<compile_context>
chip_gen: v5e
topology: v5e:2x2
jax: 0.10.0
libtpu: 0.0.40
codegen_flags: <defaults>
</compile_context>

<pallas_src>
import functools

import numpy as np
import jax
import jax.numpy as jnp
from jax.experimental import pallas as pl
from jax.experimental.pallas import tpu as pltpu


def _round_up(x, m):
    return (x + m - 1) // m * m


# ----------------------------------------------------------------------------
# Pallas kernel 1: single-pass matmul + bias + fused activation (MXU path of
# every CNN conv / transposed conv via im2col).
# ----------------------------------------------------------------------------
def _matmul_act_kernel(a_ref, w_ref, b_ref, o_ref, *, act):
    out = jnp.dot(a_ref[...], w_ref[...], preferred_element_type=jnp.float32)
    out = out + b_ref[...]
    if act == "relu":
        out = jnp.maximum(out, 0.0)
    elif act == "sigmoid":
        out = jax.nn.sigmoid(out)
    o_ref[...] = out.astype(o_ref.dtype)


def matmul_act(a, wp, bp, act=None):
    """a: (M, K) f32; wp: (K, Np) pre-padded (Np % 128 == 0); bp: (1, Np) -> (M, Np)."""
    M, K = a.shape
    K2, Np = wp.shape
    assert K == K2 and Np % 128 == 0
    TM = 128 if M >= 128 else _round_up(M, 8)
    Mp = _round_up(M, TM)
    a_p = a if Mp == M else jnp.pad(a, ((0, Mp - M), (0, 0)))

    out = pl.pallas_call(
        functools.partial(_matmul_act_kernel, act=act),
        out_shape=jax.ShapeDtypeStruct((Mp, Np), jnp.float32),
        grid_spec=pltpu.PrefetchScalarGridSpec(
            num_scalar_prefetch=0,
            grid=(Mp // TM,),
            in_specs=[
                pl.BlockSpec((TM, K), lambda i: (i, 0)),
                pl.BlockSpec((K, Np), lambda i: (0, 0)),
                pl.BlockSpec((1, Np), lambda i: (0, 0)),
            ],
            out_specs=pl.BlockSpec((TM, Np), lambda i: (i, 0)),
        ),
        compiler_params=pltpu.CompilerParams(
            dimension_semantics=("parallel",)),
    )(a_p, wp, bp)
    return out[:M] if Mp != M else out


# ----------------------------------------------------------------------------
# Pallas kernel 2: fused peephole ConvLSTM layer.  grid=(T,) ("arbitrary");
# h/c state stays resident in VMEM scratch across timesteps.  The recurrent
# 3x3 conv over h is expressed as 9 shift-matrix matmuls (S_tap @ h) @ Wh_tap,
# so no spatial reshapes are needed inside the kernel.  Gates are packed one
# per 128-lane tile (gate pitch gp) so all slices are lane-tile aligned.
# ----------------------------------------------------------------------------
def _convlstm_layer_kernel(xp_ref, wx_ref, wh_ref, b_ref, wci_ref, wcf_ref,
                           wco_ref, s_ref, h0_ref, c0_ref,
                           hseq_ref, clast_ref,
                           h_state, c_state, *, ch, gp):
    t = pl.program_id(0)

    @pl.when(t == 0)
    def _():
        h_state[...] = h0_ref[...]
        c_state[...] = c0_ref[...]

    h = h_state[...]
    c = c_state[...]

    # gate pre-activations: x-part (precomputed im2col) + recurrent h-part.
    gates = jnp.dot(xp_ref[0], wx_ref[...], preferred_element_type=jnp.float32)
    gates = gates + b_ref[...]
    for tap in range(9):
        h_sh = jnp.dot(s_ref[tap], h, preferred_element_type=jnp.float32)
        gates = gates + jnp.dot(h_sh, wh_ref[tap],
                                preferred_element_type=jnp.float32)

    cci = gates[:, 0 * gp:0 * gp + ch]
    ccf = gates[:, 1 * gp:1 * gp + ch]
    cco = gates[:, 2 * gp:2 * gp + ch]
    ccg = gates[:, 3 * gp:3 * gp + ch]

    i_g = jax.nn.sigmoid(cci + wci_ref[...] * c)
    f_g = jax.nn.sigmoid(ccf + wcf_ref[...] * c)
    g_g = jnp.tanh(ccg)
    c_next = f_g * c + i_g * g_g
    o_g = jax.nn.sigmoid(cco + wco_ref[...] * c_next)
    h_next = o_g * jnp.tanh(c_next)

    h_state[...] = h_next
    c_state[...] = c_next
    hseq_ref[0] = h_next
    clast_ref[...] = c_next


def convlstm_layer_scan(xp, wx, wh, b, wci, wcf, wco, smat, h0, c0, *, gp):
    """xp: (T, BHW, 9*Cin); returns h_seq (T, BHW, Ch), c_last (BHW, Ch)."""
    T, BHW, K9 = xp.shape
    ch = h0.shape[-1]
    kern = functools.partial(_convlstm_layer_kernel, ch=ch, gp=gp)
    h_seq, c_last = pl.pallas_call(
        kern,
        out_shape=(jax.ShapeDtypeStruct((T, BHW, ch), jnp.float32),
                   jax.ShapeDtypeStruct((BHW, ch), jnp.float32)),
        grid_spec=pltpu.PrefetchScalarGridSpec(
            num_scalar_prefetch=0,
            grid=(T,),
            in_specs=[
                pl.BlockSpec((1, BHW, K9), lambda t: (t, 0, 0)),
                pl.BlockSpec(wx.shape, lambda t: (0, 0)),
                pl.BlockSpec(wh.shape, lambda t: (0, 0, 0)),
                pl.BlockSpec(b.shape, lambda t: (0, 0)),
                pl.BlockSpec(wci.shape, lambda t: (0, 0)),
                pl.BlockSpec(wcf.shape, lambda t: (0, 0)),
                pl.BlockSpec(wco.shape, lambda t: (0, 0)),
                pl.BlockSpec(smat.shape, lambda t: (0, 0, 0)),
                pl.BlockSpec(h0.shape, lambda t: (0, 0)),
                pl.BlockSpec(c0.shape, lambda t: (0, 0)),
            ],
            out_specs=(pl.BlockSpec((1, BHW, ch), lambda t: (t, 0, 0)),
                       pl.BlockSpec((BHW, ch), lambda t: (0, 0))),
            scratch_shapes=[pltpu.VMEM((BHW, ch), jnp.float32),
                            pltpu.VMEM((BHW, ch), jnp.float32)],
        ),
        compiler_params=pltpu.CompilerParams(
            dimension_semantics=("arbitrary",)),
    )(xp, wx, wh, b, wci, wcf, wco, smat, h0, c0)
    return h_seq, c_last


# ----------------------------------------------------------------------------
# Conv glue (im2col in XLA -> Pallas matmul kernel).
# ----------------------------------------------------------------------------
def _im2col_3x3_s1(x):
    """x: (N, H, W, C) -> (N, H, W, 9*C) patches (3x3, stride 1, padding 1)."""
    N, H, W, C = x.shape
    xp = jnp.pad(x, ((0, 0), (1, 1), (1, 1), (0, 0)))
    cols = [xp[:, a:a + H, bb:bb + W, :] for a in range(3) for bb in range(3)]
    return jnp.concatenate(cols, axis=-1)


def conv3x3_s2(x, wp, bp, cout, act):
    """3x3 conv, stride 2, padding 1.  x: (N, H, W, C) -> (N, H/2, W/2, cout)."""
    N, H, W, C = x.shape
    Ho, Wo = H // 2, W // 2
    xp = jnp.pad(x, ((0, 0), (1, 1), (1, 1), (0, 0)))
    cols = [xp[:, a:a + 2 * Ho:2, bb:bb + 2 * Wo:2, :]
            for a in range(3) for bb in range(3)]
    amat = jnp.concatenate(cols, axis=-1).reshape(N * Ho * Wo, 9 * C)
    out = matmul_act(amat, wp, bp, act)[:, :cout]
    return out.reshape(N, Ho, Wo, cout)


def conv4x4_t2(x, wp, bp, cout, act):
    """ConvTranspose2d(k=4, s=2, p=1) via the 4-phase sub-pixel decomposition:
    one 3x3/stride-1 im2col + one matmul producing all 4 output phases."""
    N, H, W, C = x.shape
    amat = _im2col_3x3_s1(x).reshape(N * H * W, 9 * C)
    out = matmul_act(amat, wp, bp, act)[:, :4 * cout]      # (N*H*W, 4*cout)
    out = out.reshape(N, H, W, 2, 2, cout)
    out = out.transpose(0, 1, 3, 2, 4, 5).reshape(N, 2 * H, 2 * W, cout)
    return out


# ----------------------------------------------------------------------------
# Parameter init + one-time packing (padding / layout done once at init).
# ----------------------------------------------------------------------------
def _init_conv(key, kh, kw, cin, cout, scale=0.1):
    k_w, k_b = jax.random.split(key)
    w = jax.random.normal(k_w, (kh, kw, cin, cout), jnp.float32) * scale
    b = jax.random.normal(k_b, (cout,), jnp.float32) * scale
    return w, b


def _pack_conv(w, b):
    """(kh,kw,cin,cout) conv weight -> ((K, Np) padded matrix, (1, Np) bias, cout)."""
    kh, kw, cin, cout = w.shape
    K = kh * kw * cin
    ncols = _round_up(cout, 128)
    wp = np.zeros((K, ncols), np.float32)
    wp[:, :cout] = np.asarray(w, np.float32).reshape(K, cout)
    bp = np.zeros((1, ncols), np.float32)
    bp[0, :cout] = np.asarray(b, np.float32)
    return jnp.asarray(wp), jnp.asarray(bp), cout


def _pack_deconv(w, b):
    """4x4/stride-2/pad-1 transposed-conv weight (kh,kw,cin,cout) -> 4-phase matrix.
    Implements out[o] = sum_i x[i] * w[k] with o = 2*i - 1 + k (same math as the
    zero-dilation lowering)."""
    kh, kw, cin, cout = w.shape
    assert kh == 4 and kw == 4
    w = np.asarray(w, np.float32)
    b = np.asarray(b, np.float32)
    wall = np.zeros((3, 3, cin, 4, cout), np.float32)
    for py in range(2):
        for px in range(2):
            ph = py * 2 + px
            for i in range(2):
                for j in range(2):
                    wall[i + py, j + px, :, ph, :] = w[3 - py - 2 * i, 3 - px - 2 * j, :, :]
    K = 9 * cin
    ncols_real = 4 * cout
    ncols = _round_up(ncols_real, 128)
    wp = np.zeros((K, ncols), np.float32)
    wp[:, :ncols_real] = wall.reshape(K, ncols_real)
    bp = np.zeros((1, ncols), np.float32)
    bp[0, :ncols_real] = np.tile(b, 4)
    return jnp.asarray(wp), jnp.asarray(bp), cout


def _pack_lstm_conv(w, b, cin, ch, gp):
    """Split the ConvLSTM conv weight (3,3,cin+ch,4*ch) into x / h halves and
    spread each gate into its own gp(=128)-lane tile (padding done once)."""
    assert ch <= gp
    w = np.asarray(w, np.float32)
    b = np.asarray(b, np.float32)

    def spread(m):
        out = np.zeros(m.shape[:-1] + (4 * gp,), np.float32)
        for g in range(4):
            out[..., g * gp:g * gp + ch] = m[..., g * ch:(g + 1) * ch]
        return out

    wx = spread(w[:, :, :cin, :]).reshape(9 * cin, 4 * gp)
    wh = spread(w[:, :, cin:, :]).reshape(9, ch, 4 * gp)
    bb = spread(b.reshape(1, 4 * ch)).reshape(1, 4 * gp)
    return jnp.asarray(wx), jnp.asarray(wh), jnp.asarray(bb)


def _build_shift_mats(B, H, W):
    """(9, B*H*W, B*H*W) 0/1 matrices: S[tap] @ h_flat == zero-padded spatial shift
    of h by (tap//3 - 1, tap%3 - 1), matching the 3x3 im2col tap order."""
    n = B * H * W
    mats = np.zeros((9, n, n), np.float32)
    for a in range(3):
        for bb in range(3):
            idx = a * 3 + bb
            di, dj = a - 1, bb - 1
            for b in range(B):
                for y in range(H):
                    for x in range(W):
                        yy, xx = y + di, x + dj
                        if 0 <= yy < H and 0 <= xx < W:
                            mats[idx, b * H * W + y * W + x,
                                 b * H * W + yy * W + xx] = 1.0
    return mats


# ----------------------------------------------------------------------------
# Model.
# ----------------------------------------------------------------------------
class EncoderDecoderConvLSTM:
    def __init__(self, key, hidden_dim=16, batch_size=2, hidden_spt=4,
                 lstm_dims=(16, 16), img_size=16, img_channel=1, out_channel=1,
                 print_step=500, teacher_forcing=True):
        self.hidden_dim = hidden_dim
        self.batch_size = batch_size
        self.hidden_spt = hidden_spt
        self.lstm_dims = list(lstm_dims)
        self.img_size = img_size
        self.img_channel = img_channel
        self.out_channel = out_channel
        self.print_step = print_step
        self.teacher_forcing = teacher_forcing
        self.gate_pitch = 128   # one 128-lane tile per LSTM gate

        keys = jax.random.split(key, 6)
        enc_w1, enc_b1 = _init_conv(keys[0], 3, 3, img_channel, hidden_dim)
        enc_w2, enc_b2 = _init_conv(keys[1], 3, 3, hidden_dim, hidden_dim)
        dec_w1, dec_b1 = _init_conv(keys[2], 4, 4, hidden_dim, hidden_dim)
        dec_w2, dec_b2 = _init_conv(keys[3], 4, 4, hidden_dim, out_channel)
        self.enc1 = _pack_conv(enc_w1, enc_b1)
        self.enc2 = _pack_conv(enc_w2, enc_b2)
        self.dec1 = _pack_deconv(dec_w1, dec_b1)
        self.dec2 = _pack_deconv(dec_w2, dec_b2)

        self.lstm_encoder = self._init_convlstm(keys[4])
        self.lstm_decoder = self._init_convlstm(keys[5])

        self.shift_mats = jnp.asarray(
            _build_shift_mats(batch_size, hidden_spt, hidden_spt))

        self._compute_jit = jax.jit(
            self._compute,
            static_argnames=("x_seq_len", "future_step", "use_tf"))

    def _init_convlstm(self, key):
        layers = []
        in_dim = self.hidden_dim
        gp = self.gate_pitch
        hw = self.hidden_spt * self.hidden_spt
        lkeys = jax.random.split(key, len(self.lstm_dims))
        for l, dh in enumerate(self.lstm_dims):
            k = jax.random.split(lkeys[l], 5)
            w, b = _init_conv(k[0], 3, 3, in_dim + dh, 4 * dh)
            wci = jax.random.normal(k[1], (self.hidden_spt, self.hidden_spt, dh)) * 0.1
            wcf = jax.random.normal(k[2], (self.hidden_spt, self.hidden_spt, dh)) * 0.1
            wco = jax.random.normal(k[3], (self.hidden_spt, self.hidden_spt, dh)) * 0.1
            wx, wh, bb = _pack_lstm_conv(w, b, in_dim, dh, gp)

            def tile(m, dh=dh):  # peephole weights broadcast over batch, done once
                return jnp.asarray(np.tile(
                    np.asarray(m, np.float32).reshape(hw, dh), (self.batch_size, 1)))

            layers.append(dict(wx=wx, wh=wh, b=bb,
                               wci_t=tile(wci), wcf_t=tile(wcf), wco_t=tile(wco),
                               hid=dh))
            in_dim = dh
        return layers

    # ---- CNN encoder / decoder --------------------------------------------
    def cnn_encode(self, x):
        wp1, bp1, c1 = self.enc1
        h = conv3x3_s2(x, wp1, bp1, c1, "relu")
        wp2, bp2, c2 = self.enc2
        return conv3x3_s2(h, wp2, bp2, c2, "relu")

    def cnn_decode(self, x):
        wp1, bp1, c1 = self.dec1
        h = conv4x4_t2(x, wp1, bp1, c1, "relu")
        wp2, bp2, c2 = self.dec2
        return conv4x4_t2(h, wp2, bp2, c2, "sigmoid")   # final sigmoid fused

    # ---- ConvLSTM ----------------------------------------------------------
    def convlstm_forward(self, layers, x_seq, hidden):
        """x_seq: (B, T, H, W, Cin); hidden: list of (h, c) per layer."""
        B, T, H, W, _ = x_seq.shape
        cur = x_seq
        last_states = []
        for l, p in enumerate(layers):
            ch = p["hid"]
            h0, c0 = hidden[l]
            xf = cur.reshape(B * T, H, W, cur.shape[-1])
            patches = _im2col_3x3_s1(xf)                      # x half of concat[x, h], all T at once
            k9 = patches.shape[-1]
            xp = patches.reshape(B, T, H, W, k9).transpose(1, 0, 2, 3, 4)
            xp = xp.reshape(T, B * H * W, k9)
            h_seq, c_last = convlstm_layer_scan(
                xp, p["wx"], p["wh"], p["b"],
                p["wci_t"], p["wcf_t"], p["wco_t"],
                self.shift_mats,
                h0.reshape(B * H * W, ch), c0.reshape(B * H * W, ch),
                gp=self.gate_pitch)
            cur = h_seq.reshape(T, B, H, W, ch).transpose(1, 0, 2, 3, 4)
            last_states.append((h_seq[T - 1].reshape(B, H, W, ch),
                                c_last.reshape(B, H, W, ch)))
        return cur, last_states

    def get_init_states(self, batch_size):
        return [(jnp.zeros((batch_size, self.hidden_spt, self.hidden_spt, dh), jnp.float32),
                 jnp.zeros((batch_size, self.hidden_spt, self.hidden_spt, dh), jnp.float32))
                for dh in self.lstm_dims]

    # ---- scheduled-sampling helper -----------------------------------------
    def get_sample_prob(self, step):
        alpha = 2450
        beta = 8000
        return alpha / (alpha + np.exp((step + beta) / alpha))

    # ---- single jitted compute graph (whole forward) ------------------------
    def _compute(self, x, decisions, x_seq_len, future_step, use_tf):
        B = self.batch_size
        hs = self.hidden_spt

        prevf = x[:, :x_seq_len].reshape(-1, self.img_channel,
                                         self.img_size, self.img_size)
        prevf = jnp.transpose(prevf, (0, 2, 3, 1))            # NCHW -> NHWC
        prevf_enc = self.cnn_encode(prevf).reshape(
            B, x_seq_len, hs, hs, self.hidden_dim)

        nextf_enc = None
        if use_tf:
            nextf = x[:, x_seq_len:].reshape(-1, self.img_channel,
                                             self.img_size, self.img_size)
            nextf = jnp.transpose(nextf, (0, 2, 3, 1))
            nextf_enc = self.cnn_encode(nextf).reshape(
                B, future_step, hs, hs, self.hidden_dim)

        hidden = self.get_init_states(B)
        _, encoder_state = self.convlstm_forward(self.lstm_encoder, prevf_enc, hidden)

        decoder_outputs = []
        decoder_out, decoder_state = self.convlstm_forward(
            self.lstm_decoder, prevf_enc[:, x_seq_len - 1:x_seq_len], encoder_state)
        decoder_outputs.append(decoder_out)
        for s in range(1, future_step):
            if use_tf:
                inp = jnp.where(decisions[s] > 0, decoder_out, nextf_enc[:, s - 1:s])
            else:
                inp = decoder_out
            decoder_out, decoder_state = self.convlstm_forward(
                self.lstm_decoder, inp, decoder_state)
            decoder_outputs.append(decoder_out)

        final = jnp.concatenate(decoder_outputs, axis=1)      # (B, future, hs, hs, Ch)
        dec_in = final.reshape(B * future_step, hs, hs, final.shape[-1])
        out = self.cnn_decode(dec_in)                         # (B*future, img, img, out_c)
        out = jnp.transpose(out, (0, 3, 1, 2)).reshape(
            B, future_step, self.out_channel, self.img_size, self.img_size)
        return out

    # ---- forward ------------------------------------------------------------
    def autoencoder(self, x, x_seq_len, future_step, step, is_train=True):
        use_tf = bool(is_train and self.teacher_forcing)
        sample_prob = self.get_sample_prob(step) if use_tf else 0
        # Host-side scheduled-sampling draws (same semantics as the reference);
        # decisions feed the jitted rollout as data, not Python control flow.
        decisions = np.ones((max(future_step, 1),), np.int32)
        r_hist = []
        for s in range(1, future_step):
            r = np.random.rand()
            d = int(r > sample_prob)
            r_hist.append(d)
            decisions[s] = d

        out = self._compute_jit(x, jnp.asarray(decisions),
                                x_seq_len=x_seq_len, future_step=future_step,
                                use_tf=use_tf)

        if step % self.print_step == 0:
            output_str = ' |     Iter: {0}    |\n'.format(step)
            output_str += '-------------------------------------------\n'
            output_str += '   Sampling prob: {0:.3f}\n'.format(sample_prob)
            output_str += '   Sampling:\n'
            output_str += '    ' + str(r_hist) + '\n'
            output_str += '\n=================================================\n\n'
            print(output_str)
        return out

    def forward(self, x, future_seq=10, step=0, is_train=True):
        b, xy_seq_len, _, h, w = x.shape
        x_seq_len = xy_seq_len - future_seq
        assert b == self.batch_size
        return self.autoencoder(x, x_seq_len, future_seq, step=step, is_train=is_train)


# ----------------------------------------------------------------------------
if __name__ == "__main__":
    np.random.seed(0)
    key = jax.random.PRNGKey(0)
    k_param, k_data = jax.random.split(key)

    BATCH, SEQ_TOTAL, FUTURE = 2, 6, 3
    IMG, IMG_C, HID, HSPT = 16, 1, 16, 4

    model = EncoderDecoderConvLSTM(
        k_param, hidden_dim=HID, batch_size=BATCH, hidden_spt=HSPT,
        lstm_dims=(HID, HID), img_size=IMG, img_channel=IMG_C, out_channel=1,
        print_step=500, teacher_forcing=True)

    x = jax.random.uniform(k_data, (BATCH, SEQ_TOTAL, IMG_C, IMG, IMG), jnp.float32)

    # step=1 so the periodic debug print (step % print_step == 0) stays silent.
    out = model.forward(x, future_seq=FUTURE, step=1, is_train=True)
    out = jax.block_until_ready(out)

    assert out.shape == (BATCH, FUTURE, 1, IMG, IMG), out.shape
    assert bool(jnp.all(jnp.isfinite(out)))
    assert bool(jnp.all((out >= 0.0) & (out <= 1.0)))  # sigmoid output range
    print("KERNEL_OK")
</pallas_src>

<mosaic_0001>
module attributes {stable_mosaic.version = 11 : i64} {
  func.func @_matmul_act_kernel(%arg0: i32, %arg1: memref<128x9xf32, #tpu.memory_space<vmem>>, %arg2: memref<9x128xf32, #tpu.memory_space<vmem>>, %arg3: memref<1x128xf32, #tpu.memory_space<vmem>>, %arg4: memref<128x128xf32, #tpu.memory_space<vmem>>) attributes {dimension_semantics = [#tpu.dimension_semantics<parallel>], iteration_bounds = array<i64: 3>, scalar_prefetch = 0 : i64, scratch_operands = 0 : i64, tpu.core_type = #tpu.core_type<tc>, window_params = [{transform_indices = @transform_0, window_bounds = array<i64: 128, 9>}, {pipeline_mode = #tpu.pipeline_mode<synchronous>, transform_indices = @transform_1, window_bounds = array<i64: 9, 128>}, {pipeline_mode = #tpu.pipeline_mode<synchronous>, transform_indices = @transform_2, window_bounds = array<i64: 1, 128>}, {transform_indices = @transform_3, window_bounds = array<i64: 128, 128>}]} {
    %c0 = arith.constant 0 : index
    %c0_0 = arith.constant 0 : index
    %0 = vector.load %arg1[%c0, %c0_0] : memref<128x9xf32, #tpu.memory_space<vmem>>, vector<128x9xf32>
    %c0_1 = arith.constant 0 : index
    %c0_2 = arith.constant 0 : index
    %1 = vector.load %arg2[%c0_1, %c0_2] : memref<9x128xf32, #tpu.memory_space<vmem>>, vector<9x128xf32>
    %cst = arith.constant dense<0.000000e+00> : vector<128x128xf32>
    %2 = tpu.matmul %0, %1, %cst {dimension_numbers = #tpu.dot_dimension_numbers<[1], [0], [0], [1], [0, 0, 1, 1], [], []>} : vector<128x9xf32>, vector<9x128xf32>, vector<128x128xf32> -> vector<128x128xf32>
    %c0_3 = arith.constant 0 : index
    %c0_4 = arith.constant 0 : index
    %3 = vector.load %arg3[%c0_3, %c0_4] : memref<1x128xf32, #tpu.memory_space<vmem>>, vector<1x128xf32>
    %4 = vector.broadcast %3 : vector<1x128xf32> to vector<128x128xf32>
    %5 = arith.addf %2, %4 : vector<128x128xf32>
    %cst_5 = arith.constant 0.000000e+00 : f32
    %6 = vector.broadcast %cst_5 : f32 to vector<128x128xf32>
    %7 = arith.maximumf %5, %6 : vector<128x128xf32>
    %c0_6 = arith.constant 0 : index
    %c0_7 = arith.constant 0 : index
    %8 = vector.load %arg4[%c0_6, %c0_7] : memref<128x128xf32, #tpu.memory_space<vmem>>, vector<128x128xf32>
    tpu.vector_store %arg4[%c0_6, %c0_7], %7 {strides = array<i32>} : memref<128x128xf32, #tpu.memory_space<vmem>>, vector<128x128xf32>,
    return
  }
  func.func @transform_0(%arg0: i32) -> (i32, i32) {
    %c0_i32 = arith.constant 0 : i32
    %c0_i32_0 = arith.constant 0 : i32
    return %arg0, %c0_i32 : i32, i32
  }
  func.func @transform_1(%arg0: i32) -> (i32, i32) {
    %c0_i32 = arith.constant 0 : i32
    %c0_i32_0 = arith.constant 0 : i32
    %c0_i32_1 = arith.constant 0 : i32
    return %c0_i32, %c0_i32_0 : i32, i32
  }
  func.func @transform_2(%arg0: i32) -> (i32, i32) {
    %c0_i32 = arith.constant 0 : i32
    %c0_i32_0 = arith.constant 0 : i32
    %c0_i32_1 = arith.constant 0 : i32
    return %c0_i32, %c0_i32_0 : i32, i32
  }
  func.func @transform_3(%arg0: i32) -> (i32, i32) {
    %c0_i32 = arith.constant 0 : i32
    %c0_i32_0 = arith.constant 0 : i32
    return %arg0, %c0_i32 : i32, i32
  }
}

module attributes {stable_mosaic.version = 11 : i64} {
  func.func @_matmul_act_kernel(%arg0: i32, %arg1: memref<96x144xf32, #tpu.memory_space<vmem>>, %arg2: memref<144x128xf32, #tpu.memory_space<vmem>>, %arg3: memref<1x128xf32, #tpu.memory_space<vmem>>, %arg4: memref<96x128xf32, #tpu.memory_space<vmem>>) attributes {dimension_semantics = [#tpu.dimension_semantics<parallel>], iteration_bounds = array<i64: 1>, scalar_prefetch = 0 : i64, scratch_operands = 0 : i64, tpu.core_type = #tpu.core_type<tc>, window_params = [{transform_indices = @transform_0, window_bounds = array<i64: 96, 144>}, {pipeline_mode = #tpu.pipeline_mode<synchronous>, transform_indices = @transform_1, window_bounds = array<i64: 144, 128>}, {pipeline_mode = #tpu.pipeline_mode<synchronous>, transform_indices = @transform_2, window_bounds = array<i64: 1, 128>}, {transform_indices = @transform_3, window_bounds = array<i64: 96, 128>}]} {
    %c0 = arith.constant 0 : index
    %c0_0 = arith.constant 0 : index
    %0 = vector.load %arg1[%c0, %c0_0] : memref<96x144xf32, #tpu.memory_space<vmem>>, vector<96x144xf32>
    %c0_1 = arith.constant 0 : index
    %c0_2 = arith.constant 0 : index
    %1 = vector.load %arg2[%c0_1, %c0_2] : memref<144x128xf32, #tpu.memory_space<vmem>>, vector<144x128xf32>
    %cst = arith.constant dense<0.000000e+00> : vector<96x128xf32>
    %2 = tpu.matmul %0, %1, %cst {dimension_numbers = #tpu.dot_dimension_numbers<[1], [0], [0], [1], [0, 0, 1, 1], [], []>} : vector<96x144xf32>, vector<144x128xf32>, vector<96x128xf32> -> vector<96x128xf32>
    %c0_3 = arith.constant 0 : index
    %c0_4 = arith.constant 0 : index
    %3 = vector.load %arg3[%c0_3, %c0_4] : memref<1x128xf32, #tpu.memory_space<vmem>>, vector<1x128xf32>
    %4 = vector.broadcast %3 : vector<1x128xf32> to vector<96x128xf32>
    %5 = arith.addf %2, %4 : vector<96x128xf32>
    %cst_5 = arith.constant 0.000000e+00 : f32
    %6 = vector.broadcast %cst_5 : f32 to vector<96x128xf32>
    %7 = arith.maximumf %5, %6 : vector<96x128xf32>
    %c0_6 = arith.constant 0 : index
    %c0_7 = arith.constant 0 : index
    %8 = vector.load %arg4[%c0_6, %c0_7] : memref<96x128xf32, #tpu.memory_space<vmem>>, vector<96x128xf32>
    tpu.vector_store %arg4[%c0_6, %c0_7], %7 {strides = array<i32>} : memref<96x128xf32, #tpu.memory_space<vmem>>, vector<96x128xf32>,
    return
  }
  func.func @transform_0(%arg0: i32) -> (i32, i32) {
    %c0_i32 = arith.constant 0 : i32
    %c0_i32_0 = arith.constant 0 : i32
    return %arg0, %c0_i32 : i32, i32
  }
  func.func @transform_1(%arg0: i32) -> (i32, i32) {
    %c0_i32 = arith.constant 0 : i32
    %c0_i32_0 = arith.constant 0 : i32
    %c0_i32_1 = arith.constant 0 : i32
    return %c0_i32, %c0_i32_0 : i32, i32
  }
  func.func @transform_2(%arg0: i32) -> (i32, i32) {
    %c0_i32 = arith.constant 0 : i32
    %c0_i32_0 = arith.constant 0 : i32
    %c0_i32_1 = arith.constant 0 : i32
    return %c0_i32, %c0_i32_0 : i32, i32
  }
  func.func @transform_3(%arg0: i32) -> (i32, i32) {
    %c0_i32 = arith.constant 0 : i32
    %c0_i32_0 = arith.constant 0 : i32
    return %arg0, %c0_i32 : i32, i32
  }
}

module attributes {stable_mosaic.version = 11 : i64} {
  func.func @_convlstm_layer_kernel(%arg0: i32, %arg1: memref<1x32x144xf32, #tpu.memory_space<vmem>>, %arg2: memref<144x512xf32, #tpu.memory_space<vmem>>, %arg3: memref<9x16x512xf32, #tpu.memory_space<vmem>>, %arg4: memref<1x512xf32, #tpu.memory_space<vmem>>, %arg5: memref<32x16xf32, #tpu.memory_space<vmem>>, %arg6: memref<32x16xf32, #tpu.memory_space<vmem>>, %arg7: memref<32x16xf32, #tpu.memory_space<vmem>>, %arg8: memref<9x32x32xf32, #tpu.memory_space<vmem>>, %arg9: memref<32x16xf32, #tpu.memory_space<vmem>>, %arg10: memref<32x16xf32, #tpu.memory_space<vmem>>, %arg11: memref<1x32x16xf32, #tpu.memory_space<vmem>>, %arg12: memref<32x16xf32, #tpu.memory_space<vmem>>, %arg13: memref<32x16xf32, #tpu.memory_space<vmem>>, %arg14: memref<32x16xf32, #tpu.memory_space<vmem>>) attributes {dimension_semantics = [#tpu.dimension_semantics<arbitrary>], iteration_bounds = array<i64: 3>, scalar_prefetch = 0 : i64, scratch_operands = 2 : i64, tpu.core_type = #tpu.core_type<tc>, window_params = [{transform_indices = @transform_0, window_bounds = array<i64: 1, 32, 144>}, {pipeline_mode = #tpu.pipeline_mode<synchronous>, transform_indices = @transform_1, window_bounds = array<i64: 144, 512>}, {pipeline_mode = #tpu.pipeline_mode<synchronous>, transform_indices = @transform_2, window_bounds = array<i64: 9, 16, 512>}, {pipeline_mode = #tpu.pipeline_mode<synchronous>, transform_indices = @transform_3, window_bounds = array<i64: 1, 512>}, {pipeline_mode = #tpu.pipeline_mode<synchronous>, transform_indices = @transform_4, window_bounds = array<i64: 32, 16>}, {pipeline_mode = #tpu.pipeline_mode<synchronous>, transform_indices = @transform_5, window_bounds = array<i64: 32, 16>}, {pipeline_mode = #tpu.pipeline_mode<synchronous>, transform_indices = @transform_6, window_bounds = array<i64: 32, 16>}, {pipeline_mode = #tpu.pipeline_mode<synchronous>, transform_indices = @transform_7, window_bounds = array<i64: 9, 32, 32>}, {pipeline_mode = #tpu.pipeline_mode<synchronous>, transform_indices = @transform_8, window_bounds = array<i64: 32, 16>}, {pipeline_mode = #tpu.pipeline_mode<synchronous>, transform_indices = @transform_9, window_bounds = array<i64: 32, 16>}, {transform_indices = @transform_10, window_bounds = array<i64: 1, 32, 16>}, {pipeline_mode = #tpu.pipeline_mode<synchronous>, transform_indices = @transform_11, window_bounds = array<i64: 32, 16>}]} {
    %c0_i32 = arith.constant 0 : i32
    %0 = arith.cmpi eq, %arg0, %c0_i32 : i32
    %1 = arith.extui %0 : i1 to i32
    %c0_i32_0 = arith.constant 0 : i32
    %2 = arith.cmpi ne, %1, %c0_i32_0 : i32
    scf.if %2 {
      %c0_93 = arith.constant 0 : index
      %c0_94 = arith.constant 0 : index
      %115 = vector.load %arg9[%c0_93, %c0_94] : memref<32x16xf32, #tpu.memory_space<vmem>>, vector<32x16xf32>
      %c0_95 = arith.constant 0 : index
      %c0_96 = arith.constant 0 : index
      %116 = vector.load %arg13[%c0_95, %c0_96] : memref<32x16xf32, #tpu.memory_space<vmem>>, vector<32x16xf32>
      tpu.vector_store %arg13[%c0_95, %c0_96], %115 {strides = array<i32>} : memref<32x16xf32, #tpu.memory_space<vmem>>, vector<32x16xf32>,
      %c0_97 = arith.constant 0 : index
      %c0_98 = arith.constant 0 : index
      %117 = vector.load %arg10[%c0_97, %c0_98] : memref<32x16xf32, #tpu.memory_space<vmem>>, vector<32x16xf32>
      %c0_99 = arith.constant 0 : index
      %c0_100 = arith.constant 0 : index
      %118 = vector.load %arg14[%c0_99, %c0_100] : memref<32x16xf32, #tpu.memory_space<vmem>>, vector<32x16xf32>
      tpu.vector_store %arg14[%c0_99, %c0_100], %117 {strides = array<i32>} : memref<32x16xf32, #tpu.memory_space<vmem>>, vector<32x16xf32>,
    } else {
    }
    %c0 = arith.constant 0 : index
    %c0_1 = arith.constant 0 : index
    %3 = vector.load %arg13[%c0, %c0_1] : memref<32x16xf32, #tpu.memory_space<vmem>>, vector<32x16xf32>
    %c0_2 = arith.constant 0 : index
    %c0_3 = arith.constant 0 : index
    %4 = vector.load %arg14[%c0_2, %c0_3] : memref<32x16xf32, #tpu.memory_space<vmem>>, vector<32x16xf32>
    %c0_4 = arith.constant 0 : index
    %c0_5 = arith.constant 0 : index
    %c0_6 = arith.constant 0 : index
    %5 = vector.load %arg1[%c0_4, %c0_5, %c0_6] : memref<1x32x144xf32, #tpu.memory_space<vmem>>, vector<1x32x144xf32>
    %6 = vector.shape_cast %5 : vector<1x32x144xf32> to vector<32x144xf32>
    %c0_7 = arith.constant 0 : index
    %c0_8 = arith.constant 0 : index
    %7 = vector.load %arg2[%c0_7, %c0_8] : memref<144x512xf32, #tpu.memory_space<vmem>>, vector<144x512xf32>
    %cst = arith.constant dense<0.000000e+00> : vector<32x512xf32>
    %8 = tpu.matmul %6, %7, %cst {dimension_numbers = #tpu.dot_dimension_numbers<[1], [0], [0], [1], [0, 0, 1, 1], [], []>} : vector<32x144xf32>, vector<144x512xf32>, vector<32x512xf32> -> vector<32x512xf32>
    %c0_9 = arith.constant 0 : index
    %c0_10 = arith.constant 0 : index
    %9 = vector.load %arg4[%c0_9, %c0_10] : memref<1x512xf32, #tpu.memory_space<vmem>>, vector<1x512xf32>
    %10 = vector.broadcast %9 : vector<1x512xf32> to vector<32x512xf32>
    %11 = arith.addf %8, %10 : vector<32x512xf32>
    %c0_11 = arith.constant 0 : index
    %c0_12 = arith.constant 0 : index
    %c0_13 = arith.constant 0 : index
    %12 = vector.load %arg8[%c0_11, %c0_12, %c0_13] : memref<9x32x32xf32, #tpu.memory_space<vmem>>, vector<1x32x32xf32>
    %13 = vector.shape_cast %12 : vector<1x32x32xf32> to vector<32x32xf32>
    %cst_14 = arith.constant dense<0.000000e+00> : vector<32x16xf32>
    %14 = tpu.matmul %13, %3, %cst_14 {dimension_numbers = #tpu.dot_dimension_numbers<[1], [0], [0], [1], [0, 0, 1, 1], [], []>} : vector<32x32xf32>, vector<32x16xf32>, vector<32x16xf32> -> vector<32x16xf32>
    %c0_15 = arith.constant 0 : index
    %c0_16 = arith.constant 0 : index
    %c0_17 = arith.constant 0 : index
    %15 = vector.load %arg3[%c0_15, %c0_16, %c0_17] : memref<9x16x512xf32, #tpu.memory_space<vmem>>, vector<1x16x512xf32>
    %16 = vector.shape_cast %15 : vector<1x16x512xf32> to vector<16x512xf32>
    %cst_18 = arith.constant dense<0.000000e+00> : vector<32x512xf32>
    %17 = tpu.matmul %14, %16, %cst_18 {dimension_numbers = #tpu.dot_dimension_numbers<[1], [0], [0], [1], [0, 0, 1, 1], [], []>} : vector<32x16xf32>, vector<16x512xf32>, vector<32x512xf32> -> vector<32x512xf32>
    %18 = arith.addf %11, %17 : vector<32x512xf32>
    %c1 = arith.constant 1 : index
    %c0_19 = arith.constant 0 : index
    %c0_20 = arith.constant 0 : index
    %19 = vector.load %arg8[%c1, %c0_19, %c0_20] : memref<9x32x32xf32, #tpu.memory_space<vmem>>, vector<1x32x32xf32>
    %20 = vector.shape_cast %19 : vector<1x32x32xf32> to vector<32x32xf32>
    %cst_21 = arith.constant dense<0.000000e+00> : vector<32x16xf32>
    %21 = tpu.matmul %20, %3, %cst_21 {dimension_numbers = #tpu.dot_dimension_numbers<[1], [0], [0], [1], [0, 0, 1, 1], [], []>} : vector<32x32xf32>, vector<32x16xf32>, vector<32x16xf32> -> vector<32x16xf32>
    %c1_22 = arith.constant 1 : index
    %c0_23 = arith.constant 0 : index
    %c0_24 = arith.constant 0 : index
    %22 = vector.load %arg3[%c1_22, %c0_23, %c0_24] : memref<9x16x512xf32, #tpu.memory_space<vmem>>, vector<1x16x512xf32>
    %23 = vector.shape_cast %22 : vector<1x16x512xf32> to vector<16x512xf32>
    %cst_25 = arith.constant dense<0.000000e+00> : vector<32x512xf32>
    %24 = tpu.matmul %21, %23, %cst_25 {dimension_numbers = #tpu.dot_dimension_numbers<[1], [0], [0], [1], [0, 0, 1, 1], [], []>} : vector<32x16xf32>, vector<16x512xf32>, vector<32x512xf32> -> vector<32x512xf32>
    %25 = arith.addf %18, %24 : vector<32x512xf32>
    %c2 = arith.constant 2 : index
    %c0_26 = arith.constant 0 : index
    %c0_27 = arith.constant 0 : index
    %26 = vector.load %arg8[%c2, %c0_26, %c0_27] : memref<9x32x32xf32, #tpu.memory_space<vmem>>, vector<1x32x32xf32>
    %27 = vector.shape_cast %26 : vector<1x32x32xf32> to vector<32x32xf32>
    %cst_28 = arith.constant dense<0.000000e+00> : vector<32x16xf32>
    %28 = tpu.matmul %27, %3, %cst_28 {dimension_numbers = #tpu.dot_dimension_numbers<[1], [0], [0], [1], [0, 0, 1, 1], [], []>} : vector<32x32xf32>, vector<32x16xf32>, vector<32x16xf32> -> vector<32x16xf32>
    %c2_29 = arith.constant 2 : index
    %c0_30 = arith.constant 0 : index
    %c0_31 = arith.constant 0 : index
    %29 = vector.load %arg3[%c2_29, %c0_30, %c0_31] : memref<9x16x512xf32, #tpu.memory_space<vmem>>, vector<1x16x512xf32>
    %30 = vector.shape_cast %29 : vector<1x16x512xf32> to vector<16x512xf32>
    %cst_32 = arith.constant dense<0.000000e+00> : vector<32x512xf32>
    %31 = tpu.matmul %28, %30, %cst_32 {dimension_numbers = #tpu.dot_dimension_numbers<[1], [0], [0], [1], [0, 0, 1, 1], [], []>} : vector<32x16xf32>, vector<16x512xf32>, vector<32x512xf32> -> vector<32x512xf32>
    %32 = arith.addf %25, %31 : vector<32x512xf32>
    %c3 = arith.constant 3 : index
    %c0_33 = arith.constant 0 : index
    %c0_34 = arith.constant 0 : index
    %33 = vector.load %arg8[%c3, %c0_33, %c0_34] : memref<9x32x32xf32, #tpu.memory_space<vmem>>, vector<1x32x32xf32>
    %34 = vector.shape_cast %33 : vector<1x32x32xf32> to vector<32x32xf32>
    %cst_35 = arith.constant dense<0.000000e+00> : vector<32x16xf32>
    %35 = tpu.matmul %34, %3, %cst_35 {dimension_numbers = #tpu.dot_dimension_numbers<[1], [0], [0], [1], [0, 0, 1, 1], [], []>} : vector<32x32xf32>, vector<32x16xf32>, vector<32x16xf32> -> vector<32x16xf32>
    %c3_36 = arith.constant 3 : index
    %c0_37 = arith.constant 0 : index
    %c0_38 = arith.constant 0 : index
    %36 = vector.load %arg3[%c3_36, %c0_37, %c0_38] : memref<9x16x512xf32, #tpu.memory_space<vmem>>, vector<1x16x512xf32>
    %37 = vector.shape_cast %36 : vector<1x16x512xf32> to vector<16x512xf32>
    %cst_39 = arith.constant dense<0.000000e+00> : vector<32x512xf32>
    %38 = tpu.matmul %35, %37, %cst_39 {dimension_numbers = #tpu.dot_dimension_numbers<[1], [0], [0], [1], [0, 0, 1, 1], [], []>} : vector<32x16xf32>, vector<16x512xf32>, vector<32x512xf32> -> vector<32x512xf32>
    %39 = arith.addf %32, %38 : vector<32x512xf32>
    %c4 = arith.constant 4 : index
    %c0_40 = arith.constant 0 : index
    %c0_41 = arith.constant 0 : index
    %40 = vector.load %arg8[%c4, %c0_40, %c0_41] : memref<9x32x32xf32, #tpu.memory_space<vmem>>, vector<1x32x32xf32>
    %41 = vector.shape_cast %40 : vector<1x32x32xf32> to vector<32x32xf32>
    %cst_42 = arith.constant dense<0.000000e+00> : vector<32x16xf32>
    %42 = tpu.matmul %41, %3, %cst_42 {dimension_numbers = #tpu.dot_dimension_numbers<[1], [0], [0], [1], [0, 0, 1, 1], [], []>} : vector<32x32xf32>, vector<32x16xf32>, vector<32x16xf32> -> vector<32x16xf32>
    %c4_43 = arith.constant 4 : index
    %c0_44 = arith.constant 0 : index
    %c0_45 = arith.constant 0 : index
    %43 = vector.load %arg3[%c4_43, %c0_44, %c0_45] : memref<9x16x512xf32, #tpu.memory_space<vmem>>, vector<1x16x512xf32>
    %44 = vector.shape_cast %43 : vector<1x16x512xf32> to vector<16x512xf32>
    %cst_46 = arith.constant dense<0.000000e+00> : vector<32x512xf32>
    %45 = tpu.matmul %42, %44, %cst_46 {dimension_numbers = #tpu.dot_dimension_numbers<[1], [0], [0], [1], [0, 0, 1, 1], [], []>} : vector<32x16xf32>, vector<16x512xf32>, vector<32x512xf32> -> vector<32x512xf32>
    %46 = arith.addf %39, %45 : vector<32x512xf32>
    %c5 = arith.constant 5 : index
    %c0_47 = arith.constant 0 : index
    %c0_48 = arith.constant 0 : index
    %47 = vector.load %arg8[%c5, %c0_47, %c0_48] : memref<9x32x32xf32, #tpu.memory_space<vmem>>, vector<1x32x32xf32>
    %48 = vector.shape_cast %47 : vector<1x32x32xf32> to vector<32x32xf32>
    %cst_49 = arith.constant dense<0.000000e+00> : vector<32x16xf32>
    %49 = tpu.matmul %48, %3, %cst_49 {dimension_numbers = #tpu.dot_dimension_numbers<[1], [0], [0], [1], [0, 0, 1, 1], [], []>} : vector<32x32xf32>, vector<32x16xf32>, vector<32x16xf32> -> vector<32x16xf32>
    %c5_50 = arith.constant 5 : index
    %c0_51 = arith.constant 0 : index
    %c0_52 = arith.constant 0 : index
    %50 = vector.load %arg3[%c5_50, %c0_51, %c0_52] : memref<9x16x512xf32, #tpu.memory_space<vmem>>, vector<1x16x512xf32>
    %51 = vector.shape_cast %50 : vector<1x16x512xf32> to vector<16x512xf32>
    %cst_53 = arith.constant dense<0.000000e+00> : vector<32x512xf32>
    %52 = tpu.matmul %49, %51, %cst_53 {dimension_numbers = #tpu.dot_dimension_numbers<[1], [0], [0], [1], [0, 0, 1, 1], [], []>} : vector<32x16xf32>, vector<16x512xf32>, vector<32x512xf32> -> vector<32x512xf32>
    %53 = arith.addf %46, %52 : vector<32x512xf32>
    %c6 = arith.constant 6 : index
    %c0_54 = arith.constant 0 : index
    %c0_55 = arith.constant 0 : index
    %54 = vector.load %arg8[%c6, %c0_54, %c0_55] : memref<9x32x32xf32, #tpu.memory_space<vmem>>, vector<1x32x32xf32>
    %55 = vector.shape_cast %54 : vector<1x32x32xf32> to vector<32x32xf32>
    %cst_56 = arith.constant dense<0.000000e+00> : vector<32x16xf32>
    %56 = tpu.matmul %55, %3, %cst_56 {dimension_numbers = #tpu.dot_dimension_numbers<[1], [0], [0], [1], [0, 0, 1, 1], [], []>} : vector<32x32xf32>, vector<32x16xf32>, vector<32x16xf32> -> vector<32x16xf32>
    %c6_57 = arith.constant 6 : index
    %c0_58 = arith.constant 0 : index
    %c0_59 = arith.constant 0 : index
    %57 = vector.load %arg3[%c6_57, %c0_58, %c0_59] : memref<9x16x512xf32, #tpu.memory_space<vmem>>, vector<1x16x512xf32>
    %58 = vector.shape_cast %57 : vector<1x16x512xf32> to vector<16x512xf32>
    %cst_60 = arith.constant dense<0.000000e+00> : vector<32x512xf32>
    %59 = tpu.matmul %56, %58, %cst_60 {dimension_numbers = #tpu.dot_dimension_numbers<[1], [0], [0], [1], [0, 0, 1, 1], [], []>} : vector<32x16xf32>, vector<16x512xf32>, vector<32x512xf32> -> vector<32x512xf32>
    %60 = arith.addf %53, %59 : vector<32x512xf32>
    %c7 = arith.constant 7 : index
    %c0_61 = arith.constant 0 : index
    %c0_62 = arith.constant 0 : index
    %61 = vector.load %arg8[%c7, %c0_61, %c0_62] : memref<9x32x32xf32, #tpu.memory_space<vmem>>, vector<1x32x32xf32>
    %62 = vector.shape_cast %61 : vector<1x32x32xf32> to vector<32x32xf32>
    %cst_63 = arith.constant dense<0.000000e+00> : vector<32x16xf32>
    %63 = tpu.matmul %62, %3, %cst_63 {dimension_numbers = #tpu.dot_dimension_numbers<[1], [0], [0], [1], [0, 0, 1, 1], [], []>} : vector<32x32xf32>, vector<32x16xf32>, vector<32x16xf32> -> vector<32x16xf32>
    %c7_64 = arith.constant 7 : index
    %c0_65 = arith.constant 0 : index
    %c0_66 = arith.constant 0 : index
    %64 = vector.load %arg3[%c7_64, %c0_65, %c0_66] : memref<9x16x512xf32, #tpu.memory_space<vmem>>, vector<1x16x512xf32>
    %65 = vector.shape_cast %64 : vector<1x16x512xf32> to vector<16x512xf32>
    %cst_67 = arith.constant dense<0.000000e+00> : vector<32x512xf32>
    %66 = tpu.matmul %63, %65, %cst_67 {dimension_numbers = #tpu.dot_dimension_numbers<[1], [0], [0], [1], [0, 0, 1, 1], [], []>} : vector<32x16xf32>, vector<16x512xf32>, vector<32x512xf32> -> vector<32x512xf32>
    %67 = arith.addf %60, %66 : vector<32x512xf32>
    %c8 = arith.constant 8 : index
    %c0_68 = arith.constant 0 : index
    %c0_69 = arith.constant 0 : index
    %68 = vector.load %arg8[%c8, %c0_68, %c0_69] : memref<9x32x32xf32, #tpu.memory_space<vmem>>, vector<1x32x32xf32>
    %69 = vector.shape_cast %68 : vector<1x32x32xf32> to vector<32x32xf32>
    %cst_70 = arith.constant dense<0.000000e+00> : vector<32x16xf32>
    %70 = tpu.matmul %69, %3, %cst_70 {dimension_numbers = #tpu.dot_dimension_numbers<[1], [0], [0], [1], [0, 0, 1, 1], [], []>} : vector<32x32xf32>, vector<32x16xf32>, vector<32x16xf32> -> vector<32x16xf32>
    %c8_71 = arith.constant 8 : index
    %c0_72 = arith.constant 0 : index
    %c0_73 = arith.constant 0 : index
    %71 = vector.load %arg3[%c8_71, %c0_72, %c0_73] : memref<9x16x512xf32, #tpu.memory_space<vmem>>, vector<1x16x512xf32>
    %72 = vector.shape_cast %71 : vector<1x16x512xf32> to vector<16x512xf32>
    %cst_74 = arith.constant dense<0.000000e+00> : vector<32x512xf32>
    %73 = tpu.matmul %70, %72, %cst_74 {dimension_numbers = #tpu.dot_dimension_numbers<[1], [0], [0], [1], [0, 0, 1, 1], [], []>} : vector<32x16xf32>, vector<16x512xf32>, vector<32x512xf32> -> vector<32x512xf32>
    %74 = arith.addf %67, %73 : vector<32x512xf32>
    %75 = vector.extract_strided_slice %74 {offsets = [0, 0], sizes = [32, 16], strides = [1, 1]} : vector<32x512xf32> to vector<32x16xf32>
    %76 = vector.extract_strided_slice %74 {offsets = [0, 128], sizes = [32, 16], strides = [1, 1]} : vector<32x512xf32> to vector<32x16xf32>
    %77 = vector.extract_strided_slice %74 {offsets = [0, 256], sizes = [32, 16], strides = [1, 1]} : vector<32x512xf32> to vector<32x16xf32>
    %78 = vector.extract_strided_slice %74 {offsets = [0, 384], sizes = [32, 16], strides = [1, 1]} : vector<32x512xf32> to vector<32x16xf32>
    %c0_75 = arith.constant 0 : index
    %c0_76 = arith.constant 0 : index
    %79 = vector.load %arg5[%c0_75, %c0_76] : memref<32x16xf32, #tpu.memory_space<vmem>>, vector<32x16xf32>
    %80 = arith.mulf %79, %4 : vector<32x16xf32>
    %81 = arith.addf %75, %80 : vector<32x16xf32>
    %82 = arith.negf %81 : vector<32x16xf32>
    %83 = math.exp %82 : vector<32x16xf32>
    %cst_77 = arith.constant 1.000000e+00 : f32
    %84 = vector.broadcast %cst_77 : f32 to vector<32x16xf32>
    %85 = arith.addf %84, %83 : vector<32x16xf32>
    %86 = arith.divf %84, %85 : vector<32x16xf32>
    %c0_78 = arith.constant 0 : index
    %c0_79 = arith.constant 0 : index
    %87 = vector.load %arg6[%c0_78, %c0_79] : memref<32x16xf32, #tpu.memory_space<vmem>>, vector<32x16xf32>
    %88 = arith.mulf %87, %4 : vector<32x16xf32>
    %89 = arith.addf %76, %88 : vector<32x16xf32>
    %90 = arith.negf %89 : vector<32x16xf32>
    %91 = math.exp %90 : vector<32x16xf32>
    %cst_80 = arith.constant 1.000000e+00 : f32
    %92 = vector.broadcast %cst_80 : f32 to vector<32x16xf32>
    %93 = arith.addf %92, %91 : vector<32x16xf32>
    %94 = arith.divf %92, %93 : vector<32x16xf32>
    %95 = math.tanh %78 : vector<32x16xf32>
    %96 = arith.mulf %94, %4 : vector<32x16xf32>
    %97 = arith.mulf %86, %95 : vector<32x16xf32>
    %98 = arith.addf %96, %97 : vector<32x16xf32>
    %c0_81 = arith.constant 0 : index
    %c0_82 = arith.constant 0 : index
    %99 = vector.load %arg7[%c0_81, %c0_82] : memref<32x16xf32, #tpu.memory_space<vmem>>, vector<32x16xf32>
    %100 = arith.mulf %99, %98 : vector<32x16xf32>
    %101 = arith.addf %77, %100 : vector<32x16xf32>
    %102 = arith.negf %101 : vector<32x16xf32>
    %103 = math.exp %102 : vector<32x16xf32>
    %cst_83 = arith.constant 1.000000e+00 : f32
    %104 = vector.broadcast %cst_83 : f32 to vector<32x16xf32>
    %105 = arith.addf %104, %103 : vector<32x16xf32>
    %106 = arith.divf %104, %105 : vector<32x16xf32>
    %107 = math.tanh %98 : vector<32x16xf32>
    %108 = arith.mulf %106, %107 : vector<32x16xf32>
    %c0_84 = arith.constant 0 : index
    %c0_85 = arith.constant 0 : index
    %109 = vector.load %arg13[%c0_84, %c0_85] : memref<32x16xf32, #tpu.memory_space<vmem>>, vector<32x16xf32>
    tpu.vector_store %arg13[%c0_84, %c0_85], %108 {strides = array<i32>} : memref<32x16xf32, #tpu.memory_space<vmem>>, vector<32x16xf32>,
    %c0_86 = arith.constant 0 : index
    %c0_87 = arith.constant 0 : index
    %110 = vector.load %arg14[%c0_86, %c0_87] : memref<32x16xf32, #tpu.memory_space<vmem>>, vector<32x16xf32>
    tpu.vector_store %arg14[%c0_86, %c0_87], %98 {strides = array<i32>} : memref<32x16xf32, #tpu.memory_space<vmem>>, vector<32x16xf32>,
    %c0_88 = arith.constant 0 : index
    %c0_89 = arith.constant 0 : index
    %c0_90 = arith.constant 0 : index
    %111 = vector.load %arg11[%c0_88, %c0_89, %c0_90] : memref<1x32x16xf32, #tpu.memory_space<vmem>>, vector<1x32x16xf32>
    %112 = vector.shape_cast %111 : vector<1x32x16xf32> to vector<32x16xf32>
    %113 = vector.shape_cast %108 : vector<32x16xf32> to vector<1x32x16xf32>
    tpu.vector_store %arg11[%c0_88, %c0_89, %c0_90], %113 {strides = array<i32>} : memref<1x32x16xf32, #tpu.memory_space<vmem>>, vector<1x32x16xf32>,
    %c0_91 = arith.constant 0 : index
    %c0_92 = arith.constant 0 : index
    %114 = vector.load %arg12[%c0_91, %c0_92] : memref<32x16xf32, #tpu.memory_space<vmem>>, vector<32x16xf32>
    tpu.vector_store %arg12[%c0_91, %c0_92], %98 {strides = array<i32>} : memref<32x16xf32, #tpu.memory_space<vmem>>, vector<32x16xf32>,
    return
  }
  func.func @transform_0(%arg0: i32) -> (i32, i32, i32) {
    %c0_i32 = arith.constant 0 : i32
    %c0_i32_0 = arith.constant 0 : i32
    %c0_i32_1 = arith.constant 0 : i32
    return %arg0, %c0_i32, %c0_i32_0 : i32, i32, i32
  }
  func.func @transform_1(%arg0: i32) -> (i32, i32) {
    %c0_i32 = arith.constant 0 : i32
    %c0_i32_0 = arith.constant 0 : i32
    %c0_i32_1 = arith.constant 0 : i32
    return %c0_i32, %c0_i32_0 : i32, i32
  }
  func.func @transform_2(%arg0: i32) -> (i32, i32, i32) {
    %c0_i32 = arith.constant 0 : i32
    %c0_i32_0 = arith.constant 0 : i32
    %c0_i32_1 = arith.constant 0 : i32
    %c0_i32_2 = arith.constant 0 : i32
    return %c0_i32, %c0_i32_0, %c0_i32_1 : i32, i32, i32
  }
  func.func @transform_3(%arg0: i32) -> (i32, i32) {
    %c0_i32 = arith.constant 0 : i32
    %c0_i32_0 = arith.constant 0 : i32
    %c0_i32_1 = arith.constant 0 : i32
    return %c0_i32, %c0_i32_0 : i32, i32
  }
  func.func @transform_4(%arg0: i32) -> (i32, i32) {
    %c0_i32 = arith.constant 0 : i32
    %c0_i32_0 = arith.constant 0 : i32
    %c0_i32_1 = arith.constant 0 : i32
    return %c0_i32, %c0_i32_0 : i32, i32
  }
  func.func @transform_5(%arg0: i32) -> (i32, i32) {
    %c0_i32 = arith.constant 0 : i32
    %c0_i32_0 = arith.constant 0 : i32
    %c0_i32_1 = arith.constant 0 : i32
    return %c0_i32, %c0_i32_0 : i32, i32
  }
  func.func @transform_6(%arg0: i32) -> (i32, i32) {
    %c0_i32 = arith.constant 0 : i32
    %c0_i32_0 = arith.constant 0 : i32
    %c0_i32_1 = arith.constant 0 : i32
    return %c0_i32, %c0_i32_0 : i32, i32
  }
  func.func @transform_7(%arg0: i32) -> (i32, i32, i32) {
    %c0_i32 = arith.constant 0 : i32
    %c0_i32_0 = arith.constant 0 : i32
    %c0_i32_1 = arith.constant 0 : i32
    %c0_i32_2 = arith.constant 0 : i32
    return %c0_i32, %c0_i32_0, %c0_i32_1 : i32, i32, i32
  }
  func.func @transform_8(%arg0: i32) -> (i32, i32) {
    %c0_i32 = arith.constant 0 : i32
    %c0_i32_0 = arith.constant 0 : i32
    %c0_i32_1 = arith.constant 0 : i32
    return %c0_i32, %c0_i32_0 : i32, i32
  }
  func.func @transform_9(%arg0: i32) -> (i32, i32) {
    %c0_i32 = arith.constant 0 : i32
    %c0_i32_0 = arith.constant 0 : i32
    %c0_i32_1 = arith.constant 0 : i32
    return %c0_i32, %c0_i32_0 : i32, i32
  }
  func.func @transform_10(%arg0: i32) -> (i32, i32, i32) {
    %c0_i32 = arith.constant 0 : i32
    %c0_i32_0 = arith.constant 0 : i32
    %c0_i32_1 = arith.constant 0 : i32
    return %arg0, %c0_i32, %c0_i32_0 : i32, i32, i32
  }
  func.func @transform_11(%arg0: i32) -> (i32, i32) {
    %c0_i32 = arith.constant 0 : i32
    %c0_i32_0 = arith.constant 0 : i32
    %c0_i32_1 = arith.constant 0 : i32
    return %c0_i32, %c0_i32_0 : i32, i32
  }
}

module attributes {stable_mosaic.version = 11 : i64} {
  func.func @_convlstm_layer_kernel(%arg0: i32, %arg1: memref<1x32x144xf32, #tpu.memory_space<vmem>>, %arg2: memref<144x512xf32, #tpu.memory_space<vmem>>, %arg3: memref<9x16x512xf32, #tpu.memory_space<vmem>>, %arg4: memref<1x512xf32, #tpu.memory_space<vmem>>, %arg5: memref<32x16xf32, #tpu.memory_space<vmem>>, %arg6: memref<32x16xf32, #tpu.memory_space<vmem>>, %arg7: memref<32x16xf32, #tpu.memory_space<vmem>>, %arg8: memref<9x32x32xf32, #tpu.memory_space<vmem>>, %arg9: memref<32x16xf32, #tpu.memory_space<vmem>>, %arg10: memref<32x16xf32, #tpu.memory_space<vmem>>, %arg11: memref<1x32x16xf32, #tpu.memory_space<vmem>>, %arg12: memref<32x16xf32, #tpu.memory_space<vmem>>, %arg13: memref<32x16xf32, #tpu.memory_space<vmem>>, %arg14: memref<32x16xf32, #tpu.memory_space<vmem>>) attributes {dimension_semantics = [#tpu.dimension_semantics<arbitrary>], iteration_bounds = array<i64: 1>, scalar_prefetch = 0 : i64, scratch_operands = 2 : i64, tpu.core_type = #tpu.core_type<tc>, window_params = [{transform_indices = @transform_0, window_bounds = array<i64: 1, 32, 144>}, {pipeline_mode = #tpu.pipeline_mode<synchronous>, transform_indices = @transform_1, window_bounds = array<i64: 144, 512>}, {pipeline_mode = #tpu.pipeline_mode<synchronous>, transform_indices = @transform_2, window_bounds = array<i64: 9, 16, 512>}, {pipeline_mode = #tpu.pipeline_mode<synchronous>, transform_indices = @transform_3, window_bounds = array<i64: 1, 512>}, {pipeline_mode = #tpu.pipeline_mode<synchronous>, transform_indices = @transform_4, window_bounds = array<i64: 32, 16>}, {pipeline_mode = #tpu.pipeline_mode<synchronous>, transform_indices = @transform_5, window_bounds = array<i64: 32, 16>}, {pipeline_mode = #tpu.pipeline_mode<synchronous>, transform_indices = @transform_6, window_bounds = array<i64: 32, 16>}, {pipeline_mode = #tpu.pipeline_mode<synchronous>, transform_indices = @transform_7, window_bounds = array<i64: 9, 32, 32>}, {pipeline_mode = #tpu.pipeline_mode<synchronous>, transform_indices = @transform_8, window_bounds = array<i64: 32, 16>}, {pipeline_mode = #tpu.pipeline_mode<synchronous>, transform_indices = @transform_9, window_bounds = array<i64: 32, 16>}, {transform_indices = @transform_10, window_bounds = array<i64: 1, 32, 16>}, {pipeline_mode = #tpu.pipeline_mode<synchronous>, transform_indices = @transform_11, window_bounds = array<i64: 32, 16>}]} {
    %c0_i32 = arith.constant 0 : i32
    %0 = arith.cmpi eq, %arg0, %c0_i32 : i32
    %1 = arith.extui %0 : i1 to i32
    %c0_i32_0 = arith.constant 0 : i32
    %2 = arith.cmpi ne, %1, %c0_i32_0 : i32
    scf.if %2 {
      %c0_93 = arith.constant 0 : index
      %c0_94 = arith.constant 0 : index
      %115 = vector.load %arg9[%c0_93, %c0_94] : memref<32x16xf32, #tpu.memory_space<vmem>>, vector<32x16xf32>
      %c0_95 = arith.constant 0 : index
      %c0_96 = arith.constant 0 : index
      %116 = vector.load %arg13[%c0_95, %c0_96] : memref<32x16xf32, #tpu.memory_space<vmem>>, vector<32x16xf32>
      tpu.vector_store %arg13[%c0_95, %c0_96], %115 {strides = array<i32>} : memref<32x16xf32, #tpu.memory_space<vmem>>, vector<32x16xf32>,
      %c0_97 = arith.constant 0 : index
      %c0_98 = arith.constant 0 : index
      %117 = vector.load %arg10[%c0_97, %c0_98] : memref<32x16xf32, #tpu.memory_space<vmem>>, vector<32x16xf32>
      %c0_99 = arith.constant 0 : index
      %c0_100 = arith.constant 0 : index
      %118 = vector.load %arg14[%c0_99, %c0_100] : memref<32x16xf32, #tpu.memory_space<vmem>>, vector<32x16xf32>
      tpu.vector_store %arg14[%c0_99, %c0_100], %117 {strides = array<i32>} : memref<32x16xf32, #tpu.memory_space<vmem>>, vector<32x16xf32>,
    } else {
    }
    %c0 = arith.constant 0 : index
    %c0_1 = arith.constant 0 : index
    %3 = vector.load %arg13[%c0, %c0_1] : memref<32x16xf32, #tpu.memory_space<vmem>>, vector<32x16xf32>
    %c0_2 = arith.constant 0 : index
    %c0_3 = arith.constant 0 : index
    %4 = vector.load %arg14[%c0_2, %c0_3] : memref<32x16xf32, #tpu.memory_space<vmem>>, vector<32x16xf32>
    %c0_4 = arith.constant 0 : index
    %c0_5 = arith.constant 0 : index
    %c0_6 = arith.constant 0 : index
    %5 = vector.load %arg1[%c0_4, %c0_5, %c0_6] : memref<1x32x144xf32, #tpu.memory_space<vmem>>, vector<1x32x144xf32>
    %6 = vector.shape_cast %5 : vector<1x32x144xf32> to vector<32x144xf32>
    %c0_7 = arith.constant 0 : index
    %c0_8 = arith.constant 0 : index
    %7 = vector.load %arg2[%c0_7, %c0_8] : memref<144x512xf32, #tpu.memory_space<vmem>>, vector<144x512xf32>
    %cst = arith.constant dense<0.000000e+00> : vector<32x512xf32>
    %8 = tpu.matmul %6, %7, %cst {dimension_numbers = #tpu.dot_dimension_numbers<[1], [0], [0], [1], [0, 0, 1, 1], [], []>} : vector<32x144xf32>, vector<144x512xf32>, vector<32x512xf32> -> vector<32x512xf32>
    %c0_9 = arith.constant 0 : index
    %c0_10 = arith.constant 0 : index
    %9 = vector.load %arg4[%c0_9, %c0_10] : memref<1x512xf32, #tpu.memory_space<vmem>>, vector<1x512xf32>
    %10 = vector.broadcast %9 : vector<1x512xf32> to vector<32x512xf32>
    %11 = arith.addf %8, %10 : vector<32x512xf32>
    %c0_11 = arith.constant 0 : index
    %c0_12 = arith.constant 0 : index
    %c0_13 = arith.constant 0 : index
    %12 = vector.load %arg8[%c0_11, %c0_12, %c0_13] : memref<9x32x32xf32, #tpu.memory_space<vmem>>, vector<1x32x32xf32>
    %13 = vector.shape_cast %12 : vector<1x32x32xf32> to vector<32x32xf32>
    %cst_14 = arith.constant dense<0.000000e+00> : vector<32x16xf32>
    %14 = tpu.matmul %13, %3, %cst_14 {dimension_numbers = #tpu.dot_dimension_numbers<[1], [0], [0], [1], [0, 0, 1, 1], [], []>} : vector<32x32xf32>, vector<32x16xf32>, vector<32x16xf32> -> vector<32x16xf32>
    %c0_15 = arith.constant 0 : index
    %c0_16 = arith.constant 0 : index
    %c0_17 = arith.constant 0 : index
    %15 = vector.load %arg3[%c0_15, %c0_16, %c0_17] : memref<9x16x512xf32, #tpu.memory_space<vmem>>, vector<1x16x512xf32>
    %16 = vector.shape_cast %15 : vector<1x16x512xf32> to vector<16x512xf32>
    %cst_18 = arith.constant dense<0.000000e+00> : vector<32x512xf32>
    %17 = tpu.matmul %14, %16, %cst_18 {dimension_numbers = #tpu.dot_dimension_numbers<[1], [0], [0], [1], [0, 0, 1, 1], [], []>} : vector<32x16xf32>, vector<16x512xf32>, vector<32x512xf32> -> vector<32x512xf32>
    %18 = arith.addf %11, %17 : vector<32x512xf32>
    %c1 = arith.constant 1 : index
    %c0_19 = arith.constant 0 : index
    %c0_20 = arith.constant 0 : index
    %19 = vector.load %arg8[%c1, %c0_19, %c0_20] : memref<9x32x32xf32, #tpu.memory_space<vmem>>, vector<1x32x32xf32>
    %20 = vector.shape_cast %19 : vector<1x32x32xf32> to vector<32x32xf32>
    %cst_21 = arith.constant dense<0.000000e+00> : vector<32x16xf32>
    %21 = tpu.matmul %20, %3, %cst_21 {dimension_numbers = #tpu.dot_dimension_numbers<[1], [0], [0], [1], [0, 0, 1, 1], [], []>} : vector<32x32xf32>, vector<32x16xf32>, vector<32x16xf32> -> vector<32x16xf32>
    %c1_22 = arith.constant 1 : index
    %c0_23 = arith.constant 0 : index
    %c0_24 = arith.constant 0 : index
    %22 = vector.load %arg3[%c1_22, %c0_23, %c0_24] : memref<9x16x512xf32, #tpu.memory_space<vmem>>, vector<1x16x512xf32>
    %23 = vector.shape_cast %22 : vector<1x16x512xf32> to vector<16x512xf32>
    %cst_25 = arith.constant dense<0.000000e+00> : vector<32x512xf32>
    %24 = tpu.matmul %21, %23, %cst_25 {dimension_numbers = #tpu.dot_dimension_numbers<[1], [0], [0], [1], [0, 0, 1, 1], [], []>} : vector<32x16xf32>, vector<16x512xf32>, vector<32x512xf32> -> vector<32x512xf32>
    %25 = arith.addf %18, %24 : vector<32x512xf32>
    %c2 = arith.constant 2 : index
    %c0_26 = arith.constant 0 : index
    %c0_27 = arith.constant 0 : index
    %26 = vector.load %arg8[%c2, %c0_26, %c0_27] : memref<9x32x32xf32, #tpu.memory_space<vmem>>, vector<1x32x32xf32>
    %27 = vector.shape_cast %26 : vector<1x32x32xf32> to vector<32x32xf32>
    %cst_28 = arith.constant dense<0.000000e+00> : vector<32x16xf32>
    %28 = tpu.matmul %27, %3, %cst_28 {dimension_numbers = #tpu.dot_dimension_numbers<[1], [0], [0], [1], [0, 0, 1, 1], [], []>} : vector<32x32xf32>, vector<32x16xf32>, vector<32x16xf32> -> vector<32x16xf32>
    %c2_29 = arith.constant 2 : index
    %c0_30 = arith.constant 0 : index
    %c0_31 = arith.constant 0 : index
    %29 = vector.load %arg3[%c2_29, %c0_30, %c0_31] : memref<9x16x512xf32, #tpu.memory_space<vmem>>, vector<1x16x512xf32>
    %30 = vector.shape_cast %29 : vector<1x16x512xf32> to vector<16x512xf32>
    %cst_32 = arith.constant dense<0.000000e+00> : vector<32x512xf32>
    %31 = tpu.matmul %28, %30, %cst_32 {dimension_numbers = #tpu.dot_dimension_numbers<[1], [0], [0], [1], [0, 0, 1, 1], [], []>} : vector<32x16xf32>, vector<16x512xf32>, vector<32x512xf32> -> vector<32x512xf32>
    %32 = arith.addf %25, %31 : vector<32x512xf32>
    %c3 = arith.constant 3 : index
    %c0_33 = arith.constant 0 : index
    %c0_34 = arith.constant 0 : index
    %33 = vector.load %arg8[%c3, %c0_33, %c0_34] : memref<9x32x32xf32, #tpu.memory_space<vmem>>, vector<1x32x32xf32>
    %34 = vector.shape_cast %33 : vector<1x32x32xf32> to vector<32x32xf32>
    %cst_35 = arith.constant dense<0.000000e+00> : vector<32x16xf32>
    %35 = tpu.matmul %34, %3, %cst_35 {dimension_numbers = #tpu.dot_dimension_numbers<[1], [0], [0], [1], [0, 0, 1, 1], [], []>} : vector<32x32xf32>, vector<32x16xf32>, vector<32x16xf32> -> vector<32x16xf32>
    %c3_36 = arith.constant 3 : index
    %c0_37 = arith.constant 0 : index
    %c0_38 = arith.constant 0 : index
    %36 = vector.load %arg3[%c3_36, %c0_37, %c0_38] : memref<9x16x512xf32, #tpu.memory_space<vmem>>, vector<1x16x512xf32>
    %37 = vector.shape_cast %36 : vector<1x16x512xf32> to vector<16x512xf32>
    %cst_39 = arith.constant dense<0.000000e+00> : vector<32x512xf32>
    %38 = tpu.matmul %35, %37, %cst_39 {dimension_numbers = #tpu.dot_dimension_numbers<[1], [0], [0], [1], [0, 0, 1, 1], [], []>} : vector<32x16xf32>, vector<16x512xf32>, vector<32x512xf32> -> vector<32x512xf32>
    %39 = arith.addf %32, %38 : vector<32x512xf32>
    %c4 = arith.constant 4 : index
    %c0_40 = arith.constant 0 : index
    %c0_41 = arith.constant 0 : index
    %40 = vector.load %arg8[%c4, %c0_40, %c0_41] : memref<9x32x32xf32, #tpu.memory_space<vmem>>, vector<1x32x32xf32>
    %41 = vector.shape_cast %40 : vector<1x32x32xf32> to vector<32x32xf32>
    %cst_42 = arith.constant dense<0.000000e+00> : vector<32x16xf32>
    %42 = tpu.matmul %41, %3, %cst_42 {dimension_numbers = #tpu.dot_dimension_numbers<[1], [0], [0], [1], [0, 0, 1, 1], [], []>} : vector<32x32xf32>, vector<32x16xf32>, vector<32x16xf32> -> vector<32x16xf32>
    %c4_43 = arith.constant 4 : index
    %c0_44 = arith.constant 0 : index
    %c0_45 = arith.constant 0 : index
    %43 = vector.load %arg3[%c4_43, %c0_44, %c0_45] : memref<9x16x512xf32, #tpu.memory_space<vmem>>, vector<1x16x512xf32>
    %44 = vector.shape_cast %43 : vector<1x16x512xf32> to vector<16x512xf32>
    %cst_46 = arith.constant dense<0.000000e+00> : vector<32x512xf32>
    %45 = tpu.matmul %42, %44, %cst_46 {dimension_numbers = #tpu.dot_dimension_numbers<[1], [0], [0], [1], [0, 0, 1, 1], [], []>} : vector<32x16xf32>, vector<16x512xf32>, vector<32x512xf32> -> vector<32x512xf32>
    %46 = arith.addf %39, %45 : vector<32x512xf32>
    %c5 = arith.constant 5 : index
    %c0_47 = arith.constant 0 : index
    %c0_48 = arith.constant 0 : index
    %47 = vector.load %arg8[%c5, %c0_47, %c0_48] : memref<9x32x32xf32, #tpu.memory_space<vmem>>, vector<1x32x32xf32>
    %48 = vector.shape_cast %47 : vector<1x32x32xf32> to vector<32x32xf32>
    %cst_49 = arith.constant dense<0.000000e+00> : vector<32x16xf32>
    %49 = tpu.matmul %48, %3, %cst_49 {dimension_numbers = #tpu.dot_dimension_numbers<[1], [0], [0], [1], [0, 0, 1, 1], [], []>} : vector<32x32xf32>, vector<32x16xf32>, vector<32x16xf32> -> vector<32x16xf32>
    %c5_50 = arith.constant 5 : index
    %c0_51 = arith.constant 0 : index
    %c0_52 = arith.constant 0 : index
    %50 = vector.load %arg3[%c5_50, %c0_51, %c0_52] : memref<9x16x512xf32, #tpu.memory_space<vmem>>, vector<1x16x512xf32>
    %51 = vector.shape_cast %50 : vector<1x16x512xf32> to vector<16x512xf32>
    %cst_53 = arith.constant dense<0.000000e+00> : vector<32x512xf32>
    %52 = tpu.matmul %49, %51, %cst_53 {dimension_numbers = #tpu.dot_dimension_numbers<[1], [0], [0], [1], [0, 0, 1, 1], [], []>} : vector<32x16xf32>, vector<16x512xf32>, vector<32x512xf32> -> vector<32x512xf32>
    %53 = arith.addf %46, %52 : vector<32x512xf32>
    %c6 = arith.constant 6 : index
    %c0_54 = arith.constant 0 : index
    %c0_55 = arith.constant 0 : index
    %54 = vector.load %arg8[%c6, %c0_54, %c0_55] : memref<9x32x32xf32, #tpu.memory_space<vmem>>, vector<1x32x32xf32>
    %55 = vector.shape_cast %54 : vector<1x32x32xf32> to vector<32x32xf32>
    %cst_56 = arith.constant dense<0.000000e+00> : vector<32x16xf32>
    %56 = tpu.matmul %55, %3, %cst_56 {dimension_numbers = #tpu.dot_dimension_numbers<[1], [0], [0], [1], [0, 0, 1, 1], [], []>} : vector<32x32xf32>, vector<32x16xf32>, vector<32x16xf32> -> vector<32x16xf32>
    %c6_57 = arith.constant 6 : index
    %c0_58 = arith.constant 0 : index
    %c0_59 = arith.constant 0 : index
    %57 = vector.load %arg3[%c6_57, %c0_58, %c0_59] : memref<9x16x512xf32, #tpu.memory_space<vmem>>, vector<1x16x512xf32>
    %58 = vector.shape_cast %57 : vector<1x16x512xf32> to vector<16x512xf32>
    %cst_60 = arith.constant dense<0.000000e+00> : vector<32x512xf32>
    %59 = tpu.matmul %56, %58, %cst_60 {dimension_numbers = #tpu.dot_dimension_numbers<[1], [0], [0], [1], [0, 0, 1, 1], [], []>} : vector<32x16xf32>, vector<16x512xf32>, vector<32x512xf32> -> vector<32x512xf32>
    %60 = arith.addf %53, %59 : vector<32x512xf32>
    %c7 = arith.constant 7 : index
    %c0_61 = arith.constant 0 : index
    %c0_62 = arith.constant 0 : index
    %61 = vector.load %arg8[%c7, %c0_61, %c0_62] : memref<9x32x32xf32, #tpu.memory_space<vmem>>, vector<1x32x32xf32>
    %62 = vector.shape_cast %61 : vector<1x32x32xf32> to vector<32x32xf32>
    %cst_63 = arith.constant dense<0.000000e+00> : vector<32x16xf32>
    %63 = tpu.matmul %62, %3, %cst_63 {dimension_numbers = #tpu.dot_dimension_numbers<[1], [0], [0], [1], [0, 0, 1, 1], [], []>} : vector<32x32xf32>, vector<32x16xf32>, vector<32x16xf32> -> vector<32x16xf32>
    %c7_64 = arith.constant 7 : index
    %c0_65 = arith.constant 0 : index
    %c0_66 = arith.constant 0 : index
    %64 = vector.load %arg3[%c7_64, %c0_65, %c0_66] : memref<9x16x512xf32, #tpu.memory_space<vmem>>, vector<1x16x512xf32>
    %65 = vector.shape_cast %64 : vector<1x16x512xf32> to vector<16x512xf32>
    %cst_67 = arith.constant dense<0.000000e+00> : vector<32x512xf32>
    %66 = tpu.matmul %63, %65, %cst_67 {dimension_numbers = #tpu.dot_dimension_numbers<[1], [0], [0], [1], [0, 0, 1, 1], [], []>} : vector<32x16xf32>, vector<16x512xf32>, vector<32x512xf32> -> vector<32x512xf32>
    %67 = arith.addf %60, %66 : vector<32x512xf32>
    %c8 = arith.constant 8 : index
    %c0_68 = arith.constant 0 : index
    %c0_69 = arith.constant 0 : index
    %68 = vector.load %arg8[%c8, %c0_68, %c0_69] : memref<9x32x32xf32, #tpu.memory_space<vmem>>, vector<1x32x32xf32>
    %69 = vector.shape_cast %68 : vector<1x32x32xf32> to vector<32x32xf32>
    %cst_70 = arith.constant dense<0.000000e+00> : vector<32x16xf32>
    %70 = tpu.matmul %69, %3, %cst_70 {dimension_numbers = #tpu.dot_dimension_numbers<[1], [0], [0], [1], [0, 0, 1, 1], [], []>} : vector<32x32xf32>, vector<32x16xf32>, vector<32x16xf32> -> vector<32x16xf32>
    %c8_71 = arith.constant 8 : index
    %c0_72 = arith.constant 0 : index
    %c0_73 = arith.constant 0 : index
    %71 = vector.load %arg3[%c8_71, %c0_72, %c0_73] : memref<9x16x512xf32, #tpu.memory_space<vmem>>, vector<1x16x512xf32>
    %72 = vector.shape_cast %71 : vector<1x16x512xf32> to vector<16x512xf32>
    %cst_74 = arith.constant dense<0.000000e+00> : vector<32x512xf32>
    %73 = tpu.matmul %70, %72, %cst_74 {dimension_numbers = #tpu.dot_dimension_numbers<[1], [0], [0], [1], [0, 0, 1, 1], [], []>} : vector<32x16xf32>, vector<16x512xf32>, vector<32x512xf32> -> vector<32x512xf32>
    %74 = arith.addf %67, %73 : vector<32x512xf32>
    %75 = vector.extract_strided_slice %74 {offsets = [0, 0], sizes = [32, 16], strides = [1, 1]} : vector<32x512xf32> to vector<32x16xf32>
    %76 = vector.extract_strided_slice %74 {offsets = [0, 128], sizes = [32, 16], strides = [1, 1]} : vector<32x512xf32> to vector<32x16xf32>
    %77 = vector.extract_strided_slice %74 {offsets = [0, 256], sizes = [32, 16], strides = [1, 1]} : vector<32x512xf32> to vector<32x16xf32>
    %78 = vector.extract_strided_slice %74 {offsets = [0, 384], sizes = [32, 16], strides = [1, 1]} : vector<32x512xf32> to vector<32x16xf32>
    %c0_75 = arith.constant 0 : index
    %c0_76 = arith.constant 0 : index
    %79 = vector.load %arg5[%c0_75, %c0_76] : memref<32x16xf32, #tpu.memory_space<vmem>>, vector<32x16xf32>
    %80 = arith.mulf %79, %4 : vector<32x16xf32>
    %81 = arith.addf %75, %80 : vector<32x16xf32>
    %82 = arith.negf %81 : vector<32x16xf32>
    %83 = math.exp %82 : vector<32x16xf32>
    %cst_77 = arith.constant 1.000000e+00 : f32
    %84 = vector.broadcast %cst_77 : f32 to vector<32x16xf32>
    %85 = arith.addf %84, %83 : vector<32x16xf32>
    %86 = arith.divf %84, %85 : vector<32x16xf32>
    %c0_78 = arith.constant 0 : index
    %c0_79 = arith.constant 0 : index
    %87 = vector.load %arg6[%c0_78, %c0_79] : memref<32x16xf32, #tpu.memory_space<vmem>>, vector<32x16xf32>
    %88 = arith.mulf %87, %4 : vector<32x16xf32>
    %89 = arith.addf %76, %88 : vector<32x16xf32>
    %90 = arith.negf %89 : vector<32x16xf32>
    %91 = math.exp %90 : vector<32x16xf32>
    %cst_80 = arith.constant 1.000000e+00 : f32
    %92 = vector.broadcast %cst_80 : f32 to vector<32x16xf32>
    %93 = arith.addf %92, %91 : vector<32x16xf32>
    %94 = arith.divf %92, %93 : vector<32x16xf32>
    %95 = math.tanh %78 : vector<32x16xf32>
    %96 = arith.mulf %94, %4 : vector<32x16xf32>
    %97 = arith.mulf %86, %95 : vector<32x16xf32>
    %98 = arith.addf %96, %97 : vector<32x16xf32>
    %c0_81 = arith.constant 0 : index
    %c0_82 = arith.constant 0 : index
    %99 = vector.load %arg7[%c0_81, %c0_82] : memref<32x16xf32, #tpu.memory_space<vmem>>, vector<32x16xf32>
    %100 = arith.mulf %99, %98 : vector<32x16xf32>
    %101 = arith.addf %77, %100 : vector<32x16xf32>
    %102 = arith.negf %101 : vector<32x16xf32>
    %103 = math.exp %102 : vector<32x16xf32>
    %cst_83 = arith.constant 1.000000e+00 : f32
    %104 = vector.broadcast %cst_83 : f32 to vector<32x16xf32>
    %105 = arith.addf %104, %103 : vector<32x16xf32>
    %106 = arith.divf %104, %105 : vector<32x16xf32>
    %107 = math.tanh %98 : vector<32x16xf32>
    %108 = arith.mulf %106, %107 : vector<32x16xf32>
    %c0_84 = arith.constant 0 : index
    %c0_85 = arith.constant 0 : index
    %109 = vector.load %arg13[%c0_84, %c0_85] : memref<32x16xf32, #tpu.memory_space<vmem>>, vector<32x16xf32>
    tpu.vector_store %arg13[%c0_84, %c0_85], %108 {strides = array<i32>} : memref<32x16xf32, #tpu.memory_space<vmem>>, vector<32x16xf32>,
    %c0_86 = arith.constant 0 : index
    %c0_87 = arith.constant 0 : index
    %110 = vector.load %arg14[%c0_86, %c0_87] : memref<32x16xf32, #tpu.memory_space<vmem>>, vector<32x16xf32>
    tpu.vector_store %arg14[%c0_86, %c0_87], %98 {strides = array<i32>} : memref<32x16xf32, #tpu.memory_space<vmem>>, vector<32x16xf32>,
    %c0_88 = arith.constant 0 : index
    %c0_89 = arith.constant 0 : index
    %c0_90 = arith.constant 0 : index
    %111 = vector.load %arg11[%c0_88, %c0_89, %c0_90] : memref<1x32x16xf32, #tpu.memory_space<vmem>>, vector<1x32x16xf32>
    %112 = vector.shape_cast %111 : vector<1x32x16xf32> to vector<32x16xf32>
    %113 = vector.shape_cast %108 : vector<32x16xf32> to vector<1x32x16xf32>
    tpu.vector_store %arg11[%c0_88, %c0_89, %c0_90], %113 {strides = array<i32>} : memref<1x32x16xf32, #tpu.memory_space<vmem>>, vector<1x32x16xf32>,
    %c0_91 = arith.constant 0 : index
    %c0_92 = arith.constant 0 : index
    %114 = vector.load %arg12[%c0_91, %c0_92] : memref<32x16xf32, #tpu.memory_space<vmem>>, vector<32x16xf32>
    tpu.vector_store %arg12[%c0_91, %c0_92], %98 {strides = array<i32>} : memref<32x16xf32, #tpu.memory_space<vmem>>, vector<32x16xf32>,
    return
  }
  func.func @transform_0(%arg0: i32) -> (i32, i32, i32) {
    %c0_i32 = arith.constant 0 : i32
    %c0_i32_0 = arith.constant 0 : i32
    %c0_i32_1 = arith.constant 0 : i32
    return %arg0, %c0_i32, %c0_i32_0 : i32, i32, i32
  }
  func.func @transform_1(%arg0: i32) -> (i32, i32) {
    %c0_i32 = arith.constant 0 : i32
    %c0_i32_0 = arith.constant 0 : i32
    %c0_i32_1 = arith.constant 0 : i32
    return %c0_i32, %c0_i32_0 : i32, i32
  }
  func.func @transform_2(%arg0: i32) -> (i32, i32, i32) {
    %c0_i32 = arith.constant 0 : i32
    %c0_i32_0 = arith.constant 0 : i32
    %c0_i32_1 = arith.constant 0 : i32
    %c0_i32_2 = arith.constant 0 : i32
    return %c0_i32, %c0_i32_0, %c0_i32_1 : i32, i32, i32
  }
  func.func @transform_3(%arg0: i32) -> (i32, i32) {
    %c0_i32 = arith.constant 0 : i32
    %c0_i32_0 = arith.constant 0 : i32
    %c0_i32_1 = arith.constant 0 : i32
    return %c0_i32, %c0_i32_0 : i32, i32
  }
  func.func @transform_4(%arg0: i32) -> (i32, i32) {
    %c0_i32 = arith.constant 0 : i32
    %c0_i32_0 = arith.constant 0 : i32
    %c0_i32_1 = arith.constant 0 : i32
    return %c0_i32, %c0_i32_0 : i32, i32
  }
  func.func @transform_5(%arg0: i32) -> (i32, i32) {
    %c0_i32 = arith.constant 0 : i32
    %c0_i32_0 = arith.constant 0 : i32
    %c0_i32_1 = arith.constant 0 : i32
    return %c0_i32, %c0_i32_0 : i32, i32
  }
  func.func @transform_6(%arg0: i32) -> (i32, i32) {
    %c0_i32 = arith.constant 0 : i32
    %c0_i32_0 = arith.constant 0 : i32
    %c0_i32_1 = arith.constant 0 : i32
    return %c0_i32, %c0_i32_0 : i32, i32
  }
  func.func @transform_7(%arg0: i32) -> (i32, i32, i32) {
    %c0_i32 = arith.constant 0 : i32
    %c0_i32_0 = arith.constant 0 : i32
    %c0_i32_1 = arith.constant 0 : i32
    %c0_i32_2 = arith.constant 0 : i32
    return %c0_i32, %c0_i32_0, %c0_i32_1 : i32, i32, i32
  }
  func.func @transform_8(%arg0: i32) -> (i32, i32) {
    %c0_i32 = arith.constant 0 : i32
    %c0_i32_0 = arith.constant 0 : i32
    %c0_i32_1 = arith.constant 0 : i32
    return %c0_i32, %c0_i32_0 : i32, i32
  }
  func.func @transform_9(%arg0: i32) -> (i32, i32) {
    %c0_i32 = arith.constant 0 : i32
    %c0_i32_0 = arith.constant 0 : i32
    %c0_i32_1 = arith.constant 0 : i32
    return %c0_i32, %c0_i32_0 : i32, i32
  }
  func.func @transform_10(%arg0: i32) -> (i32, i32, i32) {
    %c0_i32 = arith.constant 0 : i32
    %c0_i32_0 = arith.constant 0 : i32
    %c0_i32_1 = arith.constant 0 : i32
    return %arg0, %c0_i32, %c0_i32_0 : i32, i32, i32
  }
  func.func @transform_11(%arg0: i32) -> (i32, i32) {
    %c0_i32 = arith.constant 0 : i32
    %c0_i32_0 = arith.constant 0 : i32
    %c0_i32_1 = arith.constant 0 : i32
    return %c0_i32, %c0_i32_0 : i32, i32
  }
}

module attributes {stable_mosaic.version = 11 : i64} {
  func.func @_convlstm_layer_kernel(%arg0: i32, %arg1: memref<1x32x144xf32, #tpu.memory_space<vmem>>, %arg2: memref<144x512xf32, #tpu.memory_space<vmem>>, %arg3: memref<9x16x512xf32, #tpu.memory_space<vmem>>, %arg4: memref<1x512xf32, #tpu.memory_space<vmem>>, %arg5: memref<32x16xf32, #tpu.memory_space<vmem>>, %arg6: memref<32x16xf32, #tpu.memory_space<vmem>>, %arg7: memref<32x16xf32, #tpu.memory_space<vmem>>, %arg8: memref<9x32x32xf32, #tpu.memory_space<vmem>>, %arg9: memref<32x16xf32, #tpu.memory_space<vmem>>, %arg10: memref<32x16xf32, #tpu.memory_space<vmem>>, %arg11: memref<1x32x16xf32, #tpu.memory_space<vmem>>, %arg12: memref<32x16xf32, #tpu.memory_space<vmem>>, %arg13: memref<32x16xf32, #tpu.memory_space<vmem>>, %arg14: memref<32x16xf32, #tpu.memory_space<vmem>>) attributes {dimension_semantics = [#tpu.dimension_semantics<arbitrary>], iteration_bounds = array<i64: 1>, scalar_prefetch = 0 : i64, scratch_operands = 2 : i64, tpu.core_type = #tpu.core_type<tc>, window_params = [{transform_indices = @transform_0, window_bounds = array<i64: 1, 32, 144>}, {pipeline_mode = #tpu.pipeline_mode<synchronous>, transform_indices = @transform_1, window_bounds = array<i64: 144, 512>}, {pipeline_mode = #tpu.pipeline_mode<synchronous>, transform_indices = @transform_2, window_bounds = array<i64: 9, 16, 512>}, {pipeline_mode = #tpu.pipeline_mode<synchronous>, transform_indices = @transform_3, window_bounds = array<i64: 1, 512>}, {pipeline_mode = #tpu.pipeline_mode<synchronous>, transform_indices = @transform_4, window_bounds = array<i64: 32, 16>}, {pipeline_mode = #tpu.pipeline_mode<synchronous>, transform_indices = @transform_5, window_bounds = array<i64: 32, 16>}, {pipeline_mode = #tpu.pipeline_mode<synchronous>, transform_indices = @transform_6, window_bounds = array<i64: 32, 16>}, {pipeline_mode = #tpu.pipeline_mode<synchronous>, transform_indices = @transform_7, window_bounds = array<i64: 9, 32, 32>}, {pipeline_mode = #tpu.pipeline_mode<synchronous>, transform_indices = @transform_8, window_bounds = array<i64: 32, 16>}, {pipeline_mode = #tpu.pipeline_mode<synchronous>, transform_indices = @transform_9, window_bounds = array<i64: 32, 16>}, {transform_indices = @transform_10, window_bounds = array<i64: 1, 32, 16>}, {pipeline_mode = #tpu.pipeline_mode<synchronous>, transform_indices = @transform_11, window_bounds = array<i64: 32, 16>}]} {
    %c0_i32 = arith.constant 0 : i32
    %0 = arith.cmpi eq, %arg0, %c0_i32 : i32
    %1 = arith.extui %0 : i1 to i32
    %c0_i32_0 = arith.constant 0 : i32
    %2 = arith.cmpi ne, %1, %c0_i32_0 : i32
    scf.if %2 {
      %c0_93 = arith.constant 0 : index
      %c0_94 = arith.constant 0 : index
      %115 = vector.load %arg9[%c0_93, %c0_94] : memref<32x16xf32, #tpu.memory_space<vmem>>, vector<32x16xf32>
      %c0_95 = arith.constant 0 : index
      %c0_96 = arith.constant 0 : index
      %116 = vector.load %arg13[%c0_95, %c0_96] : memref<32x16xf32, #tpu.memory_space<vmem>>, vector<32x16xf32>
      tpu.vector_store %arg13[%c0_95, %c0_96], %115 {strides = array<i32>} : memref<32x16xf32, #tpu.memory_space<vmem>>, vector<32x16xf32>,
      %c0_97 = arith.constant 0 : index
      %c0_98 = arith.constant 0 : index
      %117 = vector.load %arg10[%c0_97, %c0_98] : memref<32x16xf32, #tpu.memory_space<vmem>>, vector<32x16xf32>
      %c0_99 = arith.constant 0 : index
      %c0_100 = arith.constant 0 : index
      %118 = vector.load %arg14[%c0_99, %c0_100] : memref<32x16xf32, #tpu.memory_space<vmem>>, vector<32x16xf32>
      tpu.vector_store %arg14[%c0_99, %c0_100], %117 {strides = array<i32>} : memref<32x16xf32, #tpu.memory_space<vmem>>, vector<32x16xf32>,
    } else {
    }
    %c0 = arith.constant 0 : index
    %c0_1 = arith.constant 0 : index
    %3 = vector.load %arg13[%c0, %c0_1] : memref<32x16xf32, #tpu.memory_space<vmem>>, vector<32x16xf32>
    %c0_2 = arith.constant 0 : index
    %c0_3 = arith.constant 0 : index
    %4 = vector.load %arg14[%c0_2, %c0_3] : memref<32x16xf32, #tpu.memory_space<vmem>>, vector<32x16xf32>
    %c0_4 = arith.constant 0 : index
    %c0_5 = arith.constant 0 : index
    %c0_6 = arith.constant 0 : index
    %5 = vector.load %arg1[%c0_4, %c0_5, %c0_6] : memref<1x32x144xf32, #tpu.memory_space<vmem>>, vector<1x32x144xf32>
    %6 = vector.shape_cast %5 : vector<1x32x144xf32> to vector<32x144xf32>
    %c0_7 = arith.constant 0 : index
    %c0_8 = arith.constant 0 : index
    %7 = vector.load %arg2[%c0_7, %c0_8] : memref<144x512xf32, #tpu.memory_space<vmem>>, vector<144x512xf32>
    %cst = arith.constant dense<0.000000e+00> : vector<32x512xf32>
    %8 = tpu.matmul %6, %7, %cst {dimension_numbers = #tpu.dot_dimension_numbers<[1], [0], [0], [1], [0, 0, 1, 1], [], []>} : vector<32x144xf32>, vector<144x512xf32>, vector<32x512xf32> -> vector<32x512xf32>
    %c0_9 = arith.constant 0 : index
    %c0_10 = arith.constant 0 : index
    %9 = vector.load %arg4[%c0_9, %c0_10] : memref<1x512xf32, #tpu.memory_space<vmem>>, vector<1x512xf32>
    %10 = vector.broadcast %9 : vector<1x512xf32> to vector<32x512xf32>
    %11 = arith.addf %8, %10 : vector<32x512xf32>
    %c0_11 = arith.constant 0 : index
    %c0_12 = arith.constant 0 : index
    %c0_13 = arith.constant 0 : index
    %12 = vector.load %arg8[%c0_11, %c0_12, %c0_13] : memref<9x32x32xf32, #tpu.memory_space<vmem>>, vector<1x32x32xf32>
    %13 = vector.shape_cast %12 : vector<1x32x32xf32> to vector<32x32xf32>
    %cst_14 = arith.constant dense<0.000000e+00> : vector<32x16xf32>
    %14 = tpu.matmul %13, %3, %cst_14 {dimension_numbers = #tpu.dot_dimension_numbers<[1], [0], [0], [1], [0, 0, 1, 1], [], []>} : vector<32x32xf32>, vector<32x16xf32>, vector<32x16xf32> -> vector<32x16xf32>
    %c0_15 = arith.constant 0 : index
    %c0_16 = arith.constant 0 : index
    %c0_17 = arith.constant 0 : index
    %15 = vector.load %arg3[%c0_15, %c0_16, %c0_17] : memref<9x16x512xf32, #tpu.memory_space<vmem>>, vector<1x16x512xf32>
    %16 = vector.shape_cast %15 : vector<1x16x512xf32> to vector<16x512xf32>
    %cst_18 = arith.constant dense<0.000000e+00> : vector<32x512xf32>
    %17 = tpu.matmul %14, %16, %cst_18 {dimension_numbers = #tpu.dot_dimension_numbers<[1], [0], [0], [1], [0, 0, 1, 1], [], []>} : vector<32x16xf32>, vector<16x512xf32>, vector<32x512xf32> -> vector<32x512xf32>
    %18 = arith.addf %11, %17 : vector<32x512xf32>
    %c1 = arith.constant 1 : index
    %c0_19 = arith.constant 0 : index
    %c0_20 = arith.constant 0 : index
    %19 = vector.load %arg8[%c1, %c0_19, %c0_20] : memref<9x32x32xf32, #tpu.memory_space<vmem>>, vector<1x32x32xf32>
    %20 = vector.shape_cast %19 : vector<1x32x32xf32> to vector<32x32xf32>
    %cst_21 = arith.constant dense<0.000000e+00> : vector<32x16xf32>
    %21 = tpu.matmul %20, %3, %cst_21 {dimension_numbers = #tpu.dot_dimension_numbers<[1], [0], [0], [1], [0, 0, 1, 1], [], []>} : vector<32x32xf32>, vector<32x16xf32>, vector<32x16xf32> -> vector<32x16xf32>
    %c1_22 = arith.constant 1 : index
    %c0_23 = arith.constant 0 : index
    %c0_24 = arith.constant 0 : index
    %22 = vector.load %arg3[%c1_22, %c0_23, %c0_24] : memref<9x16x512xf32, #tpu.memory_space<vmem>>, vector<1x16x512xf32>
    %23 = vector.shape_cast %22 : vector<1x16x512xf32> to vector<16x512xf32>
    %cst_25 = arith.constant dense<0.000000e+00> : vector<32x512xf32>
    %24 = tpu.matmul %21, %23, %cst_25 {dimension_numbers = #tpu.dot_dimension_numbers<[1], [0], [0], [1], [0, 0, 1, 1], [], []>} : vector<32x16xf32>, vector<16x512xf32>, vector<32x512xf32> -> vector<32x512xf32>
    %25 = arith.addf %18, %24 : vector<32x512xf32>
    %c2 = arith.constant 2 : index
    %c0_26 = arith.constant 0 : index
    %c0_27 = arith.constant 0 : index
    %26 = vector.load %arg8[%c2, %c0_26, %c0_27] : memref<9x32x32xf32, #tpu.memory_space<vmem>>, vector<1x32x32xf32>
    %27 = vector.shape_cast %26 : vector<1x32x32xf32> to vector<32x32xf32>
    %cst_28 = arith.constant dense<0.000000e+00> : vector<32x16xf32>
    %28 = tpu.matmul %27, %3, %cst_28 {dimension_numbers = #tpu.dot_dimension_numbers<[1], [0], [0], [1], [0, 0, 1, 1], [], []>} : vector<32x32xf32>, vector<32x16xf32>, vector<32x16xf32> -> vector<32x16xf32>
    %c2_29 = arith.constant 2 : index
    %c0_30 = arith.constant 0 : index
    %c0_31 = arith.constant 0 : index
    %29 = vector.load %arg3[%c2_29, %c0_30, %c0_31] : memref<9x16x512xf32, #tpu.memory_space<vmem>>, vector<1x16x512xf32>
    %30 = vector.shape_cast %29 : vector<1x16x512xf32> to vector<16x512xf32>
    %cst_32 = arith.constant dense<0.000000e+00> : vector<32x512xf32>
    %31 = tpu.matmul %28, %30, %cst_32 {dimension_numbers = #tpu.dot_dimension_numbers<[1], [0], [0], [1], [0, 0, 1, 1], [], []>} : vector<32x16xf32>, vector<16x512xf32>, vector<32x512xf32> -> vector<32x512xf32>
    %32 = arith.addf %25, %31 : vector<32x512xf32>
    %c3 = arith.constant 3 : index
    %c0_33 = arith.constant 0 : index
    %c0_34 = arith.constant 0 : index
    %33 = vector.load %arg8[%c3, %c0_33, %c0_34] : memref<9x32x32xf32, #tpu.memory_space<vmem>>, vector<1x32x32xf32>
    %34 = vector.shape_cast %33 : vector<1x32x32xf32> to vector<32x32xf32>
    %cst_35 = arith.constant dense<0.000000e+00> : vector<32x16xf32>
    %35 = tpu.matmul %34, %3, %cst_35 {dimension_numbers = #tpu.dot_dimension_numbers<[1], [0], [0], [1], [0, 0, 1, 1], [], []>} : vector<32x32xf32>, vector<32x16xf32>, vector<32x16xf32> -> vector<32x16xf32>
    %c3_36 = arith.constant 3 : index
    %c0_37 = arith.constant 0 : index
    %c0_38 = arith.constant 0 : index
    %36 = vector.load %arg3[%c3_36, %c0_37, %c0_38] : memref<9x16x512xf32, #tpu.memory_space<vmem>>, vector<1x16x512xf32>
    %37 = vector.shape_cast %36 : vector<1x16x512xf32> to vector<16x512xf32>
    %cst_39 = arith.constant dense<0.000000e+00> : vector<32x512xf32>
    %38 = tpu.matmul %35, %37, %cst_39 {dimension_numbers = #tpu.dot_dimension_numbers<[1], [0], [0], [1], [0, 0, 1, 1], [], []>} : vector<32x16xf32>, vector<16x512xf32>, vector<32x512xf32> -> vector<32x512xf32>
    %39 = arith.addf %32, %38 : vector<32x512xf32>
    %c4 = arith.constant 4 : index
    %c0_40 = arith.constant 0 : index
    %c0_41 = arith.constant 0 : index
    %40 = vector.load %arg8[%c4, %c0_40, %c0_41] : memref<9x32x32xf32, #tpu.memory_space<vmem>>, vector<1x32x32xf32>
    %41 = vector.shape_cast %40 : vector<1x32x32xf32> to vector<32x32xf32>
    %cst_42 = arith.constant dense<0.000000e+00> : vector<32x16xf32>
    %42 = tpu.matmul %41, %3, %cst_42 {dimension_numbers = #tpu.dot_dimension_numbers<[1], [0], [0], [1], [0, 0, 1, 1], [], []>} : vector<32x32xf32>, vector<32x16xf32>, vector<32x16xf32> -> vector<32x16xf32>
    %c4_43 = arith.constant 4 : index
    %c0_44 = arith.constant 0 : index
    %c0_45 = arith.constant 0 : index
    %43 = vector.load %arg3[%c4_43, %c0_44, %c0_45] : memref<9x16x512xf32, #tpu.memory_space<vmem>>, vector<1x16x512xf32>
    %44 = vector.shape_cast %43 : vector<1x16x512xf32> to vector<16x512xf32>
    %cst_46 = arith.constant dense<0.000000e+00> : vector<32x512xf32>
    %45 = tpu.matmul %42, %44, %cst_46 {dimension_numbers = #tpu.dot_dimension_numbers<[1], [0], [0], [1], [0, 0, 1, 1], [], []>} : vector<32x16xf32>, vector<16x512xf32>, vector<32x512xf32> -> vector<32x512xf32>
    %46 = arith.addf %39, %45 : vector<32x512xf32>
    %c5 = arith.constant 5 : index
    %c0_47 = arith.constant 0 : index
    %c0_48 = arith.constant 0 : index
    %47 = vector.load %arg8[%c5, %c0_47, %c0_48] : memref<9x32x32xf32, #tpu.memory_space<vmem>>, vector<1x32x32xf32>
    %48 = vector.shape_cast %47 : vector<1x32x32xf32> to vector<32x32xf32>
    %cst_49 = arith.constant dense<0.000000e+00> : vector<32x16xf32>
    %49 = tpu.matmul %48, %3, %cst_49 {dimension_numbers = #tpu.dot_dimension_numbers<[1], [0], [0], [1], [0, 0, 1, 1], [], []>} : vector<32x32xf32>, vector<32x16xf32>, vector<32x16xf32> -> vector<32x16xf32>
    %c5_50 = arith.constant 5 : index
    %c0_51 = arith.constant 0 : index
    %c0_52 = arith.constant 0 : index
    %50 = vector.load %arg3[%c5_50, %c0_51, %c0_52] : memref<9x16x512xf32, #tpu.memory_space<vmem>>, vector<1x16x512xf32>
    %51 = vector.shape_cast %50 : vector<1x16x512xf32> to vector<16x512xf32>
    %cst_53 = arith.constant dense<0.000000e+00> : vector<32x512xf32>
    %52 = tpu.matmul %49, %51, %cst_53 {dimension_numbers = #tpu.dot_dimension_numbers<[1], [0], [0], [1], [0, 0, 1, 1], [], []>} : vector<32x16xf32>, vector<16x512xf32>, vector<32x512xf32> -> vector<32x512xf32>
    %53 = arith.addf %46, %52 : vector<32x512xf32>
    %c6 = arith.constant 6 : index
    %c0_54 = arith.constant 0 : index
    %c0_55 = arith.constant 0 : index
    %54 = vector.load %arg8[%c6, %c0_54, %c0_55] : memref<9x32x32xf32, #tpu.memory_space<vmem>>, vector<1x32x32xf32>
    %55 = vector.shape_cast %54 : vector<1x32x32xf32> to vector<32x32xf32>
    %cst_56 = arith.constant dense<0.000000e+00> : vector<32x16xf32>
    %56 = tpu.matmul %55, %3, %cst_56 {dimension_numbers = #tpu.dot_dimension_numbers<[1], [0], [0], [1], [0, 0, 1, 1], [], []>} : vector<32x32xf32>, vector<32x16xf32>, vector<32x16xf32> -> vector<32x16xf32>
    %c6_57 = arith.constant 6 : index
    %c0_58 = arith.constant 0 : index
    %c0_59 = arith.constant 0 : index
    %57 = vector.load %arg3[%c6_57, %c0_58, %c0_59] : memref<9x16x512xf32, #tpu.memory_space<vmem>>, vector<1x16x512xf32>
    %58 = vector.shape_cast %57 : vector<1x16x512xf32> to vector<16x512xf32>
    %cst_60 = arith.constant dense<0.000000e+00> : vector<32x512xf32>
    %59 = tpu.matmul %56, %58, %cst_60 {dimension_numbers = #tpu.dot_dimension_numbers<[1], [0], [0], [1], [0, 0, 1, 1], [], []>} : vector<32x16xf32>, vector<16x512xf32>, vector<32x512xf32> -> vector<32x512xf32>
    %60 = arith.addf %53, %59 : vector<32x512xf32>
    %c7 = arith.constant 7 : index
    %c0_61 = arith.constant 0 : index
    %c0_62 = arith.constant 0 : index
    %61 = vector.load %arg8[%c7, %c0_61, %c0_62] : memref<9x32x32xf32, #tpu.memory_space<vmem>>, vector<1x32x32xf32>
    %62 = vector.shape_cast %61 : vector<1x32x32xf32> to vector<32x32xf32>
    %cst_63 = arith.constant dense<0.000000e+00> : vector<32x16xf32>
    %63 = tpu.matmul %62, %3, %cst_63 {dimension_numbers = #tpu.dot_dimension_numbers<[1], [0], [0], [1], [0, 0, 1, 1], [], []>} : vector<32x32xf32>, vector<32x16xf32>, vector<32x16xf32> -> vector<32x16xf32>
    %c7_64 = arith.constant 7 : index
    %c0_65 = arith.constant 0 : index
    %c0_66 = arith.constant 0 : index
    %64 = vector.load %arg3[%c7_64, %c0_65, %c0_66] : memref<9x16x512xf32, #tpu.memory_space<vmem>>, vector<1x16x512xf32>
    %65 = vector.shape_cast %64 : vector<1x16x512xf32> to vector<16x512xf32>
    %cst_67 = arith.constant dense<0.000000e+00> : vector<32x512xf32>
    %66 = tpu.matmul %63, %65, %cst_67 {dimension_numbers = #tpu.dot_dimension_numbers<[1], [0], [0], [1], [0, 0, 1, 1], [], []>} : vector<32x16xf32>, vector<16x512xf32>, vector<32x512xf32> -> vector<32x512xf32>
    %67 = arith.addf %60, %66 : vector<32x512xf32>
    %c8 = arith.constant 8 : index
    %c0_68 = arith.constant 0 : index
    %c0_69 = arith.constant 0 : index
    %68 = vector.load %arg8[%c8, %c0_68, %c0_69] : memref<9x32x32xf32, #tpu.memory_space<vmem>>, vector<1x32x32xf32>
    %69 = vector.shape_cast %68 : vector<1x32x32xf32> to vector<32x32xf32>
    %cst_70 = arith.constant dense<0.000000e+00> : vector<32x16xf32>
    %70 = tpu.matmul %69, %3, %cst_70 {dimension_numbers = #tpu.dot_dimension_numbers<[1], [0], [0], [1], [0, 0, 1, 1], [], []>} : vector<32x32xf32>, vector<32x16xf32>, vector<32x16xf32> -> vector<32x16xf32>
    %c8_71 = arith.constant 8 : index
    %c0_72 = arith.constant 0 : index
    %c0_73 = arith.constant 0 : index
    %71 = vector.load %arg3[%c8_71, %c0_72, %c0_73] : memref<9x16x512xf32, #tpu.memory_space<vmem>>, vector<1x16x512xf32>
    %72 = vector.shape_cast %71 : vector<1x16x512xf32> to vector<16x512xf32>
    %cst_74 = arith.constant dense<0.000000e+00> : vector<32x512xf32>
    %73 = tpu.matmul %70, %72, %cst_74 {dimension_numbers = #tpu.dot_dimension_numbers<[1], [0], [0], [1], [0, 0, 1, 1], [], []>} : vector<32x16xf32>, vector<16x512xf32>, vector<32x512xf32> -> vector<32x512xf32>
    %74 = arith.addf %67, %73 : vector<32x512xf32>
    %75 = vector.extract_strided_slice %74 {offsets = [0, 0], sizes = [32, 16], strides = [1, 1]} : vector<32x512xf32> to vector<32x16xf32>
    %76 = vector.extract_strided_slice %74 {offsets = [0, 128], sizes = [32, 16], strides = [1, 1]} : vector<32x512xf32> to vector<32x16xf32>
    %77 = vector.extract_strided_slice %74 {offsets = [0, 256], sizes = [32, 16], strides = [1, 1]} : vector<32x512xf32> to vector<32x16xf32>
    %78 = vector.extract_strided_slice %74 {offsets = [0, 384], sizes = [32, 16], strides = [1, 1]} : vector<32x512xf32> to vector<32x16xf32>
    %c0_75 = arith.constant 0 : index
    %c0_76 = arith.constant 0 : index
    %79 = vector.load %arg5[%c0_75, %c0_76] : memref<32x16xf32, #tpu.memory_space<vmem>>, vector<32x16xf32>
    %80 = arith.mulf %79, %4 : vector<32x16xf32>
    %81 = arith.addf %75, %80 : vector<32x16xf32>
    %82 = arith.negf %81 : vector<32x16xf32>
    %83 = math.exp %82 : vector<32x16xf32>
    %cst_77 = arith.constant 1.000000e+00 : f32
    %84 = vector.broadcast %cst_77 : f32 to vector<32x16xf32>
    %85 = arith.addf %84, %83 : vector<32x16xf32>
    %86 = arith.divf %84, %85 : vector<32x16xf32>
    %c0_78 = arith.constant 0 : index
    %c0_79 = arith.constant 0 : index
    %87 = vector.load %arg6[%c0_78, %c0_79] : memref<32x16xf32, #tpu.memory_space<vmem>>, vector<32x16xf32>
    %88 = arith.mulf %87, %4 : vector<32x16xf32>
    %89 = arith.addf %76, %88 : vector<32x16xf32>
    %90 = arith.negf %89 : vector<32x16xf32>
    %91 = math.exp %90 : vector<32x16xf32>
    %cst_80 = arith.constant 1.000000e+00 : f32
    %92 = vector.broadcast %cst_80 : f32 to vector<32x16xf32>
    %93 = arith.addf %92, %91 : vector<32x16xf32>
    %94 = arith.divf %92, %93 : vector<32x16xf32>
    %95 = math.tanh %78 : vector<32x16xf32>
    %96 = arith.mulf %94, %4 : vector<32x16xf32>
    %97 = arith.mulf %86, %95 : vector<32x16xf32>
    %98 = arith.addf %96, %97 : vector<32x16xf32>
    %c0_81 = arith.constant 0 : index
    %c0_82 = arith.constant 0 : index
    %99 = vector.load %arg7[%c0_81, %c0_82] : memref<32x16xf32, #tpu.memory_space<vmem>>, vector<32x16xf32>
    %100 = arith.mulf %99, %98 : vector<32x16xf32>
    %101 = arith.addf %77, %100 : vector<32x16xf32>
    %102 = arith.negf %101 : vector<32x16xf32>
    %103 = math.exp %102 : vector<32x16xf32>
    %cst_83 = arith.constant 1.000000e+00 : f32
    %104 = vector.broadcast %cst_83 : f32 to vector<32x16xf32>
    %105 = arith.addf %104, %103 : vector<32x16xf32>
    %106 = arith.divf %104, %105 : vector<32x16xf32>
    %107 = math.tanh %98 : vector<32x16xf32>
    %108 = arith.mulf %106, %107 : vector<32x16xf32>
    %c0_84 = arith.constant 0 : index
    %c0_85 = arith.constant 0 : index
    %109 = vector.load %arg13[%c0_84, %c0_85] : memref<32x16xf32, #tpu.memory_space<vmem>>, vector<32x16xf32>
    tpu.vector_store %arg13[%c0_84, %c0_85], %108 {strides = array<i32>} : memref<32x16xf32, #tpu.memory_space<vmem>>, vector<32x16xf32>,
    %c0_86 = arith.constant 0 : index
    %c0_87 = arith.constant 0 : index
    %110 = vector.load %arg14[%c0_86, %c0_87] : memref<32x16xf32, #tpu.memory_space<vmem>>, vector<32x16xf32>
    tpu.vector_store %arg14[%c0_86, %c0_87], %98 {strides = array<i32>} : memref<32x16xf32, #tpu.memory_space<vmem>>, vector<32x16xf32>,
    %c0_88 = arith.constant 0 : index
    %c0_89 = arith.constant 0 : index
    %c0_90 = arith.constant 0 : index
    %111 = vector.load %arg11[%c0_88, %c0_89, %c0_90] : memref<1x32x16xf32, #tpu.memory_space<vmem>>, vector<1x32x16xf32>
    %112 = vector.shape_cast %111 : vector<1x32x16xf32> to vector<32x16xf32>
    %113 = vector.shape_cast %108 : vector<32x16xf32> to vector<1x32x16xf32>
    tpu.vector_store %arg11[%c0_88, %c0_89, %c0_90], %113 {strides = array<i32>} : memref<1x32x16xf32, #tpu.memory_space<vmem>>, vector<1x32x16xf32>,
    %c0_91 = arith.constant 0 : index
    %c0_92 = arith.constant 0 : index
    %114 = vector.load %arg12[%c0_91, %c0_92] : memref<32x16xf32, #tpu.memory_space<vmem>>, vector<32x16xf32>
    tpu.vector_store %arg12[%c0_91, %c0_92], %98 {strides = array<i32>} : memref<32x16xf32, #tpu.memory_space<vmem>>, vector<32x16xf32>,
    return
  }
  func.func @transform_0(%arg0: i32) -> (i32, i32, i32) {
    %c0_i32 = arith.constant 0 : i32
    %c0_i32_0 = arith.constant 0 : i32
    %c0_i32_1 = arith.constant 0 : i32
    return %arg0, %c0_i32, %c0_i32_0 : i32, i32, i32
  }
  func.func @transform_1(%arg0: i32) -> (i32, i32) {
    %c0_i32 = arith.constant 0 : i32
    %c0_i32_0 = arith.constant 0 : i32
    %c0_i32_1 = arith.constant 0 : i32
    return %c0_i32, %c0_i32_0 : i32, i32
  }
  func.func @transform_2(%arg0: i32) -> (i32, i32, i32) {
    %c0_i32 = arith.constant 0 : i32
    %c0_i32_0 = arith.constant 0 : i32
    %c0_i32_1 = arith.constant 0 : i32
    %c0_i32_2 = arith.constant 0 : i32
    return %c0_i32, %c0_i32_0, %c0_i32_1 : i32, i32, i32
  }
  func.func @transform_3(%arg0: i32) -> (i32, i32) {
    %c0_i32 = arith.constant 0 : i32
    %c0_i32_0 = arith.constant 0 : i32
    %c0_i32_1 = arith.constant 0 : i32
    return %c0_i32, %c0_i32_0 : i32, i32
  }
  func.func @transform_4(%arg0: i32) -> (i32, i32) {
    %c0_i32 = arith.constant 0 : i32
    %c0_i32_0 = arith.constant 0 : i32
    %c0_i32_1 = arith.constant 0 : i32
    return %c0_i32, %c0_i32_0 : i32, i32
  }
  func.func @transform_5(%arg0: i32) -> (i32, i32) {
    %c0_i32 = arith.constant 0 : i32
    %c0_i32_0 = arith.constant 0 : i32
    %c0_i32_1 = arith.constant 0 : i32
    return %c0_i32, %c0_i32_0 : i32, i32
  }
  func.func @transform_6(%arg0: i32) -> (i32, i32) {
    %c0_i32 = arith.constant 0 : i32
    %c0_i32_0 = arith.constant 0 : i32
    %c0_i32_1 = arith.constant 0 : i32
    return %c0_i32, %c0_i32_0 : i32, i32
  }
  func.func @transform_7(%arg0: i32) -> (i32, i32, i32) {
    %c0_i32 = arith.constant 0 : i32
    %c0_i32_0 = arith.constant 0 : i32
    %c0_i32_1 = arith.constant 0 : i32
    %c0_i32_2 = arith.constant 0 : i32
    return %c0_i32, %c0_i32_0, %c0_i32_1 : i32, i32, i32
  }
  func.func @transform_8(%arg0: i32) -> (i32, i32) {
    %c0_i32 = arith.constant 0 : i32
    %c0_i32_0 = arith.constant 0 : i32
    %c0_i32_1 = arith.constant 0 : i32
    return %c0_i32, %c0_i32_0 : i32, i32
  }
  func.func @transform_9(%arg0: i32) -> (i32, i32) {
    %c0_i32 = arith.constant 0 : i32
    %c0_i32_0 = arith.constant 0 : i32
    %c0_i32_1 = arith.constant 0 : i32
    return %c0_i32, %c0_i32_0 : i32, i32
  }
  func.func @transform_10(%arg0: i32) -> (i32, i32, i32) {
    %c0_i32 = arith.constant 0 : i32
    %c0_i32_0 = arith.constant 0 : i32
    %c0_i32_1 = arith.constant 0 : i32
    return %arg0, %c0_i32, %c0_i32_0 : i32, i32, i32
  }
  func.func @transform_11(%arg0: i32) -> (i32, i32) {
    %c0_i32 = arith.constant 0 : i32
    %c0_i32_0 = arith.constant 0 : i32
    %c0_i32_1 = arith.constant 0 : i32
    return %c0_i32, %c0_i32_0 : i32, i32
  }
}

module attributes {stable_mosaic.version = 11 : i64} {
  func.func @_matmul_act_kernel(%arg0: i32, %arg1: memref<128x144xf32, #tpu.memory_space<vmem>>, %arg2: memref<144x128xf32, #tpu.memory_space<vmem>>, %arg3: memref<1x128xf32, #tpu.memory_space<vmem>>, %arg4: memref<128x128xf32, #tpu.memory_space<vmem>>) attributes {dimension_semantics = [#tpu.dimension_semantics<parallel>], iteration_bounds = array<i64: 3>, scalar_prefetch = 0 : i64, scratch_operands = 0 : i64, tpu.core_type = #tpu.core_type<tc>, window_params = [{transform_indices = @transform_0, window_bounds = array<i64: 128, 144>}, {pipeline_mode = #tpu.pipeline_mode<synchronous>, transform_indices = @transform_1, window_bounds = array<i64: 144, 128>}, {pipeline_mode = #tpu.pipeline_mode<synchronous>, transform_indices = @transform_2, window_bounds = array<i64: 1, 128>}, {transform_indices = @transform_3, window_bounds = array<i64: 128, 128>}]} {
    %c0 = arith.constant 0 : index
    %c0_0 = arith.constant 0 : index
    %0 = vector.load %arg1[%c0, %c0_0] : memref<128x144xf32, #tpu.memory_space<vmem>>, vector<128x144xf32>
    %c0_1 = arith.constant 0 : index
    %c0_2 = arith.constant 0 : index
    %1 = vector.load %arg2[%c0_1, %c0_2] : memref<144x128xf32, #tpu.memory_space<vmem>>, vector<144x128xf32>
    %cst = arith.constant dense<0.000000e+00> : vector<128x128xf32>
    %2 = tpu.matmul %0, %1, %cst {dimension_numbers = #tpu.dot_dimension_numbers<[1], [0], [0], [1], [0, 0, 1, 1], [], []>} : vector<128x144xf32>, vector<144x128xf32>, vector<128x128xf32> -> vector<128x128xf32>
    %c0_3 = arith.constant 0 : index
    %c0_4 = arith.constant 0 : index
    %3 = vector.load %arg3[%c0_3, %c0_4] : memref<1x128xf32, #tpu.memory_space<vmem>>, vector<1x128xf32>
    %4 = vector.broadcast %3 : vector<1x128xf32> to vector<128x128xf32>
    %5 = arith.addf %2, %4 : vector<128x128xf32>
    %6 = arith.negf %5 : vector<128x128xf32>
    %7 = math.exp %6 : vector<128x128xf32>
    %cst_5 = arith.constant 1.000000e+00 : f32
    %8 = vector.broadcast %cst_5 : f32 to vector<128x128xf32>
    %9 = arith.addf %8, %7 : vector<128x128xf32>
    %10 = arith.divf %8, %9 : vector<128x128xf32>
    %c0_6 = arith.constant 0 : index
    %c0_7 = arith.constant 0 : index
    %11 = vector.load %arg4[%c0_6, %c0_7] : memref<128x128xf32, #tpu.memory_space<vmem>>, vector<128x128xf32>
    tpu.vector_store %arg4[%c0_6, %c0_7], %10 {strides = array<i32>} : memref<128x128xf32, #tpu.memory_space<vmem>>, vector<128x128xf32>,
    return
  }
  func.func @transform_0(%arg0: i32) -> (i32, i32) {
    %c0_i32 = arith.constant 0 : i32
    %c0_i32_0 = arith.constant 0 : i32
    return %arg0, %c0_i32 : i32, i32
  }
  func.func @transform_1(%arg0: i32) -> (i32, i32) {
    %c0_i32 = arith.constant 0 : i32
    %c0_i32_0 = arith.constant 0 : i32
    %c0_i32_1 = arith.constant 0 : i32
    return %c0_i32, %c0_i32_0 : i32, i32
  }
  func.func @transform_2(%arg0: i32) -> (i32, i32) {
    %c0_i32 = arith.constant 0 : i32
    %c0_i32_0 = arith.constant 0 : i32
    %c0_i32_1 = arith.constant 0 : i32
    return %c0_i32, %c0_i32_0 : i32, i32
  }
  func.func @transform_3(%arg0: i32) -> (i32, i32) {
    %c0_i32 = arith.constant 0 : i32
    %c0_i32_0 = arith.constant 0 : i32
    return %arg0, %c0_i32 : i32, i32
  }
}

</mosaic_0001>

<llo_original>
// kernel: _compute.16
$region0: #{_compute.16}
  #allocation0 [shape = 'u32[]', space=smem, size = 0x4, offset = 0x4, fixed_abs, tag = 'smem constant byte address 0x4 - core index']
  #allocation1 [shape = 'u32[72,128]{1,0:T(1,128)}', space=vmem, size = 0x9000, scoped, tag = 'internal scratch']
  %s0 = inlined_call_operand.vmem [shape: f32[384,9], index: 0, kind: input, shape index: {}]
  %s1 = inlined_call_operand.vmem [shape: f32[9,128], index: 1, kind: input, shape index: {}]
  %s2 = inlined_call_operand.vmem [shape: f32[1,128], index: 2, kind: input, shape index: {}]
  %s3 = inlined_call_operand.vmem [shape: f32[384,128], index: 3, kind: output, shape index: {}]
  %s4 = sld [smem:[#allocation0]]
  $region45: #{_compute.16} parent=0
    _
  %s6 = ssub.s32 1, %s4
  %s7 = scalar_select 0, %s6, %s4
  loop: start=0, step=1, limit=5
  $region2: #{_compute.16} parent=0 // loop_pre_header
    _
  $region3: #{_compute.16} parent=0 // loop_header
    %s9 = sphi 0, %s13
    %p10 = scmp.ge.s32.totalorder %s9, 5
    %s19 = sphi 0, %s21
    %s22 = sphi 0, %s19
    %s23 = sphi 0, %s22
    %s39 = sphi 0, %s23
    %s43 = sphi 0, %s43
    %s45 = sphi 0, %s43
    %s46 = sphi 0, %s45
    %s60 = sphi 0, %s46
    %s64 = sphi 0, %s64
    %s66 = sphi 0, %s64
    %s67 = sphi 0, %s66
    %s81 = sphi 0, %s67
    %s87 = sphi 0, %s89
    %s90 = sphi 0, %s87
    %s91 = sphi 0, %s90
    %s107 = sphi 0, %s91
  $region4: #{_compute.16} parent=0 // loop_header_branch
    %12 = sbr.rel (%p10) target = $region8
  $region5: #{_compute.16} parent=0 // loop_body
    %s14 = ssub.s32 %s9, 1
    %s15 = ssub.s32 %s9, 2
    %s16 = sadd.s32 %s9, 1
    %s17 = ssub.s32 %s9, %s16
    %p18 = scmp.eq.s32.totalorder %s17, 0
    %s20 = sadd.s32 %s19, 1
    %s21 = scalar_select %p18, %s19, %s20
    %p24 = pneg %p18
    %p25 = scmp.eq.s32.totalorder %s9, 2
    %p26 = por %p24, %p25
    %p27 = scmp.ne.s32.totalorder %s19, %s22
    %p28 = scmp.eq.s32.totalorder %s9, 0
    %p29 = por %p27, %p28
    %p30 = scmp.ne.s32.totalorder %s19, %s22
    %p31 = scmp.eq.s32.totalorder %s14, 2
    %p32 = por %p30, %p31
    %p33 = scmp.ne.s32.totalorder %s22, %s23
    %p34 = scmp.eq.s32.totalorder %s14, 0
    %p35 = por %p33, %p34
    %p36 = scmp.ne.s32.totalorder %s22, %s23
    %p37 = scmp.eq.s32.totalorder %s15, 2
    %p38 = por %p36, %p37
    %p40 = scmp.ne.s32.totalorder %s23, %s39
    %p41 = scmp.eq.s32.totalorder %s15, 0
    %p42 = por %p40, %p41
    %s44 = sadd.s32 %s43, 1
    %p47 = scmp.eq.s32.totalorder %s9, 2
    %p48 = scmp.ne.s32.totalorder %s43, %s45
    %p49 = scmp.eq.s32.totalorder %s9, 0
    %p50 = por %p48, %p49
    %p51 = scmp.ne.s32.totalorder %s43, %s45
    %p52 = scmp.eq.s32.totalorder %s14, 2
    %p53 = por %p51, %p52
    %p54 = scmp.ne.s32.totalorder %s45, %s46
    %p55 = scmp.eq.s32.totalorder %s14, 0
    %p56 = por %p54, %p55
    %p57 = scmp.ne.s32.totalorder %s45, %s46
    %p58 = scmp.eq.s32.totalorder %s15, 2
    %p59 = por %p57, %p58
    %p61 = scmp.ne.s32.totalorder %s46, %s60
    %p62 = scmp.eq.s32.totalorder %s15, 0
    %p63 = por %p61, %p62
    %s65 = sadd.s32 %s64, 1
    %p68 = scmp.eq.s32.totalorder %s9, 2
    %p69 = scmp.ne.s32.totalorder %s64, %s66
    %p70 = scmp.eq.s32.totalorder %s9, 0
    %p71 = por %p69, %p70
    %p72 = scmp.ne.s32.totalorder %s64, %s66
    %p73 = scmp.eq.s32.totalorder %s14, 2
    %p74 = por %p72, %p73
    %p75 = scmp.ne.s32.totalorder %s66, %s67
    %p76 = scmp.eq.s32.totalorder %s14, 0
    %p77 = por %p75, %p76
    %p78 = scmp.ne.s32.totalorder %s66, %s67
    %p79 = scmp.eq.s32.totalorder %s15, 2
    %p80 = por %p78, %p79
    %p82 = scmp.ne.s32.totalorder %s67, %s81
    %p83 = scmp.eq.s32.totalorder %s15, 0
    %p84 = por %p82, %p83
    %s85 = ssub.s32 %s9, %s16
    %p86 = scmp.eq.s32.totalorder %s85, 0
    %s88 = sadd.s32 %s87, 1
    %s89 = scalar_select %p86, %s87, %s88
    %p92 = pneg %p86
    %p93 = scmp.eq.s32.totalorder %s9, 2
    %p94 = por %p92, %p93
    %p95 = scmp.ne.s32.totalorder %s87, %s90
    %p96 = scmp.eq.s32.totalorder %s9, 0
    %p97 = por %p95, %p96
    %p98 = scmp.ne.s32.totalorder %s87, %s90
    %p99 = scmp.eq.s32.totalorder %s14, 2
    %p100 = por %p98, %p99
    %p101 = scmp.ne.s32.totalorder %s90, %s91
    %p102 = scmp.eq.s32.totalorder %s14, 0
    %p103 = por %p101, %p102
    %p104 = scmp.ne.s32.totalorder %s90, %s91
    %p105 = scmp.eq.s32.totalorder %s15, 2
    %p106 = por %p104, %p105
    %p108 = scmp.ne.s32.totalorder %s91, %s107
    %p109 = scmp.eq.s32.totalorder %s15, 0
    %p110 = por %p108, %p109
    %p111 = scmp.le.s32.totalorder 1, %s9
    %p112 = scmp.lt.s32.totalorder %s9, 4
    %p113 = pnand %p111, %p112
    %p114 = pneg %p113
    // Predicated region
    $region9: #{_compute.16} parent=5 // pred_check
      _
    $region10: #{_compute.16} parent=5 // pred_check_branch
      %116 = sbr.rel (%p113) target = $region12
    $region11: #{_compute.16} parent=5 // pred_region
      %s117 = ssub.s32 %s9, 1
      // Predicated region
      $region13: #{_compute.16} parent=11 // pred_check
        %p118 = pneg %p56
      $region14: #{_compute.16} parent=11 // pred_check_branch
        %120 = sbr.rel (%p118) target = $region16
      $region15: #{_compute.16} parent=11 // pred_region
        _
      $region16: #{_compute.16} parent=11 // pred_fallthru
        _
      // Predicated region
      $region17: #{_compute.16} parent=11 // pred_check
        %p121 = pneg %p77
      $region18: #{_compute.16} parent=11 // pred_check_branch
        %123 = sbr.rel (%p121) target = $region20
      $region19: #{_compute.16} parent=11 // pred_region
        _
      $region20: #{_compute.16} parent=11 // pred_fallthru
        _
    $region12: #{_compute.16} parent=5 // pred_fallthru
      _
    %p124 = scmp.lt.s32.totalorder %s9, 3
    // Predicated region
    $region21: #{_compute.16} parent=5 // pred_check
      %p125 = pneg %p124
    $region22: #{_compute.16} parent=5 // pred_check_branch
      %127 = sbr.rel (%p125) target = $region24
    $region23: #{_compute.16} parent=5 // pred_region
      // Predicated region
      $region25: #{_compute.16} parent=23 // pred_check
        %p128 = pneg %p29
      $region26: #{_compute.16} parent=23 // pred_check_branch
        %130 = sbr.rel (%p128) target = $region28
      $region27: #{_compute.16} parent=23 // pred_region
        %s131 = smul.u32 16, %s9
        %p132 = scmp.lt.s32.totalorder %s131, 47
        %s133 = scalar_select %p132, %s131, 47
        %s134 = smul.addr %s133, 8
        %s135 = scalar_lea.vmem %s0, %s134
        %s136 = smul.u32 16, %s9
      $region28: #{_compute.16} parent=23 // pred_fallthru
        _
    $region24: #{_compute.16} parent=5 // pred_fallthru
      _
    %p137 = scmp.le.s32.totalorder 1, %s9
    %p138 = scmp.lt.s32.totalorder %s9, 4
    %p139 = pnand %p137, %p138
    %p140 = pneg %p139
    // Predicated region
    $region29: #{_compute.16} parent=5 // pred_check
      _
    $region30: #{_compute.16} parent=5 // pred_check_branch
      %142 = sbr.rel (%p139) target = $region32
    $region31: #{_compute.16} parent=5 // pred_region
      %s143 = ssub.s32 %s9, 1
      %s144 = smul.u32 16, %s14
      %p145 = scmp.lt.s32.totalorder %s144, 47
      %s146 = scalar_select %p145, %s144, 47
      %s147 = smul.addr %s146, 8
      %s148 = scalar_lea.vmem %s0, %s147
      %p149 = pneg %p35
      %p150 = pneg %p32
      %p151 = pneg %p56
      %p152 = pneg %p53
      %p153 = pneg %p77
      %p154 = pneg %p74
      %p155 = pneg %p103
      %p156 = pneg %p100
      %s157 = smul.u32 16, %s14
      %p158 = scmp.lt.s32.totalorder %s157, 47
      %s159 = scalar_select %p158, %s157, 47
      %s160 = smul.addr %s159, 8
      %s161 = scalar_lea.vmem %s3, %s160
      %s162 = smul.u32 16, %s14
      %p163 = scmp.lt.s32.totalorder %s162, 47
      %s164 = scalar_select %p163, %s162, 47
      %s165 = smul.addr %s164, 8
      %s166 = scalar_lea.vmem %s0, %s165
      %s167 = smul.u32 16, %s14
      %s168 = smul.u32 16, %s14
      %p169 = scmp.lt.s32.totalorder %s168, 47
      %s170 = scalar_select %p169, %s168, 47
      %s171 = smul.addr %s170, 8
      %s172 = scalar_lea.vmem %s3, %s171
      %s173 = smul.u32 16, %s14
      %v174 = vld [vmem:[%s166] sm:$0xff]
      %v175 = vld [vmem:[%s166 + $0x8] sm:$0xff]
      %v176 = vld [vmem:[%s166 + $0x10] sm:$0xff]
      %v177 = vld [vmem:[%s166 + $0x18] sm:$0xff]
      %v178 = vld [vmem:[%s166 + $0x20] sm:$0xff]
      %v179 = vld [vmem:[%s166 + $0x28] sm:$0xff]
      %v180 = vld [vmem:[%s166 + $0x30] sm:$0xff]
      %v181 = vld [vmem:[%s166 + $0x38] sm:$0xff]
      %v182 = vld [vmem:[%s166 + $0x40] sm:$0xff]
      %v183 = vld [vmem:[%s166 + $0x48] sm:$0xff]
      %v184 = vld [vmem:[%s166 + $0x50] sm:$0xff]
      %v185 = vld [vmem:[%s166 + $0x58] sm:$0xff]
      %v186 = vld [vmem:[%s166 + $0x60] sm:$0xff]
      %v187 = vld [vmem:[%s166 + $0x68] sm:$0xff]
      %v188 = vld [vmem:[%s166 + $0x70] sm:$0xff]
      %v189 = vld [vmem:[%s166 + $0x78] sm:$0xff]
      %v190 = vld [vmem:[%s1] sm:$0xff]
      %v191 = vld [vmem:[%s1 + $0x8] sm:$0x1]
      %v192 = vld [vmem:[%s2] sm:$0x1]
      %v194 = vperm.slane %v192, 0
      %vm196 = vcmask 72704
      %v198 = vsel %vm196, %v174, 0
      %v201 = vsel %vm196, %v175, 0
      %v204 = vsel %vm196, %v176, 0
      %v207 = vsel %vm196, %v177, 0
      %v210 = vsel %vm196, %v178, 0
      %v213 = vsel %vm196, %v179, 0
      %v216 = vsel %vm196, %v180, 0
      %v219 = vsel %vm196, %v181, 0
      %v222 = vsel %vm196, %v182, 0
      %v225 = vsel %vm196, %v183, 0
      %v228 = vsel %vm196, %v184, 0
      %v231 = vsel %vm196, %v185, 0
      %v234 = vsel %vm196, %v186, 0
      %v237 = vsel %vm196, %v187, 0
      %v240 = vsel %vm196, %v188, 0
      %v243 = vsel %vm196, %v189, 0
      %vm245 = vcmask 1040384
      %v247 = vsel %vm245, %v191, 0
      %249 = vmatpush.msra.mxu0 0.0
      %250 = vmatpush.msra.mxu0 0.0
      %251 = vmatpush.msra.mxu0 0.0
      %252 = vmatpush.msra.mxu0 0.0
      %253 = vmatpush.msra.mxu0 0.0
      %254 = vmatpush.msra.mxu0 0.0
      %255 = vmatpush.msra.mxu0 0.0
      %256 = vmatpush.msra.mxu0 0.0
      %257 = vmatpush.msra.mxu0 0.0
      %258 = vmatpush.msra.mxu0 0.0
      %259 = vmatpush.msra.mxu0 0.0
      %260 = vmatpush.msra.mxu0 0.0
      %261 = vmatpush.msra.mxu0 0.0
      %262 = vmatpush.msra.mxu0 0.0
      %263 = vmatpush.msra.mxu0 %v247
      %264 = vmatpush.msra.mxu0 %v190
      %265 = vmatmul.f32.gmra.mxu0 %v198
      %v266 = vpop.f32.mrf.mxu0
      %v267 = vadd.f32 %v194, %v266
      %268 = vmatmul.f32.gmra.mxu0 %v201
      %v269 = vpop.f32.mrf.mxu0
      %v270 = vadd.f32 %v194, %v269
      %271 = vmatmul.f32.gmra.mxu0 %v204
      %v272 = vpop.f32.mrf.mxu0
      %v273 = vadd.f32 %v194, %v272
      %274 = vmatmul.f32.gmra.mxu0 %v207
      %v275 = vpop.f32.mrf.mxu0
      %v276 = vadd.f32 %v194, %v275
      %277 = vmatmul.f32.gmra.mxu0 %v210
      %v278 = vpop.f32.mrf.mxu0
      %v279 = vadd.f32 %v194, %v278
      %280 = vmatmul.f32.gmra.mxu0 %v213
      %v281 = vpop.f32.mrf.mxu0
      %v282 = vadd.f32 %v194, %v281
      %283 = vmatmul.f32.gmra.mxu0 %v216
      %v284 = vpop.f32.mrf.mxu0
      %v285 = vadd.f32 %v194, %v284
      %286 = vmatmul.f32.gmra.mxu0 %v219
      %v287 = vpop.f32.mrf.mxu0
      %v288 = vadd.f32 %v194, %v287
      %289 = vmatmul.f32.gmra.mxu0 %v222
      %v290 = vpop.f32.mrf.mxu0
      %v291 = vadd.f32 %v194, %v290
      %292 = vmatmul.f32.gmra.mxu0 %v225
      %v293 = vpop.f32.mrf.mxu0
      %v294 = vadd.f32 %v194, %v293
      %295 = vmatmul.f32.gmra.mxu0 %v228
      %v296 = vpop.f32.mrf.mxu0
      %v297 = vadd.f32 %v194, %v296
      %298 = vmatmul.f32.gmra.mxu0 %v231
      %v299 = vpop.f32.mrf.mxu0
      %v300 = vadd.f32 %v194, %v299
      %301 = vmatmul.f32.gmra.mxu0 %v234
      %v302 = vpop.f32.mrf.mxu0
      %v303 = vadd.f32 %v194, %v302
      %304 = vmatmul.f32.gmra.mxu0 %v237
      %v305 = vpop.f32.mrf.mxu0
      %v306 = vadd.f32 %v194, %v305
      %307 = vmatmul.f32.gmra.mxu0 %v240
      %v308 = vpop.f32.mrf.mxu0
      %v309 = vadd.f32 %v194, %v308
      %310 = vmatmul.f32.gmra.mxu0 %v243
      %v311 = vpop.f32.mrf.mxu0
      %v312 = vadd.f32 %v194, %v311
      %313 = vdwg.mxu0
      %v314 = vmax.f32 %v267, 0.0
      %v315 = vmax.f32 %v270, 0.0
      %v316 = vmax.f32 %v273, 0.0
      %v317 = vmax.f32 %v276, 0.0
      %v318 = vmax.f32 %v279, 0.0
      %v319 = vmax.f32 %v282, 0.0
      %v320 = vmax.f32 %v285, 0.0
      %v321 = vmax.f32 %v288, 0.0
      %v322 = vmax.f32 %v291, 0.0
      %v323 = vmax.f32 %v294, 0.0
      %v324 = vmax.f32 %v297, 0.0
      %v325 = vmax.f32 %v300, 0.0
      %v326 = vmax.f32 %v303, 0.0
      %v327 = vmax.f32 %v306, 0.0
      %v328 = vmax.f32 %v309, 0.0
      %v329 = vmax.f32 %v312, 0.0
      %330 = vst [vmem:[%s172] sm:$0xff] %v314
      %331 = vst [vmem:[%s172 + $0x8] sm:$0xff] %v315
      %332 = vst [vmem:[%s172 + $0x10] sm:$0xff] %v316
      %333 = vst [vmem:[%s172 + $0x18] sm:$0xff] %v317
      %334 = vst [vmem:[%s172 + $0x20] sm:$0xff] %v318
      %335 = vst [vmem:[%s172 + $0x28] sm:$0xff] %v319
      %336 = vst [vmem:[%s172 + $0x30] sm:$0xff] %v320
      %337 = vst [vmem:[%s172 + $0x38] sm:$0xff] %v321
      %338 = vst [vmem:[%s172 + $0x40] sm:$0xff] %v322
      %339 = vst [vmem:[%s172 + $0x48] sm:$0xff] %v323
      %340 = vst [vmem:[%s172 + $0x50] sm:$0xff] %v324
      %341 = vst [vmem:[%s172 + $0x58] sm:$0xff] %v325
      %342 = vst [vmem:[%s172 + $0x60] sm:$0xff] %v326
      %343 = vst [vmem:[%s172 + $0x68] sm:$0xff] %v327
      %344 = vst [vmem:[%s172 + $0x70] sm:$0xff] %v328
      %345 = vst [vmem:[%s172 + $0x78] sm:$0xff] %v329
      %s346 = smul.u32 16, %s14
      %p347 = scmp.lt.s32.totalorder %s346, 47
      %s348 = scalar_select %p347, %s346, 47
      %s349 = smul.addr %s348, 8
      %s350 = scalar_lea.vmem %s3, %s349
      // Predicated region
      $region33: #{_compute.16} parent=31 // pred_check
        %p351 = pneg %p100
      $region34: #{_compute.16} parent=31 // pred_check_branch
        %353 = sbr.rel (%p351) target = $region36
      $region35: #{_compute.16} parent=31 // pred_region
        %s354 = smul.u32 16, %s14
      $region36: #{_compute.16} parent=31 // pred_fallthru
        _
    $region32: #{_compute.16} parent=5 // pred_fallthru
      _
    %p355 = scmp.le.s32.totalorder 2, %s9
    // Predicated region
    $region37: #{_compute.16} parent=5 // pred_check
      %p356 = pneg %p355
    $region38: #{_compute.16} parent=5 // pred_check_branch
      %358 = sbr.rel (%p356) target = $region40
    $region39: #{_compute.16} parent=5 // pred_region
      %s359 = ssub.s32 %s9, 2
      // Predicated region
      $region41: #{_compute.16} parent=39 // pred_check
        %p360 = pneg %p106
      $region42: #{_compute.16} parent=39 // pred_check_branch
        %362 = sbr.rel (%p360) target = $region44
      $region43: #{_compute.16} parent=39 // pred_region
        %s363 = smul.u32 16, %s15
        %p364 = scmp.lt.s32.totalorder %s363, 47
        %s365 = scalar_select %p364, %s363, 47
        %s366 = smul.addr %s365, 8
        %s367 = scalar_lea.vmem %s3, %s366
      $region44: #{_compute.16} parent=39 // pred_fallthru
        _
    $region40: #{_compute.16} parent=5 // pred_fallthru
      _
  $region6: #{_compute.16} parent=0 // loop_footer
    %s13 = sadd.s32 1, %s9
  $region7: #{_compute.16} parent=0 // loop_footer_branch
    %8 = sbr.rel target = $region3
  $region8: #{_compute.16} parent=0 // loop_exit
    _

// kernel: _compute.17
$region0: #{_compute.17}
  #allocation0 [shape = 'u32[]', space=smem, size = 0x4, offset = 0x4, fixed_abs, tag = 'smem constant byte address 0x4 - core index']
  #allocation1 [shape = 'u32[72,128]{1,0:T(1,128)}', space=vmem, size = 0x9000, scoped, tag = 'internal scratch']
  %s0 = inlined_call_operand.vmem [shape: f32[96,144], index: 0, kind: input, shape index: {}]
  %s1 = inlined_call_operand.vmem [shape: f32[144,128], index: 1, kind: input, shape index: {}]
  %s2 = inlined_call_operand.vmem [shape: f32[1,128], index: 2, kind: input, shape index: {}]
  %s3 = inlined_call_operand.vmem [shape: f32[96,128], index: 3, kind: output, shape index: {}]
  %s4 = sld [smem:[#allocation0]]
  $region22: #{_compute.17} parent=0
    _
  %s6 = ssub.s32 1, %s4
  %s7 = scalar_select 0, %s6, %s4
  // Predicated region
  $region2: #{_compute.17} parent=0 // pred_check
    _
  $region3: #{_compute.17} parent=0 // pred_check_branch
    %9 = sbr.rel (0) target = $region5
  $region4: #{_compute.17} parent=0 // pred_region
    _
  $region5: #{_compute.17} parent=0 // pred_fallthru
    _
  // Predicated region
  $region6: #{_compute.17} parent=0 // pred_check
    _
  $region7: #{_compute.17} parent=0 // pred_check_branch
    %11 = sbr.rel (0) target = $region9
  $region8: #{_compute.17} parent=0 // pred_region
    _
  $region9: #{_compute.17} parent=0 // pred_fallthru
    _
  // Predicated region
  $region10: #{_compute.17} parent=0 // pred_check
    _
  $region11: #{_compute.17} parent=0 // pred_check_branch
    %13 = sbr.rel (0) target = $region13
  $region12: #{_compute.17} parent=0 // pred_region
    _
  $region13: #{_compute.17} parent=0 // pred_fallthru
    _
  %v14 = vld [vmem:[%s0] sm:$0xff]
  %v15 = vld [vmem:[%s0 + $0x8] sm:$0xff]
  %v16 = vld [vmem:[%s0 + $0x10] sm:$0xff]
  %v17 = vld [vmem:[%s0 + $0x18] sm:$0xff]
  %v18 = vld [vmem:[%s0 + $0x20] sm:$0xff]
  %v19 = vld [vmem:[%s0 + $0x28] sm:$0xff]
  %v20 = vld [vmem:[%s0 + $0x30] sm:$0xff]
  %v21 = vld [vmem:[%s0 + $0x38] sm:$0xff]
  %v22 = vld [vmem:[%s0 + $0x40] sm:$0xff]
  %v23 = vld [vmem:[%s0 + $0x48] sm:$0xff]
  %v24 = vld [vmem:[%s0 + $0x50] sm:$0xff]
  %v25 = vld [vmem:[%s0 + $0x58] sm:$0xff]
  %v26 = vld [vmem:[%s0 + $0x60] sm:$0xff]
  %v27 = vld [vmem:[%s0 + $0x68] sm:$0xff]
  %v28 = vld [vmem:[%s0 + $0x70] sm:$0xff]
  %v29 = vld [vmem:[%s0 + $0x78] sm:$0xff]
  %v30 = vld [vmem:[%s0 + $0x80] sm:$0xff]
  %v31 = vld [vmem:[%s0 + $0x88] sm:$0xff]
  %v32 = vld [vmem:[%s0 + $0x90] sm:$0xff]
  %v33 = vld [vmem:[%s0 + $0x98] sm:$0xff]
  %v34 = vld [vmem:[%s0 + $0xa0] sm:$0xff]
  %v35 = vld [vmem:[%s0 + $0xa8] sm:$0xff]
  %v36 = vld [vmem:[%s0 + $0xb0] sm:$0xff]
  %v37 = vld [vmem:[%s0 + $0xb8] sm:$0xff]
  %v38 = vld [vmem:[%s1] sm:$0xff]
  %v39 = vld [vmem:[%s1 + $0x8] sm:$0xff]
  %v40 = vld [vmem:[%s1 + $0x10] sm:$0xff]
  %v41 = vld [vmem:[%s1 + $0x18] sm:$0xff]
  %v42 = vld [vmem:[%s1 + $0x20] sm:$0xff]
  %v43 = vld [vmem:[%s1 + $0x28] sm:$0xff]
  %v44 = vld [vmem:[%s1 + $0x30] sm:$0xff]
  %v45 = vld [vmem:[%s1 + $0x38] sm:$0xff]
  %v46 = vld [vmem:[%s1 + $0x40] sm:$0xff]
  %v47 = vld [vmem:[%s1 + $0x48] sm:$0xff]
  %v48 = vld [vmem:[%s1 + $0x50] sm:$0xff]
  %v49 = vld [vmem:[%s1 + $0x58] sm:$0xff]
  %v50 = vld [vmem:[%s1 + $0x60] sm:$0xff]
  %v51 = vld [vmem:[%s1 + $0x68] sm:$0xff]
  %v52 = vld [vmem:[%s1 + $0x70] sm:$0xff]
  %v53 = vld [vmem:[%s1 + $0x78] sm:$0xff]
  %v54 = vld [vmem:[%s1 + $0x80] sm:$0xff]
  %v55 = vld [vmem:[%s1 + $0x88] sm:$0xff]
  %v56 = vld [vmem:[%s2] sm:$0x1]
  %v58 = vperm.slane %v56, 0
  %vm60 = vcmask 130048
  %v62 = vsel %vm60, %v15, 0
  %v65 = vsel %vm60, %v17, 0
  %v68 = vsel %vm60, %v19, 0
  %v71 = vsel %vm60, %v21, 0
  %v74 = vsel %vm60, %v23, 0
  %v77 = vsel %vm60, %v25, 0
  %v80 = vsel %vm60, %v27, 0
  %v83 = vsel %vm60, %v29, 0
  %v86 = vsel %vm60, %v31, 0
  %v89 = vsel %vm60, %v33, 0
  %v92 = vsel %vm60, %v35, 0
  %v95 = vsel %vm60, %v37, 0
  %97 = vmatpush.msra.mxu0 %v53
  %98 = vmatpush.msra.mxu0 %v52
  %99 = vmatpush.msra.mxu0 %v51
  %100 = vmatpush.msra.mxu0 %v50
  %101 = vmatpush.msra.mxu0 %v49
  %102 = vmatpush.msra.mxu0 %v48
  %103 = vmatpush.msra.mxu0 %v47
  %104 = vmatpush.msra.mxu0 %v46
  %105 = vmatpush.msra.mxu0 %v45
  %106 = vmatpush.msra.mxu0 %v44
  %107 = vmatpush.msra.mxu0 %v43
  %108 = vmatpush.msra.mxu0 %v42
  %109 = vmatpush.msra.mxu0 %v41
  %110 = vmatpush.msra.mxu0 %v40
  %111 = vmatpush.msra.mxu0 %v39
  %112 = vmatpush.msra.mxu0 %v38
  %113 = vmatmul.f32.gmra.mxu0 %v14
  %v114 = vpop.f32.mrf.mxu0
  %v115 = vadd.f32 %v58, %v114
  %116 = vmatmul.f32.gmra.mxu0 %v16
  %v117 = vpop.f32.mrf.mxu0
  %v118 = vadd.f32 %v58, %v117
  %119 = vmatmul.f32.gmra.mxu0 %v18
  %v120 = vpop.f32.mrf.mxu0
  %v121 = vadd.f32 %v58, %v120
  %122 = vmatmul.f32.gmra.mxu0 %v20
  %v123 = vpop.f32.mrf.mxu0
  %v124 = vadd.f32 %v58, %v123
  %125 = vmatmul.f32.gmra.mxu0 %v22
  %v126 = vpop.f32.mrf.mxu0
  %v127 = vadd.f32 %v58, %v126
  %128 = vmatmul.f32.gmra.mxu0 %v24
  %v129 = vpop.f32.mrf.mxu0
  %v130 = vadd.f32 %v58, %v129
  %131 = vmatmul.f32.gmra.mxu0 %v26
  %v132 = vpop.f32.mrf.mxu0
  %v133 = vadd.f32 %v58, %v132
  %134 = vmatmul.f32.gmra.mxu0 %v28
  %v135 = vpop.f32.mrf.mxu0
  %v136 = vadd.f32 %v58, %v135
  %137 = vmatmul.f32.gmra.mxu0 %v30
  %v138 = vpop.f32.mrf.mxu0
  %v139 = vadd.f32 %v58, %v138
  %140 = vmatmul.f32.gmra.mxu0 %v32
  %v141 = vpop.f32.mrf.mxu0
  %v142 = vadd.f32 %v58, %v141
  %143 = vmatmul.f32.gmra.mxu0 %v34
  %v144 = vpop.f32.mrf.mxu0
  %v145 = vadd.f32 %v58, %v144
  %146 = vmatmul.f32.gmra.mxu0 %v36
  %v147 = vpop.f32.mrf.mxu0
  %v148 = vadd.f32 %v58, %v147
  %149 = vdwg.mxu0
  %150 = vmatpush.msra.mxu0 0.0
  %151 = vmatpush.msra.mxu0 0.0
  %152 = vmatpush.msra.mxu0 0.0
  %153 = vmatpush.msra.mxu0 0.0
  %154 = vmatpush.msra.mxu0 0.0
  %155 = vmatpush.msra.mxu0 0.0
  %156 = vmatpush.msra.mxu0 0.0
  %157 = vmatpush.msra.mxu0 0.0
  %158 = vmatpush.msra.mxu0 0.0
  %159 = vmatpush.msra.mxu0 0.0
  %160 = vmatpush.msra.mxu0 0.0
  %161 = vmatpush.msra.mxu0 0.0
  %162 = vmatpush.msra.mxu0 0.0
  %163 = vmatpush.msra.mxu0 0.0
  %164 = vmatpush.msra.mxu0 %v55
  %165 = vmatpush.msra.mxu0 %v54
  %166 = vmatmul.f32.gmra.mxu0 %v62
  %v167 = vpop.f32.mrf.mxu0
  %v168 = vadd.f32 %v115, %v167
  %169 = vmatmul.f32.gmra.mxu0 %v65
  %v170 = vpop.f32.mrf.mxu0
  %v171 = vadd.f32 %v118, %v170
  %172 = vmatmul.f32.gmra.mxu0 %v68
  %v173 = vpop.f32.mrf.mxu0
  %v174 = vadd.f32 %v121, %v173
  %175 = vmatmul.f32.gmra.mxu0 %v71
  %v176 = vpop.f32.mrf.mxu0
  %v177 = vadd.f32 %v124, %v176
  %178 = vmatmul.f32.gmra.mxu0 %v74
  %v179 = vpop.f32.mrf.mxu0
  %v180 = vadd.f32 %v127, %v179
  %181 = vmatmul.f32.gmra.mxu0 %v77
  %v182 = vpop.f32.mrf.mxu0
  %v183 = vadd.f32 %v130, %v182
  %184 = vmatmul.f32.gmra.mxu0 %v80
  %v185 = vpop.f32.mrf.mxu0
  %v186 = vadd.f32 %v133, %v185
  %187 = vmatmul.f32.gmra.mxu0 %v83
  %v188 = vpop.f32.mrf.mxu0
  %v189 = vadd.f32 %v136, %v188
  %190 = vmatmul.f32.gmra.mxu0 %v86
  %v191 = vpop.f32.mrf.mxu0
  %v192 = vadd.f32 %v139, %v191
  %193 = vmatmul.f32.gmra.mxu0 %v89
  %v194 = vpop.f32.mrf.mxu0
  %v195 = vadd.f32 %v142, %v194
  %196 = vmatmul.f32.gmra.mxu0 %v92
  %v197 = vpop.f32.mrf.mxu0
  %v198 = vadd.f32 %v145, %v197
  %199 = vmatmul.f32.gmra.mxu0 %v95
  %v200 = vpop.f32.mrf.mxu0
  %v201 = vadd.f32 %v148, %v200
  %202 = vdwg.mxu0
  %v203 = vmax.f32 %v168, 0.0
  %v204 = vmax.f32 %v171, 0.0
  %v205 = vmax.f32 %v174, 0.0
  %v206 = vmax.f32 %v177, 0.0
  %v207 = vmax.f32 %v180, 0.0
  %v208 = vmax.f32 %v183, 0.0
  %v209 = vmax.f32 %v186, 0.0
  %v210 = vmax.f32 %v189, 0.0
  %v211 = vmax.f32 %v192, 0.0
  %v212 = vmax.f32 %v195, 0.0
  %v213 = vmax.f32 %v198, 0.0
  %v214 = vmax.f32 %v201, 0.0
  %215 = vst [vmem:[%s3] sm:$0xff] %v203
  %216 = vst [vmem:[%s3 + $0x8] sm:$0xff] %v204
  %217 = vst [vmem:[%s3 + $0x10] sm:$0xff] %v205
  %218 = vst [vmem:[%s3 + $0x18] sm:$0xff] %v206
  %219 = vst [vmem:[%s3 + $0x20] sm:$0xff] %v207
  %220 = vst [vmem:[%s3 + $0x28] sm:$0xff] %v208
  %221 = vst [vmem:[%s3 + $0x30] sm:$0xff] %v209
  %222 = vst [vmem:[%s3 + $0x38] sm:$0xff] %v210
  %223 = vst [vmem:[%s3 + $0x40] sm:$0xff] %v211
  %224 = vst [vmem:[%s3 + $0x48] sm:$0xff] %v212
  %225 = vst [vmem:[%s3 + $0x50] sm:$0xff] %v213
  %226 = vst [vmem:[%s3 + $0x58] sm:$0xff] %v214
  // Predicated region
  $region14: #{_compute.17} parent=0 // pred_check
    _
  $region15: #{_compute.17} parent=0 // pred_check_branch
    %228 = sbr.rel (0) target = $region17
  $region16: #{_compute.17} parent=0 // pred_region
    _
  $region17: #{_compute.17} parent=0 // pred_fallthru
    _
  // Predicated region
  $region18: #{_compute.17} parent=0 // pred_check
    _
  $region19: #{_compute.17} parent=0 // pred_check_branch
    %230 = sbr.rel (0) target = $region21
  $region20: #{_compute.17} parent=0 // pred_region
    _
  $region21: #{_compute.17} parent=0 // pred_fallthru
    _

// kernel: _compute.18
$region0: #{_compute.18}
  #allocation0 [shape = 'u32[]', space=smem, size = 0x4, offset = 0x4, fixed_abs, tag = 'smem constant byte address 0x4 - core index']
  #allocation1 [shape = 'u32[72,128]{1,0:T(1,128)}', space=vmem, size = 0x9000, scoped, tag = 'internal scratch']
  #allocation2 [shape = 'f32[32,16]{1,0:T(8,128)}', space=vmem, size = 0x4000, scoped, tag = 'scratch operand']
  #allocation3 [shape = 'f32[32,16]{1,0:T(8,128)}', space=vmem, size = 0x4000, scoped, tag = 'scratch operand']
  %s0 = inlined_call_operand.vmem [shape: f32[3,32,144], index: 0, kind: input, shape index: {}]
  %s1 = inlined_call_operand.vmem [shape: f32[144,512], index: 1, kind: input, shape index: {}]
  %s2 = inlined_call_operand.vmem [shape: f32[9,16,512], index: 2, kind: input, shape index: {}]
  %s3 = inlined_call_operand.vmem [shape: f32[1,512], index: 3, kind: input, shape index: {}]
  %s4 = inlined_call_operand.vmem [shape: f32[32,16], index: 4, kind: input, shape index: {}]
  %s5 = inlined_call_operand.vmem [shape: f32[32,16], index: 5, kind: input, shape index: {}]
  %s6 = inlined_call_operand.vmem [shape: f32[32,16], index: 6, kind: input, shape index: {}]
  %s7 = inlined_call_operand.vmem [shape: f32[9,32,32], index: 7, kind: input, shape index: {}]
  %s8 = inlined_call_operand.vmem [shape: f32[32,16], index: 8, kind: input, shape index: {}, may-alias: {8,9}]
  %s9 = inlined_call_operand.vmem [shape: f32[32,16], index: 9, kind: input, shape index: {}, may-alias: {8,9}]
  %s10 = inlined_call_operand.vmem [shape: f32[3,32,16], index: 10, kind: output, shape index: {0}]
  %s11 = inlined_call_operand.vmem [shape: f32[32,16], index: 11, kind: output, shape index: {1}]
  %12 = xla_tuple %s10, %s11
  %s13 = sld [smem:[#allocation0]]
  $region85: #{_compute.18} parent=0
    _
  %s15 = ssub.s32 1, %s13
  %s16 = scalar_select 0, %s15, %s13
  loop: start=0, step=1, limit=5
  $region2: #{_compute.18} parent=0 // loop_pre_header
    _
  $region3: #{_compute.18} parent=0 // loop_header
    %s18 = sphi 0, %s22
    %p19 = scmp.ge.s32.totalorder %s18, 5
    %s28 = sphi 0, %s30
    %s31 = sphi 0, %s28
    %s32 = sphi 0, %s31
    %s48 = sphi 0, %s32
    %s52 = sphi 0, %s52
    %s54 = sphi 0, %s52
    %s55 = sphi 0, %s54
    %s69 = sphi 0, %s55
    %s73 = sphi 0, %s73
    %s75 = sphi 0, %s73
    %s76 = sphi 0, %s75
    %s90 = sphi 0, %s76
    %s94 = sphi 0, %s94
    %s96 = sphi 0, %s94
    %s97 = sphi 0, %s96
    %s111 = sphi 0, %s97
    %s115 = sphi 0, %s115
    %s117 = sphi 0, %s115
    %s118 = sphi 0, %s117
    %s132 = sphi 0, %s118
    %s136 = sphi 0, %s136
    %s138 = sphi 0, %s136
    %s139 = sphi 0, %s138
    %s153 = sphi 0, %s139
    %s157 = sphi 0, %s157
    %s159 = sphi 0, %s157
    %s160 = sphi 0, %s159
    %s174 = sphi 0, %s160
    %s178 = sphi 0, %s178
    %s180 = sphi 0, %s178
    %s181 = sphi 0, %s180
    %s195 = sphi 0, %s181
    %s199 = sphi 0, %s199
    %s201 = sphi 0, %s199
    %s202 = sphi 0, %s201
    %s216 = sphi 0, %s202
    %s220 = sphi 0, %s220
    %s222 = sphi 0, %s220
    %s223 = sphi 0, %s222
    %s237 = sphi 0, %s223
    %s243 = sphi 0, %s245
    %s246 = sphi 0, %s243
    %s247 = sphi 0, %s246
    %s263 = sphi 0, %s247
    %s267 = sphi 0, %s267
    %s269 = sphi 0, %s267
    %s270 = sphi 0, %s269
    %s284 = sphi 0, %s270
  $region4: #{_compute.18} parent=0 // loop_header_branch
    %21 = sbr.rel (%p19) target = $region8
  $region5: #{_compute.18} parent=0 // loop_body
    %s23 = ssub.s32 %s18, 1
    %s24 = ssub.s32 %s18, 2
    %s25 = sadd.s32 %s18, 1
    %s26 = ssub.s32 %s18, %s25
    %p27 = scmp.eq.s32.totalorder %s26, 0
    %s29 = sadd.s32 %s28, 1
    %s30 = scalar_select %p27, %s28, %s29
    %p33 = pneg %p27
    %p34 = scmp.eq.s32.totalorder %s18, 2
    %p35 = por %p33, %p34
    %p36 = scmp.ne.s32.totalorder %s28, %s31
    %p37 = scmp.eq.s32.totalorder %s18, 0
    %p38 = por %p36, %p37
    %p39 = scmp.ne.s32.totalorder %s28, %s31
    %p40 = scmp.eq.s32.totalorder %s23, 2
    %p41 = por %p39, %p40
    %p42 = scmp.ne.s32.totalorder %s31, %s32
    %p43 = scmp.eq.s32.totalorder %s23, 0
    %p44 = por %p42, %p43
    %p45 = scmp.ne.s32.totalorder %s31, %s32
    %p46 = scmp.eq.s32.totalorder %s24, 2
    %p47 = por %p45, %p46
    %p49 = scmp.ne.s32.totalorder %s32, %s48
    %p50 = scmp.eq.s32.totalorder %s24, 0
    %p51 = por %p49, %p50
    %s53 = sadd.s32 %s52, 1
    %p56 = scmp.eq.s32.totalorder %s18, 2
    %p57 = scmp.ne.s32.totalorder %s52, %s54
    %p58 = scmp.eq.s32.totalorder %s18, 0
    %p59 = por %p57, %p58
    %p60 = scmp.ne.s32.totalorder %s52, %s54
    %p61 = scmp.eq.s32.totalorder %s23, 2
    %p62 = por %p60, %p61
    %p63 = scmp.ne.s32.totalorder %s54, %s55
    %p64 = scmp.eq.s32.totalorder %s23, 0
    %p65 = por %p63, %p64
    %p66 = scmp.ne.s32.totalorder %s54, %s55
    %p67 = scmp.eq.s32.totalorder %s24, 2
    %p68 = por %p66, %p67
    %p70 = scmp.ne.s32.totalorder %s55, %s69
    %p71 = scmp.eq.s32.totalorder %s24, 0
    %p72 = por %p70, %p71
    %s74 = sadd.s32 %s73, 1
    %p77 = scmp.eq.s32.totalorder %s18, 2
    %p78 = scmp.ne.s32.totalorder %s73, %s75
    %p79 = scmp.eq.s32.totalorder %s18, 0
    %p80 = por %p78, %p79
    %p81 = scmp.ne.s32.totalorder %s73, %s75
    %p82 = scmp.eq.s32.totalorder %s23, 2
    %p83 = por %p81, %p82
    %p84 = scmp.ne.s32.totalorder %s75, %s76
    %p85 = scmp.eq.s32.totalorder %s23, 0
    %p86 = por %p84, %p85
    %p87 = scmp.ne.s32.totalorder %s75, %s76
    %p88 = scmp.eq.s32.totalorder %s24, 2
    %p89 = por %p87, %p88
    %p91 = scmp.ne.s32.totalorder %s76, %s90
    %p92 = scmp.eq.s32.totalorder %s24, 0
    %p93 = por %p91, %p92
    %s95 = sadd.s32 %s94, 1
    %p98 = scmp.eq.s32.totalorder %s18, 2
    %p99 = scmp.ne.s32.totalorder %s94, %s96
    %p100 = scmp.eq.s32.totalorder %s18, 0
    %p101 = por %p99, %p100
    %p102 = scmp.ne.s32.totalorder %s94, %s96
    %p103 = scmp.eq.s32.totalorder %s23, 2
    %p104 = por %p102, %p103
    %p105 = scmp.ne.s32.totalorder %s96, %s97
    %p106 = scmp.eq.s32.totalorder %s23, 0
    %p107 = por %p105, %p106
    %p108 = scmp.ne.s32.totalorder %s96, %s97
    %p109 = scmp.eq.s32.totalorder %s24, 2
    %p110 = por %p108, %p109
    %p112 = scmp.ne.s32.totalorder %s97, %s111
    %p113 = scmp.eq.s32.totalorder %s24, 0
    %p114 = por %p112, %p113
    %s116 = sadd.s32 %s115, 1
    %p119 = scmp.eq.s32.totalorder %s18, 2
    %p120 = scmp.ne.s32.totalorder %s115, %s117
    %p121 = scmp.eq.s32.totalorder %s18, 0
    %p122 = por %p120, %p121
    %p123 = scmp.ne.s32.totalorder %s115, %s117
    %p124 = scmp.eq.s32.totalorder %s23, 2
    %p125 = por %p123, %p124
    %p126 = scmp.ne.s32.totalorder %s117, %s118
    %p127 = scmp.eq.s32.totalorder %s23, 0
    %p128 = por %p126, %p127
    %p129 = scmp.ne.s32.totalorder %s117, %s118
    %p130 = scmp.eq.s32.totalorder %s24, 2
    %p131 = por %p129, %p130
    %p133 = scmp.ne.s32.totalorder %s118, %s132
    %p134 = scmp.eq.s32.totalorder %s24, 0
    %p135 = por %p133, %p134
    %s137 = sadd.s32 %s136, 1
    %p140 = scmp.eq.s32.totalorder %s18, 2
    %p141 = scmp.ne.s32.totalorder %s136, %s138
    %p142 = scmp.eq.s32.totalorder %s18, 0
    %p143 = por %p141, %p142
    %p144 = scmp.ne.s32.totalorder %s136, %s138
    %p145 = scmp.eq.s32.totalorder %s23, 2
    %p146 = por %p144, %p145
    %p147 = scmp.ne.s32.totalorder %s138, %s139
    %p148 = scmp.eq.s32.totalorder %s23, 0
    %p149 = por %p147, %p148
    %p150 = scmp.ne.s32.totalorder %s138, %s139
    %p151 = scmp.eq.s32.totalorder %s24, 2
    %p152 = por %p150, %p151
    %p154 = scmp.ne.s32.totalorder %s139, %s153
    %p155 = scmp.eq.s32.totalorder %s24, 0
    %p156 = por %p154, %p155
    %s158 = sadd.s32 %s157, 1
    %p161 = scmp.eq.s32.totalorder %s18, 2
    %p162 = scmp.ne.s32.totalorder %s157, %s159
    %p163 = scmp.eq.s32.totalorder %s18, 0
    %p164 = por %p162, %p163
    %p165 = scmp.ne.s32.totalorder %s157, %s159
    %p166 = scmp.eq.s32.totalorder %s23, 2
    %p167 = por %p165, %p166
    %p168 = scmp.ne.s32.totalorder %s159, %s160
    %p169 = scmp.eq.s32.totalorder %s23, 0
    %p170 = por %p168, %p169
    %p171 = scmp.ne.s32.totalorder %s159, %s160
    %p172 = scmp.eq.s32.totalorder %s24, 2
    %p173 = por %p171, %p172
    %p175 = scmp.ne.s32.totalorder %s160, %s174
    %p176 = scmp.eq.s32.totalorder %s24, 0
    %p177 = por %p175, %p176
    %s179 = sadd.s32 %s178, 1
    %p182 = scmp.eq.s32.totalorder %s18, 2
    %p183 = scmp.ne.s32.totalorder %s178, %s180
    %p184 = scmp.eq.s32.totalorder %s18, 0
    %p185 = por %p183, %p184
    %p186 = scmp.ne.s32.totalorder %s178, %s180
    %p187 = scmp.eq.s32.totalorder %s23, 2
    %p188 = por %p186, %p187
    %p189 = scmp.ne.s32.totalorder %s180, %s181
    %p190 = scmp.eq.s32.totalorder %s23, 0
    %p191 = por %p189, %p190
    %p192 = scmp.ne.s32.totalorder %s180, %s181
    %p193 = scmp.eq.s32.totalorder %s24, 2
    %p194 = por %p192, %p193
    %p196 = scmp.ne.s32.totalorder %s181, %s195
    %p197 = scmp.eq.s32.totalorder %s24, 0
    %p198 = por %p196, %p197
    %s200 = sadd.s32 %s199, 1
    %p203 = scmp.eq.s32.totalorder %s18, 2
    %p204 = scmp.ne.s32.totalorder %s199, %s201
    %p205 = scmp.eq.s32.totalorder %s18, 0
    %p206 = por %p204, %p205
    %p207 = scmp.ne.s32.totalorder %s199, %s201
    %p208 = scmp.eq.s32.totalorder %s23, 2
    %p209 = por %p207, %p208
    %p210 = scmp.ne.s32.totalorder %s201, %s202
    %p211 = scmp.eq.s32.totalorder %s23, 0
    %p212 = por %p210, %p211
    %p213 = scmp.ne.s32.totalorder %s201, %s202
    %p214 = scmp.eq.s32.totalorder %s24, 2
    %p215 = por %p213, %p214
    %p217 = scmp.ne.s32.totalorder %s202, %s216
    %p218 = scmp.eq.s32.totalorder %s24, 0
    %p219 = por %p217, %p218
    %s221 = sadd.s32 %s220, 1
    %p224 = scmp.eq.s32.totalorder %s18, 2
    %p225 = scmp.ne.s32.totalorder %s220, %s222
    %p226 = scmp.eq.s32.totalorder %s18, 0
    %p227 = por %p225, %p226
    %p228 = scmp.ne.s32.totalorder %s220, %s222
    %p229 = scmp.eq.s32.totalorder %s23, 2
    %p230 = por %p228, %p229
    %p231 = scmp.ne.s32.totalorder %s222, %s223
    %p232 = scmp.eq.s32.totalorder %s23, 0
    %p233 = por %p231, %p232
    %p234 = scmp.ne.s32.totalorder %s222, %s223
    %p235 = scmp.eq.s32.totalorder %s24, 2
    %p236 = por %p234, %p235
    %p238 = scmp.ne.s32.totalorder %s223, %s237
    %p239 = scmp.eq.s32.totalorder %s24, 0
    %p240 = por %p238, %p239
    %s241 = ssub.s32 %s18, %s25
    %p242 = scmp.eq.s32.totalorder %s241, 0
    %s244 = sadd.s32 %s243, 1
    %s245 = scalar_select %p242, %s243, %s244
    %p248 = pneg %p242
    %p249 = scmp.eq.s32.totalorder %s18, 2
    %p250 = por %p248, %p249
    %p251 = scmp.ne.s32.totalorder %s243, %s246
    %p252 = scmp.eq.s32.totalorder %s18, 0
    %p253 = por %p251, %p252
    %p254 = scmp.ne.s32.totalorder %s243, %s246
    %p255 = scmp.eq.s32.totalorder %s23, 2
    %p256 = por %p254, %p255
    %p257 = scmp.ne.s32.totalorder %s246, %s247
    %p258 = scmp.eq.s32.totalorder %s23, 0
    %p259 = por %p257, %p258
    %p260 = scmp.ne.s32.totalorder %s246, %s247
    %p261 = scmp.eq.s32.totalorder %s24, 2
    %p262 = por %p260, %p261
    %p264 = scmp.ne.s32.totalorder %s247, %s263
    %p265 = scmp.eq.s32.totalorder %s24, 0
    %p266 = por %p264, %p265
    %s268 = sadd.s32 %s267, 1
    %p271 = scmp.eq.s32.totalorder %s18, 2
    %p272 = scmp.ne.s32.totalorder %s267, %s269
    %p273 = scmp.eq.s32.totalorder %s18, 0
    %p274 = por %p272, %p273
    %p275 = scmp.ne.s32.totalorder %s267, %s269
    %p276 = scmp.eq.s32.totalorder %s23, 2
    %p277 = por %p275, %p276
    %p278 = scmp.ne.s32.totalorder %s269, %s270
    %p279 = scmp.eq.s32.totalorder %s23, 0
    %p280 = por %p278, %p279
    %p281 = scmp.ne.s32.totalorder %s269, %s270
    %p282 = scmp.eq.s32.totalorder %s24, 2
    %p283 = por %p281, %p282
    %p285 = scmp.ne.s32.totalorder %s270, %s284
    %p286 = scmp.eq.s32.totalorder %s24, 0
    %p287 = por %p285, %p286
    %p288 = scmp.le.s32.totalorder 1, %s18
    %p289 = scmp.lt.s32.totalorder %s18, 4
    %p290 = pnand %p288, %p289
    %p291 = pneg %p290
    // Predicated region
    $region9: #{_compute.18} parent=5 // pred_check
      _
    $region10: #{_compute.18} parent=5 // pred_check_branch
      %293 = sbr.rel (%p290) target = $region12
    $region11: #{_compute.18} parent=5 // pred_region
      %s294 = ssub.s32 %s18, 1
      // Predicated region
      $region13: #{_compute.18} parent=11 // pred_check
        %p295 = pneg %p65
      $region14: #{_compute.18} parent=11 // pred_check_branch
        %297 = sbr.rel (%p295) target = $region16
      $region15: #{_compute.18} parent=11 // pred_region
        _
      $region16: #{_compute.18} parent=11 // pred_fallthru
        _
      // Predicated region
      $region17: #{_compute.18} parent=11 // pred_check
        %p298 = pneg %p86
      $region18: #{_compute.18} parent=11 // pred_check_branch
        %300 = sbr.rel (%p298) target = $region20
      $region19: #{_compute.18} parent=11 // pred_region
        _
      $region20: #{_compute.18} parent=11 // pred_fallthru
        _
      // Predicated region
      $region21: #{_compute.18} parent=11 // pred_check
        %p301 = pneg %p107
      $region22: #{_compute.18} parent=11 // pred_check_branch
        %303 = sbr.rel (%p301) target = $region24
      $region23: #{_compute.18} parent=11 // pred_region
        _
      $region24: #{_compute.18} parent=11 // pred_fallthru
        _
      // Predicated region
      $region25: #{_compute.18} parent=11 // pred_check
        %p304 = pneg %p128
      $region26: #{_compute.18} parent=11 // pred_check_branch
        %306 = sbr.rel (%p304) target = $region28
      $region27: #{_compute.18} parent=11 // pred_region
        _
      $region28: #{_compute.18} parent=11 // pred_fallthru
        _
      // Predicated region
      $region29: #{_compute.18} parent=11 // pred_check
        %p307 = pneg %p149
      $region30: #{_compute.18} parent=11 // pred_check_branch
        %309 = sbr.rel (%p307) target = $region32
      $region31: #{_compute.18} parent=11 // pred_region
        _
      $region32: #{_compute.18} parent=11 // pred_fallthru
        _
      // Predicated region
      $region33: #{_compute.18} parent=11 // pred_check
        %p310 = pneg %p170
      $region34: #{_compute.18} parent=11 // pred_check_branch
        %312 = sbr.rel (%p310) target = $region36
      $region35: #{_compute.18} parent=11 // pred_region
        _
      $region36: #{_compute.18} parent=11 // pred_fallthru
        _
      // Predicated region
      $region37: #{_compute.18} parent=11 // pred_check
        %p313 = pneg %p191
      $region38: #{_compute.18} parent=11 // pred_check_branch
        %315 = sbr.rel (%p313) target = $region40
      $region39: #{_compute.18} parent=11 // pred_region
        _
      $region40: #{_compute.18} parent=11 // pred_fallthru
        _
      // Predicated region
      $region41: #{_compute.18} parent=11 // pred_check
        %p316 = pneg %p212
      $region42: #{_compute.18} parent=11 // pred_check_branch
        %318 = sbr.rel (%p316) target = $region44
      $region43: #{_compute.18} parent=11 // pred_region
        _
      $region44: #{_compute.18} parent=11 // pred_fallthru
        _
      // Predicated region
      $region45: #{_compute.18} parent=11 // pred_check
        %p319 = pneg %p233
      $region46: #{_compute.18} parent=11 // pred_check_branch
        %321 = sbr.rel (%p319) target = $region48
      $region47: #{_compute.18} parent=11 // pred_region
        _
      $region48: #{_compute.18} parent=11 // pred_fallthru
        _
    $region12: #{_compute.18} parent=5 // pred_fallthru
      _
    %p322 = scmp.lt.s32.totalorder %s18, 3
    // Predicated region
    $region49: #{_compute.18} parent=5 // pred_check
      %p323 = pneg %p322
    $region50: #{_compute.18} parent=5 // pred_check_branch
      %325 = sbr.rel (%p323) target = $region52
    $region51: #{_compute.18} parent=5 // pred_region
      // Predicated region
      $region53: #{_compute.18} parent=51 // pred_check
        %p326 = pneg %p38
      $region54: #{_compute.18} parent=51 // pred_check_branch
        %328 = sbr.rel (%p326) target = $region56
      $region55: #{_compute.18} parent=51 // pred_region
        %p329 = scmp.lt.s32.totalorder %s18, 2
        %s330 = scalar_select %p329, %s18, 2
        %s331 = smul.addr %s330, 8
        %s332 = smul.addr %s331, 8
        %s333 = scalar_lea.vmem %s0, %s332
      $region56: #{_compute.18} parent=51 // pred_fallthru
        _
    $region52: #{_compute.18} parent=5 // pred_fallthru
      _
    %p334 = scmp.le.s32.totalorder 1, %s18
    %p335 = scmp.lt.s32.totalorder %s18, 4
    %p336 = pnand %p334, %p335
    %p337 = pneg %p336
    // Predicated region
    $region57: #{_compute.18} parent=5 // pred_check
      _
    $region58: #{_compute.18} parent=5 // pred_check_branch
      %339 = sbr.rel (%p336) target = $region60
    $region59: #{_compute.18} parent=5 // pred_region
      %s340 = ssub.s32 %s18, 1
      %p341 = scmp.lt.s32.totalorder %s23, 2
      %s342 = scalar_select %p341, %s23, 2
      %s343 = smul.addr %s342, 8
      %s344 = smul.addr %s343, 8
      %s345 = scalar_lea.vmem %s0, %s344
      %p346 = pneg %p44
      %p347 = pneg %p41
      %p348 = pneg %p65
      %p349 = pneg %p62
      %p350 = pneg %p86
      %p351 = pneg %p83
      %p352 = pneg %p107
      %p353 = pneg %p104
      %p354 = pneg %p128
      %p355 = pneg %p125
      %p356 = pneg %p149
      %p357 = pneg %p146
      %p358 = pneg %p170
      %p359 = pneg %p167
      %p360 = pneg %p191
      %p361 = pneg %p188
      %p362 = pneg %p212
      %p363 = pneg %p209
      %p364 = pneg %p233
      %p365 = pneg %p230
      %p366 = pneg %p259
      %p367 = pneg %p256
      %p368 = scmp.lt.s32.totalorder %s23, 2
      %s369 = scalar_select %p368, %s23, 2
      %s370 = smul.addr %s369, 4
      %s371 = smul.addr %s370, 8
      %s372 = scalar_lea.vmem %s10, %s371
      %p373 = pneg %p280
      %p374 = pneg %p277
      %p375 = scmp.lt.s32.totalorder %s23, 2
      %s376 = scalar_select %p375, %s23, 2
      %s377 = smul.addr %s376, 8
      %s378 = smul.addr %s377, 8
      %s379 = scalar_lea.vmem %s0, %s378
      %p380 = scmp.lt.s32.totalorder %s23, 2
      %s381 = scalar_select %p380, %s23, 2
      %s382 = smul.addr %s381, 4
      %s383 = smul.addr %s382, 8
      %s384 = scalar_lea.vmem %s10, %s383
      %p385 = scmp.eq.s32.totalorder %s23, 0
      // Predicated region
      $region61: #{_compute.18} parent=59 // pred_check
        %p386 = pneg %p385
      $region62: #{_compute.18} parent=59 // pred_check_branch
        %388 = sbr.rel (%p386) target = $region64
      $region63: #{_compute.18} parent=59 // pred_region
        %v389 = vld [vmem:[%s8] sm:$0xff]
        %v390 = vld [vmem:[%s8 + $0x8] sm:$0xff]
        %v391 = vld [vmem:[%s8 + $0x10] sm:$0xff]
        %v392 = vld [vmem:[%s8 + $0x18] sm:$0xff]
        %vm393 = vcmask 130048
        %394 = vst.msk [vmem:[#allocation2] sm:$0xff] %vm393, %v389
        %395 = vst.msk [vmem:[#allocation2 + $0x8] sm:$0xff] %vm393, %v390
        %396 = vst.msk [vmem:[#allocation2 + $0x10] sm:$0xff] %vm393, %v391
        %397 = vst.msk [vmem:[#allocation2 + $0x18] sm:$0xff] %vm393, %v392
        %v398 = vld [vmem:[%s9] sm:$0xff]
        %v399 = vld [vmem:[%s9 + $0x8] sm:$0xff]
        %v400 = vld [vmem:[%s9 + $0x10] sm:$0xff]
        %v401 = vld [vmem:[%s9 + $0x18] sm:$0xff]
        %402 = vst.msk [vmem:[#allocation3] sm:$0xff] %vm393, %v398
        %403 = vst.msk [vmem:[#allocation3 + $0x8] sm:$0xff] %vm393, %v399
        %404 = vst.msk [vmem:[#allocation3 + $0x10] sm:$0xff] %vm393, %v400
        %405 = vst.msk [vmem:[#allocation3 + $0x18] sm:$0xff] %vm393, %v401
      $region64: #{_compute.18} parent=59 // pred_fallthru
        _
      %v406 = vld [vmem:[#allocation2] sm:$0xff]
      %v407 = vld [vmem:[#allocation2 + $0x8] sm:$0xff]
      %v408 = vld [vmem:[#allocation2 + $0x10] sm:$0xff]
      %v409 = vld [vmem:[#allocation2 + $0x18] sm:$0xff]
      %v410 = vld [vmem:[#allocation3] sm:$0xff]
      %v411 = vld [vmem:[#allocation3 + $0x8] sm:$0xff]
      %v412 = vld [vmem:[#allocation3 + $0x10] sm:$0xff]
      %v413 = vld [vmem:[#allocation3 + $0x18] sm:$0xff]
      %v414 = vld [vmem:[%s379] sm:$0xff]
      %v415 = vld [vmem:[%s379 + $0x8] sm:$0xff]
      %v416 = vld [vmem:[%s379 + $0x10] sm:$0xff]
      %v417 = vld [vmem:[%s379 + $0x18] sm:$0xff]
      %v418 = vld [vmem:[%s379 + $0x20] sm:$0xff]
      %v419 = vld [vmem:[%s379 + $0x28] sm:$0xff]
      %v420 = vld [vmem:[%s379 + $0x30] sm:$0xff]
      %v421 = vld [vmem:[%s379 + $0x38] sm:$0xff]
      %v422 = vld [vmem:[%s1] sm:$0xff]
      %v423 = vld [vmem:[%s1 + $0x8] sm:$0xff]
      %v424 = vld [vmem:[%s1 + $0x10] sm:$0xff]
      %v425 = vld [vmem:[%s1 + $0x18] sm:$0xff]
      %v426 = vld [vmem:[%s1 + $0x20] sm:$0xff]
      %v427 = vld [vmem:[%s1 + $0x28] sm:$0xff]
      %v428 = vld [vmem:[%s1 + $0x30] sm:$0xff]
      %v429 = vld [vmem:[%s1 + $0x38] sm:$0xff]
      %v430 = vld [vmem:[%s1 + $0x40] sm:$0xff]
      %v431 = vld [vmem:[%s1 + $0x48] sm:$0xff]
      %v432 = vld [vmem:[%s1 + $0x50] sm:$0xff]
      %v433 = vld [vmem:[%s1 + $0x58] sm:$0xff]
      %v434 = vld [vmem:[%s1 + $0x60] sm:$0xff]
      %v435 = vld [vmem:[%s1 + $0x68] sm:$0xff]
      %v436 = vld [vmem:[%s1 + $0x70] sm:$0xff]
      %v437 = vld [vmem:[%s1 + $0x78] sm:$0xff]
      %v438 = vld [vmem:[%s1 + $0x80] sm:$0xff]
      %v439 = vld [vmem:[%s1 + $0x88] sm:$0xff]
      %v440 = vld [vmem:[%s1 + $0x90] sm:$0xff]
      %v441 = vld [vmem:[%s1 + $0x98] sm:$0xff]
      %v442 = vld [vmem:[%s1 + $0xa0] sm:$0xff]
      %v443 = vld [vmem:[%s1 + $0xa8] sm:$0xff]
      %v444 = vld [vmem:[%s1 + $0xb0] sm:$0xff]
      %v445 = vld [vmem:[%s1 + $0xb8] sm:$0xff]
      %v446 = vld [vmem:[%s1 + $0xc0] sm:$0xff]
      %v447 = vld [vmem:[%s1 + $0xc8] sm:$0xff]
      %v448 = vld [vmem:[%s1 + $0xd0] sm:$0xff]
      %v449 = vld [vmem:[%s1 + $0xd8] sm:$0xff]
      %v450 = vld [vmem:[%s1 + $0xe0] sm:$0xff]
      %v451 = vld [vmem:[%s1 + $0xe8] sm:$0xff]
      %v452 = vld [vmem:[%s1 + $0xf0] sm:$0xff]
      %v453 = vld [vmem:[%s1 + $0xf8] sm:$0xff]
      %v454 = vld [vmem:[%s1 + $0x100] sm:$0xff]
      %v455 = vld [vmem:[%s1 + $0x108] sm:$0xff]
      %v456 = vld [vmem:[%s1 + $0x110] sm:$0xff]
      %v457 = vld [vmem:[%s1 + $0x118] sm:$0xff]
      %v458 = vld [vmem:[%s1 + $0x120] sm:$0xff]
      %v459 = vld [vmem:[%s1 + $0x128] sm:$0xff]
      %v460 = vld [vmem:[%s1 + $0x130] sm:$0xff]
      %v461 = vld [vmem:[%s1 + $0x138] sm:$0xff]
      %v462 = vld [vmem:[%s1 + $0x140] sm:$0xff]
      %v463 = vld [vmem:[%s1 + $0x148] sm:$0xff]
      %v464 = vld [vmem:[%s1 + $0x150] sm:$0xff]
      %v465 = vld [vmem:[%s1 + $0x158] sm:$0xff]
      %v466 = vld [vmem:[%s1 + $0x160] sm:$0xff]
      %v467 = vld [vmem:[%s1 + $0x168] sm:$0xff]
      %v468 = vld [vmem:[%s1 + $0x170] sm:$0xff]
      %v469 = vld [vmem:[%s1 + $0x178] sm:$0xff]
      %v470 = vld [vmem:[%s1 + $0x180] sm:$0xff]
      %v471 = vld [vmem:[%s1 + $0x188] sm:$0xff]
      %v472 = vld [vmem:[%s1 + $0x190] sm:$0xff]
      %v473 = vld [vmem:[%s1 + $0x198] sm:$0xff]
      %v474 = vld [vmem:[%s1 + $0x1a0] sm:$0xff]
      %v475 = vld [vmem:[%s1 + $0x1a8] sm:$0xff]
      %v476 = vld [vmem:[%s1 + $0x1b0] sm:$0xff]
      %v477 = vld [vmem:[%s1 + $0x1b8] sm:$0xff]
      %v478 = vld [vmem:[%s1 + $0x1c0] sm:$0xff]
      %v479 = vld [vmem:[%s1 + $0x1c8] sm:$0xff]
      %v480 = vld [vmem:[%s1 + $0x1d0] sm:$0xff]
      %v481 = vld [vmem:[%s1 + $0x1d8] sm:$0xff]
      %v482 = vld [vmem:[%s1 + $0x1e0] sm:$0xff]
      %v483 = vld [vmem:[%s1 + $0x1e8] sm:$0xff]
      %v484 = vld [vmem:[%s1 + $0x1f0] sm:$0xff]
      %v485 = vld [vmem:[%s1 + $0x1f8] sm:$0xff]
      %v486 = vld [vmem:[%s1 + $0x200] sm:$0xff]
      %v487 = vld [vmem:[%s1 + $0x208] sm:$0xff]
      %v488 = vld [vmem:[%s1 + $0x210] sm:$0xff]
      %v489 = vld [vmem:[%s1 + $0x218] sm:$0xff]
      %v490 = vld [vmem:[%s1 + $0x220] sm:$0xff]
      %v491 = vld [vmem:[%s1 + $0x228] sm:$0xff]
      %v492 = vld [vmem:[%s1 + $0x230] sm:$0xff]
      %v493 = vld [vmem:[%s1 + $0x238] sm:$0xff]
      %v494 = vld [vmem:[%s3] sm:$0xf]
      %v496 = vperm.slane %v494, 0
      %v497 = vperm.slane %v494, 1
      %v498 = vperm.slane %v494, 2
      %v499 = vperm.slane %v494, 3
      %vm504 = vcmask 130048
      %v506 = vsel %vm504, %v415, 0
      %v509 = vsel %vm504, %v417, 0
      %v512 = vsel %vm504, %v419, 0
      %v515 = vsel %vm504, %v421, 0
      %517 = vmatpush.msra.mxu0 %v482
      %518 = vmatpush.msra.mxu0 %v478
      %519 = vmatpush.msra.mxu0 %v474
      %520 = vmatpush.msra.mxu0 %v470
      %521 = vmatpush.msra.mxu0 %v466
      %522 = vmatpush.msra.mxu0 %v462
      %523 = vmatpush.msra.mxu0 %v458
      %524 = vmatpush.msra.mxu0 %v454
      %525 = vmatpush.msra.mxu0 %v450
      %526 = vmatpush.msra.mxu0 %v446
      %527 = vmatpush.msra.mxu0 %v442
      %528 = vmatpush.msra.mxu0 %v438
      %529 = vmatpush.msra.mxu0 %v434
      %530 = vmatpush.msra.mxu0 %v430
      %531 = vmatpush.msra.mxu0 %v426
      %532 = vmatpush.msra.mxu0 %v422
      %533 = vmatmul.f32.gmra.mxu0 %v414
      %v534 = vpop.f32.mrf.mxu0
      %v535 = vadd.f32 %v496, %v534
      %536 = vmatmul.f32.gmra.mxu0 %v416
      %v537 = vpop.f32.mrf.mxu0
      %v538 = vadd.f32 %v496, %v537
      %539 = vmatmul.f32.gmra.mxu0 %v418
      %v540 = vpop.f32.mrf.mxu0
      %v541 = vadd.f32 %v496, %v540
      %542 = vmatmul.f32.gmra.mxu0 %v420
      %v543 = vpop.f32.mrf.mxu0
      %v544 = vadd.f32 %v496, %v543
      %545 = vdwg.mxu0
      %546 = vmatpush.msra.mxu0 0.0
      %547 = vmatpush.msra.mxu0 0.0
      %548 = vmatpush.msra.mxu0 0.0
      %549 = vmatpush.msra.mxu0 0.0
      %550 = vmatpush.msra.mxu0 0.0
      %551 = vmatpush.msra.mxu0 0.0
      %552 = vmatpush.msra.mxu0 0.0
      %553 = vmatpush.msra.mxu0 0.0
      %554 = vmatpush.msra.mxu0 0.0
      %555 = vmatpush.msra.mxu0 0.0
      %556 = vmatpush.msra.mxu0 0.0
      %557 = vmatpush.msra.mxu0 0.0
      %558 = vmatpush.msra.mxu0 0.0
      %559 = vmatpush.msra.mxu0 0.0
      %560 = vmatpush.msra.mxu0 %v490
      %561 = vmatpush.msra.mxu0 %v486
      %562 = vmatmul.f32.gmra.mxu0 %v506
      %v563 = vpop.f32.mrf.mxu0
      %v564 = vadd.f32 %v535, %v563
      %565 = vmatmul.f32.gmra.mxu0 %v509
      %v566 = vpop.f32.mrf.mxu0
      %v567 = vadd.f32 %v538, %v566
      %568 = vmatmul.f32.gmra.mxu0 %v512
      %v569 = vpop.f32.mrf.mxu0
      %v570 = vadd.f32 %v541, %v569
      %571 = vmatmul.f32.gmra.mxu0 %v515
      %v572 = vpop.f32.mrf.mxu0
      %v573 = vadd.f32 %v544, %v572
      %574 = vdwg.mxu0
      %575 = vmatpush.msra.mxu0 %v483
      %576 = vmatpush.msra.mxu0 %v479
      %577 = vmatpush.msra.mxu0 %v475
      %578 = vmatpush.msra.mxu0 %v471
      %579 = vmatpush.msra.mxu0 %v467
      %580 = vmatpush.msra.mxu0 %v463
      %581 = vmatpush.msra.mxu0 %v459
      %582 = vmatpush.msra.mxu0 %v455
      %583 = vmatpush.msra.mxu0 %v451
      %584 = vmatpush.msra.mxu0 %v447
      %585 = vmatpush.msra.mxu0 %v443
      %586 = vmatpush.msra.mxu0 %v439
      %587 = vmatpush.msra.mxu0 %v435
      %588 = vmatpush.msra.mxu0 %v431
      %589 = vmatpush.msra.mxu0 %v427
      %590 = vmatpush.msra.mxu0 %v423
      %591 = vmatmul.f32.gmra.mxu0 %v414
      %v592 = vpop.f32.mrf.mxu0
      %v593 = vadd.f32 %v497, %v592
      %594 = vmatmul.f32.gmra.mxu0 %v416
      %v595 = vpop.f32.mrf.mxu0
      %v596 = vadd.f32 %v497, %v595
      %597 = vmatmul.f32.gmra.mxu0 %v418
      %v598 = vpop.f32.mrf.mxu0
      %v599 = vadd.f32 %v497, %v598
      %600 = vmatmul.f32.gmra.mxu0 %v420
      %v601 = vpop.f32.mrf.mxu0
      %v602 = vadd.f32 %v497, %v601
      %603 = vdwg.mxu0
      %604 = vmatpush.msra.mxu0 0.0
      %605 = vmatpush.msra.mxu0 0.0
      %606 = vmatpush.msra.mxu0 0.0
      %607 = vmatpush.msra.mxu0 0.0
      %608 = vmatpush.msra.mxu0 0.0
      %609 = vmatpush.msra.mxu0 0.0
      %610 = vmatpush.msra.mxu0 0.0
      %611 = vmatpush.msra.mxu0 0.0
      %612 = vmatpush.msra.mxu0 0.0
      %613 = vmatpush.msra.mxu0 0.0
      %614 = vmatpush.msra.mxu0 0.0
      %615 = vmatpush.msra.mxu0 0.0
      %616 = vmatpush.msra.mxu0 0.0
      %617 = vmatpush.msra.mxu0 0.0
      %618 = vmatpush.msra.mxu0 %v491
      %619 = vmatpush.msra.mxu0 %v487
      %620 = vmatmul.f32.gmra.mxu0 %v506
      %v621 = vpop.f32.mrf.mxu0
      %v622 = vadd.f32 %v593, %v621
      %623 = vmatmul.f32.gmra.mxu0 %v509
      %v624 = vpop.f32.mrf.mxu0
      %v625 = vadd.f32 %v596, %v624
      %626 = vmatmul.f32.gmra.mxu0 %v512
      %v627 = vpop.f32.mrf.mxu0
      %v628 = vadd.f32 %v599, %v627
      %629 = vmatmul.f32.gmra.mxu0 %v515
      %v630 = vpop.f32.mrf.mxu0
      %v631 = vadd.f32 %v602, %v630
      %632 = vdwg.mxu0
      %633 = vmatpush.msra.mxu0 %v484
      %634 = vmatpush.msra.mxu0 %v480
      %635 = vmatpush.msra.mxu0 %v476
      %636 = vmatpush.msra.mxu0 %v472
      %637 = vmatpush.msra.mxu0 %v468
      %638 = vmatpush.msra.mxu0 %v464
      %639 = vmatpush.msra.mxu0 %v460
      %640 = vmatpush.msra.mxu0 %v456
      %641 = vmatpush.msra.mxu0 %v452
      %642 = vmatpush.msra.mxu0 %v448
      %643 = vmatpush.msra.mxu0 %v444
      %644 = vmatpush.msra.mxu0 %v440
      %645 = vmatpush.msra.mxu0 %v436
      %646 = vmatpush.msra.mxu0 %v432
      %647 = vmatpush.msra.mxu0 %v428
      %648 = vmatpush.msra.mxu0 %v424
      %649 = vmatmul.f32.gmra.mxu0 %v414
      %v650 = vpop.f32.mrf.mxu0
      %v651 = vadd.f32 %v498, %v650
      %652 = vmatmul.f32.gmra.mxu0 %v416
      %v653 = vpop.f32.mrf.mxu0
      %v654 = vadd.f32 %v498, %v653
      %655 = vmatmul.f32.gmra.mxu0 %v418
      %v656 = vpop.f32.mrf.mxu0
      %v657 = vadd.f32 %v498, %v656
      %658 = vmatmul.f32.gmra.mxu0 %v420
      %v659 = vpop.f32.mrf.mxu0
      %v660 = vadd.f32 %v498, %v659
      %661 = vdwg.mxu0
      %662 = vmatpush.msra.mxu0 0.0
      %663 = vmatpush.msra.mxu0 0.0
      %664 = vmatpush.msra.mxu0 0.0
      %665 = vmatpush.msra.mxu0 0.0
      %666 = vmatpush.msra.mxu0 0.0
      %667 = vmatpush.msra.mxu0 0.0
      %668 = vmatpush.msra.mxu0 0.0
      %669 = vmatpush.msra.mxu0 0.0
      %670 = vmatpush.msra.mxu0 0.0
      %671 = vmatpush.msra.mxu0 0.0
      %672 = vmatpush.msra.mxu0 0.0
      %673 = vmatpush.msra.mxu0 0.0
      %674 = vmatpush.msra.mxu0 0.0
      %675 = vmatpush.msra.mxu0 0.0
      %676 = vmatpush.msra.mxu0 %v492
      %677 = vmatpush.msra.mxu0 %v488
      %678 = vmatmul.f32.gmra.mxu0 %v506
      %v679 = vpop.f32.mrf.mxu0
      %v680 = vadd.f32 %v651, %v679
      %681 = vmatmul.f32.gmra.mxu0 %v509
      %v682 = vpop.f32.mrf.mxu0
      %v683 = vadd.f32 %v654, %v682
      %684 = vmatmul.f32.gmra.mxu0 %v512
      %v685 = vpop.f32.mrf.mxu0
      %v686 = vadd.f32 %v657, %v685
      %687 = vmatmul.f32.gmra.mxu0 %v515
      %v688 = vpop.f32.mrf.mxu0
      %v689 = vadd.f32 %v660, %v688
      %690 = vdwg.mxu0
      %691 = vmatpush.msra.mxu0 %v485
      %692 = vmatpush.msra.mxu0 %v481
      %693 = vmatpush.msra.mxu0 %v477
      %694 = vmatpush.msra.mxu0 %v473
      %695 = vmatpush.msra.mxu0 %v469
      %696 = vmatpush.msra.mxu0 %v465
      %697 = vmatpush.msra.mxu0 %v461
      %698 = vmatpush.msra.mxu0 %v457
      %699 = vmatpush.msra.mxu0 %v453
      %700 = vmatpush.msra.mxu0 %v449
      %701 = vmatpush.msra.mxu0 %v445
      %702 = vmatpush.msra.mxu0 %v441
      %703 = vmatpush.msra.mxu0 %v437
      %704 = vmatpush.msra.mxu0 %v433
      %705 = vmatpush.msra.mxu0 %v429
      %706 = vmatpush.msra.mxu0 %v425
      %707 = vmatmul.f32.gmra.mxu0 %v414
      %v708 = vpop.f32.mrf.mxu0
      %v709 = vadd.f32 %v499, %v708
      %710 = vmatmul.f32.gmra.mxu0 %v416
      %v711 = vpop.f32.mrf.mxu0
      %v712 = vadd.f32 %v499, %v711
      %713 = vmatmul.f32.gmra.mxu0 %v418
      %v714 = vpop.f32.mrf.mxu0
      %v715 = vadd.f32 %v499, %v714
      %716 = vmatmul.f32.gmra.mxu0 %v420
      %v717 = vpop.f32.mrf.mxu0
      %v718 = vadd.f32 %v499, %v717
      %719 = vdwg.mxu0
      %720 = vmatpush.msra.mxu0 0.0
      %721 = vmatpush.msra.mxu0 0.0
      %722 = vmatpush.msra.mxu0 0.0
      %723 = vmatpush.msra.mxu0 0.0
      %724 = vmatpush.msra.mxu0 0.0
      %725 = vmatpush.msra.mxu0 0.0
      %726 = vmatpush.msra.mxu0 0.0
      %727 = vmatpush.msra.mxu0 0.0
      %728 = vmatpush.msra.mxu0 0.0
      %729 = vmatpush.msra.mxu0 0.0
      %730 = vmatpush.msra.mxu0 0.0
      %731 = vmatpush.msra.mxu0 0.0
      %732 = vmatpush.msra.mxu0 0.0
      %733 = vmatpush.msra.mxu0 0.0
      %734 = vmatpush.msra.mxu0 %v493
      %735 = vmatpush.msra.mxu0 %v489
      %736 = vmatmul.f32.gmra.mxu0 %v506
      %v737 = vpop.f32.mrf.mxu0
      %v738 = vadd.f32 %v709, %v737
      %739 = vmatmul.f32.gmra.mxu0 %v509
      %v740 = vpop.f32.mrf.mxu0
      %v741 = vadd.f32 %v712, %v740
      %742 = vmatmul.f32.gmra.mxu0 %v512
      %v743 = vpop.f32.mrf.mxu0
      %v744 = vadd.f32 %v715, %v743
      %745 = vmatmul.f32.gmra.mxu0 %v515
      %v746 = vpop.f32.mrf.mxu0
      %v747 = vadd.f32 %v718, %v746
      %748 = vdwg.mxu0
      %v749 = vld [vmem:[%s7] sm:$0xff]
      %v750 = vld [vmem:[%s7 + $0x8] sm:$0xff]
      %v751 = vld [vmem:[%s7 + $0x10] sm:$0xff]
      %v752 = vld [vmem:[%s7 + $0x18] sm:$0xff]
      %vm753 = vcmask 261120
      %v755 = vsel %vm753, %v749, 0
      %v758 = vsel %vm753, %v750, 0
      %v761 = vsel %vm753, %v751, 0
      %v764 = vsel %vm753, %v752, 0
      %766 = vmatpush.msra.mxu0 0.0
      %767 = vmatpush.msra.mxu0 0.0
      %768 = vmatpush.msra.mxu0 0.0
      %769 = vmatpush.msra.mxu0 0.0
      %770 = vmatpush.msra.mxu0 0.0
      %771 = vmatpush.msra.mxu0 0.0
      %772 = vmatpush.msra.mxu0 0.0
      %773 = vmatpush.msra.mxu0 0.0
      %774 = vmatpush.msra.mxu0 0.0
      %775 = vmatpush.msra.mxu0 0.0
      %776 = vmatpush.msra.mxu0 0.0
      %777 = vmatpush.msra.mxu0 0.0
      %778 = vmatpush.msra.mxu0 %v409
      %779 = vmatpush.msra.mxu0 %v408
      %780 = vmatpush.msra.mxu0 %v407
      %781 = vmatpush.msra.mxu0 %v406
      %782 = vmatmul.f32.gmra.mxu0 %v755
      %v783 = vpop.f32.mrf.mxu0
      %v784 = vadd.f32 0.0, %v783
      %785 = vmatmul.f32.gmra.mxu0 %v758
      %v786 = vpop.f32.mrf.mxu0
      %v787 = vadd.f32 0.0, %v786
      %788 = vmatmul.f32.gmra.mxu0 %v761
      %v789 = vpop.f32.mrf.mxu0
      %v790 = vadd.f32 0.0, %v789
      %791 = vmatmul.f32.gmra.mxu0 %v764
      %v792 = vpop.f32.mrf.mxu0
      %v793 = vadd.f32 0.0, %v792
      %794 = vdwg.mxu0
      %v795 = vld [vmem:[%s2] sm:$0xff]
      %v796 = vld [vmem:[%s2 + $0x8] sm:$0xff]
      %v797 = vld [vmem:[%s2 + $0x10] sm:$0xff]
      %v798 = vld [vmem:[%s2 + $0x18] sm:$0xff]
      %v799 = vld [vmem:[%s2 + $0x20] sm:$0xff]
      %v800 = vld [vmem:[%s2 + $0x28] sm:$0xff]
      %v801 = vld [vmem:[%s2 + $0x30] sm:$0xff]
      %v802 = vld [vmem:[%s2 + $0x38] sm:$0xff]
      %v804 = vsel %vm504, %v784, 0
      %v807 = vsel %vm504, %v787, 0
      %v810 = vsel %vm504, %v790, 0
      %v813 = vsel %vm504, %v793, 0
      %815 = vmatpush.msra.mxu0 0.0
      %816 = vmatpush.msra.mxu0 0.0
      %817 = vmatpush.msra.mxu0 0.0
      %818 = vmatpush.msra.mxu0 0.0
      %819 = vmatpush.msra.mxu0 0.0
      %820 = vmatpush.msra.mxu0 0.0
      %821 = vmatpush.msra.mxu0 0.0
      %822 = vmatpush.msra.mxu0 0.0
      %823 = vmatpush.msra.mxu0 0.0
      %824 = vmatpush.msra.mxu0 0.0
      %825 = vmatpush.msra.mxu0 0.0
      %826 = vmatpush.msra.mxu0 0.0
      %827 = vmatpush.msra.mxu0 0.0
      %828 = vmatpush.msra.mxu0 0.0
      %829 = vmatpush.msra.mxu0 %v799
      %830 = vmatpush.msra.mxu0 %v795
      %831 = vmatmul.f32.gmra.mxu0 %v804
      %v832 = vpop.f32.mrf.mxu0
      %v833 = vadd.f32 0.0, %v832
      %834 = vmatmul.f32.gmra.mxu0 %v807
      %v835 = vpop.f32.mrf.mxu0
      %v836 = vadd.f32 0.0, %v835
      %837 = vmatmul.f32.gmra.mxu0 %v810
      %v838 = vpop.f32.mrf.mxu0
      %v839 = vadd.f32 0.0, %v838
      %840 = vmatmul.f32.gmra.mxu0 %v813
      %v841 = vpop.f32.mrf.mxu0
      %v842 = vadd.f32 0.0, %v841
      %843 = vdwg.mxu0
      %844 = vmatpush.msra.mxu0 0.0
      %845 = vmatpush.msra.mxu0 0.0
      %846 = vmatpush.msra.mxu0 0.0
      %847 = vmatpush.msra.mxu0 0.0
      %848 = vmatpush.msra.mxu0 0.0
      %849 = vmatpush.msra.mxu0 0.0
      %850 = vmatpush.msra.mxu0 0.0
      %851 = vmatpush.msra.mxu0 0.0
      %852 = vmatpush.msra.mxu0 0.0
      %853 = vmatpush.msra.mxu0 0.0
      %854 = vmatpush.msra.mxu0 0.0
      %855 = vmatpush.msra.mxu0 0.0
      %856 = vmatpush.msra.mxu0 0.0
      %857 = vmatpush.msra.mxu0 0.0
      %858 = vmatpush.msra.mxu0 %v800
      %859 = vmatpush.msra.mxu0 %v796
      %860 = vmatmul.f32.gmra.mxu0 %v804
      %v861 = vpop.f32.mrf.mxu0
      %v862 = vadd.f32 0.0, %v861
      %863 = vmatmul.f32.gmra.mxu0 %v807
      %v864 = vpop.f32.mrf.mxu0
      %v865 = vadd.f32 0.0, %v864
      %866 = vmatmul.f32.gmra.mxu0 %v810
      %v867 = vpop.f32.mrf.mxu0
      %v868 = vadd.f32 0.0, %v867
      %869 = vmatmul.f32.gmra.mxu0 %v813
      %v870 = vpop.f32.mrf.mxu0
      %v871 = vadd.f32 0.0, %v870
      %872 = vdwg.mxu0
      %873 = vmatpush.msra.mxu0 0.0
      %874 = vmatpush.msra.mxu0 0.0
      %875 = vmatpush.msra.mxu0 0.0
      %876 = vmatpush.msra.mxu0 0.0
      %877 = vmatpush.msra.mxu0 0.0
      %878 = vmatpush.msra.mxu0 0.0
      %879 = vmatpush.msra.mxu0 0.0
      %880 = vmatpush.msra.mxu0 0.0
      %881 = vmatpush.msra.mxu0 0.0
      %882 = vmatpush.msra.mxu0 0.0
      %883 = vmatpush.msra.mxu0 0.0
      %884 = vmatpush.msra.mxu0 0.0
      %885 = vmatpush.msra.mxu0 0.0
      %886 = vmatpush.msra.mxu0 0.0
      %887 = vmatpush.msra.mxu0 %v801
      %888 = vmatpush.msra.mxu0 %v797
      %889 = vmatmul.f32.gmra.mxu0 %v804
      %v890 = vpop.f32.mrf.mxu0
      %v891 = vadd.f32 0.0, %v890
      %892 = vmatmul.f32.gmra.mxu0 %v807
      %v893 = vpop.f32.mrf.mxu0
      %v894 = vadd.f32 0.0, %v893
      %895 = vmatmul.f32.gmra.mxu0 %v810
      %v896 = vpop.f32.mrf.mxu0
      %v897 = vadd.f32 0.0, %v896
      %898 = vmatmul.f32.gmra.mxu0 %v813
      %v899 = vpop.f32.mrf.mxu0
      %v900 = vadd.f32 0.0, %v899
      %901 = vdwg.mxu0
      %902 = vmatpush.msra.mxu0 0.0
      %903 = vmatpush.msra.mxu0 0.0
      %904 = vmatpush.msra.mxu0 0.0
      %905 = vmatpush.msra.mxu0 0.0
      %906 = vmatpush.msra.mxu0 0.0
      %907 = vmatpush.msra.mxu0 0.0
      %908 = vmatpush.msra.mxu0 0.0
      %909 = vmatpush.msra.mxu0 0.0
      %910 = vmatpush.msra.mxu0 0.0
      %911 = vmatpush.msra.mxu0 0.0
      %912 = vmatpush.msra.mxu0 0.0
      %913 = vmatpush.msra.mxu0 0.0
      %914 = vmatpush.msra.mxu0 0.0
      %915 = vmatpush.msra.mxu0 0.0
      %916 = vmatpush.msra.mxu0 %v802
      %917 = vmatpush.msra.mxu0 %v798
      %918 = vmatmul.f32.gmra.mxu0 %v804
      %v919 = vpop.f32.mrf.mxu0
      %v920 = vadd.f32 0.0, %v919
      %921 = vmatmul.f32.gmra.mxu0 %v807
      %v922 = vpop.f32.mrf.mxu0
      %v923 = vadd.f32 0.0, %v922
      %924 = vmatmul.f32.gmra.mxu0 %v810
      %v925 = vpop.f32.mrf.mxu0
      %v926 = vadd.f32 0.0, %v925
      %927 = vmatmul.f32.gmra.mxu0 %v813
      %v928 = vpop.f32.mrf.mxu0
      %v929 = vadd.f32 0.0, %v928
      %930 = vdwg.mxu0
      %v931 = vadd.f32 %v564, %v833
      %v932 = vadd.f32 %v622, %v862
      %v933 = vadd.f32 %v680, %v891
      %v934 = vadd.f32 %v738, %v920
      %v935 = vadd.f32 %v567, %v836
      %v936 = vadd.f32 %v625, %v865
      %v937 = vadd.f32 %v683, %v894
      %v938 = vadd.f32 %v741, %v923
      %v939 = vadd.f32 %v570, %v839
      %v940 = vadd.f32 %v628, %v868
      %v941 = vadd.f32 %v686, %v897
      %v942 = vadd.f32 %v744, %v926
      %v943 = vadd.f32 %v573, %v842
      %v944 = vadd.f32 %v631, %v871
      %v945 = vadd.f32 %v689, %v900
      %v946 = vadd.f32 %v747, %v929
      %s947 = scalar_lea.vmem %s7, 32
      %v948 = vld [vmem:[%s947] sm:$0xff]
      %v949 = vld [vmem:[%s947 + $0x8] sm:$0xff]
      %v950 = vld [vmem:[%s947 + $0x10] sm:$0xff]
      %v951 = vld [vmem:[%s947 + $0x18] sm:$0xff]
      %v953 = vsel %vm753, %v948, 0
      %v956 = vsel %vm753, %v949, 0
      %v959 = vsel %vm753, %v950, 0
      %v962 = vsel %vm753, %v951, 0
      %964 = vmatpush.msra.mxu0 0.0
      %965 = vmatpush.msra.mxu0 0.0
      %966 = vmatpush.msra.mxu0 0.0
      %967 = vmatpush.msra.mxu0 0.0
      %968 = vmatpush.msra.mxu0 0.0
      %969 = vmatpush.msra.mxu0 0.0
      %970 = vmatpush.msra.mxu0 0.0
      %971 = vmatpush.msra.mxu0 0.0
      %972 = vmatpush.msra.mxu0 0.0
      %973 = vmatpush.msra.mxu0 0.0
      %974 = vmatpush.msra.mxu0 0.0
      %975 = vmatpush.msra.mxu0 0.0
      %976 = vmatpush.msra.mxu0 %v409
      %977 = vmatpush.msra.mxu0 %v408
      %978 = vmatpush.msra.mxu0 %v407
      %979 = vmatpush.msra.mxu0 %v406
      %980 = vmatmul.f32.gmra.mxu0 %v953
      %v981 = vpop.f32.mrf.mxu0
      %v982 = vadd.f32 0.0, %v981
      %983 = vmatmul.f32.gmra.mxu0 %v956
      %v984 = vpop.f32.mrf.mxu0
      %v985 = vadd.f32 0.0, %v984
      %986 = vmatmul.f32.gmra.mxu0 %v959
      %v987 = vpop.f32.mrf.mxu0
      %v988 = vadd.f32 0.0, %v987
      %989 = vmatmul.f32.gmra.mxu0 %v962
      %v990 = vpop.f32.mrf.mxu0
      %v991 = vadd.f32 0.0, %v990
      %992 = vdwg.mxu0
      %s993 = scalar_lea.vmem %s2, 64
      %v994 = vld [vmem:[%s993] sm:$0xff]
      %v995 = vld [vmem:[%s993 + $0x8] sm:$0xff]
      %v996 = vld [vmem:[%s993 + $0x10] sm:$0xff]
      %v997 = vld [vmem:[%s993 + $0x18] sm:$0xff]
      %v998 = vld [vmem:[%s993 + $0x20] sm:$0xff]
      %v999 = vld [vmem:[%s993 + $0x28] sm:$0xff]
      %v1000 = vld [vmem:[%s993 + $0x30] sm:$0xff]
      %v1001 = vld [vmem:[%s993 + $0x38] sm:$0xff]
      %v1003 = vsel %vm504, %v982, 0
      %v1006 = vsel %vm504, %v985, 0
      %v1009 = vsel %vm504, %v988, 0
      %v1012 = vsel %vm504, %v991, 0
      %1014 = vmatpush.msra.mxu0 0.0
      %1015 = vmatpush.msra.mxu0 0.0
      %1016 = vmatpush.msra.mxu0 0.0
      %1017 = vmatpush.msra.mxu0 0.0
      %1018 = vmatpush.msra.mxu0 0.0
      %1019 = vmatpush.msra.mxu0 0.0
      %1020 = vmatpush.msra.mxu0 0.0
      %1021 = vmatpush.msra.mxu0 0.0
      %1022 = vmatpush.msra.mxu0 0.0
      %1023 = vmatpush.msra.mxu0 0.0
      %1024 = vmatpush.msra.mxu0 0.0
      %1025 = vmatpush.msra.mxu0 0.0
      %1026 = vmatpush.msra.mxu0 0.0
      %1027 = vmatpush.msra.mxu0 0.0
      %1028 = vmatpush.msra.mxu0 %v998
      %1029 = vmatpush.msra.mxu0 %v994
      %1030 = vmatmul.f32.gmra.mxu0 %v1003
      %v1031 = vpop.f32.mrf.mxu0
      %v1032 = vadd.f32 0.0, %v1031
      %1033 = vmatmul.f32.gmra.mxu0 %v1006
      %v1034 = vpop.f32.mrf.mxu0
      %v1035 = vadd.f32 0.0, %v1034
      %1036 = vmatmul.f32.gmra.mxu0 %v1009
      %v1037 = vpop.f32.mrf.mxu0
      %v1038 = vadd.f32 0.0, %v1037
      %1039 = vmatmul.f32.gmra.mxu0 %v1012
      %v1040 = vpop.f32.mrf.mxu0
      %v1041 = vadd.f32 0.0, %v1040
      %1042 = vdwg.mxu0
      %1043 = vmatpush.msra.mxu0 0.0
      %1044 = vmatpush.msra.mxu0 0.0
      %1045 = vmatpush.msra.mxu0 0.0
      %1046 = vmatpush.msra.mxu0 0.0
      %1047 = vmatpush.msra.mxu0 0.0
      %1048 = vmatpush.msra.mxu0 0.0
      %1049 = vmatpush.msra.mxu0 0.0
      %1050 = vmatpush.msra.mxu0 0.0
      %1051 = vmatpush.msra.mxu0 0.0
      %1052 = vmatpush.msra.mxu0 0.0
      %1053 = vmatpush.msra.mxu0 0.0
      %1054 = vmatpush.msra.mxu0 0.0
      %1055 = vmatpush.msra.mxu0 0.0
      %1056 = vmatpush.msra.mxu0 0.0
      %1057 = vmatpush.msra.mxu0 %v999
      %1058 = vmatpush.msra.mxu0 %v995
      %1059 = vmatmul.f32.gmra.mxu0 %v1003
      %v1060 = vpop.f32.mrf.mxu0
      %v1061 = vadd.f32 0.0, %v1060
      %1062 = vmatmul.f32.gmra.mxu0 %v1006
      %v1063 = vpop.f32.mrf.mxu0
      %v1064 = vadd.f32 0.0, %v1063
      %1065 = vmatmul.f32.gmra.mxu0 %v1009
      %v1066 = vpop.f32.mrf.mxu0
      %v1067 = vadd.f32 0.0, %v1066
      %1068 = vmatmul.f32.gmra.mxu0 %v1012
      %v1069 = vpop.f32.mrf.mxu0
      %v1070 = vadd.f32 0.0, %v1069
      %1071 = vdwg.mxu0
      %1072 = vmatpush.msra.mxu0 0.0
      %1073 = vmatpush.msra.mxu0 0.0
      %1074 = vmatpush.msra.mxu0 0.0
      %1075 = vmatpush.msra.mxu0 0.0
      %1076 = vmatpush.msra.mxu0 0.0
      %1077 = vmatpush.msra.mxu0 0.0
      %1078 = vmatpush.msra.mxu0 0.0
      %1079 = vmatpush.msra.mxu0 0.0
      %1080 = vmatpush.msra.mxu0 0.0
      %1081 = vmatpush.msra.mxu0 0.0
      %1082 = vmatpush.msra.mxu0 0.0
      %1083 = vmatpush.msra.mxu0 0.0
      %1084 = vmatpush.msra.mxu0 0.0
      %1085 = vmatpush.msra.mxu0 0.0
      %1086 = vmatpush.msra.mxu0 %v1000
      %1087 = vmatpush.msra.mxu0 %v996
      %1088 = vmatmul.f32.gmra.mxu0 %v1003
      %v1089 = vpop.f32.mrf.mxu0
      %v1090 = vadd.f32 0.0, %v1089
      %1091 = vmatmul.f32.gmra.mxu0 %v1006
      %v1092 = vpop.f32.mrf.mxu0
      %v1093 = vadd.f32 0.0, %v1092
      %1094 = vmatmul.f32.gmra.mxu0 %v1009
      %v1095 = vpop.f32.mrf.mxu0
      %v1096 = vadd.f32 0.0, %v1095
      %1097 = vmatmul.f32.gmra.mxu0 %v1012
      %v1098 = vpop.f32.mrf.mxu0
      %v1099 = vadd.f32 0.0, %v1098
      %1100 = vdwg.mxu0
      %1101 = vmatpush.msra.mxu0 0.0
      %1102 = vmatpush.msra.mxu0 0.0
      %1103 = vmatpush.msra.mxu0 0.0
      %1104 = vmatpush.msra.mxu0 0.0
      %1105 = vmatpush.msra.mxu0 0.0
      %1106 = vmatpush.msra.mxu0 0.0
      %1107 = vmatpush.msra.mxu0 0.0
      %1108 = vmatpush.msra.mxu0 0.0
      %1109 = vmatpush.msra.mxu0 0.0
      %1110 = vmatpush.msra.mxu0 0.0
      %1111 = vmatpush.msra.mxu0 0.0
      %1112 = vmatpush.msra.mxu0 0.0
      %1113 = vmatpush.msra.mxu0 0.0
      %1114 = vmatpush.msra.mxu0 0.0
      %1115 = vmatpush.msra.mxu0 %v1001
      %1116 = vmatpush.msra.mxu0 %v997
      %1117 = vmatmul.f32.gmra.mxu0 %v1003
      %v1118 = vpop.f32.mrf.mxu0
      %v1119 = vadd.f32 0.0, %v1118
      %1120 = vmatmul.f32.gmra.mxu0 %v1006
      %v1121 = vpop.f32.mrf.mxu0
      %v1122 = vadd.f32 0.0, %v1121
      %1123 = vmatmul.f32.gmra.mxu0 %v1009
      %v1124 = vpop.f32.mrf.mxu0
      %v1125 = vadd.f32 0.0, %v1124
      %1126 = vmatmul.f32.gmra.mxu0 %v1012
      %v1127 = vpop.f32.mrf.mxu0
      %v1128 = vadd.f32 0.0, %v1127
      %1129 = vdwg.mxu0
      %v1130 = vadd.f32 %v931, %v1032
      %v1131 = vadd.f32 %v932, %v1061
      %v1132 = vadd.f32 %v933, %v1090
      %v1133 = vadd.f32 %v934, %v1119
      %v1134 = vadd.f32 %v935, %v1035
      %v1135 = vadd.f32 %v936, %v1064
      %v1136 = vadd.f32 %v937, %v1093
      %v1137 = vadd.f32 %v938, %v1122
      %v1138 = vadd.f32 %v939, %v1038
      %v1139 = vadd.f32 %v940, %v1067
      %v1140 = vadd.f32 %v941, %v1096
      %v1141 = vadd.f32 %v942, %v1125
      %v1142 = vadd.f32 %v943, %v1041
      %v1143 = vadd.f32 %v944, %v1070
      %v1144 = vadd.f32 %v945, %v1099
      %v1145 = vadd.f32 %v946, %v1128
      %s1146 = scalar_lea.vmem %s7, 64
      %v1147 = vld [vmem:[%s1146] sm:$0xff]
      %v1148 = vld [vmem:[%s1146 + $0x8] sm:$0xff]
      %v1149 = vld [vmem:[%s1146 + $0x10] sm:$0xff]
      %v1150 = vld [vmem:[%s1146 + $0x18] sm:$0xff]
      %v1152 = vsel %vm753, %v1147, 0
      %v1155 = vsel %vm753, %v1148, 0
      %v1158 = vsel %vm753, %v1149, 0
      %v1161 = vsel %vm753, %v1150, 0
      %1163 = vmatpush.msra.mxu0 0.0
      %1164 = vmatpush.msra.mxu0 0.0
      %1165 = vmatpush.msra.mxu0 0.0
      %1166 = vmatpush.msra.mxu0 0.0
      %1167 = vmatpush.msra.mxu0 0.0
      %1168 = vmatpush.msra.mxu0 0.0
      %1169 = vmatpush.msra.mxu0 0.0
      %1170 = vmatpush.msra.mxu0 0.0
      %1171 = vmatpush.msra.mxu0 0.0
      %1172 = vmatpush.msra.mxu0 0.0
      %1173 = vmatpush.msra.mxu0 0.0
      %1174 = vmatpush.msra.mxu0 0.0
      %1175 = vmatpush.msra.mxu0 %v409
      %1176 = vmatpush.msra.mxu0 %v408
      %1177 = vmatpush.msra.mxu0 %v407
      %1178 = vmatpush.msra.mxu0 %v406
      %1179 = vmatmul.f32.gmra.mxu0 %v1152
      %v1180 = vpop.f32.mrf.mxu0
      %v1181 = vadd.f32 0.0, %v1180
      %1182 = vmatmul.f32.gmra.mxu0 %v1155
      %v1183 = vpop.f32.mrf.mxu0
      %v1184 = vadd.f32 0.0, %v1183
      %1185 = vmatmul.f32.gmra.mxu0 %v1158
      %v1186 = vpop.f32.mrf.mxu0
      %v1187 = vadd.f32 0.0, %v1186
      %1188 = vmatmul.f32.gmra.mxu0 %v1161
      %v1189 = vpop.f32.mrf.mxu0
      %v1190 = vadd.f32 0.0, %v1189
      %1191 = vdwg.mxu0
      %s1192 = scalar_lea.vmem %s2, 128
      %v1193 = vld [vmem:[%s1192] sm:$0xff]
      %v1194 = vld [vmem:[%s1192 + $0x8] sm:$0xff]
      %v1195 = vld [vmem:[%s1192 + $0x10] sm:$0xff]
      %v1196 = vld [vmem:[%s1192 + $0x18] sm:$0xff]
      %v1197 = vld [vmem:[%s1192 + $0x20] sm:$0xff]
      %v1198 = vld [vmem:[%s1192 + $0x28] sm:$0xff]
      %v1199 = vld [vmem:[%s1192 + $0x30] sm:$0xff]
      %v1200 = vld [vmem:[%s1192 + $0x38] sm:$0xff]
      %v1202 = vsel %vm504, %v1181, 0
      %v1205 = vsel %vm504, %v1184, 0
      %v1208 = vsel %vm504, %v1187, 0
      %v1211 = vsel %vm504, %v1190, 0
      %1213 = vmatpush.msra.mxu0 0.0
      %1214 = vmatpush.msra.mxu0 0.0
      %1215 = vmatpush.msra.mxu0 0.0
      %1216 = vmatpush.msra.mxu0 0.0
      %1217 = vmatpush.msra.mxu0 0.0
      %1218 = vmatpush.msra.mxu0 0.0
      %1219 = vmatpush.msra.mxu0 0.0
      %1220 = vmatpush.msra.mxu0 0.0
      %1221 = vmatpush.msra.mxu0 0.0
      %1222 = vmatpush.msra.mxu0 0.0
      %1223 = vmatpush.msra.mxu0 0.0
      %1224 = vmatpush.msra.mxu0 0.0
      %1225 = vmatpush.msra.mxu0 0.0
      %1226 = vmatpush.msra.mxu0 0.0
      %1227 = vmatpush.msra.mxu0 %v1197
      %1228 = vmatpush.msra.mxu0 %v1193
      %1229 = vmatmul.f32.gmra.mxu0 %v1202
      %v1230 = vpop.f32.mrf.mxu0
      %v1231 = vadd.f32 0.0, %v1230
      %1232 = vmatmul.f32.gmra.mxu0 %v1205
      %v1233 = vpop.f32.mrf.mxu0
      %v1234 = vadd.f32 0.0, %v1233
      %1235 = vmatmul.f32.gmra.mxu0 %v1208
      %v1236 = vpop.f32.mrf.mxu0
      %v1237 = vadd.f32 0.0, %v1236
      %1238 = vmatmul.f32.gmra.mxu0 %v1211
      %v1239 = vpop.f32.mrf.mxu0
      %v1240 = vadd.f32 0.0, %v1239
      %1241 = vdwg.mxu0
      %1242 = vmatpush.msra.mxu0 0.0
      %1243 = vmatpush.msra.mxu0 0.0
      %1244 = vmatpush.msra.mxu0 0.0
      %1245 = vmatpush.msra.mxu0 0.0
      %1246 = vmatpush.msra.mxu0 0.0
      %1247 = vmatpush.msra.mxu0 0.0
      %1248 = vmatpush.msra.mxu0 0.0
      %1249 = vmatpush.msra.mxu0 0.0
      %1250 = vmatpush.msra.mxu0 0.0
      %1251 = vmatpush.msra.mxu0 0.0
      %1252 = vmatpush.msra.mxu0 0.0
      %1253 = vmatpush.msra.mxu0 0.0
      %1254 = vmatpush.msra.mxu0 0.0
      %1255 = vmatpush.msra.mxu0 0.0
      %1256 = vmatpush.msra.mxu0 %v1198
      %1257 = vmatpush.msra.mxu0 %v1194
      %1258 = vmatmul.f32.gmra.mxu0 %v1202
      %v1259 = vpop.f32.mrf.mxu0
      %v1260 = vadd.f32 0.0, %v1259
      %1261 = vmatmul.f32.gmra.mxu0 %v1205
      %v1262 = vpop.f32.mrf.mxu0
      %v1263 = vadd.f32 0.0, %v1262
      %1264 = vmatmul.f32.gmra.mxu0 %v1208
      %v1265 = vpop.f32.mrf.mxu0
      %v1266 = vadd.f32 0.0, %v1265
      %1267 = vmatmul.f32.gmra.mxu0 %v1211
      %v1268 = vpop.f32.mrf.mxu0
      %v1269 = vadd.f32 0.0, %v1268
      %1270 = vdwg.mxu0
      %1271 = vmatpush.msra.mxu0 0.0
      %1272 = vmatpush.msra.mxu0 0.0
      %1273 = vmatpush.msra.mxu0 0.0
      %1274 = vmatpush.msra.mxu0 0.0
      %1275 = vmatpush.msra.mxu0 0.0
      %1276 = vmatpush.msra.mxu0 0.0
      %1277 = vmatpush.msra.mxu0 0.0
      %1278 = vmatpush.msra.mxu0 0.0
      %1279 = vmatpush.msra.mxu0 0.0
      %1280 = vmatpush.msra.mxu0 0.0
      %1281 = vmatpush.msra.mxu0 0.0
      %1282 = vmatpush.msra.mxu0 0.0
      %1283 = vmatpush.msra.mxu0 0.0
      %1284 = vmatpush.msra.mxu0 0.0
      %1285 = vmatpush.msra.mxu0 %v1199
      %1286 = vmatpush.msra.mxu0 %v1195
      %1287 = vmatmul.f32.gmra.mxu0 %v1202
      %v1288 = vpop.f32.mrf.mxu0
      %v1289 = vadd.f32 0.0, %v1288
      %1290 = vmatmul.f32.gmra.mxu0 %v1205
      %v1291 = vpop.f32.mrf.mxu0
      %v1292 = vadd.f32 0.0, %v1291
      %1293 = vmatmul.f32.gmra.mxu0 %v1208
      %v1294 = vpop.f32.mrf.mxu0
      %v1295 = vadd.f32 0.0, %v1294
      %1296 = vmatmul.f32.gmra.mxu0 %v1211
      %v1297 = vpop.f32.mrf.mxu0
      %v1298 = vadd.f32 0.0, %v1297
      %1299 = vdwg.mxu0
      %1300 = vmatpush.msra.mxu0 0.0
      %1301 = vmatpush.msra.mxu0 0.0
      %1302 = vmatpush.msra.mxu0 0.0
      %1303 = vmatpush.msra.mxu0 0.0
      %1304 = vmatpush.msra.mxu0 0.0
      %1305 = vmatpush.msra.mxu0 0.0
      %1306 = vmatpush.msra.mxu0 0.0
      %1307 = vmatpush.msra.mxu0 0.0
      %1308 = vmatpush.msra.mxu0 0.0
      %1309 = vmatpush.msra.mxu0 0.0
      %1310 = vmatpush.msra.mxu0 0.0
      %1311 = vmatpush.msra.mxu0 0.0
      %1312 = vmatpush.msra.mxu0 0.0
      %1313 = vmatpush.msra.mxu0 0.0
      %1314 = vmatpush.msra.mxu0 %v1200
      %1315 = vmatpush.msra.mxu0 %v1196
      %1316 = vmatmul.f32.gmra.mxu0 %v1202
      %v1317 = vpop.f32.mrf.mxu0
      %v1318 = vadd.f32 0.0, %v1317
      %1319 = vmatmul.f32.gmra.mxu0 %v1205
      %v1320 = vpop.f32.mrf.mxu0
      %v1321 = vadd.f32 0.0, %v1320
      %1322 = vmatmul.f32.gmra.mxu0 %v1208
      %v1323 = vpop.f32.mrf.mxu0
      %v1324 = vadd.f32 0.0, %v1323
      %1325 = vmatmul.f32.gmra.mxu0 %v1211
      %v1326 = vpop.f32.mrf.mxu0
      %v1327 = vadd.f32 0.0, %v1326
      %1328 = vdwg.mxu0
      %v1329 = vadd.f32 %v1130, %v1231
      %v1330 = vadd.f32 %v1131, %v1260
      %v1331 = vadd.f32 %v1132, %v1289
      %v1332 = vadd.f32 %v1133, %v1318
      %v1333 = vadd.f32 %v1134, %v1234
      %v1334 = vadd.f32 %v1135, %v1263
      %v1335 = vadd.f32 %v1136, %v1292
      %v1336 = vadd.f32 %v1137, %v1321
      %v1337 = vadd.f32 %v1138, %v1237
      %v1338 = vadd.f32 %v1139, %v1266
      %v1339 = vadd.f32 %v1140, %v1295
      %v1340 = vadd.f32 %v1141, %v1324
      %v1341 = vadd.f32 %v1142, %v1240
      %v1342 = vadd.f32 %v1143, %v1269
      %v1343 = vadd.f32 %v1144, %v1298
      %v1344 = vadd.f32 %v1145, %v1327
      %s1345 = scalar_lea.vmem %s7, 96
      %v1346 = vld [vmem:[%s1345] sm:$0xff]
      %v1347 = vld [vmem:[%s1345 + $0x8] sm:$0xff]
      %v1348 = vld [vmem:[%s1345 + $0x10] sm:$0xff]
      %v1349 = vld [vmem:[%s1345 + $0x18] sm:$0xff]
      %v1351 = vsel %vm753, %v1346, 0
      %v1354 = vsel %vm753, %v1347, 0
      %v1357 = vsel %vm753, %v1348, 0
      %v1360 = vsel %vm753, %v1349, 0
      %1362 = vmatpush.msra.mxu0 0.0
      %1363 = vmatpush.msra.mxu0 0.0
      %1364 = vmatpush.msra.mxu0 0.0
      %1365 = vmatpush.msra.mxu0 0.0
      %1366 = vmatpush.msra.mxu0 0.0
      %1367 = vmatpush.msra.mxu0 0.0
      %1368 = vmatpush.msra.mxu0 0.0
      %1369 = vmatpush.msra.mxu0 0.0
      %1370 = vmatpush.msra.mxu0 0.0
      %1371 = vmatpush.msra.mxu0 0.0
      %1372 = vmatpush.msra.mxu0 0.0
      %1373 = vmatpush.msra.mxu0 0.0
      %1374 = vmatpush.msra.mxu0 %v409
      %1375 = vmatpush.msra.mxu0 %v408
      %1376 = vmatpush.msra.mxu0 %v407
      %1377 = vmatpush.msra.mxu0 %v406
      %1378 = vmatmul.f32.gmra.mxu0 %v1351
      %v1379 = vpop.f32.mrf.mxu0
      %v1380 = vadd.f32 0.0, %v1379
      %1381 = vmatmul.f32.gmra.mxu0 %v1354
      %v1382 = vpop.f32.mrf.mxu0
      %v1383 = vadd.f32 0.0, %v1382
      %1384 = vmatmul.f32.gmra.mxu0 %v1357
      %v1385 = vpop.f32.mrf.mxu0
      %v1386 = vadd.f32 0.0, %v1385
      %1387 = vmatmul.f32.gmra.mxu0 %v1360
      %v1388 = vpop.f32.mrf.mxu0
      %v1389 = vadd.f32 0.0, %v1388
      %1390 = vdwg.mxu0
      %s1391 = scalar_lea.vmem %s2, 192
      %v1392 = vld [vmem:[%s1391] sm:$0xff]
      %v1393 = vld [vmem:[%s1391 + $0x8] sm:$0xff]
      %v1394 = vld [vmem:[%s1391 + $0x10] sm:$0xff]
      %v1395 = vld [vmem:[%s1391 + $0x18] sm:$0xff]
      %v1396 = vld [vmem:[%s1391 + $0x20] sm:$0xff]
      %v1397 = vld [vmem:[%s1391 + $0x28] sm:$0xff]
      %v1398 = vld [vmem:[%s1391 + $0x30] sm:$0xff]
      %v1399 = vld [vmem:[%s1391 + $0x38] sm:$0xff]
      %v1401 = vsel %vm504, %v1380, 0
      %v1404 = vsel %vm504, %v1383, 0
      %v1407 = vsel %vm504, %v1386, 0
      %v1410 = vsel %vm504, %v1389, 0
      %1412 = vmatpush.msra.mxu0 0.0
      %1413 = vmatpush.msra.mxu0 0.0
      %1414 = vmatpush.msra.mxu0 0.0
      %1415 = vmatpush.msra.mxu0 0.0
      %1416 = vmatpush.msra.mxu0 0.0
      %1417 = vmatpush.msra.mxu0 0.0
      %1418 = vmatpush.msra.mxu0 0.0
      %1419 = vmatpush.msra.mxu0 0.0
      %1420 = vmatpush.msra.mxu0 0.0
      %1421 = vmatpush.msra.mxu0 0.0
      %1422 = vmatpush.msra.mxu0 0.0
      %1423 = vmatpush.msra.mxu0 0.0
      %1424 = vmatpush.msra.mxu0 0.0
      %1425 = vmatpush.msra.mxu0 0.0
      %1426 = vmatpush.msra.mxu0 %v1396
      %1427 = vmatpush.msra.mxu0 %v1392
      %1428 = vmatmul.f32.gmra.mxu0 %v1401
      %v1429 = vpop.f32.mrf.mxu0
      %v1430 = vadd.f32 0.0, %v1429
      %1431 = vmatmul.f32.gmra.mxu0 %v1404
      %v1432 = vpop.f32.mrf.mxu0
      %v1433 = vadd.f32 0.0, %v1432
      %1434 = vmatmul.f32.gmra.mxu0 %v1407
      %v1435 = vpop.f32.mrf.mxu0
      %v1436 = vadd.f32 0.0, %v1435
      %1437 = vmatmul.f32.gmra.mxu0 %v1410
      %v1438 = vpop.f32.mrf.mxu0
      %v1439 = vadd.f32 0.0, %v1438
      %1440 = vdwg.mxu0
      %1441 = vmatpush.msra.mxu0 0.0
      %1442 = vmatpush.msra.mxu0 0.0
      %1443 = vmatpush.msra.mxu0 0.0
      %1444 = vmatpush.msra.mxu0 0.0
      %1445 = vmatpush.msra.mxu0 0.0
      %1446 = vmatpush.msra.mxu0 0.0
      %1447 = vmatpush.msra.mxu0 0.0
      %1448 = vmatpush.msra.mxu0 0.0
      %1449 = vmatpush.msra.mxu0 0.0
      %1450 = vmatpush.msra.mxu0 0.0
      %1451 = vmatpush.msra.mxu0 0.0
      %1452 = vmatpush.msra.mxu0 0.0
      %1453 = vmatpush.msra.mxu0 0.0
      %1454 = vmatpush.msra.mxu0 0.0
      %1455 = vmatpush.msra.mxu0 %v1397
      %1456 = vmatpush.msra.mxu0 %v1393
      %1457 = vmatmul.f32.gmra.mxu0 %v1401
      %v1458 = vpop.f32.mrf.mxu0
      %v1459 = vadd.f32 0.0, %v1458
      %1460 = vmatmul.f32.gmra.mxu0 %v1404
      %v1461 = vpop.f32.mrf.mxu0
      %v1462 = vadd.f32 0.0, %v1461
      %1463 = vmatmul.f32.gmra.mxu0 %v1407
      %v1464 = vpop.f32.mrf.mxu0
      %v1465 = vadd.f32 0.0, %v1464
      %1466 = vmatmul.f32.gmra.mxu0 %v1410
      %v1467 = vpop.f32.mrf.mxu0
      %v1468 = vadd.f32 0.0, %v1467
      %1469 = vdwg.mxu0
      %1470 = vmatpush.msra.mxu0 0.0
      %1471 = vmatpush.msra.mxu0 0.0
      %1472 = vmatpush.msra.mxu0 0.0
      %1473 = vmatpush.msra.mxu0 0.0
      %1474 = vmatpush.msra.mxu0 0.0
      %1475 = vmatpush.msra.mxu0 0.0
      %1476 = vmatpush.msra.mxu0 0.0
      %1477 = vmatpush.msra.mxu0 0.0
      %1478 = vmatpush.msra.mxu0 0.0
      %1479 = vmatpush.msra.mxu0 0.0
      %1480 = vmatpush.msra.mxu0 0.0
      %1481 = vmatpush.msra.mxu0 0.0
      %1482 = vmatpush.msra.mxu0 0.0
      %1483 = vmatpush.msra.mxu0 0.0
      %1484 = vmatpush.msra.mxu0 %v1398
      %1485 = vmatpush.msra.mxu0 %v1394
      %1486 = vmatmul.f32.gmra.mxu0 %v1401
      %v1487 = vpop.f32.mrf.mxu0
      %v1488 = vadd.f32 0.0, %v1487
      %1489 = vmatmul.f32.gmra.mxu0 %v1404
      %v1490 = vpop.f32.mrf.mxu0
      %v1491 = vadd.f32 0.0, %v1490
      %1492 = vmatmul.f32.gmra.mxu0 %v1407
      %v1493 = vpop.f32.mrf.mxu0
      %v1494 = vadd.f32 0.0, %v1493
      %1495 = vmatmul.f32.gmra.mxu0 %v1410
      %v1496 = vpop.f32.mrf.mxu0
      %v1497 = vadd.f32 0.0, %v1496
      %1498 = vdwg.mxu0
      %1499 = vmatpush.msra.mxu0 0.0
      %1500 = vmatpush.msra.mxu0 0.0
      %1501 = vmatpush.msra.mxu0 0.0
      %1502 = vmatpush.msra.mxu0 0.0
      %1503 = vmatpush.msra.mxu0 0.0
      %1504 = vmatpush.msra.mxu0 0.0
      %1505 = vmatpush.msra.mxu0 0.0
      %1506 = vmatpush.msra.mxu0 0.0
      %1507 = vmatpush.msra.mxu0 0.0
      %1508 = vmatpush.msra.mxu0 0.0
      %1509 = vmatpush.msra.mxu0 0.0
      %1510 = vmatpush.msra.mxu0 0.0
      %1511 = vmatpush.msra.mxu0 0.0
      %1512 = vmatpush.msra.mxu0 0.0
      %1513 = vmatpush.msra.mxu0 %v1399
      %1514 = vmatpush.msra.mxu0 %v1395
      %1515 = vmatmul.f32.gmra.mxu0 %v1401
      %v1516 = vpop.f32.mrf.mxu0
      %v1517 = vadd.f32 0.0, %v1516
      %1518 = vmatmul.f32.gmra.mxu0 %v1404
      %v1519 = vpop.f32.mrf.mxu0
      %v1520 = vadd.f32 0.0, %v1519
      %1521 = vmatmul.f32.gmra.mxu0 %v1407
      %v1522 = vpop.f32.mrf.mxu0
      %v1523 = vadd.f32 0.0, %v1522
      %1524 = vmatmul.f32.gmra.mxu0 %v1410
      %v1525 = vpop.f32.mrf.mxu0
      %v1526 = vadd.f32 0.0, %v1525
      %1527 = vdwg.mxu0
      %v1528 = vadd.f32 %v1329, %v1430
      %v1529 = vadd.f32 %v1330, %v1459
      %v1530 = vadd.f32 %v1331, %v1488
      %v1531 = vadd.f32 %v1332, %v1517
      %v1532 = vadd.f32 %v1333, %v1433
      %v1533 = vadd.f32 %v1334, %v1462
      %v1534 = vadd.f32 %v1335, %v1491
      %v1535 = vadd.f32 %v1336, %v1520
      %v1536 = vadd.f32 %v1337, %v1436
      %v1537 = vadd.f32 %v1338, %v1465
      %v1538 = vadd.f32 %v1339, %v1494
      %v1539 = vadd.f32 %v1340, %v1523
      %v1540 = vadd.f32 %v1341, %v1439
      %v1541 = vadd.f32 %v1342, %v1468
      %v1542 = vadd.f32 %v1343, %v1497
      %v1543 = vadd.f32 %v1344, %v1526
      %s1544 = scalar_lea.vmem %s7, 128
      %v1545 = vld [vmem:[%s1544] sm:$0xff]
      %v1546 = vld [vmem:[%s1544 + $0x8] sm:$0xff]
      %v1547 = vld [vmem:[%s1544 + $0x10] sm:$0xff]
      %v1548 = vld [vmem:[%s1544 + $0x18] sm:$0xff]
      %v1550 = vsel %vm753, %v1545, 0
      %v1553 = vsel %vm753, %v1546, 0
      %v1556 = vsel %vm753, %v1547, 0
      %v1559 = vsel %vm753, %v1548, 0
      %1561 = vmatpush.msra.mxu0 0.0
      %1562 = vmatpush.msra.mxu0 0.0
      %1563 = vmatpush.msra.mxu0 0.0
      %1564 = vmatpush.msra.mxu0 0.0
      %1565 = vmatpush.msra.mxu0 0.0
      %1566 = vmatpush.msra.mxu0 0.0
      %1567 = vmatpush.msra.mxu0 0.0
      %1568 = vmatpush.msra.mxu0 0.0
      %1569 = vmatpush.msra.mxu0 0.0
      %1570 = vmatpush.msra.mxu0 0.0
      %1571 = vmatpush.msra.mxu0 0.0
      %1572 = vmatpush.msra.mxu0 0.0
      %1573 = vmatpush.msra.mxu0 %v409
      %1574 = vmatpush.msra.mxu0 %v408
      %1575 = vmatpush.msra.mxu0 %v407
      %1576 = vmatpush.msra.mxu0 %v406
      %1577 = vmatmul.f32.gmra.mxu0 %v1550
      %v1578 = vpop.f32.mrf.mxu0
      %v1579 = vadd.f32 0.0, %v1578
      %1580 = vmatmul.f32.gmra.mxu0 %v1553
      %v1581 = vpop.f32.mrf.mxu0
      %v1582 = vadd.f32 0.0, %v1581
      %1583 = vmatmul.f32.gmra.mxu0 %v1556
      %v1584 = vpop.f32.mrf.mxu0
      %v1585 = vadd.f32 0.0, %v1584
      %1586 = vmatmul.f32.gmra.mxu0 %v1559
      %v1587 = vpop.f32.mrf.mxu0
      %v1588 = vadd.f32 0.0, %v1587
      %1589 = vdwg.mxu0
      %s1590 = scalar_lea.vmem %s2, 256
      %v1591 = vld [vmem:[%s1590] sm:$0xff]
      %v1592 = vld [vmem:[%s1590 + $0x8] sm:$0xff]
      %v1593 = vld [vmem:[%s1590 + $0x10] sm:$0xff]
      %v1594 = vld [vmem:[%s1590 + $0x18] sm:$0xff]
      %v1595 = vld [vmem:[%s1590 + $0x20] sm:$0xff]
      %v1596 = vld [vmem:[%s1590 + $0x28] sm:$0xff]
      %v1597 = vld [vmem:[%s1590 + $0x30] sm:$0xff]
      %v1598 = vld [vmem:[%s1590 + $0x38] sm:$0xff]
      %v1600 = vsel %vm504, %v1579, 0
      %v1603 = vsel %vm504, %v1582, 0
      %v1606 = vsel %vm504, %v1585, 0
      %v1609 = vsel %vm504, %v1588, 0
      %1611 = vmatpush.msra.mxu0 0.0
      %1612 = vmatpush.msra.mxu0 0.0
      %1613 = vmatpush.msra.mxu0 0.0
      %1614 = vmatpush.msra.mxu0 0.0
      %1615 = vmatpush.msra.mxu0 0.0
      %1616 = vmatpush.msra.mxu0 0.0
      %1617 = vmatpush.msra.mxu0 0.0
      %1618 = vmatpush.msra.mxu0 0.0
      %1619 = vmatpush.msra.mxu0 0.0
      %1620 = vmatpush.msra.mxu0 0.0
      %1621 = vmatpush.msra.mxu0 0.0
      %1622 = vmatpush.msra.mxu0 0.0
      %1623 = vmatpush.msra.mxu0 0.0
      %1624 = vmatpush.msra.mxu0 0.0
      %1625 = vmatpush.msra.mxu0 %v1595
      %1626 = vmatpush.msra.mxu0 %v1591
      %1627 = vmatmul.f32.gmra.mxu0 %v1600
      %v1628 = vpop.f32.mrf.mxu0
      %v1629 = vadd.f32 0.0, %v1628
      %1630 = vmatmul.f32.gmra.mxu0 %v1603
      %v1631 = vpop.f32.mrf.mxu0
      %v1632 = vadd.f32 0.0, %v1631
      %1633 = vmatmul.f32.gmra.mxu0 %v1606
      %v1634 = vpop.f32.mrf.mxu0
      %v1635 = vadd.f32 0.0, %v1634
      %1636 = vmatmul.f32.gmra.mxu0 %v1609
      %v1637 = vpop.f32.mrf.mxu0
      %v1638 = vadd.f32 0.0, %v1637
      %1639 = vdwg.mxu0
      %1640 = vmatpush.msra.mxu0 0.0
      %1641 = vmatpush.msra.mxu0 0.0
      %1642 = vmatpush.msra.mxu0 0.0
      %1643 = vmatpush.msra.mxu0 0.0
      %1644 = vmatpush.msra.mxu0 0.0
      %1645 = vmatpush.msra.mxu0 0.0
      %1646 = vmatpush.msra.mxu0 0.0
      %1647 = vmatpush.msra.mxu0 0.0
      %1648 = vmatpush.msra.mxu0 0.0
      %1649 = vmatpush.msra.mxu0 0.0
      %1650 = vmatpush.msra.mxu0 0.0
      %1651 = vmatpush.msra.mxu0 0.0
      %1652 = vmatpush.msra.mxu0 0.0
      %1653 = vmatpush.msra.mxu0 0.0
      %1654 = vmatpush.msra.mxu0 %v1596
      %1655 = vmatpush.msra.mxu0 %v1592
      %1656 = vmatmul.f32.gmra.mxu0 %v1600
      %v1657 = vpop.f32.mrf.mxu0
      %v1658 = vadd.f32 0.0, %v1657
      %1659 = vmatmul.f32.gmra.mxu0 %v1603
      %v1660 = vpop.f32.mrf.mxu0
      %v1661 = vadd.f32 0.0, %v1660
      %1662 = vmatmul.f32.gmra.mxu0 %v1606
      %v1663 = vpop.f32.mrf.mxu0
      %v1664 = vadd.f32 0.0, %v1663
      %1665 = vmatmul.f32.gmra.mxu0 %v1609
      %v1666 = vpop.f32.mrf.mxu0
      %v1667 = vadd.f32 0.0, %v1666
      %1668 = vdwg.mxu0
      %1669 = vmatpush.msra.mxu0 0.0
      %1670 = vmatpush.msra.mxu0 0.0
      %1671 = vmatpush.msra.mxu0 0.0
      %1672 = vmatpush.msra.mxu0 0.0
      %1673 = vmatpush.msra.mxu0 0.0
      %1674 = vmatpush.msra.mxu0 0.0
      %1675 = vmatpush.msra.mxu0 0.0
      %1676 = vmatpush.msra.mxu0 0.0
      %1677 = vmatpush.msra.mxu0 0.0
      %1678 = vmatpush.msra.mxu0 0.0
      %1679 = vmatpush.msra.mxu0 0.0
      %1680 = vmatpush.msra.mxu0 0.0
      %1681 = vmatpush.msra.mxu0 0.0
      %1682 = vmatpush.msra.mxu0 0.0
      %1683 = vmatpush.msra.mxu0 %v1597
      %1684 = vmatpush.msra.mxu0 %v1593
      %1685 = vmatmul.f32.gmra.mxu0 %v1600
      %v1686 = vpop.f32.mrf.mxu0
      %v1687 = vadd.f32 0.0, %v1686
      %1688 = vmatmul.f32.gmra.mxu0 %v1603
      %v1689 = vpop.f32.mrf.mxu0
      %v1690 = vadd.f32 0.0, %v1689
      %1691 = vmatmul.f32.gmra.mxu0 %v1606
      %v1692 = vpop.f32.mrf.mxu0
      %v1693 = vadd.f32 0.0, %v1692
      %1694 = vmatmul.f32.gmra.mxu0 %v1609
      %v1695 = vpop.f32.mrf.mxu0
      %v1696 = vadd.f32 0.0, %v1695
      %1697 = vdwg.mxu0
      %1698 = vmatpush.msra.mxu0 0.0
      %1699 = vmatpush.msra.mxu0 0.0
      %1700 = vmatpush.msra.mxu0 0.0
      %1701 = vmatpush.msra.mxu0 0.0
      %1702 = vmatpush.msra.mxu0 0.0
      %1703 = vmatpush.msra.mxu0 0.0
      %1704 = vmatpush.msra.mxu0 0.0
      %1705 = vmatpush.msra.mxu0 0.0
      %1706 = vmatpush.msra.mxu0 0.0
      %1707 = vmatpush.msra.mxu0 0.0
      %1708 = vmatpush.msra.mxu0 0.0
      %1709 = vmatpush.msra.mxu0 0.0
      %1710 = vmatpush.msra.mxu0 0.0
      %1711 = vmatpush.msra.mxu0 0.0
      %1712 = vmatpush.msra.mxu0 %v1598
      %1713 = vmatpush.msra.mxu0 %v1594
      %1714 = vmatmul.f32.gmra.mxu0 %v1600
      %v1715 = vpop.f32.mrf.mxu0
      %v1716 = vadd.f32 0.0, %v1715
      %1717 = vmatmul.f32.gmra.mxu0 %v1603
      %v1718 = vpop.f32.mrf.mxu0
      %v1719 = vadd.f32 0.0, %v1718
      %1720 = vmatmul.f32.gmra.mxu0 %v1606
      %v1721 = vpop.f32.mrf.mxu0
      %v1722 = vadd.f32 0.0, %v1721
      %1723 = vmatmul.f32.gmra.mxu0 %v1609
      %v1724 = vpop.f32.mrf.mxu0
      %v1725 = vadd.f32 0.0, %v1724
      %1726 = vdwg.mxu0
      %v1727 = vadd.f32 %v1528, %v1629
      %v1728 = vadd.f32 %v1529, %v1658
      %v1729 = vadd.f32 %v1530, %v1687
      %v1730 = vadd.f32 %v1531, %v1716
      %v1731 = vadd.f32 %v1532, %v1632
      %v1732 = vadd.f32 %v1533, %v1661
      %v1733 = vadd.f32 %v1534, %v1690
      %v1734 = vadd.f32 %v1535, %v1719
      %v1735 = vadd.f32 %v1536, %v1635
      %v1736 = vadd.f32 %v1537, %v1664
      %v1737 = vadd.f32 %v1538, %v1693
      %v1738 = vadd.f32 %v1539, %v1722
      %v1739 = vadd.f32 %v1540, %v1638
      %v1740 = vadd.f32 %v1541, %v1667
      %v1741 = vadd.f32 %v1542, %v1696
      %v1742 = vadd.f32 %v1543, %v1725
      %s1743 = scalar_lea.vmem %s7, 160
      %v1744 = vld [vmem:[%s1743] sm:$0xff]
      %v1745 = vld [vmem:[%s1743 + $0x8] sm:$0xff]
      %v1746 = vld [vmem:[%s1743 + $0x10] sm:$0xff]
      %v1747 = vld [vmem:[%s1743 + $0x18] sm:$0xff]
      %v1749 = vsel %vm753, %v1744, 0
      %v1752 = vsel %vm753, %v1745, 0
      %v1755 = vsel %vm753, %v1746, 0
      %v1758 = vsel %vm753, %v1747, 0
      %1760 = vmatpush.msra.mxu0 0.0
      %1761 = vmatpush.msra.mxu0 0.0
      %1762 = vmatpush.msra.mxu0 0.0
      %1763 = vmatpush.msra.mxu0 0.0
      %1764 = vmatpush.msra.mxu0 0.0
      %1765 = vmatpush.msra.mxu0 0.0
      %1766 = vmatpush.msra.mxu0 0.0
      %1767 = vmatpush.msra.mxu0 0.0
      %1768 = vmatpush.msra.mxu0 0.0
      %1769 = vmatpush.msra.mxu0 0.0
      %1770 = vmatpush.msra.mxu0 0.0
      %1771 = vmatpush.msra.mxu0 0.0
      %1772 = vmatpush.msra.mxu0 %v409
      %1773 = vmatpush.msra.mxu0 %v408
      %1774 = vmatpush.msra.mxu0 %v407
      %1775 = vmatpush.msra.mxu0 %v406
      %1776 = vmatmul.f32.gmra.mxu0 %v1749
      %v1777 = vpop.f32.mrf.mxu0
      %v1778 = vadd.f32 0.0, %v1777
      %1779 = vmatmul.f32.gmra.mxu0 %v1752
      %v1780 = vpop.f32.mrf.mxu0
      %v1781 = vadd.f32 0.0, %v1780
      %1782 = vmatmul.f32.gmra.mxu0 %v1755
      %v1783 = vpop.f32.mrf.mxu0
      %v1784 = vadd.f32 0.0, %v1783
      %1785 = vmatmul.f32.gmra.mxu0 %v1758
      %v1786 = vpop.f32.mrf.mxu0
      %v1787 = vadd.f32 0.0, %v1786
      %1788 = vdwg.mxu0
      %s1789 = scalar_lea.vmem %s2, 320
      %v1790 = vld [vmem:[%s1789] sm:$0xff]
      %v1791 = vld [vmem:[%s1789 + $0x8] sm:$0xff]
      %v1792 = vld [vmem:[%s1789 + $0x10] sm:$0xff]
      %v1793 = vld [vmem:[%s1789 + $0x18] sm:$0xff]
      %v1794 = vld [vmem:[%s1789 + $0x20] sm:$0xff]
      %v1795 = vld [vmem:[%s1789 + $0x28] sm:$0xff]
      %v1796 = vld [vmem:[%s1789 + $0x30] sm:$0xff]
      %v1797 = vld [vmem:[%s1789 + $0x38] sm:$0xff]
      %v1799 = vsel %vm504, %v1778, 0
      %v1802 = vsel %vm504, %v1781, 0
      %v1805 = vsel %vm504, %v1784, 0
      %v1808 = vsel %vm504, %v1787, 0
      %1810 = vmatpush.msra.mxu0 0.0
      %1811 = vmatpush.msra.mxu0 0.0
      %1812 = vmatpush.msra.mxu0 0.0
      %1813 = vmatpush.msra.mxu0 0.0
      %1814 = vmatpush.msra.mxu0 0.0
      %1815 = vmatpush.msra.mxu0 0.0
      %1816 = vmatpush.msra.mxu0 0.0
      %1817 = vmatpush.msra.mxu0 0.0
      %1818 = vmatpush.msra.mxu0 0.0
      %1819 = vmatpush.msra.mxu0 0.0
      %1820 = vmatpush.msra.mxu0 0.0
      %1821 = vmatpush.msra.mxu0 0.0
      %1822 = vmatpush.msra.mxu0 0.0
      %1823 = vmatpush.msra.mxu0 0.0
      %1824 = vmatpush.msra.mxu0 %v1794
      %1825 = vmatpush.msra.mxu0 %v1790
      %1826 = vmatmul.f32.gmra.mxu0 %v1799
      %v1827 = vpop.f32.mrf.mxu0
      %v1828 = vadd.f32 0.0, %v1827
      %1829 = vmatmul.f32.gmra.mxu0 %v1802
      %v1830 = vpop.f32.mrf.mxu0
      %v1831 = vadd.f32 0.0, %v1830
      %1832 = vmatmul.f32.gmra.mxu0 %v1805
      %v1833 = vpop.f32.mrf.mxu0
      %v1834 = vadd.f32 0.0, %v1833
      %1835 = vmatmul.f32.gmra.mxu0 %v1808
      %v1836 = vpop.f32.mrf.mxu0
      %v1837 = vadd.f32 0.0, %v1836
      %1838 = vdwg.mxu0
      %1839 = vmatpush.msra.mxu0 0.0
      %1840 = vmatpush.msra.mxu0 0.0
      %1841 = vmatpush.msra.mxu0 0.0
      %1842 = vmatpush.msra.mxu0 0.0
      %1843 = vmatpush.msra.mxu0 0.0
      %1844 = vmatpush.msra.mxu0 0.0
      %1845 = vmatpush.msra.mxu0 0.0
      %1846 = vmatpush.msra.mxu0 0.0
      %1847 = vmatpush.msra.mxu0 0.0
      %1848 = vmatpush.msra.mxu0 0.0
      %1849 = vmatpush.msra.mxu0 0.0
      %1850 = vmatpush.msra.mxu0 0.0
      %1851 = vmatpush.msra.mxu0 0.0
      %1852 = vmatpush.msra.mxu0 0.0
      %1853 = vmatpush.msra.mxu0 %v1795
      %1854 = vmatpush.msra.mxu0 %v1791
      %1855 = vmatmul.f32.gmra.mxu0 %v1799
      %v1856 = vpop.f32.mrf.mxu0
      %v1857 = vadd.f32 0.0, %v1856
      %1858 = vmatmul.f32.gmra.mxu0 %v1802
      %v1859 = vpop.f32.mrf.mxu0
      %v1860 = vadd.f32 0.0, %v1859
      %1861 = vmatmul.f32.gmra.mxu0 %v1805
      %v1862 = vpop.f32.mrf.mxu0
      %v1863 = vadd.f32 0.0, %v1862
      %1864 = vmatmul.f32.gmra.mxu0 %v1808
      %v1865 = vpop.f32.mrf.mxu0
      %v1866 = vadd.f32 0.0, %v1865
      %1867 = vdwg.mxu0
      %1868 = vmatpush.msra.mxu0 0.0
      %1869 = vmatpush.msra.mxu0 0.0
      %1870 = vmatpush.msra.mxu0 0.0
      %1871 = vmatpush.msra.mxu0 0.0
      %1872 = vmatpush.msra.mxu0 0.0
      %1873 = vmatpush.msra.mxu0 0.0
      %1874 = vmatpush.msra.mxu0 0.0
      %1875 = vmatpush.msra.mxu0 0.0
      %1876 = vmatpush.msra.mxu0 0.0
      %1877 = vmatpush.msra.mxu0 0.0
      %1878 = vmatpush.msra.mxu0 0.0
      %1879 = vmatpush.msra.mxu0 0.0
      %1880 = vmatpush.msra.mxu0 0.0
      %1881 = vmatpush.msra.mxu0 0.0
      %1882 = vmatpush.msra.mxu0 %v1796
      %1883 = vmatpush.msra.mxu0 %v1792
      %1884 = vmatmul.f32.gmra.mxu0 %v1799
      %v1885 = vpop.f32.mrf.mxu0
      %v1886 = vadd.f32 0.0, %v1885
      %1887 = vmatmul.f32.gmra.mxu0 %v1802
      %v1888 = vpop.f32.mrf.mxu0
      %v1889 = vadd.f32 0.0, %v1888
      %1890 = vmatmul.f32.gmra.mxu0 %v1805
      %v1891 = vpop.f32.mrf.mxu0
      %v1892 = vadd.f32 0.0, %v1891
      %1893 = vmatmul.f32.gmra.mxu0 %v1808
      %v1894 = vpop.f32.mrf.mxu0
      %v1895 = vadd.f32 0.0, %v1894
      %1896 = vdwg.mxu0
      %1897 = vmatpush.msra.mxu0 0.0
      %1898 = vmatpush.msra.mxu0 0.0
      %1899 = vmatpush.msra.mxu0 0.0
      %1900 = vmatpush.msra.mxu0 0.0
      %1901 = vmatpush.msra.mxu0 0.0
      %1902 = vmatpush.msra.mxu0 0.0
      %1903 = vmatpush.msra.mxu0 0.0
      %1904 = vmatpush.msra.mxu0 0.0
      %1905 = vmatpush.msra.mxu0 0.0
      %1906 = vmatpush.msra.mxu0 0.0
      %1907 = vmatpush.msra.mxu0 0.0
      %1908 = vmatpush.msra.mxu0 0.0
      %1909 = vmatpush.msra.mxu0 0.0
      %1910 = vmatpush.msra.mxu0 0.0
      %1911 = vmatpush.msra.mxu0 %v1797
      %1912 = vmatpush.msra.mxu0 %v1793
      %1913 = vmatmul.f32.gmra.mxu0 %v1799
      %v1914 = vpop.f32.mrf.mxu0
      %v1915 = vadd.f32 0.0, %v1914
      %1916 = vmatmul.f32.gmra.mxu0 %v1802
      %v1917 = vpop.f32.mrf.mxu0
      %v1918 = vadd.f32 0.0, %v1917
      %1919 = vmatmul.f32.gmra.mxu0 %v1805
      %v1920 = vpop.f32.mrf.mxu0
      %v1921 = vadd.f32 0.0, %v1920
      %1922 = vmatmul.f32.gmra.mxu0 %v1808
      %v1923 = vpop.f32.mrf.mxu0
      %v1924 = vadd.f32 0.0, %v1923
      %1925 = vdwg.mxu0
      %v1926 = vadd.f32 %v1727, %v1828
      %v1927 = vadd.f32 %v1728, %v1857
      %v1928 = vadd.f32 %v1729, %v1886
      %v1929 = vadd.f32 %v1730, %v1915
      %v1930 = vadd.f32 %v1731, %v1831
      %v1931 = vadd.f32 %v1732, %v1860
      %v1932 = vadd.f32 %v1733, %v1889
      %v1933 = vadd.f32 %v1734, %v1918
      %v1934 = vadd.f32 %v1735, %v1834
      %v1935 = vadd.f32 %v1736, %v1863
      %v1936 = vadd.f32 %v1737, %v1892
      %v1937 = vadd.f32 %v1738, %v1921
      %v1938 = vadd.f32 %v1739, %v1837
      %v1939 = vadd.f32 %v1740, %v1866
      %v1940 = vadd.f32 %v1741, %v1895
      %v1941 = vadd.f32 %v1742, %v1924
      %s1942 = scalar_lea.vmem %s7, 192
      %v1943 = vld [vmem:[%s1942] sm:$0xff]
      %v1944 = vld [vmem:[%s1942 + $0x8] sm:$0xff]
      %v1945 = vld [vmem:[%s1942 + $0x10] sm:$0xff]
      %v1946 = vld [vmem:[%s1942 + $0x18] sm:$0xff]
      %v1948 = vsel %vm753, %v1943, 0
      %v1951 = vsel %vm753, %v1944, 0
      %v1954 = vsel %vm753, %v1945, 0
      %v1957 = vsel %vm753, %v1946, 0
      %1959 = vmatpush.msra.mxu0 0.0
      %1960 = vmatpush.msra.mxu0 0.0
      %1961 = vmatpush.msra.mxu0 0.0
      %1962 = vmatpush.msra.mxu0 0.0
      %1963 = vmatpush.msra.mxu0 0.0
      %1964 = vmatpush.msra.mxu0 0.0
      %1965 = vmatpush.msra.mxu0 0.0
      %1966 = vmatpush.msra.mxu0 0.0
      %1967 = vmatpush.msra.mxu0 0.0
      %1968 = vmatpush.msra.mxu0 0.0
      %1969 = vmatpush.msra.mxu0 0.0
      %1970 = vmatpush.msra.mxu0 0.0
      %1971 = vmatpush.msra.mxu0 %v409
      %1972 = vmatpush.msra.mxu0 %v408
      %1973 = vmatpush.msra.mxu0 %v407
      %1974 = vmatpush.msra.mxu0 %v406
      %1975 = vmatmul.f32.gmra.mxu0 %v1948
      %v1976 = vpop.f32.mrf.mxu0
      %v1977 = vadd.f32 0.0, %v1976
      %1978 = vmatmul.f32.gmra.mxu0 %v1951
      %v1979 = vpop.f32.mrf.mxu0
      %v1980 = vadd.f32 0.0, %v1979
      %1981 = vmatmul.f32.gmra.mxu0 %v1954
      %v1982 = vpop.f32.mrf.mxu0
      %v1983 = vadd.f32 0.0, %v1982
      %1984 = vmatmul.f32.gmra.mxu0 %v1957
      %v1985 = vpop.f32.mrf.mxu0
      %v1986 = vadd.f32 0.0, %v1985
      %1987 = vdwg.mxu0
      %s1988 = scalar_lea.vmem %s2, 384
      %v1989 = vld [vmem:[%s1988] sm:$0xff]
      %v1990 = vld [vmem:[%s1988 + $0x8] sm:$0xff]
      %v1991 = vld [vmem:[%s1988 + $0x10] sm:$0xff]
      %v1992 = vld [vmem:[%s1988 + $0x18] sm:$0xff]
      %v1993 = vld [vmem:[%s1988 + $0x20] sm:$0xff]
      %v1994 = vld [vmem:[%s1988 + $0x28] sm:$0xff]
      %v1995 = vld [vmem:[%s1988 + $0x30] sm:$0xff]
      %v1996 = vld [vmem:[%s1988 + $0x38] sm:$0xff]
      %v1998 = vsel %vm504, %v1977, 0
      %v2001 = vsel %vm504, %v1980, 0
      %v2004 = vsel %vm504, %v1983, 0
      %v2007 = vsel %vm504, %v1986, 0
      %2009 = vmatpush.msra.mxu0 0.0
      %2010 = vmatpush.msra.mxu0 0.0
      %2011 = vmatpush.msra.mxu0 0.0
      %2012 = vmatpush.msra.mxu0 0.0
      %2013 = vmatpush.msra.mxu0 0.0
      %2014 = vmatpush.msra.mxu0 0.0
      %2015 = vmatpush.msra.mxu0 0.0
      %2016 = vmatpush.msra.mxu0 0.0
      %2017 = vmatpush.msra.mxu0 0.0
      %2018 = vmatpush.msra.mxu0 0.0
      %2019 = vmatpush.msra.mxu0 0.0
      %2020 = vmatpush.msra.mxu0 0.0
      %2021 = vmatpush.msra.mxu0 0.0
      %2022 = vmatpush.msra.mxu0 0.0
      %2023 = vmatpush.msra.mxu0 %v1993
      %2024 = vmatpush.msra.mxu0 %v1989
      %2025 = vmatmul.f32.gmra.mxu0 %v1998
      %v2026 = vpop.f32.mrf.mxu0
      %v2027 = vadd.f32 0.0, %v2026
      %2028 = vmatmul.f32.gmra.mxu0 %v2001
      %v2029 = vpop.f32.mrf.mxu0
      %v2030 = vadd.f32 0.0, %v2029
      %2031 = vmatmul.f32.gmra.mxu0 %v2004
      %v2032 = vpop.f32.mrf.mxu0
      %v2033 = vadd.f32 0.0, %v2032
      %2034 = vmatmul.f32.gmra.mxu0 %v2007
      %v2035 = vpop.f32.mrf.mxu0
      %v2036 = vadd.f32 0.0, %v2035
      %2037 = vdwg.mxu0
      %2038 = vmatpush.msra.mxu0 0.0
      %2039 = vmatpush.msra.mxu0 0.0
      %2040 = vmatpush.msra.mxu0 0.0
      %2041 = vmatpush.msra.mxu0 0.0
      %2042 = vmatpush.msra.mxu0 0.0
      %2043 = vmatpush.msra.mxu0 0.0
      %2044 = vmatpush.msra.mxu0 0.0
      %2045 = vmatpush.msra.mxu0 0.0
      %2046 = vmatpush.msra.mxu0 0.0
      %2047 = vmatpush.msra.mxu0 0.0
      %2048 = vmatpush.msra.mxu0 0.0
      %2049 = vmatpush.msra.mxu0 0.0
      %2050 = vmatpush.msra.mxu0 0.0
      %2051 = vmatpush.msra.mxu0 0.0
      %2052 = vmatpush.msra.mxu0 %v1994
      %2053 = vmatpush.msra.mxu0 %v1990
      %2054 = vmatmul.f32.gmra.mxu0 %v1998
      %v2055 = vpop.f32.mrf.mxu0
      %v2056 = vadd.f32 0.0, %v2055
      %2057 = vmatmul.f32.gmra.mxu0 %v2001
      %v2058 = vpop.f32.mrf.mxu0
      %v2059 = vadd.f32 0.0, %v2058
      %2060 = vmatmul.f32.gmra.mxu0 %v2004
      %v2061 = vpop.f32.mrf.mxu0
      %v2062 = vadd.f32 0.0, %v2061
      %2063 = vmatmul.f32.gmra.mxu0 %v2007
      %v2064 = vpop.f32.mrf.mxu0
      %v2065 = vadd.f32 0.0, %v2064
      %2066 = vdwg.mxu0
      %2067 = vmatpush.msra.mxu0 0.0
      %2068 = vmatpush.msra.mxu0 0.0
      %2069 = vmatpush.msra.mxu0 0.0
      %2070 = vmatpush.msra.mxu0 0.0
      %2071 = vmatpush.msra.mxu0 0.0
      %2072 = vmatpush.msra.mxu0 0.0
      %2073 = vmatpush.msra.mxu0 0.0
      %2074 = vmatpush.msra.mxu0 0.0
      %2075 = vmatpush.msra.mxu0 0.0
      %2076 = vmatpush.msra.mxu0 0.0
      %2077 = vmatpush.msra.mxu0 0.0
      %2078 = vmatpush.msra.mxu0 0.0
      %2079 = vmatpush.msra.mxu0 0.0
      %2080 = vmatpush.msra.mxu0 0.0
      %2081 = vmatpush.msra.mxu0 %v1995
      %2082 = vmatpush.msra.mxu0 %v1991
      %2083 = vmatmul.f32.gmra.mxu0 %v1998
      %v2084 = vpop.f32.mrf.mxu0
      %v2085 = vadd.f32 0.0, %v2084
      %2086 = vmatmul.f32.gmra.mxu0 %v2001
      %v2087 = vpop.f32.mrf.mxu0
      %v2088 = vadd.f32 0.0, %v2087
      %2089 = vmatmul.f32.gmra.mxu0 %v2004
      %v2090 = vpop.f32.mrf.mxu0
      %v2091 = vadd.f32 0.0, %v2090
      %2092 = vmatmul.f32.gmra.mxu0 %v2007
      %v2093 = vpop.f32.mrf.mxu0
      %v2094 = vadd.f32 0.0, %v2093
      %2095 = vdwg.mxu0
      %2096 = vmatpush.msra.mxu0 0.0
      %2097 = vmatpush.msra.mxu0 0.0
      %2098 = vmatpush.msra.mxu0 0.0
      %2099 = vmatpush.msra.mxu0 0.0
      %2100 = vmatpush.msra.mxu0 0.0
      %2101 = vmatpush.msra.mxu0 0.0
      %2102 = vmatpush.msra.mxu0 0.0
      %2103 = vmatpush.msra.mxu0 0.0
      %2104 = vmatpush.msra.mxu0 0.0
      %2105 = vmatpush.msra.mxu0 0.0
      %2106 = vmatpush.msra.mxu0 0.0
      %2107 = vmatpush.msra.mxu0 0.0
      %2108 = vmatpush.msra.mxu0 0.0
      %2109 = vmatpush.msra.mxu0 0.0
      %2110 = vmatpush.msra.mxu0 %v1996
      %2111 = vmatpush.msra.mxu0 %v1992
      %2112 = vmatmul.f32.gmra.mxu0 %v1998
      %v2113 = vpop.f32.mrf.mxu0
      %v2114 = vadd.f32 0.0, %v2113
      %2115 = vmatmul.f32.gmra.mxu0 %v2001
      %v2116 = vpop.f32.mrf.mxu0
      %v2117 = vadd.f32 0.0, %v2116
      %2118 = vmatmul.f32.gmra.mxu0 %v2004
      %v2119 = vpop.f32.mrf.mxu0
      %v2120 = vadd.f32 0.0, %v2119
      %2121 = vmatmul.f32.gmra.mxu0 %v2007
      %v2122 = vpop.f32.mrf.mxu0
      %v2123 = vadd.f32 0.0, %v2122
      %2124 = vdwg.mxu0
      %v2125 = vadd.f32 %v1926, %v2027
      %v2126 = vadd.f32 %v1927, %v2056
      %v2127 = vadd.f32 %v1928, %v2085
      %v2128 = vadd.f32 %v1929, %v2114
      %v2129 = vadd.f32 %v1930, %v2030
      %v2130 = vadd.f32 %v1931, %v2059
      %v2131 = vadd.f32 %v1932, %v2088
      %v2132 = vadd.f32 %v1933, %v2117
      %v2133 = vadd.f32 %v1934, %v2033
      %v2134 = vadd.f32 %v1935, %v2062
      %v2135 = vadd.f32 %v1936, %v2091
      %v2136 = vadd.f32 %v1937, %v2120
      %v2137 = vadd.f32 %v1938, %v2036
      %v2138 = vadd.f32 %v1939, %v2065
      %v2139 = vadd.f32 %v1940, %v2094
      %v2140 = vadd.f32 %v1941, %v2123
      %s2141 = scalar_lea.vmem %s7, 224
      %v2142 = vld [vmem:[%s2141] sm:$0xff]
      %v2143 = vld [vmem:[%s2141 + $0x8] sm:$0xff]
      %v2144 = vld [vmem:[%s2141 + $0x10] sm:$0xff]
      %v2145 = vld [vmem:[%s2141 + $0x18] sm:$0xff]
      %v2147 = vsel %vm753, %v2142, 0
      %v2150 = vsel %vm753, %v2143, 0
      %v2153 = vsel %vm753, %v2144, 0
      %v2156 = vsel %vm753, %v2145, 0
      %2158 = vmatpush.msra.mxu0 0.0
      %2159 = vmatpush.msra.mxu0 0.0
      %2160 = vmatpush.msra.mxu0 0.0
      %2161 = vmatpush.msra.mxu0 0.0
      %2162 = vmatpush.msra.mxu0 0.0
      %2163 = vmatpush.msra.mxu0 0.0
      %2164 = vmatpush.msra.mxu0 0.0
      %2165 = vmatpush.msra.mxu0 0.0
      %2166 = vmatpush.msra.mxu0 0.0
      %2167 = vmatpush.msra.mxu0 0.0
      %2168 = vmatpush.msra.mxu0 0.0
      %2169 = vmatpush.msra.mxu0 0.0
      %2170 = vmatpush.msra.mxu0 %v409
      %2171 = vmatpush.msra.mxu0 %v408
      %2172 = vmatpush.msra.mxu0 %v407
      %2173 = vmatpush.msra.mxu0 %v406
      %2174 = vmatmul.f32.gmra.mxu0 %v2147
      %v2175 = vpop.f32.mrf.mxu0
      %v2176 = vadd.f32 0.0, %v2175
      %2177 = vmatmul.f32.gmra.mxu0 %v2150
      %v2178 = vpop.f32.mrf.mxu0
      %v2179 = vadd.f32 0.0, %v2178
      %2180 = vmatmul.f32.gmra.mxu0 %v2153
      %v2181 = vpop.f32.mrf.mxu0
      %v2182 = vadd.f32 0.0, %v2181
      %2183 = vmatmul.f32.gmra.mxu0 %v2156
      %v2184 = vpop.f32.mrf.mxu0
      %v2185 = vadd.f32 0.0, %v2184
      %2186 = vdwg.mxu0
      %s2187 = scalar_lea.vmem %s2, 448
      %v2188 = vld [vmem:[%s2187] sm:$0xff]
      %v2189 = vld [vmem:[%s2187 + $0x8] sm:$0xff]
      %v2190 = vld [vmem:[%s2187 + $0x10] sm:$0xff]
      %v2191 = vld [vmem:[%s2187 + $0x18] sm:$0xff]
      %v2192 = vld [vmem:[%s2187 + $0x20] sm:$0xff]
      %v2193 = vld [vmem:[%s2187 + $0x28] sm:$0xff]
      %v2194 = vld [vmem:[%s2187 + $0x30] sm:$0xff]
      %v2195 = vld [vmem:[%s2187 + $0x38] sm:$0xff]
      %v2197 = vsel %vm504, %v2176, 0
      %v2200 = vsel %vm504, %v2179, 0
      %v2203 = vsel %vm504, %v2182, 0
      %v2206 = vsel %vm504, %v2185, 0
      %2208 = vmatpush.msra.mxu0 0.0
      %2209 = vmatpush.msra.mxu0 0.0
      %2210 = vmatpush.msra.mxu0 0.0
      %2211 = vmatpush.msra.mxu0 0.0
      %2212 = vmatpush.msra.mxu0 0.0
      %2213 = vmatpush.msra.mxu0 0.0
      %2214 = vmatpush.msra.mxu0 0.0
      %2215 = vmatpush.msra.mxu0 0.0
      %2216 = vmatpush.msra.mxu0 0.0
      %2217 = vmatpush.msra.mxu0 0.0
      %2218 = vmatpush.msra.mxu0 0.0
      %2219 = vmatpush.msra.mxu0 0.0
      %2220 = vmatpush.msra.mxu0 0.0
      %2221 = vmatpush.msra.mxu0 0.0
      %2222 = vmatpush.msra.mxu0 %v2192
      %2223 = vmatpush.msra.mxu0 %v2188
      %2224 = vmatmul.f32.gmra.mxu0 %v2197
      %v2225 = vpop.f32.mrf.mxu0
      %v2226 = vadd.f32 0.0, %v2225
      %2227 = vmatmul.f32.gmra.mxu0 %v2200
      %v2228 = vpop.f32.mrf.mxu0
      %v2229 = vadd.f32 0.0, %v2228
      %2230 = vmatmul.f32.gmra.mxu0 %v2203
      %v2231 = vpop.f32.mrf.mxu0
      %v2232 = vadd.f32 0.0, %v2231
      %2233 = vmatmul.f32.gmra.mxu0 %v2206
      %v2234 = vpop.f32.mrf.mxu0
      %v2235 = vadd.f32 0.0, %v2234
      %2236 = vdwg.mxu0
      %2237 = vmatpush.msra.mxu0 0.0
      %2238 = vmatpush.msra.mxu0 0.0
      %2239 = vmatpush.msra.mxu0 0.0
      %2240 = vmatpush.msra.mxu0 0.0
      %2241 = vmatpush.msra.mxu0 0.0
      %2242 = vmatpush.msra.mxu0 0.0
      %2243 = vmatpush.msra.mxu0 0.0
      %2244 = vmatpush.msra.mxu0 0.0
      %2245 = vmatpush.msra.mxu0 0.0
      %2246 = vmatpush.msra.mxu0 0.0
      %2247 = vmatpush.msra.mxu0 0.0
      %2248 = vmatpush.msra.mxu0 0.0
      %2249 = vmatpush.msra.mxu0 0.0
      %2250 = vmatpush.msra.mxu0 0.0
      %2251 = vmatpush.msra.mxu0 %v2193
      %2252 = vmatpush.msra.mxu0 %v2189
      %2253 = vmatmul.f32.gmra.mxu0 %v2197
      %v2254 = vpop.f32.mrf.mxu0
      %v2255 = vadd.f32 0.0, %v2254
      %2256 = vmatmul.f32.gmra.mxu0 %v2200
      %v2257 = vpop.f32.mrf.mxu0
      %v2258 = vadd.f32 0.0, %v2257
      %2259 = vmatmul.f32.gmra.mxu0 %v2203
      %v2260 = vpop.f32.mrf.mxu0
      %v2261 = vadd.f32 0.0, %v2260
      %2262 = vmatmul.f32.gmra.mxu0 %v2206
      %v2263 = vpop.f32.mrf.mxu0
      %v2264 = vadd.f32 0.0, %v2263
      %2265 = vdwg.mxu0
      %2266 = vmatpush.msra.mxu0 0.0
      %2267 = vmatpush.msra.mxu0 0.0
      %2268 = vmatpush.msra.mxu0 0.0
      %2269 = vmatpush.msra.mxu0 0.0
      %2270 = vmatpush.msra.mxu0 0.0
      %2271 = vmatpush.msra.mxu0 0.0
      %2272 = vmatpush.msra.mxu0 0.0
      %2273 = vmatpush.msra.mxu0 0.0
      %2274 = vmatpush.msra.mxu0 0.0
      %2275 = vmatpush.msra.mxu0 0.0
      %2276 = vmatpush.msra.mxu0 0.0
      %2277 = vmatpush.msra.mxu0 0.0
      %2278 = vmatpush.msra.mxu0 0.0
      %2279 = vmatpush.msra.mxu0 0.0
      %2280 = vmatpush.msra.mxu0 %v2194
      %2281 = vmatpush.msra.mxu0 %v2190
      %2282 = vmatmul.f32.gmra.mxu0 %v2197
      %v2283 = vpop.f32.mrf.mxu0
      %v2284 = vadd.f32 0.0, %v2283
      %2285 = vmatmul.f32.gmra.mxu0 %v2200
      %v2286 = vpop.f32.mrf.mxu0
      %v2287 = vadd.f32 0.0, %v2286
      %2288 = vmatmul.f32.gmra.mxu0 %v2203
      %v2289 = vpop.f32.mrf.mxu0
      %v2290 = vadd.f32 0.0, %v2289
      %2291 = vmatmul.f32.gmra.mxu0 %v2206
      %v2292 = vpop.f32.mrf.mxu0
      %v2293 = vadd.f32 0.0, %v2292
      %2294 = vdwg.mxu0
      %2295 = vmatpush.msra.mxu0 0.0
      %2296 = vmatpush.msra.mxu0 0.0
      %2297 = vmatpush.msra.mxu0 0.0
      %2298 = vmatpush.msra.mxu0 0.0
      %2299 = vmatpush.msra.mxu0 0.0
      %2300 = vmatpush.msra.mxu0 0.0
      %2301 = vmatpush.msra.mxu0 0.0
      %2302 = vmatpush.msra.mxu0 0.0
      %2303 = vmatpush.msra.mxu0 0.0
      %2304 = vmatpush.msra.mxu0 0.0
      %2305 = vmatpush.msra.mxu0 0.0
      %2306 = vmatpush.msra.mxu0 0.0
      %2307 = vmatpush.msra.mxu0 0.0
      %2308 = vmatpush.msra.mxu0 0.0
      %2309 = vmatpush.msra.mxu0 %v2195
      %2310 = vmatpush.msra.mxu0 %v2191
      %2311 = vmatmul.f32.gmra.mxu0 %v2197
      %v2312 = vpop.f32.mrf.mxu0
      %v2313 = vadd.f32 0.0, %v2312
      %2314 = vmatmul.f32.gmra.mxu0 %v2200
      %v2315 = vpop.f32.mrf.mxu0
      %v2316 = vadd.f32 0.0, %v2315
      %2317 = vmatmul.f32.gmra.mxu0 %v2203
      %v2318 = vpop.f32.mrf.mxu0
      %v2319 = vadd.f32 0.0, %v2318
      %2320 = vmatmul.f32.gmra.mxu0 %v2206
      %v2321 = vpop.f32.mrf.mxu0
      %v2322 = vadd.f32 0.0, %v2321
      %2323 = vdwg.mxu0
      %v2324 = vadd.f32 %v2125, %v2226
      %v2325 = vadd.f32 %v2126, %v2255
      %v2326 = vadd.f32 %v2127, %v2284
      %v2327 = vadd.f32 %v2128, %v2313
      %v2328 = vadd.f32 %v2129, %v2229
      %v2329 = vadd.f32 %v2130, %v2258
      %v2330 = vadd.f32 %v2131, %v2287
      %v2331 = vadd.f32 %v2132, %v2316
      %v2332 = vadd.f32 %v2133, %v2232
      %v2333 = vadd.f32 %v2134, %v2261
      %v2334 = vadd.f32 %v2135, %v2290
      %v2335 = vadd.f32 %v2136, %v2319
      %v2336 = vadd.f32 %v2137, %v2235
      %v2337 = vadd.f32 %v2138, %v2264
      %v2338 = vadd.f32 %v2139, %v2293
      %v2339 = vadd.f32 %v2140, %v2322
      %s2340 = scalar_lea.vmem %s7, 256
      %v2341 = vld [vmem:[%s2340] sm:$0xff]
      %v2342 = vld [vmem:[%s2340 + $0x8] sm:$0xff]
      %v2343 = vld [vmem:[%s2340 + $0x10] sm:$0xff]
      %v2344 = vld [vmem:[%s2340 + $0x18] sm:$0xff]
      %v2346 = vsel %vm753, %v2341, 0
      %v2349 = vsel %vm753, %v2342, 0
      %v2352 = vsel %vm753, %v2343, 0
      %v2355 = vsel %vm753, %v2344, 0
      %2357 = vmatpush.msra.mxu0 0.0
      %2358 = vmatpush.msra.mxu0 0.0
      %2359 = vmatpush.msra.mxu0 0.0
      %2360 = vmatpush.msra.mxu0 0.0
      %2361 = vmatpush.msra.mxu0 0.0
      %2362 = vmatpush.msra.mxu0 0.0
      %2363 = vmatpush.msra.mxu0 0.0
      %2364 = vmatpush.msra.mxu0 0.0
      %2365 = vmatpush.msra.mxu0 0.0
      %2366 = vmatpush.msra.mxu0 0.0
      %2367 = vmatpush.msra.mxu0 0.0
      %2368 = vmatpush.msra.mxu0 0.0
      %2369 = vmatpush.msra.mxu0 %v409
      %2370 = vmatpush.msra.mxu0 %v408
      %2371 = vmatpush.msra.mxu0 %v407
      %2372 = vmatpush.msra.mxu0 %v406
      %2373 = vmatmul.f32.gmra.mxu0 %v2346
      %v2374 = vpop.f32.mrf.mxu0
      %v2375 = vadd.f32 0.0, %v2374
      %2376 = vmatmul.f32.gmra.mxu0 %v2349
      %v2377 = vpop.f32.mrf.mxu0
      %v2378 = vadd.f32 0.0, %v2377
      %2379 = vmatmul.f32.gmra.mxu0 %v2352
      %v2380 = vpop.f32.mrf.mxu0
      %v2381 = vadd.f32 0.0, %v2380
      %2382 = vmatmul.f32.gmra.mxu0 %v2355
      %v2383 = vpop.f32.mrf.mxu0
      %v2384 = vadd.f32 0.0, %v2383
      %2385 = vdwg.mxu0
      %s2386 = scalar_lea.vmem %s2, 512
      %v2387 = vld [vmem:[%s2386] sm:$0xff]
      %v2388 = vld [vmem:[%s2386 + $0x8] sm:$0xff]
      %v2389 = vld [vmem:[%s2386 + $0x10] sm:$0xff]
      %v2390 = vld [vmem:[%s2386 + $0x18] sm:$0xff]
      %v2391 = vld [vmem:[%s2386 + $0x20] sm:$0xff]
      %v2392 = vld [vmem:[%s2386 + $0x28] sm:$0xff]
      %v2393 = vld [vmem:[%s2386 + $0x30] sm:$0xff]
      %v2394 = vld [vmem:[%s2386 + $0x38] sm:$0xff]
      %v2396 = vsel %vm504, %v2375, 0
      %v2399 = vsel %vm504, %v2378, 0
      %v2402 = vsel %vm504, %v2381, 0
      %v2405 = vsel %vm504, %v2384, 0
      %2407 = vmatpush.msra.mxu0 0.0
      %2408 = vmatpush.msra.mxu0 0.0
      %2409 = vmatpush.msra.mxu0 0.0
      %2410 = vmatpush.msra.mxu0 0.0
      %2411 = vmatpush.msra.mxu0 0.0
      %2412 = vmatpush.msra.mxu0 0.0
      %2413 = vmatpush.msra.mxu0 0.0
      %2414 = vmatpush.msra.mxu0 0.0
      %2415 = vmatpush.msra.mxu0 0.0
      %2416 = vmatpush.msra.mxu0 0.0
      %2417 = vmatpush.msra.mxu0 0.0
      %2418 = vmatpush.msra.mxu0 0.0
      %2419 = vmatpush.msra.mxu0 0.0
      %2420 = vmatpush.msra.mxu0 0.0
      %2421 = vmatpush.msra.mxu0 %v2391
      %2422 = vmatpush.msra.mxu0 %v2387
      %2423 = vmatmul.f32.gmra.mxu0 %v2396
      %v2424 = vpop.f32.mrf.mxu0
      %v2425 = vadd.f32 0.0, %v2424
      %2426 = vmatmul.f32.gmra.mxu0 %v2399
      %v2427 = vpop.f32.mrf.mxu0
      %v2428 = vadd.f32 0.0, %v2427
      %2429 = vmatmul.f32.gmra.mxu0 %v2402
      %v2430 = vpop.f32.mrf.mxu0
      %v2431 = vadd.f32 0.0, %v2430
      %2432 = vmatmul.f32.gmra.mxu0 %v2405
      %v2433 = vpop.f32.mrf.mxu0
      %v2434 = vadd.f32 0.0, %v2433
      %2435 = vdwg.mxu0
      %2436 = vmatpush.msra.mxu0 0.0
      %2437 = vmatpush.msra.mxu0 0.0
      %2438 = vmatpush.msra.mxu0 0.0
      %2439 = vmatpush.msra.mxu0 0.0
      %2440 = vmatpush.msra.mxu0 0.0
      %2441 = vmatpush.msra.mxu0 0.0
      %2442 = vmatpush.msra.mxu0 0.0
      %2443 = vmatpush.msra.mxu0 0.0
      %2444 = vmatpush.msra.mxu0 0.0
      %2445 = vmatpush.msra.mxu0 0.0
      %2446 = vmatpush.msra.mxu0 0.0
      %2447 = vmatpush.msra.mxu0 0.0
      %2448 = vmatpush.msra.mxu0 0.0
      %2449 = vmatpush.msra.mxu0 0.0
      %2450 = vmatpush.msra.mxu0 %v2392
      %2451 = vmatpush.msra.mxu0 %v2388
      %2452 = vmatmul.f32.gmra.mxu0 %v2396
      %v2453 = vpop.f32.mrf.mxu0
      %v2454 = vadd.f32 0.0, %v2453
      %2455 = vmatmul.f32.gmra.mxu0 %v2399
      %v2456 = vpop.f32.mrf.mxu0
      %v2457 = vadd.f32 0.0, %v2456
      %2458 = vmatmul.f32.gmra.mxu0 %v2402
      %v2459 = vpop.f32.mrf.mxu0
      %v2460 = vadd.f32 0.0, %v2459
      %2461 = vmatmul.f32.gmra.mxu0 %v2405
      %v2462 = vpop.f32.mrf.mxu0
      %v2463 = vadd.f32 0.0, %v2462
      %2464 = vdwg.mxu0
      %2465 = vmatpush.msra.mxu0 0.0
      %2466 = vmatpush.msra.mxu0 0.0
      %2467 = vmatpush.msra.mxu0 0.0
      %2468 = vmatpush.msra.mxu0 0.0
      %2469 = vmatpush.msra.mxu0 0.0
      %2470 = vmatpush.msra.mxu0 0.0
      %2471 = vmatpush.msra.mxu0 0.0
      %2472 = vmatpush.msra.mxu0 0.0
      %2473 = vmatpush.msra.mxu0 0.0
      %2474 = vmatpush.msra.mxu0 0.0
      %2475 = vmatpush.msra.mxu0 0.0
      %2476 = vmatpush.msra.mxu0 0.0
      %2477 = vmatpush.msra.mxu0 0.0
      %2478 = vmatpush.msra.mxu0 0.0
      %2479 = vmatpush.msra.mxu0 %v2393
      %2480 = vmatpush.msra.mxu0 %v2389
      %2481 = vmatmul.f32.gmra.mxu0 %v2396
      %v2482 = vpop.f32.mrf.mxu0
      %v2483 = vadd.f32 0.0, %v2482
      %2484 = vmatmul.f32.gmra.mxu0 %v2399
      %v2485 = vpop.f32.mrf.mxu0
      %v2486 = vadd.f32 0.0, %v2485
      %2487 = vmatmul.f32.gmra.mxu0 %v2402
      %v2488 = vpop.f32.mrf.mxu0
      %v2489 = vadd.f32 0.0, %v2488
      %2490 = vmatmul.f32.gmra.mxu0 %v2405
      %v2491 = vpop.f32.mrf.mxu0
      %v2492 = vadd.f32 0.0, %v2491
      %2493 = vdwg.mxu0
      %2494 = vmatpush.msra.mxu0 0.0
      %2495 = vmatpush.msra.mxu0 0.0
      %2496 = vmatpush.msra.mxu0 0.0
      %2497 = vmatpush.msra.mxu0 0.0
      %2498 = vmatpush.msra.mxu0 0.0
      %2499 = vmatpush.msra.mxu0 0.0
      %2500 = vmatpush.msra.mxu0 0.0
      %2501 = vmatpush.msra.mxu0 0.0
      %2502 = vmatpush.msra.mxu0 0.0
      %2503 = vmatpush.msra.mxu0 0.0
      %2504 = vmatpush.msra.mxu0 0.0
      %2505 = vmatpush.msra.mxu0 0.0
      %2506 = vmatpush.msra.mxu0 0.0
      %2507 = vmatpush.msra.mxu0 0.0
      %2508 = vmatpush.msra.mxu0 %v2394
      %2509 = vmatpush.msra.mxu0 %v2390
      %2510 = vmatmul.f32.gmra.mxu0 %v2396
      %v2511 = vpop.f32.mrf.mxu0
      %v2512 = vadd.f32 0.0, %v2511
      %2513 = vmatmul.f32.gmra.mxu0 %v2399
      %v2514 = vpop.f32.mrf.mxu0
      %v2515 = vadd.f32 0.0, %v2514
      %2516 = vmatmul.f32.gmra.mxu0 %v2402
      %v2517 = vpop.f32.mrf.mxu0
      %v2518 = vadd.f32 0.0, %v2517
      %2519 = vmatmul.f32.gmra.mxu0 %v2405
      %v2520 = vpop.f32.mrf.mxu0
      %v2521 = vadd.f32 0.0, %v2520
      %2522 = vdwg.mxu0
      %v2523 = vadd.f32 %v2324, %v2425
      %v2524 = vadd.f32 %v2325, %v2454
      %v2525 = vadd.f32 %v2326, %v2483
      %v2526 = vadd.f32 %v2327, %v2512
      %v2527 = vadd.f32 %v2328, %v2428
      %v2528 = vadd.f32 %v2329, %v2457
      %v2529 = vadd.f32 %v2330, %v2486
      %v2530 = vadd.f32 %v2331, %v2515
      %v2531 = vadd.f32 %v2332, %v2431
      %v2532 = vadd.f32 %v2333, %v2460
      %v2533 = vadd.f32 %v2334, %v2489
      %v2534 = vadd.f32 %v2335, %v2518
      %v2535 = vadd.f32 %v2336, %v2434
      %v2536 = vadd.f32 %v2337, %v2463
      %v2537 = vadd.f32 %v2338, %v2492
      %v2538 = vadd.f32 %v2339, %v2521
      %v2539 = vld [vmem:[%s4] sm:$0xff]
      %v2540 = vld [vmem:[%s4 + $0x8] sm:$0xff]
      %v2541 = vld [vmem:[%s4 + $0x10] sm:$0xff]
      %v2542 = vld [vmem:[%s4 + $0x18] sm:$0xff]
      %v2543 = vmul.f32 %v2539, %v410
      %v2544 = vmul.f32 %v2540, %v411
      %v2545 = vmul.f32 %v2541, %v412
      %v2546 = vmul.f32 %v2542, %v413
      %v2547 = vadd.f32 %v2523, %v2543
      %v2548 = vadd.f32 %v2527, %v2544
      %v2549 = vadd.f32 %v2531, %v2545
      %v2550 = vadd.f32 %v2535, %v2546
      %v2551 = vxor.u32 %v2547, 2147483648
      %v2552 = vxor.u32 %v2548, 2147483648
      %v2553 = vxor.u32 %v2549, 2147483648
      %v2554 = vxor.u32 %v2550, 2147483648
      %v2555 = vmul.f32 %v2551, 1.442695
      %v2556 = vpow.pop %v2555
      %v2557 = vmul.f32 %v2552, 1.442695
      %v2558 = vpow.pop %v2557
      %v2559 = vmul.f32 %v2553, 1.442695
      %v2560 = vpow.pop %v2559
      %v2561 = vmul.f32 %v2554, 1.442695
      %v2562 = vpow.pop %v2561
      %v2563 = vadd.f32 %v2556, 1.0
      %v2564 = vadd.f32 %v2558, 1.0
      %v2565 = vadd.f32 %v2560, 1.0
      %v2566 = vadd.f32 %v2562, 1.0
      %v2567 = vrcp.pop %v2563
      %v2568 = vmul.f32 %v2563, %v2567
      %v2569 = vsub.f32 1.0, %v2568
      %v2570 = vmul.f32 %v2567, %v2569
      %v2571 = vadd.f32 %v2567, %v2570
      %vm2572 = vweird.f32 %v2563
      %vm2573 = vweird.f32 %v2567
      %vm2574 = vmor %vm2572, %vm2573
      %v2575 = vsel %vm2574, %v2567, %v2571
      %v2576 = vand.u32 2147483647, %v2563
      %vm2577 = vcmp.eq.f32.partialorder %v2576, 8.507059e+37
      %v2578 = vand.u32 %v2563, 2147483648
      %v2579 = vor.u32 1.1754944e-38, %v2578
      %v2580 = vsel %vm2577, %v2579, %v2575
      %v2581 = vmul.f32 1.0, %v2580
      %v2582 = vrcp.pop %v2564
      %v2583 = vmul.f32 %v2564, %v2582
      %v2584 = vsub.f32 1.0, %v2583
      %v2585 = vmul.f32 %v2582, %v2584
      %v2586 = vadd.f32 %v2582, %v2585
      %vm2587 = vweird.f32 %v2564
      %vm2588 = vweird.f32 %v2582
      %vm2589 = vmor %vm2587, %vm2588
      %v2590 = vsel %vm2589, %v2582, %v2586
      %v2591 = vand.u32 2147483647, %v2564
      %vm2592 = vcmp.eq.f32.partialorder %v2591, 8.507059e+37
      %v2593 = vand.u32 %v2564, 2147483648
      %v2594 = vor.u32 1.1754944e-38, %v2593
      %v2595 = vsel %vm2592, %v2594, %v2590
      %v2596 = vmul.f32 1.0, %v2595
      %v2597 = vrcp.pop %v2565
      %v2598 = vmul.f32 %v2565, %v2597
      %v2599 = vsub.f32 1.0, %v2598
      %v2600 = vmul.f32 %v2597, %v2599
      %v2601 = vadd.f32 %v2597, %v2600
      %vm2602 = vweird.f32 %v2565
      %vm2603 = vweird.f32 %v2597
      %vm2604 = vmor %vm2602, %vm2603
      %v2605 = vsel %vm2604, %v2597, %v2601
      %v2606 = vand.u32 2147483647, %v2565
      %vm2607 = vcmp.eq.f32.partialorder %v2606, 8.507059e+37
      %v2608 = vand.u32 %v2565, 2147483648
      %v2609 = vor.u32 1.1754944e-38, %v2608
      %v2610 = vsel %vm2607, %v2609, %v2605
      %v2611 = vmul.f32 1.0, %v2610
      %v2612 = vrcp.pop %v2566
      %v2613 = vmul.f32 %v2566, %v2612
      %v2614 = vsub.f32 1.0, %v2613
      %v2615 = vmul.f32 %v2612, %v2614
      %v2616 = vadd.f32 %v2612, %v2615
      %vm2617 = vweird.f32 %v2566
      %vm2618 = vweird.f32 %v2612
      %vm2619 = vmor %vm2617, %vm2618
      %v2620 = vsel %vm2619, %v2612, %v2616
      %v2621 = vand.u32 2147483647, %v2566
      %vm2622 = vcmp.eq.f32.partialorder %v2621, 8.507059e+37
      %v2623 = vand.u32 %v2566, 2147483648
      %v2624 = vor.u32 1.1754944e-38, %v2623
      %v2625 = vsel %vm2622, %v2624, %v2620
      %v2626 = vmul.f32 1.0, %v2625
      %v2627 = vld [vmem:[%s5] sm:$0xff]
      %v2628 = vld [vmem:[%s5 + $0x8] sm:$0xff]
      %v2629 = vld [vmem:[%s5 + $0x10] sm:$0xff]
      %v2630 = vld [vmem:[%s5 + $0x18] sm:$0xff]
      %v2631 = vmul.f32 %v2627, %v410
      %v2632 = vmul.f32 %v2628, %v411
      %v2633 = vmul.f32 %v2629, %v412
      %v2634 = vmul.f32 %v2630, %v413
      %v2635 = vadd.f32 %v2524, %v2631
      %v2636 = vadd.f32 %v2528, %v2632
      %v2637 = vadd.f32 %v2532, %v2633
      %v2638 = vadd.f32 %v2536, %v2634
      %v2639 = vxor.u32 %v2635, 2147483648
      %v2640 = vxor.u32 %v2636, 2147483648
      %v2641 = vxor.u32 %v2637, 2147483648
      %v2642 = vxor.u32 %v2638, 2147483648
      %v2643 = vmul.f32 %v2639, 1.442695
      %v2644 = vpow.pop %v2643
      %v2645 = vmul.f32 %v2640, 1.442695
      %v2646 = vpow.pop %v2645
      %v2647 = vmul.f32 %v2641, 1.442695
      %v2648 = vpow.pop %v2647
      %v2649 = vmul.f32 %v2642, 1.442695
      %v2650 = vpow.pop %v2649
      %v2651 = vadd.f32 %v2644, 1.0
      %v2652 = vadd.f32 %v2646, 1.0
      %v2653 = vadd.f32 %v2648, 1.0
      %v2654 = vadd.f32 %v2650, 1.0
      %v2655 = vrcp.pop %v2651
      %v2656 = vmul.f32 %v2651, %v2655
      %v2657 = vsub.f32 1.0, %v2656
      %v2658 = vmul.f32 %v2655, %v2657
      %v2659 = vadd.f32 %v2655, %v2658
      %vm2660 = vweird.f32 %v2651
      %vm2661 = vweird.f32 %v2655
      %vm2662 = vmor %vm2660, %vm2661
      %v2663 = vsel %vm2662, %v2655, %v2659
      %v2664 = vand.u32 2147483647, %v2651
      %vm2665 = vcmp.eq.f32.partialorder %v2664, 8.507059e+37
      %v2666 = vand.u32 %v2651, 2147483648
      %v2667 = vor.u32 1.1754944e-38, %v2666
      %v2668 = vsel %vm2665, %v2667, %v2663
      %v2669 = vmul.f32 1.0, %v2668
      %v2670 = vrcp.pop %v2652
      %v2671 = vmul.f32 %v2652, %v2670
      %v2672 = vsub.f32 1.0, %v2671
      %v2673 = vmul.f32 %v2670, %v2672
      %v2674 = vadd.f32 %v2670, %v2673
      %vm2675 = vweird.f32 %v2652
      %vm2676 = vweird.f32 %v2670
      %vm2677 = vmor %vm2675, %vm2676
      %v2678 = vsel %vm2677, %v2670, %v2674
      %v2679 = vand.u32 2147483647, %v2652
      %vm2680 = vcmp.eq.f32.partialorder %v2679, 8.507059e+37
      %v2681 = vand.u32 %v2652, 2147483648
      %v2682 = vor.u32 1.1754944e-38, %v2681
      %v2683 = vsel %vm2680, %v2682, %v2678
      %v2684 = vmul.f32 1.0, %v2683
      %v2685 = vrcp.pop %v2653
      %v2686 = vmul.f32 %v2653, %v2685
      %v2687 = vsub.f32 1.0, %v2686
      %v2688 = vmul.f32 %v2685, %v2687
      %v2689 = vadd.f32 %v2685, %v2688
      %vm2690 = vweird.f32 %v2653
      %vm2691 = vweird.f32 %v2685
      %vm2692 = vmor %vm2690, %vm2691
      %v2693 = vsel %vm2692, %v2685, %v2689
      %v2694 = vand.u32 2147483647, %v2653
      %vm2695 = vcmp.eq.f32.partialorder %v2694, 8.507059e+37
      %v2696 = vand.u32 %v2653, 2147483648
      %v2697 = vor.u32 1.1754944e-38, %v2696
      %v2698 = vsel %vm2695, %v2697, %v2693
      %v2699 = vmul.f32 1.0, %v2698
      %v2700 = vrcp.pop %v2654
      %v2701 = vmul.f32 %v2654, %v2700
      %v2702 = vsub.f32 1.0, %v2701
      %v2703 = vmul.f32 %v2700, %v2702
      %v2704 = vadd.f32 %v2700, %v2703
      %vm2705 = vweird.f32 %v2654
      %vm2706 = vweird.f32 %v2700
      %vm2707 = vmor %vm2705, %vm2706
      %v2708 = vsel %vm2707, %v2700, %v2704
      %v2709 = vand.u32 2147483647, %v2654
      %vm2710 = vcmp.eq.f32.partialorder %v2709, 8.507059e+37
      %v2711 = vand.u32 %v2654, 2147483648
      %v2712 = vor.u32 1.1754944e-38, %v2711
      %v2713 = vsel %vm2710, %v2712, %v2708
      %v2714 = vmul.f32 1.0, %v2713
      %v2715 = vtanh.pop %v2526
      %v2716 = vtanh.pop %v2530
      %v2717 = vtanh.pop %v2534
      %v2718 = vtanh.pop %v2538
      %v2719 = vmul.f32 %v2669, %v410
      %v2720 = vmul.f32 %v2684, %v411
      %v2721 = vmul.f32 %v2699, %v412
      %v2722 = vmul.f32 %v2714, %v413
      %v2723 = vmul.f32 %v2581, %v2715
      %v2724 = vmul.f32 %v2596, %v2716
      %v2725 = vmul.f32 %v2611, %v2717
      %v2726 = vmul.f32 %v2626, %v2718
      %v2727 = vadd.f32 %v2719, %v2723
      %v2728 = vadd.f32 %v2720, %v2724
      %v2729 = vadd.f32 %v2721, %v2725
      %v2730 = vadd.f32 %v2722, %v2726
      %v2731 = vld [vmem:[%s6] sm:$0xff]
      %v2732 = vld [vmem:[%s6 + $0x8] sm:$0xff]
      %v2733 = vld [vmem:[%s6 + $0x10] sm:$0xff]
      %v2734 = vld [vmem:[%s6 + $0x18] sm:$0xff]
      %v2735 = vmul.f32 %v2731, %v2727
      %v2736 = vmul.f32 %v2732, %v2728
      %v2737 = vmul.f32 %v2733, %v2729
      %v2738 = vmul.f32 %v2734, %v2730
      %v2739 = vadd.f32 %v2525, %v2735
      %v2740 = vadd.f32 %v2529, %v2736
      %v2741 = vadd.f32 %v2533, %v2737
      %v2742 = vadd.f32 %v2537, %v2738
      %v2743 = vxor.u32 %v2739, 2147483648
      %v2744 = vxor.u32 %v2740, 2147483648
      %v2745 = vxor.u32 %v2741, 2147483648
      %v2746 = vxor.u32 %v2742, 2147483648
      %v2747 = vmul.f32 %v2743, 1.442695
      %v2748 = vpow.pop %v2747
      %v2749 = vmul.f32 %v2744, 1.442695
      %v2750 = vpow.pop %v2749
      %v2751 = vmul.f32 %v2745, 1.442695
      %v2752 = vpow.pop %v2751
      %v2753 = vmul.f32 %v2746, 1.442695
      %v2754 = vpow.pop %v2753
      %v2755 = vadd.f32 %v2748, 1.0
      %v2756 = vadd.f32 %v2750, 1.0
      %v2757 = vadd.f32 %v2752, 1.0
      %v2758 = vadd.f32 %v2754, 1.0
      %v2759 = vrcp.pop %v2755
      %v2760 = vmul.f32 %v2755, %v2759
      %v2761 = vsub.f32 1.0, %v2760
      %v2762 = vmul.f32 %v2759, %v2761
      %v2763 = vadd.f32 %v2759, %v2762
      %vm2764 = vweird.f32 %v2755
      %vm2765 = vweird.f32 %v2759
      %vm2766 = vmor %vm2764, %vm2765
      %v2767 = vsel %vm2766, %v2759, %v2763
      %v2768 = vand.u32 2147483647, %v2755
      %vm2769 = vcmp.eq.f32.partialorder %v2768, 8.507059e+37
      %v2770 = vand.u32 %v2755, 2147483648
      %v2771 = vor.u32 1.1754944e-38, %v2770
      %v2772 = vsel %vm2769, %v2771, %v2767
      %v2773 = vmul.f32 1.0, %v2772
      %v2774 = vrcp.pop %v2756
      %v2775 = vmul.f32 %v2756, %v2774
      %v2776 = vsub.f32 1.0, %v2775
      %v2777 = vmul.f32 %v2774, %v2776
      %v2778 = vadd.f32 %v2774, %v2777
      %vm2779 = vweird.f32 %v2756
      %vm2780 = vweird.f32 %v2774
      %vm2781 = vmor %vm2779, %vm2780
      %v2782 = vsel %vm2781, %v2774, %v2778
      %v2783 = vand.u32 2147483647, %v2756
      %vm2784 = vcmp.eq.f32.partialorder %v2783, 8.507059e+37
      %v2785 = vand.u32 %v2756, 2147483648
      %v2786 = vor.u32 1.1754944e-38, %v2785
      %v2787 = vsel %vm2784, %v2786, %v2782
      %v2788 = vmul.f32 1.0, %v2787
      %v2789 = vrcp.pop %v2757
      %v2790 = vmul.f32 %v2757, %v2789
      %v2791 = vsub.f32 1.0, %v2790
      %v2792 = vmul.f32 %v2789, %v2791
      %v2793 = vadd.f32 %v2789, %v2792
      %vm2794 = vweird.f32 %v2757
      %vm2795 = vweird.f32 %v2789
      %vm2796 = vmor %vm2794, %vm2795
      %v2797 = vsel %vm2796, %v2789, %v2793
      %v2798 = vand.u32 2147483647, %v2757
      %vm2799 = vcmp.eq.f32.partialorder %v2798, 8.507059e+37
      %v2800 = vand.u32 %v2757, 2147483648
      %v2801 = vor.u32 1.1754944e-38, %v2800
      %v2802 = vsel %vm2799, %v2801, %v2797
      %v2803 = vmul.f32 1.0, %v2802
      %v2804 = vrcp.pop %v2758
      %v2805 = vmul.f32 %v2758, %v2804
      %v2806 = vsub.f32 1.0, %v2805
      %v2807 = vmul.f32 %v2804, %v2806
      %v2808 = vadd.f32 %v2804, %v2807
      %vm2809 = vweird.f32 %v2758
      %vm2810 = vweird.f32 %v2804
      %vm2811 = vmor %vm2809, %vm2810
      %v2812 = vsel %vm2811, %v2804, %v2808
      %v2813 = vand.u32 2147483647, %v2758
      %vm2814 = vcmp.eq.f32.partialorder %v2813, 8.507059e+37
      %v2815 = vand.u32 %v2758, 2147483648
      %v2816 = vor.u32 1.1754944e-38, %v2815
      %v2817 = vsel %vm2814, %v2816, %v2812
      %v2818 = vmul.f32 1.0, %v2817
      %v2819 = vtanh.pop %v2727
      %v2820 = vtanh.pop %v2728
      %v2821 = vtanh.pop %v2729
      %v2822 = vtanh.pop %v2730
      %v2823 = vmul.f32 %v2773, %v2819
      %v2824 = vmul.f32 %v2788, %v2820
      %v2825 = vmul.f32 %v2803, %v2821
      %v2826 = vmul.f32 %v2818, %v2822
      %2827 = vst.msk [vmem:[#allocation2] sm:$0xff] %vm504, %v2823
      %2828 = vst.msk [vmem:[#allocation2 + $0x8] sm:$0xff] %vm504, %v2824
      %2829 = vst.msk [vmem:[#allocation2 + $0x10] sm:$0xff] %vm504, %v2825
      %2830 = vst.msk [vmem:[#allocation2 + $0x18] sm:$0xff] %vm504, %v2826
      %2831 = vst.msk [vmem:[#allocation3] sm:$0xff] %vm504, %v2727
      %2832 = vst.msk [vmem:[#allocation3 + $0x8] sm:$0xff] %vm504, %v2728
      %2833 = vst.msk [vmem:[#allocation3 + $0x10] sm:$0xff] %vm504, %v2729
      %2834 = vst.msk [vmem:[#allocation3 + $0x18] sm:$0xff] %vm504, %v2730
      %2835 = vst.msk [vmem:[%s384] sm:$0xff] %vm504, %v2823
      %2836 = vst.msk [vmem:[%s384 + $0x8] sm:$0xff] %vm504, %v2824
      %2837 = vst.msk [vmem:[%s384 + $0x10] sm:$0xff] %vm504, %v2825
      %2838 = vst.msk [vmem:[%s384 + $0x18] sm:$0xff] %vm504, %v2826
      %2839 = vst.msk [vmem:[%s11] sm:$0xff] %vm504, %v2727
      %2840 = vst.msk [vmem:[%s11 + $0x8] sm:$0xff] %vm504, %v2728
      %2841 = vst.msk [vmem:[%s11 + $0x10] sm:$0xff] %vm504, %v2729
      %2842 = vst.msk [vmem:[%s11 + $0x18] sm:$0xff] %vm504, %v2730
      %p2843 = scmp.lt.s32.totalorder %s23, 2
      %s2844 = scalar_select %p2843, %s23, 2
      %s2845 = smul.addr %s2844, 4
      %s2846 = smul.addr %s2845, 8
      %s2847 = scalar_lea.vmem %s10, %s2846
      // Predicated region
      $region65: #{_compute.18} parent=59 // pred_check
        %p2848 = pneg %p256
      $region66: #{_compute.18} parent=59 // pred_check_branch
        %2850 = sbr.rel (%p2848) target = $region68
      $region67: #{_compute.18} parent=59 // pred_region
        _
      $region68: #{_compute.18} parent=59 // pred_fallthru
        _
      // Predicated region
      $region69: #{_compute.18} parent=59 // pred_check
        %p2851 = pneg %p277
      $region70: #{_compute.18} parent=59 // pred_check_branch
        %2853 = sbr.rel (%p2851) target = $region72
      $region71: #{_compute.18} parent=59 // pred_region
        _
      $region72: #{_compute.18} parent=59 // pred_fallthru
        _
      // Predicated region
      $region73: #{_compute.18} parent=59 // pred_check
        %p2854 = pneg %p277
      $region74: #{_compute.18} parent=59 // pred_check_branch
        %2856 = sbr.rel (%p2854) target = $region76
      $region75: #{_compute.18} parent=59 // pred_region
        _
      $region76: #{_compute.18} parent=59 // pred_fallthru
        _
    $region60: #{_compute.18} parent=5 // pred_fallthru
      _
    %p2857 = scmp.le.s32.totalorder 2, %s18
    // Predicated region
    $region77: #{_compute.18} parent=5 // pred_check
      %p2858 = pneg %p2857
    $region78: #{_compute.18} parent=5 // pred_check_branch
      %2860 = sbr.rel (%p2858) target = $region80
    $region79: #{_compute.18} parent=5 // pred_region
      %s2861 = ssub.s32 %s18, 2
      // Predicated region
      $region81: #{_compute.18} parent=79 // pred_check
        %p2862 = pneg %p262
      $region82: #{_compute.18} parent=79 // pred_check_branch
        %2864 = sbr.rel (%p2862) target = $region84
      $region83: #{_compute.18} parent=79 // pred_region
        %p2865 = scmp.lt.s32.totalorder %s24, 2
        %s2866 = scalar_select %p2865, %s24, 2
        %s2867 = smul.addr %s2866, 4
        %s2868 = smul.addr %s2867, 8
        %s2869 = scalar_lea.vmem %s10, %s2868
      $region84: #{_compute.18} parent=79 // pred_fallthru
        _
    $region80: #{_compute.18} parent=5 // pred_fallthru
      _
  $region6: #{_compute.18} parent=0 // loop_footer
    %s22 = sadd.s32 1, %s18
  $region7: #{_compute.18} parent=0 // loop_footer_branch
    %17 = sbr.rel target = $region3
  $region8: #{_compute.18} parent=0 // loop_exit
    _

// kernel: _compute.20
$region0: #{_compute.20}
  #allocation0 [shape = 'u32[]', space=smem, size = 0x4, offset = 0x4, fixed_abs, tag = 'smem constant byte address 0x4 - core index']
  #allocation1 [shape = 'u32[72,128]{1,0:T(1,128)}', space=vmem, size = 0x9000, scoped, tag = 'internal scratch']
  #allocation2 [shape = 'f32[32,16]{1,0:T(8,128)}', space=vmem, size = 0x4000, scoped, tag = 'scratch operand']
  #allocation3 [shape = 'f32[32,16]{1,0:T(8,128)}', space=vmem, size = 0x4000, scoped, tag = 'scratch operand']
  %s0 = inlined_call_operand.vmem [shape: f32[1,32,144], index: 0, kind: input, shape index: {}]
  %s1 = inlined_call_operand.vmem [shape: f32[144,512], index: 1, kind: input, shape index: {}]
  %s2 = inlined_call_operand.vmem [shape: f32[9,16,512], index: 2, kind: input, shape index: {}]
  %s3 = inlined_call_operand.vmem [shape: f32[1,512], index: 3, kind: input, shape index: {}]
  %s4 = inlined_call_operand.vmem [shape: f32[32,16], index: 4, kind: input, shape index: {}]
  %s5 = inlined_call_operand.vmem [shape: f32[32,16], index: 5, kind: input, shape index: {}]
  %s6 = inlined_call_operand.vmem [shape: f32[32,16], index: 6, kind: input, shape index: {}]
  %s7 = inlined_call_operand.vmem [shape: f32[9,32,32], index: 7, kind: input, shape index: {}]
  %s8 = inlined_call_operand.vmem [shape: f32[32,16], index: 8, kind: input, shape index: {}]
  %s9 = inlined_call_operand.vmem [shape: f32[32,16], index: 9, kind: input, shape index: {}]
  %s10 = inlined_call_operand.vmem [shape: f32[1,32,16], index: 10, kind: output, shape index: {0}]
  %s11 = inlined_call_operand.vmem [shape: f32[32,16], index: 11, kind: output, shape index: {1}]
  %12 = xla_tuple %s10, %s11
  %s13 = sld [smem:[#allocation0]]
  $region62: #{_compute.20} parent=0
    _
  %s15 = ssub.s32 1, %s13
  %s16 = scalar_select 0, %s15, %s13
  // Predicated region
  $region2: #{_compute.20} parent=0 // pred_check
    _
  $region3: #{_compute.20} parent=0 // pred_check_branch
    %18 = sbr.rel (0) target = $region5
  $region4: #{_compute.20} parent=0 // pred_region
    _
  $region5: #{_compute.20} parent=0 // pred_fallthru
    _
  // Predicated region
  $region6: #{_compute.20} parent=0 // pred_check
    _
  $region7: #{_compute.20} parent=0 // pred_check_branch
    %20 = sbr.rel (0) target = $region9
  $region8: #{_compute.20} parent=0 // pred_region
    _
  $region9: #{_compute.20} parent=0 // pred_fallthru
    _
  // Predicated region
  $region10: #{_compute.20} parent=0 // pred_check
    _
  $region11: #{_compute.20} parent=0 // pred_check_branch
    %22 = sbr.rel (0) target = $region13
  $region12: #{_compute.20} parent=0 // pred_region
    _
  $region13: #{_compute.20} parent=0 // pred_fallthru
    _
  // Predicated region
  $region14: #{_compute.20} parent=0 // pred_check
    _
  $region15: #{_compute.20} parent=0 // pred_check_branch
    %24 = sbr.rel (0) target = $region17
  $region16: #{_compute.20} parent=0 // pred_region
    _
  $region17: #{_compute.20} parent=0 // pred_fallthru
    _
  // Predicated region
  $region18: #{_compute.20} parent=0 // pred_check
    _
  $region19: #{_compute.20} parent=0 // pred_check_branch
    %26 = sbr.rel (0) target = $region21
  $region20: #{_compute.20} parent=0 // pred_region
    _
  $region21: #{_compute.20} parent=0 // pred_fallthru
    _
  // Predicated region
  $region22: #{_compute.20} parent=0 // pred_check
    _
  $region23: #{_compute.20} parent=0 // pred_check_branch
    %28 = sbr.rel (0) target = $region25
  $region24: #{_compute.20} parent=0 // pred_region
    _
  $region25: #{_compute.20} parent=0 // pred_fallthru
    _
  // Predicated region
  $region26: #{_compute.20} parent=0 // pred_check
    _
  $region27: #{_compute.20} parent=0 // pred_check_branch
    %30 = sbr.rel (0) target = $region29
  $region28: #{_compute.20} parent=0 // pred_region
    _
  $region29: #{_compute.20} parent=0 // pred_fallthru
    _
  // Predicated region
  $region30: #{_compute.20} parent=0 // pred_check
    _
  $region31: #{_compute.20} parent=0 // pred_check_branch
    %32 = sbr.rel (0) target = $region33
  $region32: #{_compute.20} parent=0 // pred_region
    _
  $region33: #{_compute.20} parent=0 // pred_fallthru
    _
  // Predicated region
  $region34: #{_compute.20} parent=0 // pred_check
    _
  $region35: #{_compute.20} parent=0 // pred_check_branch
    %34 = sbr.rel (0) target = $region37
  $region36: #{_compute.20} parent=0 // pred_region
    _
  $region37: #{_compute.20} parent=0 // pred_fallthru
    _
  // Predicated region
  $region38: #{_compute.20} parent=0 // pred_check
    _
  $region39: #{_compute.20} parent=0 // pred_check_branch
    %36 = sbr.rel (0) target = $region41
  $region40: #{_compute.20} parent=0 // pred_region
    _
  $region41: #{_compute.20} parent=0 // pred_fallthru
    _
  %p37 = scmp.eq.s32.totalorder 0, 0
  // Predicated region
  $region42: #{_compute.20} parent=0 // pred_check
    %p38 = pneg %p37
  $region43: #{_compute.20} parent=0 // pred_check_branch
    %40 = sbr.rel (%p38) target = $region45
  $region44: #{_compute.20} parent=0 // pred_region
    %v41 = vld [vmem:[%s8] sm:$0xff]
    %v42 = vld [vmem:[%s8 + $0x8] sm:$0xff]
    %v43 = vld [vmem:[%s8 + $0x10] sm:$0xff]
    %v44 = vld [vmem:[%s8 + $0x18] sm:$0xff]
    %vm45 = vcmask 130048
    %46 = vst.msk [vmem:[#allocation2] sm:$0xff] %vm45, %v41
    %47 = vst.msk [vmem:[#allocation2 + $0x8] sm:$0xff] %vm45, %v42
    %48 = vst.msk [vmem:[#allocation2 + $0x10] sm:$0xff] %vm45, %v43
    %49 = vst.msk [vmem:[#allocation2 + $0x18] sm:$0xff] %vm45, %v44
    %v50 = vld [vmem:[%s9] sm:$0xff]
    %v51 = vld [vmem:[%s9 + $0x8] sm:$0xff]
    %v52 = vld [vmem:[%s9 + $0x10] sm:$0xff]
    %v53 = vld [vmem:[%s9 + $0x18] sm:$0xff]
    %54 = vst.msk [vmem:[#allocation3] sm:$0xff] %vm45, %v50
    %55 = vst.msk [vmem:[#allocation3 + $0x8] sm:$0xff] %vm45, %v51
    %56 = vst.msk [vmem:[#allocation3 + $0x10] sm:$0xff] %vm45, %v52
    %57 = vst.msk [vmem:[#allocation3 + $0x18] sm:$0xff] %vm45, %v53
  $region45: #{_compute.20} parent=0 // pred_fallthru
    _
  %v58 = vld [vmem:[#allocation2] sm:$0xff]
  %v59 = vld [vmem:[#allocation2 + $0x8] sm:$0xff]
  %v60 = vld [vmem:[#allocation2 + $0x10] sm:$0xff]
  %v61 = vld [vmem:[#allocation2 + $0x18] sm:$0xff]
  %v62 = vld [vmem:[#allocation3] sm:$0xff]
  %v63 = vld [vmem:[#allocation3 + $0x8] sm:$0xff]
  %v64 = vld [vmem:[#allocation3 + $0x10] sm:$0xff]
  %v65 = vld [vmem:[#allocation3 + $0x18] sm:$0xff]
  %v66 = vld [vmem:[%s0] sm:$0xff]
  %v67 = vld [vmem:[%s0 + $0x8] sm:$0xff]
  %v68 = vld [vmem:[%s0 + $0x10] sm:$0xff]
  %v69 = vld [vmem:[%s0 + $0x18] sm:$0xff]
  %v70 = vld [vmem:[%s0 + $0x20] sm:$0xff]
  %v71 = vld [vmem:[%s0 + $0x28] sm:$0xff]
  %v72 = vld [vmem:[%s0 + $0x30] sm:$0xff]
  %v73 = vld [vmem:[%s0 + $0x38] sm:$0xff]
  %v74 = vld [vmem:[%s1] sm:$0xff]
  %v75 = vld [vmem:[%s1 + $0x8] sm:$0xff]
  %v76 = vld [vmem:[%s1 + $0x10] sm:$0xff]
  %v77 = vld [vmem:[%s1 + $0x18] sm:$0xff]
  %v78 = vld [vmem:[%s1 + $0x20] sm:$0xff]
  %v79 = vld [vmem:[%s1 + $0x28] sm:$0xff]
  %v80 = vld [vmem:[%s1 + $0x30] sm:$0xff]
  %v81 = vld [vmem:[%s1 + $0x38] sm:$0xff]
  %v82 = vld [vmem:[%s1 + $0x40] sm:$0xff]
  %v83 = vld [vmem:[%s1 + $0x48] sm:$0xff]
  %v84 = vld [vmem:[%s1 + $0x50] sm:$0xff]
  %v85 = vld [vmem:[%s1 + $0x58] sm:$0xff]
  %v86 = vld [vmem:[%s1 + $0x60] sm:$0xff]
  %v87 = vld [vmem:[%s1 + $0x68] sm:$0xff]
  %v88 = vld [vmem:[%s1 + $0x70] sm:$0xff]
  %v89 = vld [vmem:[%s1 + $0x78] sm:$0xff]
  %v90 = vld [vmem:[%s1 + $0x80] sm:$0xff]
  %v91 = vld [vmem:[%s1 + $0x88] sm:$0xff]
  %v92 = vld [vmem:[%s1 + $0x90] sm:$0xff]
  %v93 = vld [vmem:[%s1 + $0x98] sm:$0xff]
  %v94 = vld [vmem:[%s1 + $0xa0] sm:$0xff]
  %v95 = vld [vmem:[%s1 + $0xa8] sm:$0xff]
  %v96 = vld [vmem:[%s1 + $0xb0] sm:$0xff]
  %v97 = vld [vmem:[%s1 + $0xb8] sm:$0xff]
  %v98 = vld [vmem:[%s1 + $0xc0] sm:$0xff]
  %v99 = vld [vmem:[%s1 + $0xc8] sm:$0xff]
  %v100 = vld [vmem:[%s1 + $0xd0] sm:$0xff]
  %v101 = vld [vmem:[%s1 + $0xd8] sm:$0xff]
  %v102 = vld [vmem:[%s1 + $0xe0] sm:$0xff]
  %v103 = vld [vmem:[%s1 + $0xe8] sm:$0xff]
  %v104 = vld [vmem:[%s1 + $0xf0] sm:$0xff]
  %v105 = vld [vmem:[%s1 + $0xf8] sm:$0xff]
  %v106 = vld [vmem:[%s1 + $0x100] sm:$0xff]
  %v107 = vld [vmem:[%s1 + $0x108] sm:$0xff]
  %v108 = vld [vmem:[%s1 + $0x110] sm:$0xff]
  %v109 = vld [vmem:[%s1 + $0x118] sm:$0xff]
  %v110 = vld [vmem:[%s1 + $0x120] sm:$0xff]
  %v111 = vld [vmem:[%s1 + $0x128] sm:$0xff]
  %v112 = vld [vmem:[%s1 + $0x130] sm:$0xff]
  %v113 = vld [vmem:[%s1 + $0x138] sm:$0xff]
  %v114 = vld [vmem:[%s1 + $0x140] sm:$0xff]
  %v115 = vld [vmem:[%s1 + $0x148] sm:$0xff]
  %v116 = vld [vmem:[%s1 + $0x150] sm:$0xff]
  %v117 = vld [vmem:[%s1 + $0x158] sm:$0xff]
  %v118 = vld [vmem:[%s1 + $0x160] sm:$0xff]
  %v119 = vld [vmem:[%s1 + $0x168] sm:$0xff]
  %v120 = vld [vmem:[%s1 + $0x170] sm:$0xff]
  %v121 = vld [vmem:[%s1 + $0x178] sm:$0xff]
  %v122 = vld [vmem:[%s1 + $0x180] sm:$0xff]
  %v123 = vld [vmem:[%s1 + $0x188] sm:$0xff]
  %v124 = vld [vmem:[%s1 + $0x190] sm:$0xff]
  %v125 = vld [vmem:[%s1 + $0x198] sm:$0xff]
  %v126 = vld [vmem:[%s1 + $0x1a0] sm:$0xff]
  %v127 = vld [vmem:[%s1 + $0x1a8] sm:$0xff]
  %v128 = vld [vmem:[%s1 + $0x1b0] sm:$0xff]
  %v129 = vld [vmem:[%s1 + $0x1b8] sm:$0xff]
  %v130 = vld [vmem:[%s1 + $0x1c0] sm:$0xff]
  %v131 = vld [vmem:[%s1 + $0x1c8] sm:$0xff]
  %v132 = vld [vmem:[%s1 + $0x1d0] sm:$0xff]
  %v133 = vld [vmem:[%s1 + $0x1d8] sm:$0xff]
  %v134 = vld [vmem:[%s1 + $0x1e0] sm:$0xff]
  %v135 = vld [vmem:[%s1 + $0x1e8] sm:$0xff]
  %v136 = vld [vmem:[%s1 + $0x1f0] sm:$0xff]
  %v137 = vld [vmem:[%s1 + $0x1f8] sm:$0xff]
  %v138 = vld [vmem:[%s1 + $0x200] sm:$0xff]
  %v139 = vld [vmem:[%s1 + $0x208] sm:$0xff]
  %v140 = vld [vmem:[%s1 + $0x210] sm:$0xff]
  %v141 = vld [vmem:[%s1 + $0x218] sm:$0xff]
  %v142 = vld [vmem:[%s1 + $0x220] sm:$0xff]
  %v143 = vld [vmem:[%s1 + $0x228] sm:$0xff]
  %v144 = vld [vmem:[%s1 + $0x230] sm:$0xff]
  %v145 = vld [vmem:[%s1 + $0x238] sm:$0xff]
  %v146 = vld [vmem:[%s3] sm:$0xf]
  %v148 = vperm.slane %v146, 0
  %v149 = vperm.slane %v146, 1
  %v150 = vperm.slane %v146, 2
  %v151 = vperm.slane %v146, 3
  %vm156 = vcmask 130048
  %v158 = vsel %vm156, %v67, 0
  %v161 = vsel %vm156, %v69, 0
  %v164 = vsel %vm156, %v71, 0
  %v167 = vsel %vm156, %v73, 0
  %169 = vmatpush.msra.mxu0 %v134
  %170 = vmatpush.msra.mxu0 %v130
  %171 = vmatpush.msra.mxu0 %v126
  %172 = vmatpush.msra.mxu0 %v122
  %173 = vmatpush.msra.mxu0 %v118
  %174 = vmatpush.msra.mxu0 %v114
  %175 = vmatpush.msra.mxu0 %v110
  %176 = vmatpush.msra.mxu0 %v106
  %177 = vmatpush.msra.mxu0 %v102
  %178 = vmatpush.msra.mxu0 %v98
  %179 = vmatpush.msra.mxu0 %v94
  %180 = vmatpush.msra.mxu0 %v90
  %181 = vmatpush.msra.mxu0 %v86
  %182 = vmatpush.msra.mxu0 %v82
  %183 = vmatpush.msra.mxu0 %v78
  %184 = vmatpush.msra.mxu0 %v74
  %185 = vmatmul.f32.gmra.mxu0 %v66
  %v186 = vpop.f32.mrf.mxu0
  %v187 = vadd.f32 %v148, %v186
  %188 = vmatmul.f32.gmra.mxu0 %v68
  %v189 = vpop.f32.mrf.mxu0
  %v190 = vadd.f32 %v148, %v189
  %191 = vmatmul.f32.gmra.mxu0 %v70
  %v192 = vpop.f32.mrf.mxu0
  %v193 = vadd.f32 %v148, %v192
  %194 = vmatmul.f32.gmra.mxu0 %v72
  %v195 = vpop.f32.mrf.mxu0
  %v196 = vadd.f32 %v148, %v195
  %197 = vdwg.mxu0
  %198 = vmatpush.msra.mxu0 0.0
  %199 = vmatpush.msra.mxu0 0.0
  %200 = vmatpush.msra.mxu0 0.0
  %201 = vmatpush.msra.mxu0 0.0
  %202 = vmatpush.msra.mxu0 0.0
  %203 = vmatpush.msra.mxu0 0.0
  %204 = vmatpush.msra.mxu0 0.0
  %205 = vmatpush.msra.mxu0 0.0
  %206 = vmatpush.msra.mxu0 0.0
  %207 = vmatpush.msra.mxu0 0.0
  %208 = vmatpush.msra.mxu0 0.0
  %209 = vmatpush.msra.mxu0 0.0
  %210 = vmatpush.msra.mxu0 0.0
  %211 = vmatpush.msra.mxu0 0.0
  %212 = vmatpush.msra.mxu0 %v142
  %213 = vmatpush.msra.mxu0 %v138
  %214 = vmatmul.f32.gmra.mxu0 %v158
  %v215 = vpop.f32.mrf.mxu0
  %v216 = vadd.f32 %v187, %v215
  %217 = vmatmul.f32.gmra.mxu0 %v161
  %v218 = vpop.f32.mrf.mxu0
  %v219 = vadd.f32 %v190, %v218
  %220 = vmatmul.f32.gmra.mxu0 %v164
  %v221 = vpop.f32.mrf.mxu0
  %v222 = vadd.f32 %v193, %v221
  %223 = vmatmul.f32.gmra.mxu0 %v167
  %v224 = vpop.f32.mrf.mxu0
  %v225 = vadd.f32 %v196, %v224
  %226 = vdwg.mxu0
  %227 = vmatpush.msra.mxu0 %v135
  %228 = vmatpush.msra.mxu0 %v131
  %229 = vmatpush.msra.mxu0 %v127
  %230 = vmatpush.msra.mxu0 %v123
  %231 = vmatpush.msra.mxu0 %v119
  %232 = vmatpush.msra.mxu0 %v115
  %233 = vmatpush.msra.mxu0 %v111
  %234 = vmatpush.msra.mxu0 %v107
  %235 = vmatpush.msra.mxu0 %v103
  %236 = vmatpush.msra.mxu0 %v99
  %237 = vmatpush.msra.mxu0 %v95
  %238 = vmatpush.msra.mxu0 %v91
  %239 = vmatpush.msra.mxu0 %v87
  %240 = vmatpush.msra.mxu0 %v83
  %241 = vmatpush.msra.mxu0 %v79
  %242 = vmatpush.msra.mxu0 %v75
  %243 = vmatmul.f32.gmra.mxu0 %v66
  %v244 = vpop.f32.mrf.mxu0
  %v245 = vadd.f32 %v149, %v244
  %246 = vmatmul.f32.gmra.mxu0 %v68
  %v247 = vpop.f32.mrf.mxu0
  %v248 = vadd.f32 %v149, %v247
  %249 = vmatmul.f32.gmra.mxu0 %v70
  %v250 = vpop.f32.mrf.mxu0
  %v251 = vadd.f32 %v149, %v250
  %252 = vmatmul.f32.gmra.mxu0 %v72
  %v253 = vpop.f32.mrf.mxu0
  %v254 = vadd.f32 %v149, %v253
  %255 = vdwg.mxu0
  %256 = vmatpush.msra.mxu0 0.0
  %257 = vmatpush.msra.mxu0 0.0
  %258 = vmatpush.msra.mxu0 0.0
  %259 = vmatpush.msra.mxu0 0.0
  %260 = vmatpush.msra.mxu0 0.0
  %261 = vmatpush.msra.mxu0 0.0
  %262 = vmatpush.msra.mxu0 0.0
  %263 = vmatpush.msra.mxu0 0.0
  %264 = vmatpush.msra.mxu0 0.0
  %265 = vmatpush.msra.mxu0 0.0
  %266 = vmatpush.msra.mxu0 0.0
  %267 = vmatpush.msra.mxu0 0.0
  %268 = vmatpush.msra.mxu0 0.0
  %269 = vmatpush.msra.mxu0 0.0
  %270 = vmatpush.msra.mxu0 %v143
  %271 = vmatpush.msra.mxu0 %v139
  %272 = vmatmul.f32.gmra.mxu0 %v158
  %v273 = vpop.f32.mrf.mxu0
  %v274 = vadd.f32 %v245, %v273
  %275 = vmatmul.f32.gmra.mxu0 %v161
  %v276 = vpop.f32.mrf.mxu0
  %v277 = vadd.f32 %v248, %v276
  %278 = vmatmul.f32.gmra.mxu0 %v164
  %v279 = vpop.f32.mrf.mxu0
  %v280 = vadd.f32 %v251, %v279
  %281 = vmatmul.f32.gmra.mxu0 %v167
  %v282 = vpop.f32.mrf.mxu0
  %v283 = vadd.f32 %v254, %v282
  %284 = vdwg.mxu0
  %285 = vmatpush.msra.mxu0 %v136
  %286 = vmatpush.msra.mxu0 %v132
  %287 = vmatpush.msra.mxu0 %v128
  %288 = vmatpush.msra.mxu0 %v124
  %289 = vmatpush.msra.mxu0 %v120
  %290 = vmatpush.msra.mxu0 %v116
  %291 = vmatpush.msra.mxu0 %v112
  %292 = vmatpush.msra.mxu0 %v108
  %293 = vmatpush.msra.mxu0 %v104
  %294 = vmatpush.msra.mxu0 %v100
  %295 = vmatpush.msra.mxu0 %v96
  %296 = vmatpush.msra.mxu0 %v92
  %297 = vmatpush.msra.mxu0 %v88
  %298 = vmatpush.msra.mxu0 %v84
  %299 = vmatpush.msra.mxu0 %v80
  %300 = vmatpush.msra.mxu0 %v76
  %301 = vmatmul.f32.gmra.mxu0 %v66
  %v302 = vpop.f32.mrf.mxu0
  %v303 = vadd.f32 %v150, %v302
  %304 = vmatmul.f32.gmra.mxu0 %v68
  %v305 = vpop.f32.mrf.mxu0
  %v306 = vadd.f32 %v150, %v305
  %307 = vmatmul.f32.gmra.mxu0 %v70
  %v308 = vpop.f32.mrf.mxu0
  %v309 = vadd.f32 %v150, %v308
  %310 = vmatmul.f32.gmra.mxu0 %v72
  %v311 = vpop.f32.mrf.mxu0
  %v312 = vadd.f32 %v150, %v311
  %313 = vdwg.mxu0
  %314 = vmatpush.msra.mxu0 0.0
  %315 = vmatpush.msra.mxu0 0.0
  %316 = vmatpush.msra.mxu0 0.0
  %317 = vmatpush.msra.mxu0 0.0
  %318 = vmatpush.msra.mxu0 0.0
  %319 = vmatpush.msra.mxu0 0.0
  %320 = vmatpush.msra.mxu0 0.0
  %321 = vmatpush.msra.mxu0 0.0
  %322 = vmatpush.msra.mxu0 0.0
  %323 = vmatpush.msra.mxu0 0.0
  %324 = vmatpush.msra.mxu0 0.0
  %325 = vmatpush.msra.mxu0 0.0
  %326 = vmatpush.msra.mxu0 0.0
  %327 = vmatpush.msra.mxu0 0.0
  %328 = vmatpush.msra.mxu0 %v144
  %329 = vmatpush.msra.mxu0 %v140
  %330 = vmatmul.f32.gmra.mxu0 %v158
  %v331 = vpop.f32.mrf.mxu0
  %v332 = vadd.f32 %v303, %v331
  %333 = vmatmul.f32.gmra.mxu0 %v161
  %v334 = vpop.f32.mrf.mxu0
  %v335 = vadd.f32 %v306, %v334
  %336 = vmatmul.f32.gmra.mxu0 %v164
  %v337 = vpop.f32.mrf.mxu0
  %v338 = vadd.f32 %v309, %v337
  %339 = vmatmul.f32.gmra.mxu0 %v167
  %v340 = vpop.f32.mrf.mxu0
  %v341 = vadd.f32 %v312, %v340
  %342 = vdwg.mxu0
  %343 = vmatpush.msra.mxu0 %v137
  %344 = vmatpush.msra.mxu0 %v133
  %345 = vmatpush.msra.mxu0 %v129
  %346 = vmatpush.msra.mxu0 %v125
  %347 = vmatpush.msra.mxu0 %v121
  %348 = vmatpush.msra.mxu0 %v117
  %349 = vmatpush.msra.mxu0 %v113
  %350 = vmatpush.msra.mxu0 %v109
  %351 = vmatpush.msra.mxu0 %v105
  %352 = vmatpush.msra.mxu0 %v101
  %353 = vmatpush.msra.mxu0 %v97
  %354 = vmatpush.msra.mxu0 %v93
  %355 = vmatpush.msra.mxu0 %v89
  %356 = vmatpush.msra.mxu0 %v85
  %357 = vmatpush.msra.mxu0 %v81
  %358 = vmatpush.msra.mxu0 %v77
  %359 = vmatmul.f32.gmra.mxu0 %v66
  %v360 = vpop.f32.mrf.mxu0
  %v361 = vadd.f32 %v151, %v360
  %362 = vmatmul.f32.gmra.mxu0 %v68
  %v363 = vpop.f32.mrf.mxu0
  %v364 = vadd.f32 %v151, %v363
  %365 = vmatmul.f32.gmra.mxu0 %v70
  %v366 = vpop.f32.mrf.mxu0
  %v367 = vadd.f32 %v151, %v366
  %368 = vmatmul.f32.gmra.mxu0 %v72
  %v369 = vpop.f32.mrf.mxu0
  %v370 = vadd.f32 %v151, %v369
  %371 = vdwg.mxu0
  %372 = vmatpush.msra.mxu0 0.0
  %373 = vmatpush.msra.mxu0 0.0
  %374 = vmatpush.msra.mxu0 0.0
  %375 = vmatpush.msra.mxu0 0.0
  %376 = vmatpush.msra.mxu0 0.0
  %377 = vmatpush.msra.mxu0 0.0
  %378 = vmatpush.msra.mxu0 0.0
  %379 = vmatpush.msra.mxu0 0.0
  %380 = vmatpush.msra.mxu0 0.0
  %381 = vmatpush.msra.mxu0 0.0
  %382 = vmatpush.msra.mxu0 0.0
  %383 = vmatpush.msra.mxu0 0.0
  %384 = vmatpush.msra.mxu0 0.0
  %385 = vmatpush.msra.mxu0 0.0
  %386 = vmatpush.msra.mxu0 %v145
  %387 = vmatpush.msra.mxu0 %v141
  %388 = vmatmul.f32.gmra.mxu0 %v158
  %v389 = vpop.f32.mrf.mxu0
  %v390 = vadd.f32 %v361, %v389
  %391 = vmatmul.f32.gmra.mxu0 %v161
  %v392 = vpop.f32.mrf.mxu0
  %v393 = vadd.f32 %v364, %v392
  %394 = vmatmul.f32.gmra.mxu0 %v164
  %v395 = vpop.f32.mrf.mxu0
  %v396 = vadd.f32 %v367, %v395
  %397 = vmatmul.f32.gmra.mxu0 %v167
  %v398 = vpop.f32.mrf.mxu0
  %v399 = vadd.f32 %v370, %v398
  %400 = vdwg.mxu0
  %v401 = vld [vmem:[%s7] sm:$0xff]
  %v402 = vld [vmem:[%s7 + $0x8] sm:$0xff]
  %v403 = vld [vmem:[%s7 + $0x10] sm:$0xff]
  %v404 = vld [vmem:[%s7 + $0x18] sm:$0xff]
  %vm405 = vcmask 261120
  %v407 = vsel %vm405, %v401, 0
  %v410 = vsel %vm405, %v402, 0
  %v413 = vsel %vm405, %v403, 0
  %v416 = vsel %vm405, %v404, 0
  %418 = vmatpush.msra.mxu0 0.0
  %419 = vmatpush.msra.mxu0 0.0
  %420 = vmatpush.msra.mxu0 0.0
  %421 = vmatpush.msra.mxu0 0.0
  %422 = vmatpush.msra.mxu0 0.0
  %423 = vmatpush.msra.mxu0 0.0
  %424 = vmatpush.msra.mxu0 0.0
  %425 = vmatpush.msra.mxu0 0.0
  %426 = vmatpush.msra.mxu0 0.0
  %427 = vmatpush.msra.mxu0 0.0
  %428 = vmatpush.msra.mxu0 0.0
  %429 = vmatpush.msra.mxu0 0.0
  %430 = vmatpush.msra.mxu0 %v61
  %431 = vmatpush.msra.mxu0 %v60
  %432 = vmatpush.msra.mxu0 %v59
  %433 = vmatpush.msra.mxu0 %v58
  %434 = vmatmul.f32.gmra.mxu0 %v407
  %v435 = vpop.f32.mrf.mxu0
  %v436 = vadd.f32 0.0, %v435
  %437 = vmatmul.f32.gmra.mxu0 %v410
  %v438 = vpop.f32.mrf.mxu0
  %v439 = vadd.f32 0.0, %v438
  %440 = vmatmul.f32.gmra.mxu0 %v413
  %v441 = vpop.f32.mrf.mxu0
  %v442 = vadd.f32 0.0, %v441
  %443 = vmatmul.f32.gmra.mxu0 %v416
  %v444 = vpop.f32.mrf.mxu0
  %v445 = vadd.f32 0.0, %v444
  %446 = vdwg.mxu0
  %v447 = vld [vmem:[%s2] sm:$0xff]
  %v448 = vld [vmem:[%s2 + $0x8] sm:$0xff]
  %v449 = vld [vmem:[%s2 + $0x10] sm:$0xff]
  %v450 = vld [vmem:[%s2 + $0x18] sm:$0xff]
  %v451 = vld [vmem:[%s2 + $0x20] sm:$0xff]
  %v452 = vld [vmem:[%s2 + $0x28] sm:$0xff]
  %v453 = vld [vmem:[%s2 + $0x30] sm:$0xff]
  %v454 = vld [vmem:[%s2 + $0x38] sm:$0xff]
  %v456 = vsel %vm156, %v436, 0
  %v459 = vsel %vm156, %v439, 0
  %v462 = vsel %vm156, %v442, 0
  %v465 = vsel %vm156, %v445, 0
  %467 = vmatpush.msra.mxu0 0.0
  %468 = vmatpush.msra.mxu0 0.0
  %469 = vmatpush.msra.mxu0 0.0
  %470 = vmatpush.msra.mxu0 0.0
  %471 = vmatpush.msra.mxu0 0.0
  %472 = vmatpush.msra.mxu0 0.0
  %473 = vmatpush.msra.mxu0 0.0
  %474 = vmatpush.msra.mxu0 0.0
  %475 = vmatpush.msra.mxu0 0.0
  %476 = vmatpush.msra.mxu0 0.0
  %477 = vmatpush.msra.mxu0 0.0
  %478 = vmatpush.msra.mxu0 0.0
  %479 = vmatpush.msra.mxu0 0.0
  %480 = vmatpush.msra.mxu0 0.0
  %481 = vmatpush.msra.mxu0 %v451
  %482 = vmatpush.msra.mxu0 %v447
  %483 = vmatmul.f32.gmra.mxu0 %v456
  %v484 = vpop.f32.mrf.mxu0
  %v485 = vadd.f32 0.0, %v484
  %486 = vmatmul.f32.gmra.mxu0 %v459
  %v487 = vpop.f32.mrf.mxu0
  %v488 = vadd.f32 0.0, %v487
  %489 = vmatmul.f32.gmra.mxu0 %v462
  %v490 = vpop.f32.mrf.mxu0
  %v491 = vadd.f32 0.0, %v490
  %492 = vmatmul.f32.gmra.mxu0 %v465
  %v493 = vpop.f32.mrf.mxu0
  %v494 = vadd.f32 0.0, %v493
  %495 = vdwg.mxu0
  %496 = vmatpush.msra.mxu0 0.0
  %497 = vmatpush.msra.mxu0 0.0
  %498 = vmatpush.msra.mxu0 0.0
  %499 = vmatpush.msra.mxu0 0.0
  %500 = vmatpush.msra.mxu0 0.0
  %501 = vmatpush.msra.mxu0 0.0
  %502 = vmatpush.msra.mxu0 0.0
  %503 = vmatpush.msra.mxu0 0.0
  %504 = vmatpush.msra.mxu0 0.0
  %505 = vmatpush.msra.mxu0 0.0
  %506 = vmatpush.msra.mxu0 0.0
  %507 = vmatpush.msra.mxu0 0.0
  %508 = vmatpush.msra.mxu0 0.0
  %509 = vmatpush.msra.mxu0 0.0
  %510 = vmatpush.msra.mxu0 %v452
  %511 = vmatpush.msra.mxu0 %v448
  %512 = vmatmul.f32.gmra.mxu0 %v456
  %v513 = vpop.f32.mrf.mxu0
  %v514 = vadd.f32 0.0, %v513
  %515 = vmatmul.f32.gmra.mxu0 %v459
  %v516 = vpop.f32.mrf.mxu0
  %v517 = vadd.f32 0.0, %v516
  %518 = vmatmul.f32.gmra.mxu0 %v462
  %v519 = vpop.f32.mrf.mxu0
  %v520 = vadd.f32 0.0, %v519
  %521 = vmatmul.f32.gmra.mxu0 %v465
  %v522 = vpop.f32.mrf.mxu0
  %v523 = vadd.f32 0.0, %v522
  %524 = vdwg.mxu0
  %525 = vmatpush.msra.mxu0 0.0
  %526 = vmatpush.msra.mxu0 0.0
  %527 = vmatpush.msra.mxu0 0.0
  %528 = vmatpush.msra.mxu0 0.0
  %529 = vmatpush.msra.mxu0 0.0
  %530 = vmatpush.msra.mxu0 0.0
  %531 = vmatpush.msra.mxu0 0.0
  %532 = vmatpush.msra.mxu0 0.0
  %533 = vmatpush.msra.mxu0 0.0
  %534 = vmatpush.msra.mxu0 0.0
  %535 = vmatpush.msra.mxu0 0.0
  %536 = vmatpush.msra.mxu0 0.0
  %537 = vmatpush.msra.mxu0 0.0
  %538 = vmatpush.msra.mxu0 0.0
  %539 = vmatpush.msra.mxu0 %v453
  %540 = vmatpush.msra.mxu0 %v449
  %541 = vmatmul.f32.gmra.mxu0 %v456
  %v542 = vpop.f32.mrf.mxu0
  %v543 = vadd.f32 0.0, %v542
  %544 = vmatmul.f32.gmra.mxu0 %v459
  %v545 = vpop.f32.mrf.mxu0
  %v546 = vadd.f32 0.0, %v545
  %547 = vmatmul.f32.gmra.mxu0 %v462
  %v548 = vpop.f32.mrf.mxu0
  %v549 = vadd.f32 0.0, %v548
  %550 = vmatmul.f32.gmra.mxu0 %v465
  %v551 = vpop.f32.mrf.mxu0
  %v552 = vadd.f32 0.0, %v551
  %553 = vdwg.mxu0
  %554 = vmatpush.msra.mxu0 0.0
  %555 = vmatpush.msra.mxu0 0.0
  %556 = vmatpush.msra.mxu0 0.0
  %557 = vmatpush.msra.mxu0 0.0
  %558 = vmatpush.msra.mxu0 0.0
  %559 = vmatpush.msra.mxu0 0.0
  %560 = vmatpush.msra.mxu0 0.0
  %561 = vmatpush.msra.mxu0 0.0
  %562 = vmatpush.msra.mxu0 0.0
  %563 = vmatpush.msra.mxu0 0.0
  %564 = vmatpush.msra.mxu0 0.0
  %565 = vmatpush.msra.mxu0 0.0
  %566 = vmatpush.msra.mxu0 0.0
  %567 = vmatpush.msra.mxu0 0.0
  %568 = vmatpush.msra.mxu0 %v454
  %569 = vmatpush.msra.mxu0 %v450
  %570 = vmatmul.f32.gmra.mxu0 %v456
  %v571 = vpop.f32.mrf.mxu0
  %v572 = vadd.f32 0.0, %v571
  %573 = vmatmul.f32.gmra.mxu0 %v459
  %v574 = vpop.f32.mrf.mxu0
  %v575 = vadd.f32 0.0, %v574
  %576 = vmatmul.f32.gmra.mxu0 %v462
  %v577 = vpop.f32.mrf.mxu0
  %v578 = vadd.f32 0.0, %v577
  %579 = vmatmul.f32.gmra.mxu0 %v465
  %v580 = vpop.f32.mrf.mxu0
  %v581 = vadd.f32 0.0, %v580
  %582 = vdwg.mxu0
  %v583 = vadd.f32 %v216, %v485
  %v584 = vadd.f32 %v274, %v514
  %v585 = vadd.f32 %v332, %v543
  %v586 = vadd.f32 %v390, %v572
  %v587 = vadd.f32 %v219, %v488
  %v588 = vadd.f32 %v277, %v517
  %v589 = vadd.f32 %v335, %v546
  %v590 = vadd.f32 %v393, %v575
  %v591 = vadd.f32 %v222, %v491
  %v592 = vadd.f32 %v280, %v520
  %v593 = vadd.f32 %v338, %v549
  %v594 = vadd.f32 %v396, %v578
  %v595 = vadd.f32 %v225, %v494
  %v596 = vadd.f32 %v283, %v523
  %v597 = vadd.f32 %v341, %v552
  %v598 = vadd.f32 %v399, %v581
  %s599 = scalar_lea.vmem %s7, 32
  %v600 = vld [vmem:[%s599] sm:$0xff]
  %v601 = vld [vmem:[%s599 + $0x8] sm:$0xff]
  %v602 = vld [vmem:[%s599 + $0x10] sm:$0xff]
  %v603 = vld [vmem:[%s599 + $0x18] sm:$0xff]
  %v605 = vsel %vm405, %v600, 0
  %v608 = vsel %vm405, %v601, 0
  %v611 = vsel %vm405, %v602, 0
  %v614 = vsel %vm405, %v603, 0
  %616 = vmatpush.msra.mxu0 0.0
  %617 = vmatpush.msra.mxu0 0.0
  %618 = vmatpush.msra.mxu0 0.0
  %619 = vmatpush.msra.mxu0 0.0
  %620 = vmatpush.msra.mxu0 0.0
  %621 = vmatpush.msra.mxu0 0.0
  %622 = vmatpush.msra.mxu0 0.0
  %623 = vmatpush.msra.mxu0 0.0
  %624 = vmatpush.msra.mxu0 0.0
  %625 = vmatpush.msra.mxu0 0.0
  %626 = vmatpush.msra.mxu0 0.0
  %627 = vmatpush.msra.mxu0 0.0
  %628 = vmatpush.msra.mxu0 %v61
  %629 = vmatpush.msra.mxu0 %v60
  %630 = vmatpush.msra.mxu0 %v59
  %631 = vmatpush.msra.mxu0 %v58
  %632 = vmatmul.f32.gmra.mxu0 %v605
  %v633 = vpop.f32.mrf.mxu0
  %v634 = vadd.f32 0.0, %v633
  %635 = vmatmul.f32.gmra.mxu0 %v608
  %v636 = vpop.f32.mrf.mxu0
  %v637 = vadd.f32 0.0, %v636
  %638 = vmatmul.f32.gmra.mxu0 %v611
  %v639 = vpop.f32.mrf.mxu0
  %v640 = vadd.f32 0.0, %v639
  %641 = vmatmul.f32.gmra.mxu0 %v614
  %v642 = vpop.f32.mrf.mxu0
  %v643 = vadd.f32 0.0, %v642
  %644 = vdwg.mxu0
  %s645 = scalar_lea.vmem %s2, 64
  %v646 = vld [vmem:[%s645] sm:$0xff]
  %v647 = vld [vmem:[%s645 + $0x8] sm:$0xff]
  %v648 = vld [vmem:[%s645 + $0x10] sm:$0xff]
  %v649 = vld [vmem:[%s645 + $0x18] sm:$0xff]
  %v650 = vld [vmem:[%s645 + $0x20] sm:$0xff]
  %v651 = vld [vmem:[%s645 + $0x28] sm:$0xff]
  %v652 = vld [vmem:[%s645 + $0x30] sm:$0xff]
  %v653 = vld [vmem:[%s645 + $0x38] sm:$0xff]
  %v655 = vsel %vm156, %v634, 0
  %v658 = vsel %vm156, %v637, 0
  %v661 = vsel %vm156, %v640, 0
  %v664 = vsel %vm156, %v643, 0
  %666 = vmatpush.msra.mxu0 0.0
  %667 = vmatpush.msra.mxu0 0.0
  %668 = vmatpush.msra.mxu0 0.0
  %669 = vmatpush.msra.mxu0 0.0
  %670 = vmatpush.msra.mxu0 0.0
  %671 = vmatpush.msra.mxu0 0.0
  %672 = vmatpush.msra.mxu0 0.0
  %673 = vmatpush.msra.mxu0 0.0
  %674 = vmatpush.msra.mxu0 0.0
  %675 = vmatpush.msra.mxu0 0.0
  %676 = vmatpush.msra.mxu0 0.0
  %677 = vmatpush.msra.mxu0 0.0
  %678 = vmatpush.msra.mxu0 0.0
  %679 = vmatpush.msra.mxu0 0.0
  %680 = vmatpush.msra.mxu0 %v650
  %681 = vmatpush.msra.mxu0 %v646
  %682 = vmatmul.f32.gmra.mxu0 %v655
  %v683 = vpop.f32.mrf.mxu0
  %v684 = vadd.f32 0.0, %v683
  %685 = vmatmul.f32.gmra.mxu0 %v658
  %v686 = vpop.f32.mrf.mxu0
  %v687 = vadd.f32 0.0, %v686
  %688 = vmatmul.f32.gmra.mxu0 %v661
  %v689 = vpop.f32.mrf.mxu0
  %v690 = vadd.f32 0.0, %v689
  %691 = vmatmul.f32.gmra.mxu0 %v664
  %v692 = vpop.f32.mrf.mxu0
  %v693 = vadd.f32 0.0, %v692
  %694 = vdwg.mxu0
  %695 = vmatpush.msra.mxu0 0.0
  %696 = vmatpush.msra.mxu0 0.0
  %697 = vmatpush.msra.mxu0 0.0
  %698 = vmatpush.msra.mxu0 0.0
  %699 = vmatpush.msra.mxu0 0.0
  %700 = vmatpush.msra.mxu0 0.0
  %701 = vmatpush.msra.mxu0 0.0
  %702 = vmatpush.msra.mxu0 0.0
  %703 = vmatpush.msra.mxu0 0.0
  %704 = vmatpush.msra.mxu0 0.0
  %705 = vmatpush.msra.mxu0 0.0
  %706 = vmatpush.msra.mxu0 0.0
  %707 = vmatpush.msra.mxu0 0.0
  %708 = vmatpush.msra.mxu0 0.0
  %709 = vmatpush.msra.mxu0 %v651
  %710 = vmatpush.msra.mxu0 %v647
  %711 = vmatmul.f32.gmra.mxu0 %v655
  %v712 = vpop.f32.mrf.mxu0
  %v713 = vadd.f32 0.0, %v712
  %714 = vmatmul.f32.gmra.mxu0 %v658
  %v715 = vpop.f32.mrf.mxu0
  %v716 = vadd.f32 0.0, %v715
  %717 = vmatmul.f32.gmra.mxu0 %v661
  %v718 = vpop.f32.mrf.mxu0
  %v719 = vadd.f32 0.0, %v718
  %720 = vmatmul.f32.gmra.mxu0 %v664
  %v721 = vpop.f32.mrf.mxu0
  %v722 = vadd.f32 0.0, %v721
  %723 = vdwg.mxu0
  %724 = vmatpush.msra.mxu0 0.0
  %725 = vmatpush.msra.mxu0 0.0
  %726 = vmatpush.msra.mxu0 0.0
  %727 = vmatpush.msra.mxu0 0.0
  %728 = vmatpush.msra.mxu0 0.0
  %729 = vmatpush.msra.mxu0 0.0
  %730 = vmatpush.msra.mxu0 0.0
  %731 = vmatpush.msra.mxu0 0.0
  %732 = vmatpush.msra.mxu0 0.0
  %733 = vmatpush.msra.mxu0 0.0
  %734 = vmatpush.msra.mxu0 0.0
  %735 = vmatpush.msra.mxu0 0.0
  %736 = vmatpush.msra.mxu0 0.0
  %737 = vmatpush.msra.mxu0 0.0
  %738 = vmatpush.msra.mxu0 %v652
  %739 = vmatpush.msra.mxu0 %v648
  %740 = vmatmul.f32.gmra.mxu0 %v655
  %v741 = vpop.f32.mrf.mxu0
  %v742 = vadd.f32 0.0, %v741
  %743 = vmatmul.f32.gmra.mxu0 %v658
  %v744 = vpop.f32.mrf.mxu0
  %v745 = vadd.f32 0.0, %v744
  %746 = vmatmul.f32.gmra.mxu0 %v661
  %v747 = vpop.f32.mrf.mxu0
  %v748 = vadd.f32 0.0, %v747
  %749 = vmatmul.f32.gmra.mxu0 %v664
  %v750 = vpop.f32.mrf.mxu0
  %v751 = vadd.f32 0.0, %v750
  %752 = vdwg.mxu0
  %753 = vmatpush.msra.mxu0 0.0
  %754 = vmatpush.msra.mxu0 0.0
  %755 = vmatpush.msra.mxu0 0.0
  %756 = vmatpush.msra.mxu0 0.0
  %757 = vmatpush.msra.mxu0 0.0
  %758 = vmatpush.msra.mxu0 0.0
  %759 = vmatpush.msra.mxu0 0.0
  %760 = vmatpush.msra.mxu0 0.0
  %761 = vmatpush.msra.mxu0 0.0
  %762 = vmatpush.msra.mxu0 0.0
  %763 = vmatpush.msra.mxu0 0.0
  %764 = vmatpush.msra.mxu0 0.0
  %765 = vmatpush.msra.mxu0 0.0
  %766 = vmatpush.msra.mxu0 0.0
  %767 = vmatpush.msra.mxu0 %v653
  %768 = vmatpush.msra.mxu0 %v649
  %769 = vmatmul.f32.gmra.mxu0 %v655
  %v770 = vpop.f32.mrf.mxu0
  %v771 = vadd.f32 0.0, %v770
  %772 = vmatmul.f32.gmra.mxu0 %v658
  %v773 = vpop.f32.mrf.mxu0
  %v774 = vadd.f32 0.0, %v773
  %775 = vmatmul.f32.gmra.mxu0 %v661
  %v776 = vpop.f32.mrf.mxu0
  %v777 = vadd.f32 0.0, %v776
  %778 = vmatmul.f32.gmra.mxu0 %v664
  %v779 = vpop.f32.mrf.mxu0
  %v780 = vadd.f32 0.0, %v779
  %781 = vdwg.mxu0
  %v782 = vadd.f32 %v583, %v684
  %v783 = vadd.f32 %v584, %v713
  %v784 = vadd.f32 %v585, %v742
  %v785 = vadd.f32 %v586, %v771
  %v786 = vadd.f32 %v587, %v687
  %v787 = vadd.f32 %v588, %v716
  %v788 = vadd.f32 %v589, %v745
  %v789 = vadd.f32 %v590, %v774
  %v790 = vadd.f32 %v591, %v690
  %v791 = vadd.f32 %v592, %v719
  %v792 = vadd.f32 %v593, %v748
  %v793 = vadd.f32 %v594, %v777
  %v794 = vadd.f32 %v595, %v693
  %v795 = vadd.f32 %v596, %v722
  %v796 = vadd.f32 %v597, %v751
  %v797 = vadd.f32 %v598, %v780
  %s798 = scalar_lea.vmem %s7, 64
  %v799 = vld [vmem:[%s798] sm:$0xff]
  %v800 = vld [vmem:[%s798 + $0x8] sm:$0xff]
  %v801 = vld [vmem:[%s798 + $0x10] sm:$0xff]
  %v802 = vld [vmem:[%s798 + $0x18] sm:$0xff]
  %v804 = vsel %vm405, %v799, 0
  %v807 = vsel %vm405, %v800, 0
  %v810 = vsel %vm405, %v801, 0
  %v813 = vsel %vm405, %v802, 0
  %815 = vmatpush.msra.mxu0 0.0
  %816 = vmatpush.msra.mxu0 0.0
  %817 = vmatpush.msra.mxu0 0.0
  %818 = vmatpush.msra.mxu0 0.0
  %819 = vmatpush.msra.mxu0 0.0
  %820 = vmatpush.msra.mxu0 0.0
  %821 = vmatpush.msra.mxu0 0.0
  %822 = vmatpush.msra.mxu0 0.0
  %823 = vmatpush.msra.mxu0 0.0
  %824 = vmatpush.msra.mxu0 0.0
  %825 = vmatpush.msra.mxu0 0.0
  %826 = vmatpush.msra.mxu0 0.0
  %827 = vmatpush.msra.mxu0 %v61
  %828 = vmatpush.msra.mxu0 %v60
  %829 = vmatpush.msra.mxu0 %v59
  %830 = vmatpush.msra.mxu0 %v58
  %831 = vmatmul.f32.gmra.mxu0 %v804
  %v832 = vpop.f32.mrf.mxu0
  %v833 = vadd.f32 0.0, %v832
  %834 = vmatmul.f32.gmra.mxu0 %v807
  %v835 = vpop.f32.mrf.mxu0
  %v836 = vadd.f32 0.0, %v835
  %837 = vmatmul.f32.gmra.mxu0 %v810
  %v838 = vpop.f32.mrf.mxu0
  %v839 = vadd.f32 0.0, %v838
  %840 = vmatmul.f32.gmra.mxu0 %v813
  %v841 = vpop.f32.mrf.mxu0
  %v842 = vadd.f32 0.0, %v841
  %843 = vdwg.mxu0
  %s844 = scalar_lea.vmem %s2, 128
  %v845 = vld [vmem:[%s844] sm:$0xff]
  %v846 = vld [vmem:[%s844 + $0x8] sm:$0xff]
  %v847 = vld [vmem:[%s844 + $0x10] sm:$0xff]
  %v848 = vld [vmem:[%s844 + $0x18] sm:$0xff]
  %v849 = vld [vmem:[%s844 + $0x20] sm:$0xff]
  %v850 = vld [vmem:[%s844 + $0x28] sm:$0xff]
  %v851 = vld [vmem:[%s844 + $0x30] sm:$0xff]
  %v852 = vld [vmem:[%s844 + $0x38] sm:$0xff]
  %v854 = vsel %vm156, %v833, 0
  %v857 = vsel %vm156, %v836, 0
  %v860 = vsel %vm156, %v839, 0
  %v863 = vsel %vm156, %v842, 0
  %865 = vmatpush.msra.mxu0 0.0
  %866 = vmatpush.msra.mxu0 0.0
  %867 = vmatpush.msra.mxu0 0.0
  %868 = vmatpush.msra.mxu0 0.0
  %869 = vmatpush.msra.mxu0 0.0
  %870 = vmatpush.msra.mxu0 0.0
  %871 = vmatpush.msra.mxu0 0.0
  %872 = vmatpush.msra.mxu0 0.0
  %873 = vmatpush.msra.mxu0 0.0
  %874 = vmatpush.msra.mxu0 0.0
  %875 = vmatpush.msra.mxu0 0.0
  %876 = vmatpush.msra.mxu0 0.0
  %877 = vmatpush.msra.mxu0 0.0
  %878 = vmatpush.msra.mxu0 0.0
  %879 = vmatpush.msra.mxu0 %v849
  %880 = vmatpush.msra.mxu0 %v845
  %881 = vmatmul.f32.gmra.mxu0 %v854
  %v882 = vpop.f32.mrf.mxu0
  %v883 = vadd.f32 0.0, %v882
  %884 = vmatmul.f32.gmra.mxu0 %v857
  %v885 = vpop.f32.mrf.mxu0
  %v886 = vadd.f32 0.0, %v885
  %887 = vmatmul.f32.gmra.mxu0 %v860
  %v888 = vpop.f32.mrf.mxu0
  %v889 = vadd.f32 0.0, %v888
  %890 = vmatmul.f32.gmra.mxu0 %v863
  %v891 = vpop.f32.mrf.mxu0
  %v892 = vadd.f32 0.0, %v891
  %893 = vdwg.mxu0
  %894 = vmatpush.msra.mxu0 0.0
  %895 = vmatpush.msra.mxu0 0.0
  %896 = vmatpush.msra.mxu0 0.0
  %897 = vmatpush.msra.mxu0 0.0
  %898 = vmatpush.msra.mxu0 0.0
  %899 = vmatpush.msra.mxu0 0.0
  %900 = vmatpush.msra.mxu0 0.0
  %901 = vmatpush.msra.mxu0 0.0
  %902 = vmatpush.msra.mxu0 0.0
  %903 = vmatpush.msra.mxu0 0.0
  %904 = vmatpush.msra.mxu0 0.0
  %905 = vmatpush.msra.mxu0 0.0
  %906 = vmatpush.msra.mxu0 0.0
  %907 = vmatpush.msra.mxu0 0.0
  %908 = vmatpush.msra.mxu0 %v850
  %909 = vmatpush.msra.mxu0 %v846
  %910 = vmatmul.f32.gmra.mxu0 %v854
  %v911 = vpop.f32.mrf.mxu0
  %v912 = vadd.f32 0.0, %v911
  %913 = vmatmul.f32.gmra.mxu0 %v857
  %v914 = vpop.f32.mrf.mxu0
  %v915 = vadd.f32 0.0, %v914
  %916 = vmatmul.f32.gmra.mxu0 %v860
  %v917 = vpop.f32.mrf.mxu0
  %v918 = vadd.f32 0.0, %v917
  %919 = vmatmul.f32.gmra.mxu0 %v863
  %v920 = vpop.f32.mrf.mxu0
  %v921 = vadd.f32 0.0, %v920
  %922 = vdwg.mxu0
  %923 = vmatpush.msra.mxu0 0.0
  %924 = vmatpush.msra.mxu0 0.0
  %925 = vmatpush.msra.mxu0 0.0
  %926 = vmatpush.msra.mxu0 0.0
  %927 = vmatpush.msra.mxu0 0.0
  %928 = vmatpush.msra.mxu0 0.0
  %929 = vmatpush.msra.mxu0 0.0
  %930 = vmatpush.msra.mxu0 0.0
  %931 = vmatpush.msra.mxu0 0.0
  %932 = vmatpush.msra.mxu0 0.0
  %933 = vmatpush.msra.mxu0 0.0
  %934 = vmatpush.msra.mxu0 0.0
  %935 = vmatpush.msra.mxu0 0.0
  %936 = vmatpush.msra.mxu0 0.0
  %937 = vmatpush.msra.mxu0 %v851
  %938 = vmatpush.msra.mxu0 %v847
  %939 = vmatmul.f32.gmra.mxu0 %v854
  %v940 = vpop.f32.mrf.mxu0
  %v941 = vadd.f32 0.0, %v940
  %942 = vmatmul.f32.gmra.mxu0 %v857
  %v943 = vpop.f32.mrf.mxu0
  %v944 = vadd.f32 0.0, %v943
  %945 = vmatmul.f32.gmra.mxu0 %v860
  %v946 = vpop.f32.mrf.mxu0
  %v947 = vadd.f32 0.0, %v946
  %948 = vmatmul.f32.gmra.mxu0 %v863
  %v949 = vpop.f32.mrf.mxu0
  %v950 = vadd.f32 0.0, %v949
  %951 = vdwg.mxu0
  %952 = vmatpush.msra.mxu0 0.0
  %953 = vmatpush.msra.mxu0 0.0
  %954 = vmatpush.msra.mxu0 0.0
  %955 = vmatpush.msra.mxu0 0.0
  %956 = vmatpush.msra.mxu0 0.0
  %957 = vmatpush.msra.mxu0 0.0
  %958 = vmatpush.msra.mxu0 0.0
  %959 = vmatpush.msra.mxu0 0.0
  %960 = vmatpush.msra.mxu0 0.0
  %961 = vmatpush.msra.mxu0 0.0
  %962 = vmatpush.msra.mxu0 0.0
  %963 = vmatpush.msra.mxu0 0.0
  %964 = vmatpush.msra.mxu0 0.0
  %965 = vmatpush.msra.mxu0 0.0
  %966 = vmatpush.msra.mxu0 %v852
  %967 = vmatpush.msra.mxu0 %v848
  %968 = vmatmul.f32.gmra.mxu0 %v854
  %v969 = vpop.f32.mrf.mxu0
  %v970 = vadd.f32 0.0, %v969
  %971 = vmatmul.f32.gmra.mxu0 %v857
  %v972 = vpop.f32.mrf.mxu0
  %v973 = vadd.f32 0.0, %v972
  %974 = vmatmul.f32.gmra.mxu0 %v860
  %v975 = vpop.f32.mrf.mxu0
  %v976 = vadd.f32 0.0, %v975
  %977 = vmatmul.f32.gmra.mxu0 %v863
  %v978 = vpop.f32.mrf.mxu0
  %v979 = vadd.f32 0.0, %v978
  %980 = vdwg.mxu0
  %v981 = vadd.f32 %v782, %v883
  %v982 = vadd.f32 %v783, %v912
  %v983 = vadd.f32 %v784, %v941
  %v984 = vadd.f32 %v785, %v970
  %v985 = vadd.f32 %v786, %v886
  %v986 = vadd.f32 %v787, %v915
  %v987 = vadd.f32 %v788, %v944
  %v988 = vadd.f32 %v789, %v973
  %v989 = vadd.f32 %v790, %v889
  %v990 = vadd.f32 %v791, %v918
  %v991 = vadd.f32 %v792, %v947
  %v992 = vadd.f32 %v793, %v976
  %v993 = vadd.f32 %v794, %v892
  %v994 = vadd.f32 %v795, %v921
  %v995 = vadd.f32 %v796, %v950
  %v996 = vadd.f32 %v797, %v979
  %s997 = scalar_lea.vmem %s7, 96
  %v998 = vld [vmem:[%s997] sm:$0xff]
  %v999 = vld [vmem:[%s997 + $0x8] sm:$0xff]
  %v1000 = vld [vmem:[%s997 + $0x10] sm:$0xff]
  %v1001 = vld [vmem:[%s997 + $0x18] sm:$0xff]
  %v1003 = vsel %vm405, %v998, 0
  %v1006 = vsel %vm405, %v999, 0
  %v1009 = vsel %vm405, %v1000, 0
  %v1012 = vsel %vm405, %v1001, 0
  %1014 = vmatpush.msra.mxu0 0.0
  %1015 = vmatpush.msra.mxu0 0.0
  %1016 = vmatpush.msra.mxu0 0.0
  %1017 = vmatpush.msra.mxu0 0.0
  %1018 = vmatpush.msra.mxu0 0.0
  %1019 = vmatpush.msra.mxu0 0.0
  %1020 = vmatpush.msra.mxu0 0.0
  %1021 = vmatpush.msra.mxu0 0.0
  %1022 = vmatpush.msra.mxu0 0.0
  %1023 = vmatpush.msra.mxu0 0.0
  %1024 = vmatpush.msra.mxu0 0.0
  %1025 = vmatpush.msra.mxu0 0.0
  %1026 = vmatpush.msra.mxu0 %v61
  %1027 = vmatpush.msra.mxu0 %v60
  %1028 = vmatpush.msra.mxu0 %v59
  %1029 = vmatpush.msra.mxu0 %v58
  %1030 = vmatmul.f32.gmra.mxu0 %v1003
  %v1031 = vpop.f32.mrf.mxu0
  %v1032 = vadd.f32 0.0, %v1031
  %1033 = vmatmul.f32.gmra.mxu0 %v1006
  %v1034 = vpop.f32.mrf.mxu0
  %v1035 = vadd.f32 0.0, %v1034
  %1036 = vmatmul.f32.gmra.mxu0 %v1009
  %v1037 = vpop.f32.mrf.mxu0
  %v1038 = vadd.f32 0.0, %v1037
  %1039 = vmatmul.f32.gmra.mxu0 %v1012
  %v1040 = vpop.f32.mrf.mxu0
  %v1041 = vadd.f32 0.0, %v1040
  %1042 = vdwg.mxu0
  %s1043 = scalar_lea.vmem %s2, 192
  %v1044 = vld [vmem:[%s1043] sm:$0xff]
  %v1045 = vld [vmem:[%s1043 + $0x8] sm:$0xff]
  %v1046 = vld [vmem:[%s1043 + $0x10] sm:$0xff]
  %v1047 = vld [vmem:[%s1043 + $0x18] sm:$0xff]
  %v1048 = vld [vmem:[%s1043 + $0x20] sm:$0xff]
  %v1049 = vld [vmem:[%s1043 + $0x28] sm:$0xff]
  %v1050 = vld [vmem:[%s1043 + $0x30] sm:$0xff]
  %v1051 = vld [vmem:[%s1043 + $0x38] sm:$0xff]
  %v1053 = vsel %vm156, %v1032, 0
  %v1056 = vsel %vm156, %v1035, 0
  %v1059 = vsel %vm156, %v1038, 0
  %v1062 = vsel %vm156, %v1041, 0
  %1064 = vmatpush.msra.mxu0 0.0
  %1065 = vmatpush.msra.mxu0 0.0
  %1066 = vmatpush.msra.mxu0 0.0
  %1067 = vmatpush.msra.mxu0 0.0
  %1068 = vmatpush.msra.mxu0 0.0
  %1069 = vmatpush.msra.mxu0 0.0
  %1070 = vmatpush.msra.mxu0 0.0
  %1071 = vmatpush.msra.mxu0 0.0
  %1072 = vmatpush.msra.mxu0 0.0
  %1073 = vmatpush.msra.mxu0 0.0
  %1074 = vmatpush.msra.mxu0 0.0
  %1075 = vmatpush.msra.mxu0 0.0
  %1076 = vmatpush.msra.mxu0 0.0
  %1077 = vmatpush.msra.mxu0 0.0
  %1078 = vmatpush.msra.mxu0 %v1048
  %1079 = vmatpush.msra.mxu0 %v1044
  %1080 = vmatmul.f32.gmra.mxu0 %v1053
  %v1081 = vpop.f32.mrf.mxu0
  %v1082 = vadd.f32 0.0, %v1081
  %1083 = vmatmul.f32.gmra.mxu0 %v1056
  %v1084 = vpop.f32.mrf.mxu0
  %v1085 = vadd.f32 0.0, %v1084
  %1086 = vmatmul.f32.gmra.mxu0 %v1059
  %v1087 = vpop.f32.mrf.mxu0
  %v1088 = vadd.f32 0.0, %v1087
  %1089 = vmatmul.f32.gmra.mxu0 %v1062
  %v1090 = vpop.f32.mrf.mxu0
  %v1091 = vadd.f32 0.0, %v1090
  %1092 = vdwg.mxu0
  %1093 = vmatpush.msra.mxu0 0.0
  %1094 = vmatpush.msra.mxu0 0.0
  %1095 = vmatpush.msra.mxu0 0.0
  %1096 = vmatpush.msra.mxu0 0.0
  %1097 = vmatpush.msra.mxu0 0.0
  %1098 = vmatpush.msra.mxu0 0.0
  %1099 = vmatpush.msra.mxu0 0.0
  %1100 = vmatpush.msra.mxu0 0.0
  %1101 = vmatpush.msra.mxu0 0.0
  %1102 = vmatpush.msra.mxu0 0.0
  %1103 = vmatpush.msra.mxu0 0.0
  %1104 = vmatpush.msra.mxu0 0.0
  %1105 = vmatpush.msra.mxu0 0.0
  %1106 = vmatpush.msra.mxu0 0.0
  %1107 = vmatpush.msra.mxu0 %v1049
  %1108 = vmatpush.msra.mxu0 %v1045
  %1109 = vmatmul.f32.gmra.mxu0 %v1053
  %v1110 = vpop.f32.mrf.mxu0
  %v1111 = vadd.f32 0.0, %v1110
  %1112 = vmatmul.f32.gmra.mxu0 %v1056
  %v1113 = vpop.f32.mrf.mxu0
  %v1114 = vadd.f32 0.0, %v1113
  %1115 = vmatmul.f32.gmra.mxu0 %v1059
  %v1116 = vpop.f32.mrf.mxu0
  %v1117 = vadd.f32 0.0, %v1116
  %1118 = vmatmul.f32.gmra.mxu0 %v1062
  %v1119 = vpop.f32.mrf.mxu0
  %v1120 = vadd.f32 0.0, %v1119
  %1121 = vdwg.mxu0
  %1122 = vmatpush.msra.mxu0 0.0
  %1123 = vmatpush.msra.mxu0 0.0
  %1124 = vmatpush.msra.mxu0 0.0
  %1125 = vmatpush.msra.mxu0 0.0
  %1126 = vmatpush.msra.mxu0 0.0
  %1127 = vmatpush.msra.mxu0 0.0
  %1128 = vmatpush.msra.mxu0 0.0
  %1129 = vmatpush.msra.mxu0 0.0
  %1130 = vmatpush.msra.mxu0 0.0
  %1131 = vmatpush.msra.mxu0 0.0
  %1132 = vmatpush.msra.mxu0 0.0
  %1133 = vmatpush.msra.mxu0 0.0
  %1134 = vmatpush.msra.mxu0 0.0
  %1135 = vmatpush.msra.mxu0 0.0
  %1136 = vmatpush.msra.mxu0 %v1050
  %1137 = vmatpush.msra.mxu0 %v1046
  %1138 = vmatmul.f32.gmra.mxu0 %v1053
  %v1139 = vpop.f32.mrf.mxu0
  %v1140 = vadd.f32 0.0, %v1139
  %1141 = vmatmul.f32.gmra.mxu0 %v1056
  %v1142 = vpop.f32.mrf.mxu0
  %v1143 = vadd.f32 0.0, %v1142
  %1144 = vmatmul.f32.gmra.mxu0 %v1059
  %v1145 = vpop.f32.mrf.mxu0
  %v1146 = vadd.f32 0.0, %v1145
  %1147 = vmatmul.f32.gmra.mxu0 %v1062
  %v1148 = vpop.f32.mrf.mxu0
  %v1149 = vadd.f32 0.0, %v1148
  %1150 = vdwg.mxu0
  %1151 = vmatpush.msra.mxu0 0.0
  %1152 = vmatpush.msra.mxu0 0.0
  %1153 = vmatpush.msra.mxu0 0.0
  %1154 = vmatpush.msra.mxu0 0.0
  %1155 = vmatpush.msra.mxu0 0.0
  %1156 = vmatpush.msra.mxu0 0.0
  %1157 = vmatpush.msra.mxu0 0.0
  %1158 = vmatpush.msra.mxu0 0.0
  %1159 = vmatpush.msra.mxu0 0.0
  %1160 = vmatpush.msra.mxu0 0.0
  %1161 = vmatpush.msra.mxu0 0.0
  %1162 = vmatpush.msra.mxu0 0.0
  %1163 = vmatpush.msra.mxu0 0.0
  %1164 = vmatpush.msra.mxu0 0.0
  %1165 = vmatpush.msra.mxu0 %v1051
  %1166 = vmatpush.msra.mxu0 %v1047
  %1167 = vmatmul.f32.gmra.mxu0 %v1053
  %v1168 = vpop.f32.mrf.mxu0
  %v1169 = vadd.f32 0.0, %v1168
  %1170 = vmatmul.f32.gmra.mxu0 %v1056
  %v1171 = vpop.f32.mrf.mxu0
  %v1172 = vadd.f32 0.0, %v1171
  %1173 = vmatmul.f32.gmra.mxu0 %v1059
  %v1174 = vpop.f32.mrf.mxu0
  %v1175 = vadd.f32 0.0, %v1174
  %1176 = vmatmul.f32.gmra.mxu0 %v1062
  %v1177 = vpop.f32.mrf.mxu0
  %v1178 = vadd.f32 0.0, %v1177
  %1179 = vdwg.mxu0
  %v1180 = vadd.f32 %v981, %v1082
  %v1181 = vadd.f32 %v982, %v1111
  %v1182 = vadd.f32 %v983, %v1140
  %v1183 = vadd.f32 %v984, %v1169
  %v1184 = vadd.f32 %v985, %v1085
  %v1185 = vadd.f32 %v986, %v1114
  %v1186 = vadd.f32 %v987, %v1143
  %v1187 = vadd.f32 %v988, %v1172
  %v1188 = vadd.f32 %v989, %v1088
  %v1189 = vadd.f32 %v990, %v1117
  %v1190 = vadd.f32 %v991, %v1146
  %v1191 = vadd.f32 %v992, %v1175
  %v1192 = vadd.f32 %v993, %v1091
  %v1193 = vadd.f32 %v994, %v1120
  %v1194 = vadd.f32 %v995, %v1149
  %v1195 = vadd.f32 %v996, %v1178
  %s1196 = scalar_lea.vmem %s7, 128
  %v1197 = vld [vmem:[%s1196] sm:$0xff]
  %v1198 = vld [vmem:[%s1196 + $0x8] sm:$0xff]
  %v1199 = vld [vmem:[%s1196 + $0x10] sm:$0xff]
  %v1200 = vld [vmem:[%s1196 + $0x18] sm:$0xff]
  %v1202 = vsel %vm405, %v1197, 0
  %v1205 = vsel %vm405, %v1198, 0
  %v1208 = vsel %vm405, %v1199, 0
  %v1211 = vsel %vm405, %v1200, 0
  %1213 = vmatpush.msra.mxu0 0.0
  %1214 = vmatpush.msra.mxu0 0.0
  %1215 = vmatpush.msra.mxu0 0.0
  %1216 = vmatpush.msra.mxu0 0.0
  %1217 = vmatpush.msra.mxu0 0.0
  %1218 = vmatpush.msra.mxu0 0.0
  %1219 = vmatpush.msra.mxu0 0.0
  %1220 = vmatpush.msra.mxu0 0.0
  %1221 = vmatpush.msra.mxu0 0.0
  %1222 = vmatpush.msra.mxu0 0.0
  %1223 = vmatpush.msra.mxu0 0.0
  %1224 = vmatpush.msra.mxu0 0.0
  %1225 = vmatpush.msra.mxu0 %v61
  %1226 = vmatpush.msra.mxu0 %v60
  %1227 = vmatpush.msra.mxu0 %v59
  %1228 = vmatpush.msra.mxu0 %v58
  %1229 = vmatmul.f32.gmra.mxu0 %v1202
  %v1230 = vpop.f32.mrf.mxu0
  %v1231 = vadd.f32 0.0, %v1230
  %1232 = vmatmul.f32.gmra.mxu0 %v1205
  %v1233 = vpop.f32.mrf.mxu0
  %v1234 = vadd.f32 0.0, %v1233
  %1235 = vmatmul.f32.gmra.mxu0 %v1208
  %v1236 = vpop.f32.mrf.mxu0
  %v1237 = vadd.f32 0.0, %v1236
  %1238 = vmatmul.f32.gmra.mxu0 %v1211
  %v1239 = vpop.f32.mrf.mxu0
  %v1240 = vadd.f32 0.0, %v1239
  %1241 = vdwg.mxu0
  %s1242 = scalar_lea.vmem %s2, 256
  %v1243 = vld [vmem:[%s1242] sm:$0xff]
  %v1244 = vld [vmem:[%s1242 + $0x8] sm:$0xff]
  %v1245 = vld [vmem:[%s1242 + $0x10] sm:$0xff]
  %v1246 = vld [vmem:[%s1242 + $0x18] sm:$0xff]
  %v1247 = vld [vmem:[%s1242 + $0x20] sm:$0xff]
  %v1248 = vld [vmem:[%s1242 + $0x28] sm:$0xff]
  %v1249 = vld [vmem:[%s1242 + $0x30] sm:$0xff]
  %v1250 = vld [vmem:[%s1242 + $0x38] sm:$0xff]
  %v1252 = vsel %vm156, %v1231, 0
  %v1255 = vsel %vm156, %v1234, 0
  %v1258 = vsel %vm156, %v1237, 0
  %v1261 = vsel %vm156, %v1240, 0
  %1263 = vmatpush.msra.mxu0 0.0
  %1264 = vmatpush.msra.mxu0 0.0
  %1265 = vmatpush.msra.mxu0 0.0
  %1266 = vmatpush.msra.mxu0 0.0
  %1267 = vmatpush.msra.mxu0 0.0
  %1268 = vmatpush.msra.mxu0 0.0
  %1269 = vmatpush.msra.mxu0 0.0
  %1270 = vmatpush.msra.mxu0 0.0
  %1271 = vmatpush.msra.mxu0 0.0
  %1272 = vmatpush.msra.mxu0 0.0
  %1273 = vmatpush.msra.mxu0 0.0
  %1274 = vmatpush.msra.mxu0 0.0
  %1275 = vmatpush.msra.mxu0 0.0
  %1276 = vmatpush.msra.mxu0 0.0
  %1277 = vmatpush.msra.mxu0 %v1247
  %1278 = vmatpush.msra.mxu0 %v1243
  %1279 = vmatmul.f32.gmra.mxu0 %v1252
  %v1280 = vpop.f32.mrf.mxu0
  %v1281 = vadd.f32 0.0, %v1280
  %1282 = vmatmul.f32.gmra.mxu0 %v1255
  %v1283 = vpop.f32.mrf.mxu0
  %v1284 = vadd.f32 0.0, %v1283
  %1285 = vmatmul.f32.gmra.mxu0 %v1258
  %v1286 = vpop.f32.mrf.mxu0
  %v1287 = vadd.f32 0.0, %v1286
  %1288 = vmatmul.f32.gmra.mxu0 %v1261
  %v1289 = vpop.f32.mrf.mxu0
  %v1290 = vadd.f32 0.0, %v1289
  %1291 = vdwg.mxu0
  %1292 = vmatpush.msra.mxu0 0.0
  %1293 = vmatpush.msra.mxu0 0.0
  %1294 = vmatpush.msra.mxu0 0.0
  %1295 = vmatpush.msra.mxu0 0.0
  %1296 = vmatpush.msra.mxu0 0.0
  %1297 = vmatpush.msra.mxu0 0.0
  %1298 = vmatpush.msra.mxu0 0.0
  %1299 = vmatpush.msra.mxu0 0.0
  %1300 = vmatpush.msra.mxu0 0.0
  %1301 = vmatpush.msra.mxu0 0.0
  %1302 = vmatpush.msra.mxu0 0.0
  %1303 = vmatpush.msra.mxu0 0.0
  %1304 = vmatpush.msra.mxu0 0.0
  %1305 = vmatpush.msra.mxu0 0.0
  %1306 = vmatpush.msra.mxu0 %v1248
  %1307 = vmatpush.msra.mxu0 %v1244
  %1308 = vmatmul.f32.gmra.mxu0 %v1252
  %v1309 = vpop.f32.mrf.mxu0
  %v1310 = vadd.f32 0.0, %v1309
  %1311 = vmatmul.f32.gmra.mxu0 %v1255
  %v1312 = vpop.f32.mrf.mxu0
  %v1313 = vadd.f32 0.0, %v1312
  %1314 = vmatmul.f32.gmra.mxu0 %v1258
  %v1315 = vpop.f32.mrf.mxu0
  %v1316 = vadd.f32 0.0, %v1315
  %1317 = vmatmul.f32.gmra.mxu0 %v1261
  %v1318 = vpop.f32.mrf.mxu0
  %v1319 = vadd.f32 0.0, %v1318
  %1320 = vdwg.mxu0
  %1321 = vmatpush.msra.mxu0 0.0
  %1322 = vmatpush.msra.mxu0 0.0
  %1323 = vmatpush.msra.mxu0 0.0
  %1324 = vmatpush.msra.mxu0 0.0
  %1325 = vmatpush.msra.mxu0 0.0
  %1326 = vmatpush.msra.mxu0 0.0
  %1327 = vmatpush.msra.mxu0 0.0
  %1328 = vmatpush.msra.mxu0 0.0
  %1329 = vmatpush.msra.mxu0 0.0
  %1330 = vmatpush.msra.mxu0 0.0
  %1331 = vmatpush.msra.mxu0 0.0
  %1332 = vmatpush.msra.mxu0 0.0
  %1333 = vmatpush.msra.mxu0 0.0
  %1334 = vmatpush.msra.mxu0 0.0
  %1335 = vmatpush.msra.mxu0 %v1249
  %1336 = vmatpush.msra.mxu0 %v1245
  %1337 = vmatmul.f32.gmra.mxu0 %v1252
  %v1338 = vpop.f32.mrf.mxu0
  %v1339 = vadd.f32 0.0, %v1338
  %1340 = vmatmul.f32.gmra.mxu0 %v1255
  %v1341 = vpop.f32.mrf.mxu0
  %v1342 = vadd.f32 0.0, %v1341
  %1343 = vmatmul.f32.gmra.mxu0 %v1258
  %v1344 = vpop.f32.mrf.mxu0
  %v1345 = vadd.f32 0.0, %v1344
  %1346 = vmatmul.f32.gmra.mxu0 %v1261
  %v1347 = vpop.f32.mrf.mxu0
  %v1348 = vadd.f32 0.0, %v1347
  %1349 = vdwg.mxu0
  %1350 = vmatpush.msra.mxu0 0.0
  %1351 = vmatpush.msra.mxu0 0.0
  %1352 = vmatpush.msra.mxu0 0.0
  %1353 = vmatpush.msra.mxu0 0.0
  %1354 = vmatpush.msra.mxu0 0.0
  %1355 = vmatpush.msra.mxu0 0.0
  %1356 = vmatpush.msra.mxu0 0.0
  %1357 = vmatpush.msra.mxu0 0.0
  %1358 = vmatpush.msra.mxu0 0.0
  %1359 = vmatpush.msra.mxu0 0.0
  %1360 = vmatpush.msra.mxu0 0.0
  %1361 = vmatpush.msra.mxu0 0.0
  %1362 = vmatpush.msra.mxu0 0.0
  %1363 = vmatpush.msra.mxu0 0.0
  %1364 = vmatpush.msra.mxu0 %v1250
  %1365 = vmatpush.msra.mxu0 %v1246
  %1366 = vmatmul.f32.gmra.mxu0 %v1252
  %v1367 = vpop.f32.mrf.mxu0
  %v1368 = vadd.f32 0.0, %v1367
  %1369 = vmatmul.f32.gmra.mxu0 %v1255
  %v1370 = vpop.f32.mrf.mxu0
  %v1371 = vadd.f32 0.0, %v1370
  %1372 = vmatmul.f32.gmra.mxu0 %v1258
  %v1373 = vpop.f32.mrf.mxu0
  %v1374 = vadd.f32 0.0, %v1373
  %1375 = vmatmul.f32.gmra.mxu0 %v1261
  %v1376 = vpop.f32.mrf.mxu0
  %v1377 = vadd.f32 0.0, %v1376
  %1378 = vdwg.mxu0
  %v1379 = vadd.f32 %v1180, %v1281
  %v1380 = vadd.f32 %v1181, %v1310
  %v1381 = vadd.f32 %v1182, %v1339
  %v1382 = vadd.f32 %v1183, %v1368
  %v1383 = vadd.f32 %v1184, %v1284
  %v1384 = vadd.f32 %v1185, %v1313
  %v1385 = vadd.f32 %v1186, %v1342
  %v1386 = vadd.f32 %v1187, %v1371
  %v1387 = vadd.f32 %v1188, %v1287
  %v1388 = vadd.f32 %v1189, %v1316
  %v1389 = vadd.f32 %v1190, %v1345
  %v1390 = vadd.f32 %v1191, %v1374
  %v1391 = vadd.f32 %v1192, %v1290
  %v1392 = vadd.f32 %v1193, %v1319
  %v1393 = vadd.f32 %v1194, %v1348
  %v1394 = vadd.f32 %v1195, %v1377
  %s1395 = scalar_lea.vmem %s7, 160
  %v1396 = vld [vmem:[%s1395] sm:$0xff]
  %v1397 = vld [vmem:[%s1395 + $0x8] sm:$0xff]
  %v1398 = vld [vmem:[%s1395 + $0x10] sm:$0xff]
  %v1399 = vld [vmem:[%s1395 + $0x18] sm:$0xff]
  %v1401 = vsel %vm405, %v1396, 0
  %v1404 = vsel %vm405, %v1397, 0
  %v1407 = vsel %vm405, %v1398, 0
  %v1410 = vsel %vm405, %v1399, 0
  %1412 = vmatpush.msra.mxu0 0.0
  %1413 = vmatpush.msra.mxu0 0.0
  %1414 = vmatpush.msra.mxu0 0.0
  %1415 = vmatpush.msra.mxu0 0.0
  %1416 = vmatpush.msra.mxu0 0.0
  %1417 = vmatpush.msra.mxu0 0.0
  %1418 = vmatpush.msra.mxu0 0.0
  %1419 = vmatpush.msra.mxu0 0.0
  %1420 = vmatpush.msra.mxu0 0.0
  %1421 = vmatpush.msra.mxu0 0.0
  %1422 = vmatpush.msra.mxu0 0.0
  %1423 = vmatpush.msra.mxu0 0.0
  %1424 = vmatpush.msra.mxu0 %v61
  %1425 = vmatpush.msra.mxu0 %v60
  %1426 = vmatpush.msra.mxu0 %v59
  %1427 = vmatpush.msra.mxu0 %v58
  %1428 = vmatmul.f32.gmra.mxu0 %v1401
  %v1429 = vpop.f32.mrf.mxu0
  %v1430 = vadd.f32 0.0, %v1429
  %1431 = vmatmul.f32.gmra.mxu0 %v1404
  %v1432 = vpop.f32.mrf.mxu0
  %v1433 = vadd.f32 0.0, %v1432
  %1434 = vmatmul.f32.gmra.mxu0 %v1407
  %v1435 = vpop.f32.mrf.mxu0
  %v1436 = vadd.f32 0.0, %v1435
  %1437 = vmatmul.f32.gmra.mxu0 %v1410
  %v1438 = vpop.f32.mrf.mxu0
  %v1439 = vadd.f32 0.0, %v1438
  %1440 = vdwg.mxu0
  %s1441 = scalar_lea.vmem %s2, 320
  %v1442 = vld [vmem:[%s1441] sm:$0xff]
  %v1443 = vld [vmem:[%s1441 + $0x8] sm:$0xff]
  %v1444 = vld [vmem:[%s1441 + $0x10] sm:$0xff]
  %v1445 = vld [vmem:[%s1441 + $0x18] sm:$0xff]
  %v1446 = vld [vmem:[%s1441 + $0x20] sm:$0xff]
  %v1447 = vld [vmem:[%s1441 + $0x28] sm:$0xff]
  %v1448 = vld [vmem:[%s1441 + $0x30] sm:$0xff]
  %v1449 = vld [vmem:[%s1441 + $0x38] sm:$0xff]
  %v1451 = vsel %vm156, %v1430, 0
  %v1454 = vsel %vm156, %v1433, 0
  %v1457 = vsel %vm156, %v1436, 0
  %v1460 = vsel %vm156, %v1439, 0
  %1462 = vmatpush.msra.mxu0 0.0
  %1463 = vmatpush.msra.mxu0 0.0
  %1464 = vmatpush.msra.mxu0 0.0
  %1465 = vmatpush.msra.mxu0 0.0
  %1466 = vmatpush.msra.mxu0 0.0
  %1467 = vmatpush.msra.mxu0 0.0
  %1468 = vmatpush.msra.mxu0 0.0
  %1469 = vmatpush.msra.mxu0 0.0
  %1470 = vmatpush.msra.mxu0 0.0
  %1471 = vmatpush.msra.mxu0 0.0
  %1472 = vmatpush.msra.mxu0 0.0
  %1473 = vmatpush.msra.mxu0 0.0
  %1474 = vmatpush.msra.mxu0 0.0
  %1475 = vmatpush.msra.mxu0 0.0
  %1476 = vmatpush.msra.mxu0 %v1446
  %1477 = vmatpush.msra.mxu0 %v1442
  %1478 = vmatmul.f32.gmra.mxu0 %v1451
  %v1479 = vpop.f32.mrf.mxu0
  %v1480 = vadd.f32 0.0, %v1479
  %1481 = vmatmul.f32.gmra.mxu0 %v1454
  %v1482 = vpop.f32.mrf.mxu0
  %v1483 = vadd.f32 0.0, %v1482
  %1484 = vmatmul.f32.gmra.mxu0 %v1457
  %v1485 = vpop.f32.mrf.mxu0
  %v1486 = vadd.f32 0.0, %v1485
  %1487 = vmatmul.f32.gmra.mxu0 %v1460
  %v1488 = vpop.f32.mrf.mxu0
  %v1489 = vadd.f32 0.0, %v1488
  %1490 = vdwg.mxu0
  %1491 = vmatpush.msra.mxu0 0.0
  %1492 = vmatpush.msra.mxu0 0.0
  %1493 = vmatpush.msra.mxu0 0.0
  %1494 = vmatpush.msra.mxu0 0.0
  %1495 = vmatpush.msra.mxu0 0.0
  %1496 = vmatpush.msra.mxu0 0.0
  %1497 = vmatpush.msra.mxu0 0.0
  %1498 = vmatpush.msra.mxu0 0.0
  %1499 = vmatpush.msra.mxu0 0.0
  %1500 = vmatpush.msra.mxu0 0.0
  %1501 = vmatpush.msra.mxu0 0.0
  %1502 = vmatpush.msra.mxu0 0.0
  %1503 = vmatpush.msra.mxu0 0.0
  %1504 = vmatpush.msra.mxu0 0.0
  %1505 = vmatpush.msra.mxu0 %v1447
  %1506 = vmatpush.msra.mxu0 %v1443
  %1507 = vmatmul.f32.gmra.mxu0 %v1451
  %v1508 = vpop.f32.mrf.mxu0
  %v1509 = vadd.f32 0.0, %v1508
  %1510 = vmatmul.f32.gmra.mxu0 %v1454
  %v1511 = vpop.f32.mrf.mxu0
  %v1512 = vadd.f32 0.0, %v1511
  %1513 = vmatmul.f32.gmra.mxu0 %v1457
  %v1514 = vpop.f32.mrf.mxu0
  %v1515 = vadd.f32 0.0, %v1514
  %1516 = vmatmul.f32.gmra.mxu0 %v1460
  %v1517 = vpop.f32.mrf.mxu0
  %v1518 = vadd.f32 0.0, %v1517
  %1519 = vdwg.mxu0
  %1520 = vmatpush.msra.mxu0 0.0
  %1521 = vmatpush.msra.mxu0 0.0
  %1522 = vmatpush.msra.mxu0 0.0
  %1523 = vmatpush.msra.mxu0 0.0
  %1524 = vmatpush.msra.mxu0 0.0
  %1525 = vmatpush.msra.mxu0 0.0
  %1526 = vmatpush.msra.mxu0 0.0
  %1527 = vmatpush.msra.mxu0 0.0
  %1528 = vmatpush.msra.mxu0 0.0
  %1529 = vmatpush.msra.mxu0 0.0
  %1530 = vmatpush.msra.mxu0 0.0
  %1531 = vmatpush.msra.mxu0 0.0
  %1532 = vmatpush.msra.mxu0 0.0
  %1533 = vmatpush.msra.mxu0 0.0
  %1534 = vmatpush.msra.mxu0 %v1448
  %1535 = vmatpush.msra.mxu0 %v1444
  %1536 = vmatmul.f32.gmra.mxu0 %v1451
  %v1537 = vpop.f32.mrf.mxu0
  %v1538 = vadd.f32 0.0, %v1537
  %1539 = vmatmul.f32.gmra.mxu0 %v1454
  %v1540 = vpop.f32.mrf.mxu0
  %v1541 = vadd.f32 0.0, %v1540
  %1542 = vmatmul.f32.gmra.mxu0 %v1457
  %v1543 = vpop.f32.mrf.mxu0
  %v1544 = vadd.f32 0.0, %v1543
  %1545 = vmatmul.f32.gmra.mxu0 %v1460
  %v1546 = vpop.f32.mrf.mxu0
  %v1547 = vadd.f32 0.0, %v1546
  %1548 = vdwg.mxu0
  %1549 = vmatpush.msra.mxu0 0.0
  %1550 = vmatpush.msra.mxu0 0.0
  %1551 = vmatpush.msra.mxu0 0.0
  %1552 = vmatpush.msra.mxu0 0.0
  %1553 = vmatpush.msra.mxu0 0.0
  %1554 = vmatpush.msra.mxu0 0.0
  %1555 = vmatpush.msra.mxu0 0.0
  %1556 = vmatpush.msra.mxu0 0.0
  %1557 = vmatpush.msra.mxu0 0.0
  %1558 = vmatpush.msra.mxu0 0.0
  %1559 = vmatpush.msra.mxu0 0.0
  %1560 = vmatpush.msra.mxu0 0.0
  %1561 = vmatpush.msra.mxu0 0.0
  %1562 = vmatpush.msra.mxu0 0.0
  %1563 = vmatpush.msra.mxu0 %v1449
  %1564 = vmatpush.msra.mxu0 %v1445
  %1565 = vmatmul.f32.gmra.mxu0 %v1451
  %v1566 = vpop.f32.mrf.mxu0
  %v1567 = vadd.f32 0.0, %v1566
  %1568 = vmatmul.f32.gmra.mxu0 %v1454
  %v1569 = vpop.f32.mrf.mxu0
  %v1570 = vadd.f32 0.0, %v1569
  %1571 = vmatmul.f32.gmra.mxu0 %v1457
  %v1572 = vpop.f32.mrf.mxu0
  %v1573 = vadd.f32 0.0, %v1572
  %1574 = vmatmul.f32.gmra.mxu0 %v1460
  %v1575 = vpop.f32.mrf.mxu0
  %v1576 = vadd.f32 0.0, %v1575
  %1577 = vdwg.mxu0
  %v1578 = vadd.f32 %v1379, %v1480
  %v1579 = vadd.f32 %v1380, %v1509
  %v1580 = vadd.f32 %v1381, %v1538
  %v1581 = vadd.f32 %v1382, %v1567
  %v1582 = vadd.f32 %v1383, %v1483
  %v1583 = vadd.f32 %v1384, %v1512
  %v1584 = vadd.f32 %v1385, %v1541
  %v1585 = vadd.f32 %v1386, %v1570
  %v1586 = vadd.f32 %v1387, %v1486
  %v1587 = vadd.f32 %v1388, %v1515
  %v1588 = vadd.f32 %v1389, %v1544
  %v1589 = vadd.f32 %v1390, %v1573
  %v1590 = vadd.f32 %v1391, %v1489
  %v1591 = vadd.f32 %v1392, %v1518
  %v1592 = vadd.f32 %v1393, %v1547
  %v1593 = vadd.f32 %v1394, %v1576
  %s1594 = scalar_lea.vmem %s7, 192
  %v1595 = vld [vmem:[%s1594] sm:$0xff]
  %v1596 = vld [vmem:[%s1594 + $0x8] sm:$0xff]
  %v1597 = vld [vmem:[%s1594 + $0x10] sm:$0xff]
  %v1598 = vld [vmem:[%s1594 + $0x18] sm:$0xff]
  %v1600 = vsel %vm405, %v1595, 0
  %v1603 = vsel %vm405, %v1596, 0
  %v1606 = vsel %vm405, %v1597, 0
  %v1609 = vsel %vm405, %v1598, 0
  %1611 = vmatpush.msra.mxu0 0.0
  %1612 = vmatpush.msra.mxu0 0.0
  %1613 = vmatpush.msra.mxu0 0.0
  %1614 = vmatpush.msra.mxu0 0.0
  %1615 = vmatpush.msra.mxu0 0.0
  %1616 = vmatpush.msra.mxu0 0.0
  %1617 = vmatpush.msra.mxu0 0.0
  %1618 = vmatpush.msra.mxu0 0.0
  %1619 = vmatpush.msra.mxu0 0.0
  %1620 = vmatpush.msra.mxu0 0.0
  %1621 = vmatpush.msra.mxu0 0.0
  %1622 = vmatpush.msra.mxu0 0.0
  %1623 = vmatpush.msra.mxu0 %v61
  %1624 = vmatpush.msra.mxu0 %v60
  %1625 = vmatpush.msra.mxu0 %v59
  %1626 = vmatpush.msra.mxu0 %v58
  %1627 = vmatmul.f32.gmra.mxu0 %v1600
  %v1628 = vpop.f32.mrf.mxu0
  %v1629 = vadd.f32 0.0, %v1628
  %1630 = vmatmul.f32.gmra.mxu0 %v1603
  %v1631 = vpop.f32.mrf.mxu0
  %v1632 = vadd.f32 0.0, %v1631
  %1633 = vmatmul.f32.gmra.mxu0 %v1606
  %v1634 = vpop.f32.mrf.mxu0
  %v1635 = vadd.f32 0.0, %v1634
  %1636 = vmatmul.f32.gmra.mxu0 %v1609
  %v1637 = vpop.f32.mrf.mxu0
  %v1638 = vadd.f32 0.0, %v1637
  %1639 = vdwg.mxu0
  %s1640 = scalar_lea.vmem %s2, 384
  %v1641 = vld [vmem:[%s1640] sm:$0xff]
  %v1642 = vld [vmem:[%s1640 + $0x8] sm:$0xff]
  %v1643 = vld [vmem:[%s1640 + $0x10] sm:$0xff]
  %v1644 = vld [vmem:[%s1640 + $0x18] sm:$0xff]
  %v1645 = vld [vmem:[%s1640 + $0x20] sm:$0xff]
  %v1646 = vld [vmem:[%s1640 + $0x28] sm:$0xff]
  %v1647 = vld [vmem:[%s1640 + $0x30] sm:$0xff]
  %v1648 = vld [vmem:[%s1640 + $0x38] sm:$0xff]
  %v1650 = vsel %vm156, %v1629, 0
  %v1653 = vsel %vm156, %v1632, 0
  %v1656 = vsel %vm156, %v1635, 0
  %v1659 = vsel %vm156, %v1638, 0
  %1661 = vmatpush.msra.mxu0 0.0
  %1662 = vmatpush.msra.mxu0 0.0
  %1663 = vmatpush.msra.mxu0 0.0
  %1664 = vmatpush.msra.mxu0 0.0
  %1665 = vmatpush.msra.mxu0 0.0
  %1666 = vmatpush.msra.mxu0 0.0
  %1667 = vmatpush.msra.mxu0 0.0
  %1668 = vmatpush.msra.mxu0 0.0
  %1669 = vmatpush.msra.mxu0 0.0
  %1670 = vmatpush.msra.mxu0 0.0
  %1671 = vmatpush.msra.mxu0 0.0
  %1672 = vmatpush.msra.mxu0 0.0
  %1673 = vmatpush.msra.mxu0 0.0
  %1674 = vmatpush.msra.mxu0 0.0
  %1675 = vmatpush.msra.mxu0 %v1645
  %1676 = vmatpush.msra.mxu0 %v1641
  %1677 = vmatmul.f32.gmra.mxu0 %v1650
  %v1678 = vpop.f32.mrf.mxu0
  %v1679 = vadd.f32 0.0, %v1678
  %1680 = vmatmul.f32.gmra.mxu0 %v1653
  %v1681 = vpop.f32.mrf.mxu0
  %v1682 = vadd.f32 0.0, %v1681
  %1683 = vmatmul.f32.gmra.mxu0 %v1656
  %v1684 = vpop.f32.mrf.mxu0
  %v1685 = vadd.f32 0.0, %v1684
  %1686 = vmatmul.f32.gmra.mxu0 %v1659
  %v1687 = vpop.f32.mrf.mxu0
  %v1688 = vadd.f32 0.0, %v1687
  %1689 = vdwg.mxu0
  %1690 = vmatpush.msra.mxu0 0.0
  %1691 = vmatpush.msra.mxu0 0.0
  %1692 = vmatpush.msra.mxu0 0.0
  %1693 = vmatpush.msra.mxu0 0.0
  %1694 = vmatpush.msra.mxu0 0.0
  %1695 = vmatpush.msra.mxu0 0.0
  %1696 = vmatpush.msra.mxu0 0.0
  %1697 = vmatpush.msra.mxu0 0.0
  %1698 = vmatpush.msra.mxu0 0.0
  %1699 = vmatpush.msra.mxu0 0.0
  %1700 = vmatpush.msra.mxu0 0.0
  %1701 = vmatpush.msra.mxu0 0.0
  %1702 = vmatpush.msra.mxu0 0.0
  %1703 = vmatpush.msra.mxu0 0.0
  %1704 = vmatpush.msra.mxu0 %v1646
  %1705 = vmatpush.msra.mxu0 %v1642
  %1706 = vmatmul.f32.gmra.mxu0 %v1650
  %v1707 = vpop.f32.mrf.mxu0
  %v1708 = vadd.f32 0.0, %v1707
  %1709 = vmatmul.f32.gmra.mxu0 %v1653
  %v1710 = vpop.f32.mrf.mxu0
  %v1711 = vadd.f32 0.0, %v1710
  %1712 = vmatmul.f32.gmra.mxu0 %v1656
  %v1713 = vpop.f32.mrf.mxu0
  %v1714 = vadd.f32 0.0, %v1713
  %1715 = vmatmul.f32.gmra.mxu0 %v1659
  %v1716 = vpop.f32.mrf.mxu0
  %v1717 = vadd.f32 0.0, %v1716
  %1718 = vdwg.mxu0
  %1719 = vmatpush.msra.mxu0 0.0
  %1720 = vmatpush.msra.mxu0 0.0
  %1721 = vmatpush.msra.mxu0 0.0
  %1722 = vmatpush.msra.mxu0 0.0
  %1723 = vmatpush.msra.mxu0 0.0
  %1724 = vmatpush.msra.mxu0 0.0
  %1725 = vmatpush.msra.mxu0 0.0
  %1726 = vmatpush.msra.mxu0 0.0
  %1727 = vmatpush.msra.mxu0 0.0
  %1728 = vmatpush.msra.mxu0 0.0
  %1729 = vmatpush.msra.mxu0 0.0
  %1730 = vmatpush.msra.mxu0 0.0
  %1731 = vmatpush.msra.mxu0 0.0
  %1732 = vmatpush.msra.mxu0 0.0
  %1733 = vmatpush.msra.mxu0 %v1647
  %1734 = vmatpush.msra.mxu0 %v1643
  %1735 = vmatmul.f32.gmra.mxu0 %v1650
  %v1736 = vpop.f32.mrf.mxu0
  %v1737 = vadd.f32 0.0, %v1736
  %1738 = vmatmul.f32.gmra.mxu0 %v1653
  %v1739 = vpop.f32.mrf.mxu0
  %v1740 = vadd.f32 0.0, %v1739
  %1741 = vmatmul.f32.gmra.mxu0 %v1656
  %v1742 = vpop.f32.mrf.mxu0
  %v1743 = vadd.f32 0.0, %v1742
  %1744 = vmatmul.f32.gmra.mxu0 %v1659
  %v1745 = vpop.f32.mrf.mxu0
  %v1746 = vadd.f32 0.0, %v1745
  %1747 = vdwg.mxu0
  %1748 = vmatpush.msra.mxu0 0.0
  %1749 = vmatpush.msra.mxu0 0.0
  %1750 = vmatpush.msra.mxu0 0.0
  %1751 = vmatpush.msra.mxu0 0.0
  %1752 = vmatpush.msra.mxu0 0.0
  %1753 = vmatpush.msra.mxu0 0.0
  %1754 = vmatpush.msra.mxu0 0.0
  %1755 = vmatpush.msra.mxu0 0.0
  %1756 = vmatpush.msra.mxu0 0.0
  %1757 = vmatpush.msra.mxu0 0.0
  %1758 = vmatpush.msra.mxu0 0.0
  %1759 = vmatpush.msra.mxu0 0.0
  %1760 = vmatpush.msra.mxu0 0.0
  %1761 = vmatpush.msra.mxu0 0.0
  %1762 = vmatpush.msra.mxu0 %v1648
  %1763 = vmatpush.msra.mxu0 %v1644
  %1764 = vmatmul.f32.gmra.mxu0 %v1650
  %v1765 = vpop.f32.mrf.mxu0
  %v1766 = vadd.f32 0.0, %v1765
  %1767 = vmatmul.f32.gmra.mxu0 %v1653
  %v1768 = vpop.f32.mrf.mxu0
  %v1769 = vadd.f32 0.0, %v1768
  %1770 = vmatmul.f32.gmra.mxu0 %v1656
  %v1771 = vpop.f32.mrf.mxu0
  %v1772 = vadd.f32 0.0, %v1771
  %1773 = vmatmul.f32.gmra.mxu0 %v1659
  %v1774 = vpop.f32.mrf.mxu0
  %v1775 = vadd.f32 0.0, %v1774
  %1776 = vdwg.mxu0
  %v1777 = vadd.f32 %v1578, %v1679
  %v1778 = vadd.f32 %v1579, %v1708
  %v1779 = vadd.f32 %v1580, %v1737
  %v1780 = vadd.f32 %v1581, %v1766
  %v1781 = vadd.f32 %v1582, %v1682
  %v1782 = vadd.f32 %v1583, %v1711
  %v1783 = vadd.f32 %v1584, %v1740
  %v1784 = vadd.f32 %v1585, %v1769
  %v1785 = vadd.f32 %v1586, %v1685
  %v1786 = vadd.f32 %v1587, %v1714
  %v1787 = vadd.f32 %v1588, %v1743
  %v1788 = vadd.f32 %v1589, %v1772
  %v1789 = vadd.f32 %v1590, %v1688
  %v1790 = vadd.f32 %v1591, %v1717
  %v1791 = vadd.f32 %v1592, %v1746
  %v1792 = vadd.f32 %v1593, %v1775
  %s1793 = scalar_lea.vmem %s7, 224
  %v1794 = vld [vmem:[%s1793] sm:$0xff]
  %v1795 = vld [vmem:[%s1793 + $0x8] sm:$0xff]
  %v1796 = vld [vmem:[%s1793 + $0x10] sm:$0xff]
  %v1797 = vld [vmem:[%s1793 + $0x18] sm:$0xff]
  %v1799 = vsel %vm405, %v1794, 0
  %v1802 = vsel %vm405, %v1795, 0
  %v1805 = vsel %vm405, %v1796, 0
  %v1808 = vsel %vm405, %v1797, 0
  %1810 = vmatpush.msra.mxu0 0.0
  %1811 = vmatpush.msra.mxu0 0.0
  %1812 = vmatpush.msra.mxu0 0.0
  %1813 = vmatpush.msra.mxu0 0.0
  %1814 = vmatpush.msra.mxu0 0.0
  %1815 = vmatpush.msra.mxu0 0.0
  %1816 = vmatpush.msra.mxu0 0.0
  %1817 = vmatpush.msra.mxu0 0.0
  %1818 = vmatpush.msra.mxu0 0.0
  %1819 = vmatpush.msra.mxu0 0.0
  %1820 = vmatpush.msra.mxu0 0.0
  %1821 = vmatpush.msra.mxu0 0.0
  %1822 = vmatpush.msra.mxu0 %v61
  %1823 = vmatpush.msra.mxu0 %v60
  %1824 = vmatpush.msra.mxu0 %v59
  %1825 = vmatpush.msra.mxu0 %v58
  %1826 = vmatmul.f32.gmra.mxu0 %v1799
  %v1827 = vpop.f32.mrf.mxu0
  %v1828 = vadd.f32 0.0, %v1827
  %1829 = vmatmul.f32.gmra.mxu0 %v1802
  %v1830 = vpop.f32.mrf.mxu0
  %v1831 = vadd.f32 0.0, %v1830
  %1832 = vmatmul.f32.gmra.mxu0 %v1805
  %v1833 = vpop.f32.mrf.mxu0
  %v1834 = vadd.f32 0.0, %v1833
  %1835 = vmatmul.f32.gmra.mxu0 %v1808
  %v1836 = vpop.f32.mrf.mxu0
  %v1837 = vadd.f32 0.0, %v1836
  %1838 = vdwg.mxu0
  %s1839 = scalar_lea.vmem %s2, 448
  %v1840 = vld [vmem:[%s1839] sm:$0xff]
  %v1841 = vld [vmem:[%s1839 + $0x8] sm:$0xff]
  %v1842 = vld [vmem:[%s1839 + $0x10] sm:$0xff]
  %v1843 = vld [vmem:[%s1839 + $0x18] sm:$0xff]
  %v1844 = vld [vmem:[%s1839 + $0x20] sm:$0xff]
  %v1845 = vld [vmem:[%s1839 + $0x28] sm:$0xff]
  %v1846 = vld [vmem:[%s1839 + $0x30] sm:$0xff]
  %v1847 = vld [vmem:[%s1839 + $0x38] sm:$0xff]
  %v1849 = vsel %vm156, %v1828, 0
  %v1852 = vsel %vm156, %v1831, 0
  %v1855 = vsel %vm156, %v1834, 0
  %v1858 = vsel %vm156, %v1837, 0
  %1860 = vmatpush.msra.mxu0 0.0
  %1861 = vmatpush.msra.mxu0 0.0
  %1862 = vmatpush.msra.mxu0 0.0
  %1863 = vmatpush.msra.mxu0 0.0
  %1864 = vmatpush.msra.mxu0 0.0
  %1865 = vmatpush.msra.mxu0 0.0
  %1866 = vmatpush.msra.mxu0 0.0
  %1867 = vmatpush.msra.mxu0 0.0
  %1868 = vmatpush.msra.mxu0 0.0
  %1869 = vmatpush.msra.mxu0 0.0
  %1870 = vmatpush.msra.mxu0 0.0
  %1871 = vmatpush.msra.mxu0 0.0
  %1872 = vmatpush.msra.mxu0 0.0
  %1873 = vmatpush.msra.mxu0 0.0
  %1874 = vmatpush.msra.mxu0 %v1844
  %1875 = vmatpush.msra.mxu0 %v1840
  %1876 = vmatmul.f32.gmra.mxu0 %v1849
  %v1877 = vpop.f32.mrf.mxu0
  %v1878 = vadd.f32 0.0, %v1877
  %1879 = vmatmul.f32.gmra.mxu0 %v1852
  %v1880 = vpop.f32.mrf.mxu0
  %v1881 = vadd.f32 0.0, %v1880
  %1882 = vmatmul.f32.gmra.mxu0 %v1855
  %v1883 = vpop.f32.mrf.mxu0
  %v1884 = vadd.f32 0.0, %v1883
  %1885 = vmatmul.f32.gmra.mxu0 %v1858
  %v1886 = vpop.f32.mrf.mxu0
  %v1887 = vadd.f32 0.0, %v1886
  %1888 = vdwg.mxu0
  %1889 = vmatpush.msra.mxu0 0.0
  %1890 = vmatpush.msra.mxu0 0.0
  %1891 = vmatpush.msra.mxu0 0.0
  %1892 = vmatpush.msra.mxu0 0.0
  %1893 = vmatpush.msra.mxu0 0.0
  %1894 = vmatpush.msra.mxu0 0.0
  %1895 = vmatpush.msra.mxu0 0.0
  %1896 = vmatpush.msra.mxu0 0.0
  %1897 = vmatpush.msra.mxu0 0.0
  %1898 = vmatpush.msra.mxu0 0.0
  %1899 = vmatpush.msra.mxu0 0.0
  %1900 = vmatpush.msra.mxu0 0.0
  %1901 = vmatpush.msra.mxu0 0.0
  %1902 = vmatpush.msra.mxu0 0.0
  %1903 = vmatpush.msra.mxu0 %v1845
  %1904 = vmatpush.msra.mxu0 %v1841
  %1905 = vmatmul.f32.gmra.mxu0 %v1849
  %v1906 = vpop.f32.mrf.mxu0
  %v1907 = vadd.f32 0.0, %v1906
  %1908 = vmatmul.f32.gmra.mxu0 %v1852
  %v1909 = vpop.f32.mrf.mxu0
  %v1910 = vadd.f32 0.0, %v1909
  %1911 = vmatmul.f32.gmra.mxu0 %v1855
  %v1912 = vpop.f32.mrf.mxu0
  %v1913 = vadd.f32 0.0, %v1912
  %1914 = vmatmul.f32.gmra.mxu0 %v1858
  %v1915 = vpop.f32.mrf.mxu0
  %v1916 = vadd.f32 0.0, %v1915
  %1917 = vdwg.mxu0
  %1918 = vmatpush.msra.mxu0 0.0
  %1919 = vmatpush.msra.mxu0 0.0
  %1920 = vmatpush.msra.mxu0 0.0
  %1921 = vmatpush.msra.mxu0 0.0
  %1922 = vmatpush.msra.mxu0 0.0
  %1923 = vmatpush.msra.mxu0 0.0
  %1924 = vmatpush.msra.mxu0 0.0
  %1925 = vmatpush.msra.mxu0 0.0
  %1926 = vmatpush.msra.mxu0 0.0
  %1927 = vmatpush.msra.mxu0 0.0
  %1928 = vmatpush.msra.mxu0 0.0
  %1929 = vmatpush.msra.mxu0 0.0
  %1930 = vmatpush.msra.mxu0 0.0
  %1931 = vmatpush.msra.mxu0 0.0
  %1932 = vmatpush.msra.mxu0 %v1846
  %1933 = vmatpush.msra.mxu0 %v1842
  %1934 = vmatmul.f32.gmra.mxu0 %v1849
  %v1935 = vpop.f32.mrf.mxu0
  %v1936 = vadd.f32 0.0, %v1935
  %1937 = vmatmul.f32.gmra.mxu0 %v1852
  %v1938 = vpop.f32.mrf.mxu0
  %v1939 = vadd.f32 0.0, %v1938
  %1940 = vmatmul.f32.gmra.mxu0 %v1855
  %v1941 = vpop.f32.mrf.mxu0
  %v1942 = vadd.f32 0.0, %v1941
  %1943 = vmatmul.f32.gmra.mxu0 %v1858
  %v1944 = vpop.f32.mrf.mxu0
  %v1945 = vadd.f32 0.0, %v1944
  %1946 = vdwg.mxu0
  %1947 = vmatpush.msra.mxu0 0.0
  %1948 = vmatpush.msra.mxu0 0.0
  %1949 = vmatpush.msra.mxu0 0.0
  %1950 = vmatpush.msra.mxu0 0.0
  %1951 = vmatpush.msra.mxu0 0.0
  %1952 = vmatpush.msra.mxu0 0.0
  %1953 = vmatpush.msra.mxu0 0.0
  %1954 = vmatpush.msra.mxu0 0.0
  %1955 = vmatpush.msra.mxu0 0.0
  %1956 = vmatpush.msra.mxu0 0.0
  %1957 = vmatpush.msra.mxu0 0.0
  %1958 = vmatpush.msra.mxu0 0.0
  %1959 = vmatpush.msra.mxu0 0.0
  %1960 = vmatpush.msra.mxu0 0.0
  %1961 = vmatpush.msra.mxu0 %v1847
  %1962 = vmatpush.msra.mxu0 %v1843
  %1963 = vmatmul.f32.gmra.mxu0 %v1849
  %v1964 = vpop.f32.mrf.mxu0
  %v1965 = vadd.f32 0.0, %v1964
  %1966 = vmatmul.f32.gmra.mxu0 %v1852
  %v1967 = vpop.f32.mrf.mxu0
  %v1968 = vadd.f32 0.0, %v1967
  %1969 = vmatmul.f32.gmra.mxu0 %v1855
  %v1970 = vpop.f32.mrf.mxu0
  %v1971 = vadd.f32 0.0, %v1970
  %1972 = vmatmul.f32.gmra.mxu0 %v1858
  %v1973 = vpop.f32.mrf.mxu0
  %v1974 = vadd.f32 0.0, %v1973
  %1975 = vdwg.mxu0
  %v1976 = vadd.f32 %v1777, %v1878
  %v1977 = vadd.f32 %v1778, %v1907
  %v1978 = vadd.f32 %v1779, %v1936
  %v1979 = vadd.f32 %v1780, %v1965
  %v1980 = vadd.f32 %v1781, %v1881
  %v1981 = vadd.f32 %v1782, %v1910
  %v1982 = vadd.f32 %v1783, %v1939
  %v1983 = vadd.f32 %v1784, %v1968
  %v1984 = vadd.f32 %v1785, %v1884
  %v1985 = vadd.f32 %v1786, %v1913
  %v1986 = vadd.f32 %v1787, %v1942
  %v1987 = vadd.f32 %v1788, %v1971
  %v1988 = vadd.f32 %v1789, %v1887
  %v1989 = vadd.f32 %v1790, %v1916
  %v1990 = vadd.f32 %v1791, %v1945
  %v1991 = vadd.f32 %v1792, %v1974
  %s1992 = scalar_lea.vmem %s7, 256
  %v1993 = vld [vmem:[%s1992] sm:$0xff]
  %v1994 = vld [vmem:[%s1992 + $0x8] sm:$0xff]
  %v1995 = vld [vmem:[%s1992 + $0x10] sm:$0xff]
  %v1996 = vld [vmem:[%s1992 + $0x18] sm:$0xff]
  %v1998 = vsel %vm405, %v1993, 0
  %v2001 = vsel %vm405, %v1994, 0
  %v2004 = vsel %vm405, %v1995, 0
  %v2007 = vsel %vm405, %v1996, 0
  %2009 = vmatpush.msra.mxu0 0.0
  %2010 = vmatpush.msra.mxu0 0.0
  %2011 = vmatpush.msra.mxu0 0.0
  %2012 = vmatpush.msra.mxu0 0.0
  %2013 = vmatpush.msra.mxu0 0.0
  %2014 = vmatpush.msra.mxu0 0.0
  %2015 = vmatpush.msra.mxu0 0.0
  %2016 = vmatpush.msra.mxu0 0.0
  %2017 = vmatpush.msra.mxu0 0.0
  %2018 = vmatpush.msra.mxu0 0.0
  %2019 = vmatpush.msra.mxu0 0.0
  %2020 = vmatpush.msra.mxu0 0.0
  %2021 = vmatpush.msra.mxu0 %v61
  %2022 = vmatpush.msra.mxu0 %v60
  %2023 = vmatpush.msra.mxu0 %v59
  %2024 = vmatpush.msra.mxu0 %v58
  %2025 = vmatmul.f32.gmra.mxu0 %v1998
  %v2026 = vpop.f32.mrf.mxu0
  %v2027 = vadd.f32 0.0, %v2026
  %2028 = vmatmul.f32.gmra.mxu0 %v2001
  %v2029 = vpop.f32.mrf.mxu0
  %v2030 = vadd.f32 0.0, %v2029
  %2031 = vmatmul.f32.gmra.mxu0 %v2004
  %v2032 = vpop.f32.mrf.mxu0
  %v2033 = vadd.f32 0.0, %v2032
  %2034 = vmatmul.f32.gmra.mxu0 %v2007
  %v2035 = vpop.f32.mrf.mxu0
  %v2036 = vadd.f32 0.0, %v2035
  %2037 = vdwg.mxu0
  %s2038 = scalar_lea.vmem %s2, 512
  %v2039 = vld [vmem:[%s2038] sm:$0xff]
  %v2040 = vld [vmem:[%s2038 + $0x8] sm:$0xff]
  %v2041 = vld [vmem:[%s2038 + $0x10] sm:$0xff]
  %v2042 = vld [vmem:[%s2038 + $0x18] sm:$0xff]
  %v2043 = vld [vmem:[%s2038 + $0x20] sm:$0xff]
  %v2044 = vld [vmem:[%s2038 + $0x28] sm:$0xff]
  %v2045 = vld [vmem:[%s2038 + $0x30] sm:$0xff]
  %v2046 = vld [vmem:[%s2038 + $0x38] sm:$0xff]
  %v2048 = vsel %vm156, %v2027, 0
  %v2051 = vsel %vm156, %v2030, 0
  %v2054 = vsel %vm156, %v2033, 0
  %v2057 = vsel %vm156, %v2036, 0
  %2059 = vmatpush.msra.mxu0 0.0
  %2060 = vmatpush.msra.mxu0 0.0
  %2061 = vmatpush.msra.mxu0 0.0
  %2062 = vmatpush.msra.mxu0 0.0
  %2063 = vmatpush.msra.mxu0 0.0
  %2064 = vmatpush.msra.mxu0 0.0
  %2065 = vmatpush.msra.mxu0 0.0
  %2066 = vmatpush.msra.mxu0 0.0
  %2067 = vmatpush.msra.mxu0 0.0
  %2068 = vmatpush.msra.mxu0 0.0
  %2069 = vmatpush.msra.mxu0 0.0
  %2070 = vmatpush.msra.mxu0 0.0
  %2071 = vmatpush.msra.mxu0 0.0
  %2072 = vmatpush.msra.mxu0 0.0
  %2073 = vmatpush.msra.mxu0 %v2043
  %2074 = vmatpush.msra.mxu0 %v2039
  %2075 = vmatmul.f32.gmra.mxu0 %v2048
  %v2076 = vpop.f32.mrf.mxu0
  %v2077 = vadd.f32 0.0, %v2076
  %2078 = vmatmul.f32.gmra.mxu0 %v2051
  %v2079 = vpop.f32.mrf.mxu0
  %v2080 = vadd.f32 0.0, %v2079
  %2081 = vmatmul.f32.gmra.mxu0 %v2054
  %v2082 = vpop.f32.mrf.mxu0
  %v2083 = vadd.f32 0.0, %v2082
  %2084 = vmatmul.f32.gmra.mxu0 %v2057
  %v2085 = vpop.f32.mrf.mxu0
  %v2086 = vadd.f32 0.0, %v2085
  %2087 = vdwg.mxu0
  %2088 = vmatpush.msra.mxu0 0.0
  %2089 = vmatpush.msra.mxu0 0.0
  %2090 = vmatpush.msra.mxu0 0.0
  %2091 = vmatpush.msra.mxu0 0.0
  %2092 = vmatpush.msra.mxu0 0.0
  %2093 = vmatpush.msra.mxu0 0.0
  %2094 = vmatpush.msra.mxu0 0.0
  %2095 = vmatpush.msra.mxu0 0.0
  %2096 = vmatpush.msra.mxu0 0.0
  %2097 = vmatpush.msra.mxu0 0.0
  %2098 = vmatpush.msra.mxu0 0.0
  %2099 = vmatpush.msra.mxu0 0.0
  %2100 = vmatpush.msra.mxu0 0.0
  %2101 = vmatpush.msra.mxu0 0.0
  %2102 = vmatpush.msra.mxu0 %v2044
  %2103 = vmatpush.msra.mxu0 %v2040
  %2104 = vmatmul.f32.gmra.mxu0 %v2048
  %v2105 = vpop.f32.mrf.mxu0
  %v2106 = vadd.f32 0.0, %v2105
  %2107 = vmatmul.f32.gmra.mxu0 %v2051
  %v2108 = vpop.f32.mrf.mxu0
  %v2109 = vadd.f32 0.0, %v2108
  %2110 = vmatmul.f32.gmra.mxu0 %v2054
  %v2111 = vpop.f32.mrf.mxu0
  %v2112 = vadd.f32 0.0, %v2111
  %2113 = vmatmul.f32.gmra.mxu0 %v2057
  %v2114 = vpop.f32.mrf.mxu0
  %v2115 = vadd.f32 0.0, %v2114
  %2116 = vdwg.mxu0
  %2117 = vmatpush.msra.mxu0 0.0
  %2118 = vmatpush.msra.mxu0 0.0
  %2119 = vmatpush.msra.mxu0 0.0
  %2120 = vmatpush.msra.mxu0 0.0
  %2121 = vmatpush.msra.mxu0 0.0
  %2122 = vmatpush.msra.mxu0 0.0
  %2123 = vmatpush.msra.mxu0 0.0
  %2124 = vmatpush.msra.mxu0 0.0
  %2125 = vmatpush.msra.mxu0 0.0
  %2126 = vmatpush.msra.mxu0 0.0
  %2127 = vmatpush.msra.mxu0 0.0
  %2128 = vmatpush.msra.mxu0 0.0
  %2129 = vmatpush.msra.mxu0 0.0
  %2130 = vmatpush.msra.mxu0 0.0
  %2131 = vmatpush.msra.mxu0 %v2045
  %2132 = vmatpush.msra.mxu0 %v2041
  %2133 = vmatmul.f32.gmra.mxu0 %v2048
  %v2134 = vpop.f32.mrf.mxu0
  %v2135 = vadd.f32 0.0, %v2134
  %2136 = vmatmul.f32.gmra.mxu0 %v2051
  %v2137 = vpop.f32.mrf.mxu0
  %v2138 = vadd.f32 0.0, %v2137
  %2139 = vmatmul.f32.gmra.mxu0 %v2054
  %v2140 = vpop.f32.mrf.mxu0
  %v2141 = vadd.f32 0.0, %v2140
  %2142 = vmatmul.f32.gmra.mxu0 %v2057
  %v2143 = vpop.f32.mrf.mxu0
  %v2144 = vadd.f32 0.0, %v2143
  %2145 = vdwg.mxu0
  %2146 = vmatpush.msra.mxu0 0.0
  %2147 = vmatpush.msra.mxu0 0.0
  %2148 = vmatpush.msra.mxu0 0.0
  %2149 = vmatpush.msra.mxu0 0.0
  %2150 = vmatpush.msra.mxu0 0.0
  %2151 = vmatpush.msra.mxu0 0.0
  %2152 = vmatpush.msra.mxu0 0.0
  %2153 = vmatpush.msra.mxu0 0.0
  %2154 = vmatpush.msra.mxu0 0.0
  %2155 = vmatpush.msra.mxu0 0.0
  %2156 = vmatpush.msra.mxu0 0.0
  %2157 = vmatpush.msra.mxu0 0.0
  %2158 = vmatpush.msra.mxu0 0.0
  %2159 = vmatpush.msra.mxu0 0.0
  %2160 = vmatpush.msra.mxu0 %v2046
  %2161 = vmatpush.msra.mxu0 %v2042
  %2162 = vmatmul.f32.gmra.mxu0 %v2048
  %v2163 = vpop.f32.mrf.mxu0
  %v2164 = vadd.f32 0.0, %v2163
  %2165 = vmatmul.f32.gmra.mxu0 %v2051
  %v2166 = vpop.f32.mrf.mxu0
  %v2167 = vadd.f32 0.0, %v2166
  %2168 = vmatmul.f32.gmra.mxu0 %v2054
  %v2169 = vpop.f32.mrf.mxu0
  %v2170 = vadd.f32 0.0, %v2169
  %2171 = vmatmul.f32.gmra.mxu0 %v2057
  %v2172 = vpop.f32.mrf.mxu0
  %v2173 = vadd.f32 0.0, %v2172
  %2174 = vdwg.mxu0
  %v2175 = vadd.f32 %v1976, %v2077
  %v2176 = vadd.f32 %v1977, %v2106
  %v2177 = vadd.f32 %v1978, %v2135
  %v2178 = vadd.f32 %v1979, %v2164
  %v2179 = vadd.f32 %v1980, %v2080
  %v2180 = vadd.f32 %v1981, %v2109
  %v2181 = vadd.f32 %v1982, %v2138
  %v2182 = vadd.f32 %v1983, %v2167
  %v2183 = vadd.f32 %v1984, %v2083
  %v2184 = vadd.f32 %v1985, %v2112
  %v2185 = vadd.f32 %v1986, %v2141
  %v2186 = vadd.f32 %v1987, %v2170
  %v2187 = vadd.f32 %v1988, %v2086
  %v2188 = vadd.f32 %v1989, %v2115
  %v2189 = vadd.f32 %v1990, %v2144
  %v2190 = vadd.f32 %v1991, %v2173
  %v2191 = vld [vmem:[%s4] sm:$0xff]
  %v2192 = vld [vmem:[%s4 + $0x8] sm:$0xff]
  %v2193 = vld [vmem:[%s4 + $0x10] sm:$0xff]
  %v2194 = vld [vmem:[%s4 + $0x18] sm:$0xff]
  %v2195 = vmul.f32 %v2191, %v62
  %v2196 = vmul.f32 %v2192, %v63
  %v2197 = vmul.f32 %v2193, %v64
  %v2198 = vmul.f32 %v2194, %v65
  %v2199 = vadd.f32 %v2175, %v2195
  %v2200 = vadd.f32 %v2179, %v2196
  %v2201 = vadd.f32 %v2183, %v2197
  %v2202 = vadd.f32 %v2187, %v2198
  %v2203 = vxor.u32 %v2199, 2147483648
  %v2204 = vxor.u32 %v2200, 2147483648
  %v2205 = vxor.u32 %v2201, 2147483648
  %v2206 = vxor.u32 %v2202, 2147483648
  %v2207 = vmul.f32 %v2203, 1.442695
  %v2208 = vpow.pop %v2207
  %v2209 = vmul.f32 %v2204, 1.442695
  %v2210 = vpow.pop %v2209
  %v2211 = vmul.f32 %v2205, 1.442695
  %v2212 = vpow.pop %v2211
  %v2213 = vmul.f32 %v2206, 1.442695
  %v2214 = vpow.pop %v2213
  %v2215 = vadd.f32 %v2208, 1.0
  %v2216 = vadd.f32 %v2210, 1.0
  %v2217 = vadd.f32 %v2212, 1.0
  %v2218 = vadd.f32 %v2214, 1.0
  %v2219 = vrcp.pop %v2215
  %v2220 = vmul.f32 %v2215, %v2219
  %v2221 = vsub.f32 1.0, %v2220
  %v2222 = vmul.f32 %v2219, %v2221
  %v2223 = vadd.f32 %v2219, %v2222
  %vm2224 = vweird.f32 %v2215
  %vm2225 = vweird.f32 %v2219
  %vm2226 = vmor %vm2224, %vm2225
  %v2227 = vsel %vm2226, %v2219, %v2223
  %v2228 = vand.u32 2147483647, %v2215
  %vm2229 = vcmp.eq.f32.partialorder %v2228, 8.507059e+37
  %v2230 = vand.u32 %v2215, 2147483648
  %v2231 = vor.u32 1.1754944e-38, %v2230
  %v2232 = vsel %vm2229, %v2231, %v2227
  %v2233 = vmul.f32 1.0, %v2232
  %v2234 = vrcp.pop %v2216
  %v2235 = vmul.f32 %v2216, %v2234
  %v2236 = vsub.f32 1.0, %v2235
  %v2237 = vmul.f32 %v2234, %v2236
  %v2238 = vadd.f32 %v2234, %v2237
  %vm2239 = vweird.f32 %v2216
  %vm2240 = vweird.f32 %v2234
  %vm2241 = vmor %vm2239, %vm2240
  %v2242 = vsel %vm2241, %v2234, %v2238
  %v2243 = vand.u32 2147483647, %v2216
  %vm2244 = vcmp.eq.f32.partialorder %v2243, 8.507059e+37
  %v2245 = vand.u32 %v2216, 2147483648
  %v2246 = vor.u32 1.1754944e-38, %v2245
  %v2247 = vsel %vm2244, %v2246, %v2242
  %v2248 = vmul.f32 1.0, %v2247
  %v2249 = vrcp.pop %v2217
  %v2250 = vmul.f32 %v2217, %v2249
  %v2251 = vsub.f32 1.0, %v2250
  %v2252 = vmul.f32 %v2249, %v2251
  %v2253 = vadd.f32 %v2249, %v2252
  %vm2254 = vweird.f32 %v2217
  %vm2255 = vweird.f32 %v2249
  %vm2256 = vmor %vm2254, %vm2255
  %v2257 = vsel %vm2256, %v2249, %v2253
  %v2258 = vand.u32 2147483647, %v2217
  %vm2259 = vcmp.eq.f32.partialorder %v2258, 8.507059e+37
  %v2260 = vand.u32 %v2217, 2147483648
  %v2261 = vor.u32 1.1754944e-38, %v2260
  %v2262 = vsel %vm2259, %v2261, %v2257
  %v2263 = vmul.f32 1.0, %v2262
  %v2264 = vrcp.pop %v2218
  %v2265 = vmul.f32 %v2218, %v2264
  %v2266 = vsub.f32 1.0, %v2265
  %v2267 = vmul.f32 %v2264, %v2266
  %v2268 = vadd.f32 %v2264, %v2267
  %vm2269 = vweird.f32 %v2218
  %vm2270 = vweird.f32 %v2264
  %vm2271 = vmor %vm2269, %vm2270
  %v2272 = vsel %vm2271, %v2264, %v2268
  %v2273 = vand.u32 2147483647, %v2218
  %vm2274 = vcmp.eq.f32.partialorder %v2273, 8.507059e+37
  %v2275 = vand.u32 %v2218, 2147483648
  %v2276 = vor.u32 1.1754944e-38, %v2275
  %v2277 = vsel %vm2274, %v2276, %v2272
  %v2278 = vmul.f32 1.0, %v2277
  %v2279 = vld [vmem:[%s5] sm:$0xff]
  %v2280 = vld [vmem:[%s5 + $0x8] sm:$0xff]
  %v2281 = vld [vmem:[%s5 + $0x10] sm:$0xff]
  %v2282 = vld [vmem:[%s5 + $0x18] sm:$0xff]
  %v2283 = vmul.f32 %v2279, %v62
  %v2284 = vmul.f32 %v2280, %v63
  %v2285 = vmul.f32 %v2281, %v64
  %v2286 = vmul.f32 %v2282, %v65
  %v2287 = vadd.f32 %v2176, %v2283
  %v2288 = vadd.f32 %v2180, %v2284
  %v2289 = vadd.f32 %v2184, %v2285
  %v2290 = vadd.f32 %v2188, %v2286
  %v2291 = vxor.u32 %v2287, 2147483648
  %v2292 = vxor.u32 %v2288, 2147483648
  %v2293 = vxor.u32 %v2289, 2147483648
  %v2294 = vxor.u32 %v2290, 2147483648
  %v2295 = vmul.f32 %v2291, 1.442695
  %v2296 = vpow.pop %v2295
  %v2297 = vmul.f32 %v2292, 1.442695
  %v2298 = vpow.pop %v2297
  %v2299 = vmul.f32 %v2293, 1.442695
  %v2300 = vpow.pop %v2299
  %v2301 = vmul.f32 %v2294, 1.442695
  %v2302 = vpow.pop %v2301
  %v2303 = vadd.f32 %v2296, 1.0
  %v2304 = vadd.f32 %v2298, 1.0
  %v2305 = vadd.f32 %v2300, 1.0
  %v2306 = vadd.f32 %v2302, 1.0
  %v2307 = vrcp.pop %v2303
  %v2308 = vmul.f32 %v2303, %v2307
  %v2309 = vsub.f32 1.0, %v2308
  %v2310 = vmul.f32 %v2307, %v2309
  %v2311 = vadd.f32 %v2307, %v2310
  %vm2312 = vweird.f32 %v2303
  %vm2313 = vweird.f32 %v2307
  %vm2314 = vmor %vm2312, %vm2313
  %v2315 = vsel %vm2314, %v2307, %v2311
  %v2316 = vand.u32 2147483647, %v2303
  %vm2317 = vcmp.eq.f32.partialorder %v2316, 8.507059e+37
  %v2318 = vand.u32 %v2303, 2147483648
  %v2319 = vor.u32 1.1754944e-38, %v2318
  %v2320 = vsel %vm2317, %v2319, %v2315
  %v2321 = vmul.f32 1.0, %v2320
  %v2322 = vrcp.pop %v2304
  %v2323 = vmul.f32 %v2304, %v2322
  %v2324 = vsub.f32 1.0, %v2323
  %v2325 = vmul.f32 %v2322, %v2324
  %v2326 = vadd.f32 %v2322, %v2325
  %vm2327 = vweird.f32 %v2304
  %vm2328 = vweird.f32 %v2322
  %vm2329 = vmor %vm2327, %vm2328
  %v2330 = vsel %vm2329, %v2322, %v2326
  %v2331 = vand.u32 2147483647, %v2304
  %vm2332 = vcmp.eq.f32.partialorder %v2331, 8.507059e+37
  %v2333 = vand.u32 %v2304, 2147483648
  %v2334 = vor.u32 1.1754944e-38, %v2333
  %v2335 = vsel %vm2332, %v2334, %v2330
  %v2336 = vmul.f32 1.0, %v2335
  %v2337 = vrcp.pop %v2305
  %v2338 = vmul.f32 %v2305, %v2337
  %v2339 = vsub.f32 1.0, %v2338
  %v2340 = vmul.f32 %v2337, %v2339
  %v2341 = vadd.f32 %v2337, %v2340
  %vm2342 = vweird.f32 %v2305
  %vm2343 = vweird.f32 %v2337
  %vm2344 = vmor %vm2342, %vm2343
  %v2345 = vsel %vm2344, %v2337, %v2341
  %v2346 = vand.u32 2147483647, %v2305
  %vm2347 = vcmp.eq.f32.partialorder %v2346, 8.507059e+37
  %v2348 = vand.u32 %v2305, 2147483648
  %v2349 = vor.u32 1.1754944e-38, %v2348
  %v2350 = vsel %vm2347, %v2349, %v2345
  %v2351 = vmul.f32 1.0, %v2350
  %v2352 = vrcp.pop %v2306
  %v2353 = vmul.f32 %v2306, %v2352
  %v2354 = vsub.f32 1.0, %v2353
  %v2355 = vmul.f32 %v2352, %v2354
  %v2356 = vadd.f32 %v2352, %v2355
  %vm2357 = vweird.f32 %v2306
  %vm2358 = vweird.f32 %v2352
  %vm2359 = vmor %vm2357, %vm2358
  %v2360 = vsel %vm2359, %v2352, %v2356
  %v2361 = vand.u32 2147483647, %v2306
  %vm2362 = vcmp.eq.f32.partialorder %v2361, 8.507059e+37
  %v2363 = vand.u32 %v2306, 2147483648
  %v2364 = vor.u32 1.1754944e-38, %v2363
  %v2365 = vsel %vm2362, %v2364, %v2360
  %v2366 = vmul.f32 1.0, %v2365
  %v2367 = vtanh.pop %v2178
  %v2368 = vtanh.pop %v2182
  %v2369 = vtanh.pop %v2186
  %v2370 = vtanh.pop %v2190
  %v2371 = vmul.f32 %v2321, %v62
  %v2372 = vmul.f32 %v2336, %v63
  %v2373 = vmul.f32 %v2351, %v64
  %v2374 = vmul.f32 %v2366, %v65
  %v2375 = vmul.f32 %v2233, %v2367
  %v2376 = vmul.f32 %v2248, %v2368
  %v2377 = vmul.f32 %v2263, %v2369
  %v2378 = vmul.f32 %v2278, %v2370
  %v2379 = vadd.f32 %v2371, %v2375
  %v2380 = vadd.f32 %v2372, %v2376
  %v2381 = vadd.f32 %v2373, %v2377
  %v2382 = vadd.f32 %v2374, %v2378
  %v2383 = vld [vmem:[%s6] sm:$0xff]
  %v2384 = vld [vmem:[%s6 + $0x8] sm:$0xff]
  %v2385 = vld [vmem:[%s6 + $0x10] sm:$0xff]
  %v2386 = vld [vmem:[%s6 + $0x18] sm:$0xff]
  %v2387 = vmul.f32 %v2383, %v2379
  %v2388 = vmul.f32 %v2384, %v2380
  %v2389 = vmul.f32 %v2385, %v2381
  %v2390 = vmul.f32 %v2386, %v2382
  %v2391 = vadd.f32 %v2177, %v2387
  %v2392 = vadd.f32 %v2181, %v2388
  %v2393 = vadd.f32 %v2185, %v2389
  %v2394 = vadd.f32 %v2189, %v2390
  %v2395 = vxor.u32 %v2391, 2147483648
  %v2396 = vxor.u32 %v2392, 2147483648
  %v2397 = vxor.u32 %v2393, 2147483648
  %v2398 = vxor.u32 %v2394, 2147483648
  %v2399 = vmul.f32 %v2395, 1.442695
  %v2400 = vpow.pop %v2399
  %v2401 = vmul.f32 %v2396, 1.442695
  %v2402 = vpow.pop %v2401
  %v2403 = vmul.f32 %v2397, 1.442695
  %v2404 = vpow.pop %v2403
  %v2405 = vmul.f32 %v2398, 1.442695
  %v2406 = vpow.pop %v2405
  %v2407 = vadd.f32 %v2400, 1.0
  %v2408 = vadd.f32 %v2402, 1.0
  %v2409 = vadd.f32 %v2404, 1.0
  %v2410 = vadd.f32 %v2406, 1.0
  %v2411 = vrcp.pop %v2407
  %v2412 = vmul.f32 %v2407, %v2411
  %v2413 = vsub.f32 1.0, %v2412
  %v2414 = vmul.f32 %v2411, %v2413
  %v2415 = vadd.f32 %v2411, %v2414
  %vm2416 = vweird.f32 %v2407
  %vm2417 = vweird.f32 %v2411
  %vm2418 = vmor %vm2416, %vm2417
  %v2419 = vsel %vm2418, %v2411, %v2415
  %v2420 = vand.u32 2147483647, %v2407
  %vm2421 = vcmp.eq.f32.partialorder %v2420, 8.507059e+37
  %v2422 = vand.u32 %v2407, 2147483648
  %v2423 = vor.u32 1.1754944e-38, %v2422
  %v2424 = vsel %vm2421, %v2423, %v2419
  %v2425 = vmul.f32 1.0, %v2424
  %v2426 = vrcp.pop %v2408
  %v2427 = vmul.f32 %v2408, %v2426
  %v2428 = vsub.f32 1.0, %v2427
  %v2429 = vmul.f32 %v2426, %v2428
  %v2430 = vadd.f32 %v2426, %v2429
  %vm2431 = vweird.f32 %v2408
  %vm2432 = vweird.f32 %v2426
  %vm2433 = vmor %vm2431, %vm2432
  %v2434 = vsel %vm2433, %v2426, %v2430
  %v2435 = vand.u32 2147483647, %v2408
  %vm2436 = vcmp.eq.f32.partialorder %v2435, 8.507059e+37
  %v2437 = vand.u32 %v2408, 2147483648
  %v2438 = vor.u32 1.1754944e-38, %v2437
  %v2439 = vsel %vm2436, %v2438, %v2434
  %v2440 = vmul.f32 1.0, %v2439
  %v2441 = vrcp.pop %v2409
  %v2442 = vmul.f32 %v2409, %v2441
  %v2443 = vsub.f32 1.0, %v2442
  %v2444 = vmul.f32 %v2441, %v2443
  %v2445 = vadd.f32 %v2441, %v2444
  %vm2446 = vweird.f32 %v2409
  %vm2447 = vweird.f32 %v2441
  %vm2448 = vmor %vm2446, %vm2447
  %v2449 = vsel %vm2448, %v2441, %v2445
  %v2450 = vand.u32 2147483647, %v2409
  %vm2451 = vcmp.eq.f32.partialorder %v2450, 8.507059e+37
  %v2452 = vand.u32 %v2409, 2147483648
  %v2453 = vor.u32 1.1754944e-38, %v2452
  %v2454 = vsel %vm2451, %v2453, %v2449
  %v2455 = vmul.f32 1.0, %v2454
  %v2456 = vrcp.pop %v2410
  %v2457 = vmul.f32 %v2410, %v2456
  %v2458 = vsub.f32 1.0, %v2457
  %v2459 = vmul.f32 %v2456, %v2458
  %v2460 = vadd.f32 %v2456, %v2459
  %vm2461 = vweird.f32 %v2410
  %vm2462 = vweird.f32 %v2456
  %vm2463 = vmor %vm2461, %vm2462
  %v2464 = vsel %vm2463, %v2456, %v2460
  %v2465 = vand.u32 2147483647, %v2410
  %vm2466 = vcmp.eq.f32.partialorder %v2465, 8.507059e+37
  %v2467 = vand.u32 %v2410, 2147483648
  %v2468 = vor.u32 1.1754944e-38, %v2467
  %v2469 = vsel %vm2466, %v2468, %v2464
  %v2470 = vmul.f32 1.0, %v2469
  %v2471 = vtanh.pop %v2379
  %v2472 = vtanh.pop %v2380
  %v2473 = vtanh.pop %v2381
  %v2474 = vtanh.pop %v2382
  %v2475 = vmul.f32 %v2425, %v2471
  %v2476 = vmul.f32 %v2440, %v2472
  %v2477 = vmul.f32 %v2455, %v2473
  %v2478 = vmul.f32 %v2470, %v2474
  %2479 = vst.msk [vmem:[#allocation2] sm:$0xff] %vm156, %v2475
  %2480 = vst.msk [vmem:[#allocation2 + $0x8] sm:$0xff] %vm156, %v2476
  %2481 = vst.msk [vmem:[#allocation2 + $0x10] sm:$0xff] %vm156, %v2477
  %2482 = vst.msk [vmem:[#allocation2 + $0x18] sm:$0xff] %vm156, %v2478
  %2483 = vst.msk [vmem:[#allocation3] sm:$0xff] %vm156, %v2379
  %2484 = vst.msk [vmem:[#allocation3 + $0x8] sm:$0xff] %vm156, %v2380
  %2485 = vst.msk [vmem:[#allocation3 + $0x10] sm:$0xff] %vm156, %v2381
  %2486 = vst.msk [vmem:[#allocation3 + $0x18] sm:$0xff] %vm156, %v2382
  %2487 = vst.msk [vmem:[%s10] sm:$0xff] %vm156, %v2475
  %2488 = vst.msk [vmem:[%s10 + $0x8] sm:$0xff] %vm156, %v2476
  %2489 = vst.msk [vmem:[%s10 + $0x10] sm:$0xff] %vm156, %v2477
  %2490 = vst.msk [vmem:[%s10 + $0x18] sm:$0xff] %vm156, %v2478
  %2491 = vst.msk [vmem:[%s11] sm:$0xff] %vm156, %v2379
  %2492 = vst.msk [vmem:[%s11 + $0x8] sm:$0xff] %vm156, %v2380
  %2493 = vst.msk [vmem:[%s11 + $0x10] sm:$0xff] %vm156, %v2381
  %2494 = vst.msk [vmem:[%s11 + $0x18] sm:$0xff] %vm156, %v2382
  // Predicated region
  $region46: #{_compute.20} parent=0 // pred_check
    _
  $region47: #{_compute.20} parent=0 // pred_check_branch
    %2496 = sbr.rel (0) target = $region49
  $region48: #{_compute.20} parent=0 // pred_region
    _
  $region49: #{_compute.20} parent=0 // pred_fallthru
    _
  // Predicated region
  $region50: #{_compute.20} parent=0 // pred_check
    _
  $region51: #{_compute.20} parent=0 // pred_check_branch
    %2498 = sbr.rel (0) target = $region53
  $region52: #{_compute.20} parent=0 // pred_region
    _
  $region53: #{_compute.20} parent=0 // pred_fallthru
    _
  // Predicated region
  $region54: #{_compute.20} parent=0 // pred_check
    _
  $region55: #{_compute.20} parent=0 // pred_check_branch
    %2500 = sbr.rel (0) target = $region57
  $region56: #{_compute.20} parent=0 // pred_region
    _
  $region57: #{_compute.20} parent=0 // pred_fallthru
    _
  // Predicated region
  $region58: #{_compute.20} parent=0 // pred_check
    _
  $region59: #{_compute.20} parent=0 // pred_check_branch
    %2502 = sbr.rel (0) target = $region61
  $region60: #{_compute.20} parent=0 // pred_region
    _
  $region61: #{_compute.20} parent=0 // pred_fallthru
    _

// kernel: _compute.24
$region0: #{_compute.24}
  #allocation0 [shape = 'u32[]', space=smem, size = 0x4, offset = 0x4, fixed_abs, tag = 'smem constant byte address 0x4 - core index']
  #allocation1 [shape = 'u32[72,128]{1,0:T(1,128)}', space=vmem, size = 0x9000, scoped, tag = 'internal scratch']
  #allocation2 [shape = 'f32[32,16]{1,0:T(8,128)}', space=vmem, size = 0x4000, scoped, tag = 'scratch operand']
  #allocation3 [shape = 'f32[32,16]{1,0:T(8,128)}', space=vmem, size = 0x4000, scoped, tag = 'scratch operand']
  %s0 = inlined_call_operand.vmem [shape: f32[1,32,144], index: 0, kind: input, shape index: {}]
  %s1 = inlined_call_operand.vmem [shape: f32[144,512], index: 1, kind: input, shape index: {}]
  %s2 = inlined_call_operand.vmem [shape: f32[9,16,512], index: 2, kind: input, shape index: {}]
  %s3 = inlined_call_operand.vmem [shape: f32[1,512], index: 3, kind: input, shape index: {}]
  %s4 = inlined_call_operand.vmem [shape: f32[32,16], index: 4, kind: input, shape index: {}]
  %s5 = inlined_call_operand.vmem [shape: f32[32,16], index: 5, kind: input, shape index: {}]
  %s6 = inlined_call_operand.vmem [shape: f32[32,16], index: 6, kind: input, shape index: {}]
  %s7 = inlined_call_operand.vmem [shape: f32[9,32,32], index: 7, kind: input, shape index: {}]
  %s8 = inlined_call_operand.vmem [shape: f32[32,16], index: 8, kind: input, shape index: {}]
  %s9 = inlined_call_operand.vmem [shape: f32[32,16], index: 9, kind: input, shape index: {}]
  %s10 = inlined_call_operand.vmem [shape: f32[1,32,16], index: 10, kind: output, shape index: {0}]
  %s11 = inlined_call_operand.hbm [shape: f32[32,16], index: 11, kind: output, shape index: {1}]
  %12 = xla_tuple %s10, %s11
  %s13 = sld [smem:[#allocation0]]
  $region62: #{_compute.24} parent=0
    _
  %s15 = ssub.s32 1, %s13
  %s16 = scalar_select 0, %s15, %s13
  $region1: #{_compute.24} parent=0
    #allocation4 [shape = 'u8[16384]{0}', space=vmem, size = 0x4000, scoped, tag = 'output window, operand 1, single buffered']
    #allocation5 [shape = 's32[1]{0}', space=sflag, size = 0x4, scoped, tag = 'scoped memory for _compute.24']
    %17 = vsyncpa [#allocation5], 0
    // Predicated region
    $region2: #{_compute.24} parent=1 // pred_check
      _
    $region3: #{_compute.24} parent=1 // pred_check_branch
      %19 = sbr.rel (0) target = $region5
    $region4: #{_compute.24} parent=1 // pred_region
      _
    $region5: #{_compute.24} parent=1 // pred_fallthru
      _
    // Predicated region
    $region6: #{_compute.24} parent=1 // pred_check
      _
    $region7: #{_compute.24} parent=1 // pred_check_branch
      %21 = sbr.rel (0) target = $region9
    $region8: #{_compute.24} parent=1 // pred_region
      _
    $region9: #{_compute.24} parent=1 // pred_fallthru
      _
    // Predicated region
    $region10: #{_compute.24} parent=1 // pred_check
      _
    $region11: #{_compute.24} parent=1 // pred_check_branch
      %23 = sbr.rel (0) target = $region13
    $region12: #{_compute.24} parent=1 // pred_region
      _
    $region13: #{_compute.24} parent=1 // pred_fallthru
      _
    // Predicated region
    $region14: #{_compute.24} parent=1 // pred_check
      _
    $region15: #{_compute.24} parent=1 // pred_check_branch
      %25 = sbr.rel (0) target = $region17
    $region16: #{_compute.24} parent=1 // pred_region
      _
    $region17: #{_compute.24} parent=1 // pred_fallthru
      _
    // Predicated region
    $region18: #{_compute.24} parent=1 // pred_check
      _
    $region19: #{_compute.24} parent=1 // pred_check_branch
      %27 = sbr.rel (0) target = $region21
    $region20: #{_compute.24} parent=1 // pred_region
      _
    $region21: #{_compute.24} parent=1 // pred_fallthru
      _
    // Predicated region
    $region22: #{_compute.24} parent=1 // pred_check
      _
    $region23: #{_compute.24} parent=1 // pred_check_branch
      %29 = sbr.rel (0) target = $region25
    $region24: #{_compute.24} parent=1 // pred_region
      _
    $region25: #{_compute.24} parent=1 // pred_fallthru
      _
    // Predicated region
    $region26: #{_compute.24} parent=1 // pred_check
      _
    $region27: #{_compute.24} parent=1 // pred_check_branch
      %31 = sbr.rel (0) target = $region29
    $region28: #{_compute.24} parent=1 // pred_region
      _
    $region29: #{_compute.24} parent=1 // pred_fallthru
      _
    // Predicated region
    $region30: #{_compute.24} parent=1 // pred_check
      _
    $region31: #{_compute.24} parent=1 // pred_check_branch
      %33 = sbr.rel (0) target = $region33
    $region32: #{_compute.24} parent=1 // pred_region
      _
    $region33: #{_compute.24} parent=1 // pred_fallthru
      _
    // Predicated region
    $region34: #{_compute.24} parent=1 // pred_check
      _
    $region35: #{_compute.24} parent=1 // pred_check_branch
      %35 = sbr.rel (0) target = $region37
    $region36: #{_compute.24} parent=1 // pred_region
      _
    $region37: #{_compute.24} parent=1 // pred_fallthru
      _
    // Predicated region
    $region38: #{_compute.24} parent=1 // pred_check
      _
    $region39: #{_compute.24} parent=1 // pred_check_branch
      %37 = sbr.rel (0) target = $region41
    $region40: #{_compute.24} parent=1 // pred_region
      _
    $region41: #{_compute.24} parent=1 // pred_fallthru
      _
    %p38 = scmp.eq.s32.totalorder 0, 0
    // Predicated region
    $region42: #{_compute.24} parent=1 // pred_check
      %p39 = pneg %p38
    $region43: #{_compute.24} parent=1 // pred_check_branch
      %41 = sbr.rel (%p39) target = $region45
    $region44: #{_compute.24} parent=1 // pred_region
      %v42 = vld [vmem:[%s8] sm:$0xff]
      %v43 = vld [vmem:[%s8 + $0x8] sm:$0xff]
      %v44 = vld [vmem:[%s8 + $0x10] sm:$0xff]
      %v45 = vld [vmem:[%s8 + $0x18] sm:$0xff]
      %vm46 = vcmask 130048
      %47 = vst.msk [vmem:[#allocation2] sm:$0xff] %vm46, %v42
      %48 = vst.msk [vmem:[#allocation2 + $0x8] sm:$0xff] %vm46, %v43
      %49 = vst.msk [vmem:[#allocation2 + $0x10] sm:$0xff] %vm46, %v44
      %50 = vst.msk [vmem:[#allocation2 + $0x18] sm:$0xff] %vm46, %v45
      %v51 = vld [vmem:[%s9] sm:$0xff]
      %v52 = vld [vmem:[%s9 + $0x8] sm:$0xff]
      %v53 = vld [vmem:[%s9 + $0x10] sm:$0xff]
      %v54 = vld [vmem:[%s9 + $0x18] sm:$0xff]
      %55 = vst.msk [vmem:[#allocation3] sm:$0xff] %vm46, %v51
      %56 = vst.msk [vmem:[#allocation3 + $0x8] sm:$0xff] %vm46, %v52
      %57 = vst.msk [vmem:[#allocation3 + $0x10] sm:$0xff] %vm46, %v53
      %58 = vst.msk [vmem:[#allocation3 + $0x18] sm:$0xff] %vm46, %v54
    $region45: #{_compute.24} parent=1 // pred_fallthru
      _
    %v59 = vld [vmem:[#allocation2] sm:$0xff]
    %v60 = vld [vmem:[#allocation2 + $0x8] sm:$0xff]
    %v61 = vld [vmem:[#allocation2 + $0x10] sm:$0xff]
    %v62 = vld [vmem:[#allocation2 + $0x18] sm:$0xff]
    %v63 = vld [vmem:[#allocation3] sm:$0xff]
    %v64 = vld [vmem:[#allocation3 + $0x8] sm:$0xff]
    %v65 = vld [vmem:[#allocation3 + $0x10] sm:$0xff]
    %v66 = vld [vmem:[#allocation3 + $0x18] sm:$0xff]
    %v67 = vld [vmem:[%s0] sm:$0xff]
    %v68 = vld [vmem:[%s0 + $0x8] sm:$0xff]
    %v69 = vld [vmem:[%s0 + $0x10] sm:$0xff]
    %v70 = vld [vmem:[%s0 + $0x18] sm:$0xff]
    %v71 = vld [vmem:[%s0 + $0x20] sm:$0xff]
    %v72 = vld [vmem:[%s0 + $0x28] sm:$0xff]
    %v73 = vld [vmem:[%s0 + $0x30] sm:$0xff]
    %v74 = vld [vmem:[%s0 + $0x38] sm:$0xff]
    %v75 = vld [vmem:[%s1] sm:$0xff]
    %v76 = vld [vmem:[%s1 + $0x8] sm:$0xff]
    %v77 = vld [vmem:[%s1 + $0x10] sm:$0xff]
    %v78 = vld [vmem:[%s1 + $0x18] sm:$0xff]
    %v79 = vld [vmem:[%s1 + $0x20] sm:$0xff]
    %v80 = vld [vmem:[%s1 + $0x28] sm:$0xff]
    %v81 = vld [vmem:[%s1 + $0x30] sm:$0xff]
    %v82 = vld [vmem:[%s1 + $0x38] sm:$0xff]
    %v83 = vld [vmem:[%s1 + $0x40] sm:$0xff]
    %v84 = vld [vmem:[%s1 + $0x48] sm:$0xff]
    %v85 = vld [vmem:[%s1 + $0x50] sm:$0xff]
    %v86 = vld [vmem:[%s1 + $0x58] sm:$0xff]
    %v87 = vld [vmem:[%s1 + $0x60] sm:$0xff]
    %v88 = vld [vmem:[%s1 + $0x68] sm:$0xff]
    %v89 = vld [vmem:[%s1 + $0x70] sm:$0xff]
    %v90 = vld [vmem:[%s1 + $0x78] sm:$0xff]
    %v91 = vld [vmem:[%s1 + $0x80] sm:$0xff]
    %v92 = vld [vmem:[%s1 + $0x88] sm:$0xff]
    %v93 = vld [vmem:[%s1 + $0x90] sm:$0xff]
    %v94 = vld [vmem:[%s1 + $0x98] sm:$0xff]
    %v95 = vld [vmem:[%s1 + $0xa0] sm:$0xff]
    %v96 = vld [vmem:[%s1 + $0xa8] sm:$0xff]
    %v97 = vld [vmem:[%s1 + $0xb0] sm:$0xff]
    %v98 = vld [vmem:[%s1 + $0xb8] sm:$0xff]
    %v99 = vld [vmem:[%s1 + $0xc0] sm:$0xff]
    %v100 = vld [vmem:[%s1 + $0xc8] sm:$0xff]
    %v101 = vld [vmem:[%s1 + $0xd0] sm:$0xff]
    %v102 = vld [vmem:[%s1 + $0xd8] sm:$0xff]
    %v103 = vld [vmem:[%s1 + $0xe0] sm:$0xff]
    %v104 = vld [vmem:[%s1 + $0xe8] sm:$0xff]
    %v105 = vld [vmem:[%s1 + $0xf0] sm:$0xff]
    %v106 = vld [vmem:[%s1 + $0xf8] sm:$0xff]
    %v107 = vld [vmem:[%s1 + $0x100] sm:$0xff]
    %v108 = vld [vmem:[%s1 + $0x108] sm:$0xff]
    %v109 = vld [vmem:[%s1 + $0x110] sm:$0xff]
    %v110 = vld [vmem:[%s1 + $0x118] sm:$0xff]
    %v111 = vld [vmem:[%s1 + $0x120] sm:$0xff]
    %v112 = vld [vmem:[%s1 + $0x128] sm:$0xff]
    %v113 = vld [vmem:[%s1 + $0x130] sm:$0xff]
    %v114 = vld [vmem:[%s1 + $0x138] sm:$0xff]
    %v115 = vld [vmem:[%s1 + $0x140] sm:$0xff]
    %v116 = vld [vmem:[%s1 + $0x148] sm:$0xff]
    %v117 = vld [vmem:[%s1 + $0x150] sm:$0xff]
    %v118 = vld [vmem:[%s1 + $0x158] sm:$0xff]
    %v119 = vld [vmem:[%s1 + $0x160] sm:$0xff]
    %v120 = vld [vmem:[%s1 + $0x168] sm:$0xff]
    %v121 = vld [vmem:[%s1 + $0x170] sm:$0xff]
    %v122 = vld [vmem:[%s1 + $0x178] sm:$0xff]
    %v123 = vld [vmem:[%s1 + $0x180] sm:$0xff]
    %v124 = vld [vmem:[%s1 + $0x188] sm:$0xff]
    %v125 = vld [vmem:[%s1 + $0x190] sm:$0xff]
    %v126 = vld [vmem:[%s1 + $0x198] sm:$0xff]
    %v127 = vld [vmem:[%s1 + $0x1a0] sm:$0xff]
    %v128 = vld [vmem:[%s1 + $0x1a8] sm:$0xff]
    %v129 = vld [vmem:[%s1 + $0x1b0] sm:$0xff]
    %v130 = vld [vmem:[%s1 + $0x1b8] sm:$0xff]
    %v131 = vld [vmem:[%s1 + $0x1c0] sm:$0xff]
    %v132 = vld [vmem:[%s1 + $0x1c8] sm:$0xff]
    %v133 = vld [vmem:[%s1 + $0x1d0] sm:$0xff]
    %v134 = vld [vmem:[%s1 + $0x1d8] sm:$0xff]
    %v135 = vld [vmem:[%s1 + $0x1e0] sm:$0xff]
    %v136 = vld [vmem:[%s1 + $0x1e8] sm:$0xff]
    %v137 = vld [vmem:[%s1 + $0x1f0] sm:$0xff]
    %v138 = vld [vmem:[%s1 + $0x1f8] sm:$0xff]
    %v139 = vld [vmem:[%s1 + $0x200] sm:$0xff]
    %v140 = vld [vmem:[%s1 + $0x208] sm:$0xff]
    %v141 = vld [vmem:[%s1 + $0x210] sm:$0xff]
    %v142 = vld [vmem:[%s1 + $0x218] sm:$0xff]
    %v143 = vld [vmem:[%s1 + $0x220] sm:$0xff]
    %v144 = vld [vmem:[%s1 + $0x228] sm:$0xff]
    %v145 = vld [vmem:[%s1 + $0x230] sm:$0xff]
    %v146 = vld [vmem:[%s1 + $0x238] sm:$0xff]
    %v147 = vld [vmem:[%s3] sm:$0xf]
    %v149 = vperm.slane %v147, 0
    %v150 = vperm.slane %v147, 1
    %v151 = vperm.slane %v147, 2
    %v152 = vperm.slane %v147, 3
    %vm157 = vcmask 130048
    %v159 = vsel %vm157, %v68, 0
    %v162 = vsel %vm157, %v70, 0
    %v165 = vsel %vm157, %v72, 0
    %v168 = vsel %vm157, %v74, 0
    %170 = vmatpush.msra.mxu0 %v135
    %171 = vmatpush.msra.mxu0 %v131
    %172 = vmatpush.msra.mxu0 %v127
    %173 = vmatpush.msra.mxu0 %v123
    %174 = vmatpush.msra.mxu0 %v119
    %175 = vmatpush.msra.mxu0 %v115
    %176 = vmatpush.msra.mxu0 %v111
    %177 = vmatpush.msra.mxu0 %v107
    %178 = vmatpush.msra.mxu0 %v103
    %179 = vmatpush.msra.mxu0 %v99
    %180 = vmatpush.msra.mxu0 %v95
    %181 = vmatpush.msra.mxu0 %v91
    %182 = vmatpush.msra.mxu0 %v87
    %183 = vmatpush.msra.mxu0 %v83
    %184 = vmatpush.msra.mxu0 %v79
    %185 = vmatpush.msra.mxu0 %v75
    %186 = vmatmul.f32.gmra.mxu0 %v67
    %v187 = vpop.f32.mrf.mxu0
    %v188 = vadd.f32 %v149, %v187
    %189 = vmatmul.f32.gmra.mxu0 %v69
    %v190 = vpop.f32.mrf.mxu0
    %v191 = vadd.f32 %v149, %v190
    %192 = vmatmul.f32.gmra.mxu0 %v71
    %v193 = vpop.f32.mrf.mxu0
    %v194 = vadd.f32 %v149, %v193
    %195 = vmatmul.f32.gmra.mxu0 %v73
    %v196 = vpop.f32.mrf.mxu0
    %v197 = vadd.f32 %v149, %v196
    %198 = vdwg.mxu0
    %199 = vmatpush.msra.mxu0 0.0
    %200 = vmatpush.msra.mxu0 0.0
    %201 = vmatpush.msra.mxu0 0.0
    %202 = vmatpush.msra.mxu0 0.0
    %203 = vmatpush.msra.mxu0 0.0
    %204 = vmatpush.msra.mxu0 0.0
    %205 = vmatpush.msra.mxu0 0.0
    %206 = vmatpush.msra.mxu0 0.0
    %207 = vmatpush.msra.mxu0 0.0
    %208 = vmatpush.msra.mxu0 0.0
    %209 = vmatpush.msra.mxu0 0.0
    %210 = vmatpush.msra.mxu0 0.0
    %211 = vmatpush.msra.mxu0 0.0
    %212 = vmatpush.msra.mxu0 0.0
    %213 = vmatpush.msra.mxu0 %v143
    %214 = vmatpush.msra.mxu0 %v139
    %215 = vmatmul.f32.gmra.mxu0 %v159
    %v216 = vpop.f32.mrf.mxu0
    %v217 = vadd.f32 %v188, %v216
    %218 = vmatmul.f32.gmra.mxu0 %v162
    %v219 = vpop.f32.mrf.mxu0
    %v220 = vadd.f32 %v191, %v219
    %221 = vmatmul.f32.gmra.mxu0 %v165
    %v222 = vpop.f32.mrf.mxu0
    %v223 = vadd.f32 %v194, %v222
    %224 = vmatmul.f32.gmra.mxu0 %v168
    %v225 = vpop.f32.mrf.mxu0
    %v226 = vadd.f32 %v197, %v225
    %227 = vdwg.mxu0
    %228 = vmatpush.msra.mxu0 %v136
    %229 = vmatpush.msra.mxu0 %v132
    %230 = vmatpush.msra.mxu0 %v128
    %231 = vmatpush.msra.mxu0 %v124
    %232 = vmatpush.msra.mxu0 %v120
    %233 = vmatpush.msra.mxu0 %v116
    %234 = vmatpush.msra.mxu0 %v112
    %235 = vmatpush.msra.mxu0 %v108
    %236 = vmatpush.msra.mxu0 %v104
    %237 = vmatpush.msra.mxu0 %v100
    %238 = vmatpush.msra.mxu0 %v96
    %239 = vmatpush.msra.mxu0 %v92
    %240 = vmatpush.msra.mxu0 %v88
    %241 = vmatpush.msra.mxu0 %v84
    %242 = vmatpush.msra.mxu0 %v80
    %243 = vmatpush.msra.mxu0 %v76
    %244 = vmatmul.f32.gmra.mxu0 %v67
    %v245 = vpop.f32.mrf.mxu0
    %v246 = vadd.f32 %v150, %v245
    %247 = vmatmul.f32.gmra.mxu0 %v69
    %v248 = vpop.f32.mrf.mxu0
    %v249 = vadd.f32 %v150, %v248
    %250 = vmatmul.f32.gmra.mxu0 %v71
    %v251 = vpop.f32.mrf.mxu0
    %v252 = vadd.f32 %v150, %v251
    %253 = vmatmul.f32.gmra.mxu0 %v73
    %v254 = vpop.f32.mrf.mxu0
    %v255 = vadd.f32 %v150, %v254
    %256 = vdwg.mxu0
    %257 = vmatpush.msra.mxu0 0.0
    %258 = vmatpush.msra.mxu0 0.0
    %259 = vmatpush.msra.mxu0 0.0
    %260 = vmatpush.msra.mxu0 0.0
    %261 = vmatpush.msra.mxu0 0.0
    %262 = vmatpush.msra.mxu0 0.0
    %263 = vmatpush.msra.mxu0 0.0
    %264 = vmatpush.msra.mxu0 0.0
    %265 = vmatpush.msra.mxu0 0.0
    %266 = vmatpush.msra.mxu0 0.0
    %267 = vmatpush.msra.mxu0 0.0
    %268 = vmatpush.msra.mxu0 0.0
    %269 = vmatpush.msra.mxu0 0.0
    %270 = vmatpush.msra.mxu0 0.0
    %271 = vmatpush.msra.mxu0 %v144
    %272 = vmatpush.msra.mxu0 %v140
    %273 = vmatmul.f32.gmra.mxu0 %v159
    %v274 = vpop.f32.mrf.mxu0
    %v275 = vadd.f32 %v246, %v274
    %276 = vmatmul.f32.gmra.mxu0 %v162
    %v277 = vpop.f32.mrf.mxu0
    %v278 = vadd.f32 %v249, %v277
    %279 = vmatmul.f32.gmra.mxu0 %v165
    %v280 = vpop.f32.mrf.mxu0
    %v281 = vadd.f32 %v252, %v280
    %282 = vmatmul.f32.gmra.mxu0 %v168
    %v283 = vpop.f32.mrf.mxu0
    %v284 = vadd.f32 %v255, %v283
    %285 = vdwg.mxu0
    %286 = vmatpush.msra.mxu0 %v137
    %287 = vmatpush.msra.mxu0 %v133
    %288 = vmatpush.msra.mxu0 %v129
    %289 = vmatpush.msra.mxu0 %v125
    %290 = vmatpush.msra.mxu0 %v121
    %291 = vmatpush.msra.mxu0 %v117
    %292 = vmatpush.msra.mxu0 %v113
    %293 = vmatpush.msra.mxu0 %v109
    %294 = vmatpush.msra.mxu0 %v105
    %295 = vmatpush.msra.mxu0 %v101
    %296 = vmatpush.msra.mxu0 %v97
    %297 = vmatpush.msra.mxu0 %v93
    %298 = vmatpush.msra.mxu0 %v89
    %299 = vmatpush.msra.mxu0 %v85
    %300 = vmatpush.msra.mxu0 %v81
    %301 = vmatpush.msra.mxu0 %v77
    %302 = vmatmul.f32.gmra.mxu0 %v67
    %v303 = vpop.f32.mrf.mxu0
    %v304 = vadd.f32 %v151, %v303
    %305 = vmatmul.f32.gmra.mxu0 %v69
    %v306 = vpop.f32.mrf.mxu0
    %v307 = vadd.f32 %v151, %v306
    %308 = vmatmul.f32.gmra.mxu0 %v71
    %v309 = vpop.f32.mrf.mxu0
    %v310 = vadd.f32 %v151, %v309
    %311 = vmatmul.f32.gmra.mxu0 %v73
    %v312 = vpop.f32.mrf.mxu0
    %v313 = vadd.f32 %v151, %v312
    %314 = vdwg.mxu0
    %315 = vmatpush.msra.mxu0 0.0
    %316 = vmatpush.msra.mxu0 0.0
    %317 = vmatpush.msra.mxu0 0.0
    %318 = vmatpush.msra.mxu0 0.0
    %319 = vmatpush.msra.mxu0 0.0
    %320 = vmatpush.msra.mxu0 0.0
    %321 = vmatpush.msra.mxu0 0.0
    %322 = vmatpush.msra.mxu0 0.0
    %323 = vmatpush.msra.mxu0 0.0
    %324 = vmatpush.msra.mxu0 0.0
    %325 = vmatpush.msra.mxu0 0.0
    %326 = vmatpush.msra.mxu0 0.0
    %327 = vmatpush.msra.mxu0 0.0
    %328 = vmatpush.msra.mxu0 0.0
    %329 = vmatpush.msra.mxu0 %v145
    %330 = vmatpush.msra.mxu0 %v141
    %331 = vmatmul.f32.gmra.mxu0 %v159
    %v332 = vpop.f32.mrf.mxu0
    %v333 = vadd.f32 %v304, %v332
    %334 = vmatmul.f32.gmra.mxu0 %v162
    %v335 = vpop.f32.mrf.mxu0
    %v336 = vadd.f32 %v307, %v335
    %337 = vmatmul.f32.gmra.mxu0 %v165
    %v338 = vpop.f32.mrf.mxu0
    %v339 = vadd.f32 %v310, %v338
    %340 = vmatmul.f32.gmra.mxu0 %v168
    %v341 = vpop.f32.mrf.mxu0
    %v342 = vadd.f32 %v313, %v341
    %343 = vdwg.mxu0
    %344 = vmatpush.msra.mxu0 %v138
    %345 = vmatpush.msra.mxu0 %v134
    %346 = vmatpush.msra.mxu0 %v130
    %347 = vmatpush.msra.mxu0 %v126
    %348 = vmatpush.msra.mxu0 %v122
    %349 = vmatpush.msra.mxu0 %v118
    %350 = vmatpush.msra.mxu0 %v114
    %351 = vmatpush.msra.mxu0 %v110
    %352 = vmatpush.msra.mxu0 %v106
    %353 = vmatpush.msra.mxu0 %v102
    %354 = vmatpush.msra.mxu0 %v98
    %355 = vmatpush.msra.mxu0 %v94
    %356 = vmatpush.msra.mxu0 %v90
    %357 = vmatpush.msra.mxu0 %v86
    %358 = vmatpush.msra.mxu0 %v82
    %359 = vmatpush.msra.mxu0 %v78
    %360 = vmatmul.f32.gmra.mxu0 %v67
    %v361 = vpop.f32.mrf.mxu0
    %v362 = vadd.f32 %v152, %v361
    %363 = vmatmul.f32.gmra.mxu0 %v69
    %v364 = vpop.f32.mrf.mxu0
    %v365 = vadd.f32 %v152, %v364
    %366 = vmatmul.f32.gmra.mxu0 %v71
    %v367 = vpop.f32.mrf.mxu0
    %v368 = vadd.f32 %v152, %v367
    %369 = vmatmul.f32.gmra.mxu0 %v73
    %v370 = vpop.f32.mrf.mxu0
    %v371 = vadd.f32 %v152, %v370
    %372 = vdwg.mxu0
    %373 = vmatpush.msra.mxu0 0.0
    %374 = vmatpush.msra.mxu0 0.0
    %375 = vmatpush.msra.mxu0 0.0
    %376 = vmatpush.msra.mxu0 0.0
    %377 = vmatpush.msra.mxu0 0.0
    %378 = vmatpush.msra.mxu0 0.0
    %379 = vmatpush.msra.mxu0 0.0
    %380 = vmatpush.msra.mxu0 0.0
    %381 = vmatpush.msra.mxu0 0.0
    %382 = vmatpush.msra.mxu0 0.0
    %383 = vmatpush.msra.mxu0 0.0
    %384 = vmatpush.msra.mxu0 0.0
    %385 = vmatpush.msra.mxu0 0.0
    %386 = vmatpush.msra.mxu0 0.0
    %387 = vmatpush.msra.mxu0 %v146
    %388 = vmatpush.msra.mxu0 %v142
    %389 = vmatmul.f32.gmra.mxu0 %v159
    %v390 = vpop.f32.mrf.mxu0
    %v391 = vadd.f32 %v362, %v390
    %392 = vmatmul.f32.gmra.mxu0 %v162
    %v393 = vpop.f32.mrf.mxu0
    %v394 = vadd.f32 %v365, %v393
    %395 = vmatmul.f32.gmra.mxu0 %v165
    %v396 = vpop.f32.mrf.mxu0
    %v397 = vadd.f32 %v368, %v396
    %398 = vmatmul.f32.gmra.mxu0 %v168
    %v399 = vpop.f32.mrf.mxu0
    %v400 = vadd.f32 %v371, %v399
    %401 = vdwg.mxu0
    %v402 = vld [vmem:[%s7] sm:$0xff]
    %v403 = vld [vmem:[%s7 + $0x8] sm:$0xff]
    %v404 = vld [vmem:[%s7 + $0x10] sm:$0xff]
    %v405 = vld [vmem:[%s7 + $0x18] sm:$0xff]
    %vm406 = vcmask 261120
    %v408 = vsel %vm406, %v402, 0
    %v411 = vsel %vm406, %v403, 0
    %v414 = vsel %vm406, %v404, 0
    %v417 = vsel %vm406, %v405, 0
    %419 = vmatpush.msra.mxu0 0.0
    %420 = vmatpush.msra.mxu0 0.0
    %421 = vmatpush.msra.mxu0 0.0
    %422 = vmatpush.msra.mxu0 0.0
    %423 = vmatpush.msra.mxu0 0.0
    %424 = vmatpush.msra.mxu0 0.0
    %425 = vmatpush.msra.mxu0 0.0
    %426 = vmatpush.msra.mxu0 0.0
    %427 = vmatpush.msra.mxu0 0.0
    %428 = vmatpush.msra.mxu0 0.0
    %429 = vmatpush.msra.mxu0 0.0
    %430 = vmatpush.msra.mxu0 0.0
    %431 = vmatpush.msra.mxu0 %v62
    %432 = vmatpush.msra.mxu0 %v61
    %433 = vmatpush.msra.mxu0 %v60
    %434 = vmatpush.msra.mxu0 %v59
    %435 = vmatmul.f32.gmra.mxu0 %v408
    %v436 = vpop.f32.mrf.mxu0
    %v437 = vadd.f32 0.0, %v436
    %438 = vmatmul.f32.gmra.mxu0 %v411
    %v439 = vpop.f32.mrf.mxu0
    %v440 = vadd.f32 0.0, %v439
    %441 = vmatmul.f32.gmra.mxu0 %v414
    %v442 = vpop.f32.mrf.mxu0
    %v443 = vadd.f32 0.0, %v442
    %444 = vmatmul.f32.gmra.mxu0 %v417
    %v445 = vpop.f32.mrf.mxu0
    %v446 = vadd.f32 0.0, %v445
    %447 = vdwg.mxu0
    %v448 = vld [vmem:[%s2] sm:$0xff]
    %v449 = vld [vmem:[%s2 + $0x8] sm:$0xff]
    %v450 = vld [vmem:[%s2 + $0x10] sm:$0xff]
    %v451 = vld [vmem:[%s2 + $0x18] sm:$0xff]
    %v452 = vld [vmem:[%s2 + $0x20] sm:$0xff]
    %v453 = vld [vmem:[%s2 + $0x28] sm:$0xff]
    %v454 = vld [vmem:[%s2 + $0x30] sm:$0xff]
    %v455 = vld [vmem:[%s2 + $0x38] sm:$0xff]
    %v457 = vsel %vm157, %v437, 0
    %v460 = vsel %vm157, %v440, 0
    %v463 = vsel %vm157, %v443, 0
    %v466 = vsel %vm157, %v446, 0
    %468 = vmatpush.msra.mxu0 0.0
    %469 = vmatpush.msra.mxu0 0.0
    %470 = vmatpush.msra.mxu0 0.0
    %471 = vmatpush.msra.mxu0 0.0
    %472 = vmatpush.msra.mxu0 0.0
    %473 = vmatpush.msra.mxu0 0.0
    %474 = vmatpush.msra.mxu0 0.0
    %475 = vmatpush.msra.mxu0 0.0
    %476 = vmatpush.msra.mxu0 0.0
    %477 = vmatpush.msra.mxu0 0.0
    %478 = vmatpush.msra.mxu0 0.0
    %479 = vmatpush.msra.mxu0 0.0
    %480 = vmatpush.msra.mxu0 0.0
    %481 = vmatpush.msra.mxu0 0.0
    %482 = vmatpush.msra.mxu0 %v452
    %483 = vmatpush.msra.mxu0 %v448
    %484 = vmatmul.f32.gmra.mxu0 %v457
    %v485 = vpop.f32.mrf.mxu0
    %v486 = vadd.f32 0.0, %v485
    %487 = vmatmul.f32.gmra.mxu0 %v460
    %v488 = vpop.f32.mrf.mxu0
    %v489 = vadd.f32 0.0, %v488
    %490 = vmatmul.f32.gmra.mxu0 %v463
    %v491 = vpop.f32.mrf.mxu0
    %v492 = vadd.f32 0.0, %v491
    %493 = vmatmul.f32.gmra.mxu0 %v466
    %v494 = vpop.f32.mrf.mxu0
    %v495 = vadd.f32 0.0, %v494
    %496 = vdwg.mxu0
    %497 = vmatpush.msra.mxu0 0.0
    %498 = vmatpush.msra.mxu0 0.0
    %499 = vmatpush.msra.mxu0 0.0
    %500 = vmatpush.msra.mxu0 0.0
    %501 = vmatpush.msra.mxu0 0.0
    %502 = vmatpush.msra.mxu0 0.0
    %503 = vmatpush.msra.mxu0 0.0
    %504 = vmatpush.msra.mxu0 0.0
    %505 = vmatpush.msra.mxu0 0.0
    %506 = vmatpush.msra.mxu0 0.0
    %507 = vmatpush.msra.mxu0 0.0
    %508 = vmatpush.msra.mxu0 0.0
    %509 = vmatpush.msra.mxu0 0.0
    %510 = vmatpush.msra.mxu0 0.0
    %511 = vmatpush.msra.mxu0 %v453
    %512 = vmatpush.msra.mxu0 %v449
    %513 = vmatmul.f32.gmra.mxu0 %v457
    %v514 = vpop.f32.mrf.mxu0
    %v515 = vadd.f32 0.0, %v514
    %516 = vmatmul.f32.gmra.mxu0 %v460
    %v517 = vpop.f32.mrf.mxu0
    %v518 = vadd.f32 0.0, %v517
    %519 = vmatmul.f32.gmra.mxu0 %v463
    %v520 = vpop.f32.mrf.mxu0
    %v521 = vadd.f32 0.0, %v520
    %522 = vmatmul.f32.gmra.mxu0 %v466
    %v523 = vpop.f32.mrf.mxu0
    %v524 = vadd.f32 0.0, %v523
    %525 = vdwg.mxu0
    %526 = vmatpush.msra.mxu0 0.0
    %527 = vmatpush.msra.mxu0 0.0
    %528 = vmatpush.msra.mxu0 0.0
    %529 = vmatpush.msra.mxu0 0.0
    %530 = vmatpush.msra.mxu0 0.0
    %531 = vmatpush.msra.mxu0 0.0
    %532 = vmatpush.msra.mxu0 0.0
    %533 = vmatpush.msra.mxu0 0.0
    %534 = vmatpush.msra.mxu0 0.0
    %535 = vmatpush.msra.mxu0 0.0
    %536 = vmatpush.msra.mxu0 0.0
    %537 = vmatpush.msra.mxu0 0.0
    %538 = vmatpush.msra.mxu0 0.0
    %539 = vmatpush.msra.mxu0 0.0
    %540 = vmatpush.msra.mxu0 %v454
    %541 = vmatpush.msra.mxu0 %v450
    %542 = vmatmul.f32.gmra.mxu0 %v457
    %v543 = vpop.f32.mrf.mxu0
    %v544 = vadd.f32 0.0, %v543
    %545 = vmatmul.f32.gmra.mxu0 %v460
    %v546 = vpop.f32.mrf.mxu0
    %v547 = vadd.f32 0.0, %v546
    %548 = vmatmul.f32.gmra.mxu0 %v463
    %v549 = vpop.f32.mrf.mxu0
    %v550 = vadd.f32 0.0, %v549
    %551 = vmatmul.f32.gmra.mxu0 %v466
    %v552 = vpop.f32.mrf.mxu0
    %v553 = vadd.f32 0.0, %v552
    %554 = vdwg.mxu0
    %555 = vmatpush.msra.mxu0 0.0
    %556 = vmatpush.msra.mxu0 0.0
    %557 = vmatpush.msra.mxu0 0.0
    %558 = vmatpush.msra.mxu0 0.0
    %559 = vmatpush.msra.mxu0 0.0
    %560 = vmatpush.msra.mxu0 0.0
    %561 = vmatpush.msra.mxu0 0.0
    %562 = vmatpush.msra.mxu0 0.0
    %563 = vmatpush.msra.mxu0 0.0
    %564 = vmatpush.msra.mxu0 0.0
    %565 = vmatpush.msra.mxu0 0.0
    %566 = vmatpush.msra.mxu0 0.0
    %567 = vmatpush.msra.mxu0 0.0
    %568 = vmatpush.msra.mxu0 0.0
    %569 = vmatpush.msra.mxu0 %v455
    %570 = vmatpush.msra.mxu0 %v451
    %571 = vmatmul.f32.gmra.mxu0 %v457
    %v572 = vpop.f32.mrf.mxu0
    %v573 = vadd.f32 0.0, %v572
    %574 = vmatmul.f32.gmra.mxu0 %v460
    %v575 = vpop.f32.mrf.mxu0
    %v576 = vadd.f32 0.0, %v575
    %577 = vmatmul.f32.gmra.mxu0 %v463
    %v578 = vpop.f32.mrf.mxu0
    %v579 = vadd.f32 0.0, %v578
    %580 = vmatmul.f32.gmra.mxu0 %v466
    %v581 = vpop.f32.mrf.mxu0
    %v582 = vadd.f32 0.0, %v581
    %583 = vdwg.mxu0
    %v584 = vadd.f32 %v217, %v486
    %v585 = vadd.f32 %v275, %v515
    %v586 = vadd.f32 %v333, %v544
    %v587 = vadd.f32 %v391, %v573
    %v588 = vadd.f32 %v220, %v489
    %v589 = vadd.f32 %v278, %v518
    %v590 = vadd.f32 %v336, %v547
    %v591 = vadd.f32 %v394, %v576
    %v592 = vadd.f32 %v223, %v492
    %v593 = vadd.f32 %v281, %v521
    %v594 = vadd.f32 %v339, %v550
    %v595 = vadd.f32 %v397, %v579
    %v596 = vadd.f32 %v226, %v495
    %v597 = vadd.f32 %v284, %v524
    %v598 = vadd.f32 %v342, %v553
    %v599 = vadd.f32 %v400, %v582
    %s600 = scalar_lea.vmem %s7, 32
    %v601 = vld [vmem:[%s600] sm:$0xff]
    %v602 = vld [vmem:[%s600 + $0x8] sm:$0xff]
    %v603 = vld [vmem:[%s600 + $0x10] sm:$0xff]
    %v604 = vld [vmem:[%s600 + $0x18] sm:$0xff]
    %v606 = vsel %vm406, %v601, 0
    %v609 = vsel %vm406, %v602, 0
    %v612 = vsel %vm406, %v603, 0
    %v615 = vsel %vm406, %v604, 0
    %617 = vmatpush.msra.mxu0 0.0
    %618 = vmatpush.msra.mxu0 0.0
    %619 = vmatpush.msra.mxu0 0.0
    %620 = vmatpush.msra.mxu0 0.0
    %621 = vmatpush.msra.mxu0 0.0
    %622 = vmatpush.msra.mxu0 0.0
    %623 = vmatpush.msra.mxu0 0.0
    %624 = vmatpush.msra.mxu0 0.0
    %625 = vmatpush.msra.mxu0 0.0
    %626 = vmatpush.msra.mxu0 0.0
    %627 = vmatpush.msra.mxu0 0.0
    %628 = vmatpush.msra.mxu0 0.0
    %629 = vmatpush.msra.mxu0 %v62
    %630 = vmatpush.msra.mxu0 %v61
    %631 = vmatpush.msra.mxu0 %v60
    %632 = vmatpush.msra.mxu0 %v59
    %633 = vmatmul.f32.gmra.mxu0 %v606
    %v634 = vpop.f32.mrf.mxu0
    %v635 = vadd.f32 0.0, %v634
    %636 = vmatmul.f32.gmra.mxu0 %v609
    %v637 = vpop.f32.mrf.mxu0
    %v638 = vadd.f32 0.0, %v637
    %639 = vmatmul.f32.gmra.mxu0 %v612
    %v640 = vpop.f32.mrf.mxu0
    %v641 = vadd.f32 0.0, %v640
    %642 = vmatmul.f32.gmra.mxu0 %v615
    %v643 = vpop.f32.mrf.mxu0
    %v644 = vadd.f32 0.0, %v643
    %645 = vdwg.mxu0
    %s646 = scalar_lea.vmem %s2, 64
    %v647 = vld [vmem:[%s646] sm:$0xff]
    %v648 = vld [vmem:[%s646 + $0x8] sm:$0xff]
    %v649 = vld [vmem:[%s646 + $0x10] sm:$0xff]
    %v650 = vld [vmem:[%s646 + $0x18] sm:$0xff]
    %v651 = vld [vmem:[%s646 + $0x20] sm:$0xff]
    %v652 = vld [vmem:[%s646 + $0x28] sm:$0xff]
    %v653 = vld [vmem:[%s646 + $0x30] sm:$0xff]
    %v654 = vld [vmem:[%s646 + $0x38] sm:$0xff]
    %v656 = vsel %vm157, %v635, 0
    %v659 = vsel %vm157, %v638, 0
    %v662 = vsel %vm157, %v641, 0
    %v665 = vsel %vm157, %v644, 0
    %667 = vmatpush.msra.mxu0 0.0
    %668 = vmatpush.msra.mxu0 0.0
    %669 = vmatpush.msra.mxu0 0.0
    %670 = vmatpush.msra.mxu0 0.0
    %671 = vmatpush.msra.mxu0 0.0
    %672 = vmatpush.msra.mxu0 0.0
    %673 = vmatpush.msra.mxu0 0.0
    %674 = vmatpush.msra.mxu0 0.0
    %675 = vmatpush.msra.mxu0 0.0
    %676 = vmatpush.msra.mxu0 0.0
    %677 = vmatpush.msra.mxu0 0.0
    %678 = vmatpush.msra.mxu0 0.0
    %679 = vmatpush.msra.mxu0 0.0
    %680 = vmatpush.msra.mxu0 0.0
    %681 = vmatpush.msra.mxu0 %v651
    %682 = vmatpush.msra.mxu0 %v647
    %683 = vmatmul.f32.gmra.mxu0 %v656
    %v684 = vpop.f32.mrf.mxu0
    %v685 = vadd.f32 0.0, %v684
    %686 = vmatmul.f32.gmra.mxu0 %v659
    %v687 = vpop.f32.mrf.mxu0
    %v688 = vadd.f32 0.0, %v687
    %689 = vmatmul.f32.gmra.mxu0 %v662
    %v690 = vpop.f32.mrf.mxu0
    %v691 = vadd.f32 0.0, %v690
    %692 = vmatmul.f32.gmra.mxu0 %v665
    %v693 = vpop.f32.mrf.mxu0
    %v694 = vadd.f32 0.0, %v693
    %695 = vdwg.mxu0
    %696 = vmatpush.msra.mxu0 0.0
    %697 = vmatpush.msra.mxu0 0.0
    %698 = vmatpush.msra.mxu0 0.0
    %699 = vmatpush.msra.mxu0 0.0
    %700 = vmatpush.msra.mxu0 0.0
    %701 = vmatpush.msra.mxu0 0.0
    %702 = vmatpush.msra.mxu0 0.0
    %703 = vmatpush.msra.mxu0 0.0
    %704 = vmatpush.msra.mxu0 0.0
    %705 = vmatpush.msra.mxu0 0.0
    %706 = vmatpush.msra.mxu0 0.0
    %707 = vmatpush.msra.mxu0 0.0
    %708 = vmatpush.msra.mxu0 0.0
    %709 = vmatpush.msra.mxu0 0.0
    %710 = vmatpush.msra.mxu0 %v652
    %711 = vmatpush.msra.mxu0 %v648
    %712 = vmatmul.f32.gmra.mxu0 %v656
    %v713 = vpop.f32.mrf.mxu0
    %v714 = vadd.f32 0.0, %v713
    %715 = vmatmul.f32.gmra.mxu0 %v659
    %v716 = vpop.f32.mrf.mxu0
    %v717 = vadd.f32 0.0, %v716
    %718 = vmatmul.f32.gmra.mxu0 %v662
    %v719 = vpop.f32.mrf.mxu0
    %v720 = vadd.f32 0.0, %v719
    %721 = vmatmul.f32.gmra.mxu0 %v665
    %v722 = vpop.f32.mrf.mxu0
    %v723 = vadd.f32 0.0, %v722
    %724 = vdwg.mxu0
    %725 = vmatpush.msra.mxu0 0.0
    %726 = vmatpush.msra.mxu0 0.0
    %727 = vmatpush.msra.mxu0 0.0
    %728 = vmatpush.msra.mxu0 0.0
    %729 = vmatpush.msra.mxu0 0.0
    %730 = vmatpush.msra.mxu0 0.0
    %731 = vmatpush.msra.mxu0 0.0
    %732 = vmatpush.msra.mxu0 0.0
    %733 = vmatpush.msra.mxu0 0.0
    %734 = vmatpush.msra.mxu0 0.0
    %735 = vmatpush.msra.mxu0 0.0
    %736 = vmatpush.msra.mxu0 0.0
    %737 = vmatpush.msra.mxu0 0.0
    %738 = vmatpush.msra.mxu0 0.0
    %739 = vmatpush.msra.mxu0 %v653
    %740 = vmatpush.msra.mxu0 %v649
    %741 = vmatmul.f32.gmra.mxu0 %v656
    %v742 = vpop.f32.mrf.mxu0
    %v743 = vadd.f32 0.0, %v742
    %744 = vmatmul.f32.gmra.mxu0 %v659
    %v745 = vpop.f32.mrf.mxu0
    %v746 = vadd.f32 0.0, %v745
    %747 = vmatmul.f32.gmra.mxu0 %v662
    %v748 = vpop.f32.mrf.mxu0
    %v749 = vadd.f32 0.0, %v748
    %750 = vmatmul.f32.gmra.mxu0 %v665
    %v751 = vpop.f32.mrf.mxu0
    %v752 = vadd.f32 0.0, %v751
    %753 = vdwg.mxu0
    %754 = vmatpush.msra.mxu0 0.0
    %755 = vmatpush.msra.mxu0 0.0
    %756 = vmatpush.msra.mxu0 0.0
    %757 = vmatpush.msra.mxu0 0.0
    %758 = vmatpush.msra.mxu0 0.0
    %759 = vmatpush.msra.mxu0 0.0
    %760 = vmatpush.msra.mxu0 0.0
    %761 = vmatpush.msra.mxu0 0.0
    %762 = vmatpush.msra.mxu0 0.0
    %763 = vmatpush.msra.mxu0 0.0
    %764 = vmatpush.msra.mxu0 0.0
    %765 = vmatpush.msra.mxu0 0.0
    %766 = vmatpush.msra.mxu0 0.0
    %767 = vmatpush.msra.mxu0 0.0
    %768 = vmatpush.msra.mxu0 %v654
    %769 = vmatpush.msra.mxu0 %v650
    %770 = vmatmul.f32.gmra.mxu0 %v656
    %v771 = vpop.f32.mrf.mxu0
    %v772 = vadd.f32 0.0, %v771
    %773 = vmatmul.f32.gmra.mxu0 %v659
    %v774 = vpop.f32.mrf.mxu0
    %v775 = vadd.f32 0.0, %v774
    %776 = vmatmul.f32.gmra.mxu0 %v662
    %v777 = vpop.f32.mrf.mxu0
    %v778 = vadd.f32 0.0, %v777
    %779 = vmatmul.f32.gmra.mxu0 %v665
    %v780 = vpop.f32.mrf.mxu0
    %v781 = vadd.f32 0.0, %v780
    %782 = vdwg.mxu0
    %v783 = vadd.f32 %v584, %v685
    %v784 = vadd.f32 %v585, %v714
    %v785 = vadd.f32 %v586, %v743
    %v786 = vadd.f32 %v587, %v772
    %v787 = vadd.f32 %v588, %v688
    %v788 = vadd.f32 %v589, %v717
    %v789 = vadd.f32 %v590, %v746
    %v790 = vadd.f32 %v591, %v775
    %v791 = vadd.f32 %v592, %v691
    %v792 = vadd.f32 %v593, %v720
    %v793 = vadd.f32 %v594, %v749
    %v794 = vadd.f32 %v595, %v778
    %v795 = vadd.f32 %v596, %v694
    %v796 = vadd.f32 %v597, %v723
    %v797 = vadd.f32 %v598, %v752
    %v798 = vadd.f32 %v599, %v781
    %s799 = scalar_lea.vmem %s7, 64
    %v800 = vld [vmem:[%s799] sm:$0xff]
    %v801 = vld [vmem:[%s799 + $0x8] sm:$0xff]
    %v802 = vld [vmem:[%s799 + $0x10] sm:$0xff]
    %v803 = vld [vmem:[%s799 + $0x18] sm:$0xff]
    %v805 = vsel %vm406, %v800, 0
    %v808 = vsel %vm406, %v801, 0
    %v811 = vsel %vm406, %v802, 0
    %v814 = vsel %vm406, %v803, 0
    %816 = vmatpush.msra.mxu0 0.0
    %817 = vmatpush.msra.mxu0 0.0
    %818 = vmatpush.msra.mxu0 0.0
    %819 = vmatpush.msra.mxu0 0.0
    %820 = vmatpush.msra.mxu0 0.0
    %821 = vmatpush.msra.mxu0 0.0
    %822 = vmatpush.msra.mxu0 0.0
    %823 = vmatpush.msra.mxu0 0.0
    %824 = vmatpush.msra.mxu0 0.0
    %825 = vmatpush.msra.mxu0 0.0
    %826 = vmatpush.msra.mxu0 0.0
    %827 = vmatpush.msra.mxu0 0.0
    %828 = vmatpush.msra.mxu0 %v62
    %829 = vmatpush.msra.mxu0 %v61
    %830 = vmatpush.msra.mxu0 %v60
    %831 = vmatpush.msra.mxu0 %v59
    %832 = vmatmul.f32.gmra.mxu0 %v805
    %v833 = vpop.f32.mrf.mxu0
    %v834 = vadd.f32 0.0, %v833
    %835 = vmatmul.f32.gmra.mxu0 %v808
    %v836 = vpop.f32.mrf.mxu0
    %v837 = vadd.f32 0.0, %v836
    %838 = vmatmul.f32.gmra.mxu0 %v811
    %v839 = vpop.f32.mrf.mxu0
    %v840 = vadd.f32 0.0, %v839
    %841 = vmatmul.f32.gmra.mxu0 %v814
    %v842 = vpop.f32.mrf.mxu0
    %v843 = vadd.f32 0.0, %v842
    %844 = vdwg.mxu0
    %s845 = scalar_lea.vmem %s2, 128
    %v846 = vld [vmem:[%s845] sm:$0xff]
    %v847 = vld [vmem:[%s845 + $0x8] sm:$0xff]
    %v848 = vld [vmem:[%s845 + $0x10] sm:$0xff]
    %v849 = vld [vmem:[%s845 + $0x18] sm:$0xff]
    %v850 = vld [vmem:[%s845 + $0x20] sm:$0xff]
    %v851 = vld [vmem:[%s845 + $0x28] sm:$0xff]
    %v852 = vld [vmem:[%s845 + $0x30] sm:$0xff]
    %v853 = vld [vmem:[%s845 + $0x38] sm:$0xff]
    %v855 = vsel %vm157, %v834, 0
    %v858 = vsel %vm157, %v837, 0
    %v861 = vsel %vm157, %v840, 0
    %v864 = vsel %vm157, %v843, 0
    %866 = vmatpush.msra.mxu0 0.0
    %867 = vmatpush.msra.mxu0 0.0
    %868 = vmatpush.msra.mxu0 0.0
    %869 = vmatpush.msra.mxu0 0.0
    %870 = vmatpush.msra.mxu0 0.0
    %871 = vmatpush.msra.mxu0 0.0
    %872 = vmatpush.msra.mxu0 0.0
    %873 = vmatpush.msra.mxu0 0.0
    %874 = vmatpush.msra.mxu0 0.0
    %875 = vmatpush.msra.mxu0 0.0
    %876 = vmatpush.msra.mxu0 0.0
    %877 = vmatpush.msra.mxu0 0.0
    %878 = vmatpush.msra.mxu0 0.0
    %879 = vmatpush.msra.mxu0 0.0
    %880 = vmatpush.msra.mxu0 %v850
    %881 = vmatpush.msra.mxu0 %v846
    %882 = vmatmul.f32.gmra.mxu0 %v855
    %v883 = vpop.f32.mrf.mxu0
    %v884 = vadd.f32 0.0, %v883
    %885 = vmatmul.f32.gmra.mxu0 %v858
    %v886 = vpop.f32.mrf.mxu0
    %v887 = vadd.f32 0.0, %v886
    %888 = vmatmul.f32.gmra.mxu0 %v861
    %v889 = vpop.f32.mrf.mxu0
    %v890 = vadd.f32 0.0, %v889
    %891 = vmatmul.f32.gmra.mxu0 %v864
    %v892 = vpop.f32.mrf.mxu0
    %v893 = vadd.f32 0.0, %v892
    %894 = vdwg.mxu0
    %895 = vmatpush.msra.mxu0 0.0
    %896 = vmatpush.msra.mxu0 0.0
    %897 = vmatpush.msra.mxu0 0.0
    %898 = vmatpush.msra.mxu0 0.0
    %899 = vmatpush.msra.mxu0 0.0
    %900 = vmatpush.msra.mxu0 0.0
    %901 = vmatpush.msra.mxu0 0.0
    %902 = vmatpush.msra.mxu0 0.0
    %903 = vmatpush.msra.mxu0 0.0
    %904 = vmatpush.msra.mxu0 0.0
    %905 = vmatpush.msra.mxu0 0.0
    %906 = vmatpush.msra.mxu0 0.0
    %907 = vmatpush.msra.mxu0 0.0
    %908 = vmatpush.msra.mxu0 0.0
    %909 = vmatpush.msra.mxu0 %v851
    %910 = vmatpush.msra.mxu0 %v847
    %911 = vmatmul.f32.gmra.mxu0 %v855
    %v912 = vpop.f32.mrf.mxu0
    %v913 = vadd.f32 0.0, %v912
    %914 = vmatmul.f32.gmra.mxu0 %v858
    %v915 = vpop.f32.mrf.mxu0
    %v916 = vadd.f32 0.0, %v915
    %917 = vmatmul.f32.gmra.mxu0 %v861
    %v918 = vpop.f32.mrf.mxu0
    %v919 = vadd.f32 0.0, %v918
    %920 = vmatmul.f32.gmra.mxu0 %v864
    %v921 = vpop.f32.mrf.mxu0
    %v922 = vadd.f32 0.0, %v921
    %923 = vdwg.mxu0
    %924 = vmatpush.msra.mxu0 0.0
    %925 = vmatpush.msra.mxu0 0.0
    %926 = vmatpush.msra.mxu0 0.0
    %927 = vmatpush.msra.mxu0 0.0
    %928 = vmatpush.msra.mxu0 0.0
    %929 = vmatpush.msra.mxu0 0.0
    %930 = vmatpush.msra.mxu0 0.0
    %931 = vmatpush.msra.mxu0 0.0
    %932 = vmatpush.msra.mxu0 0.0
    %933 = vmatpush.msra.mxu0 0.0
    %934 = vmatpush.msra.mxu0 0.0
    %935 = vmatpush.msra.mxu0 0.0
    %936 = vmatpush.msra.mxu0 0.0
    %937 = vmatpush.msra.mxu0 0.0
    %938 = vmatpush.msra.mxu0 %v852
    %939 = vmatpush.msra.mxu0 %v848
    %940 = vmatmul.f32.gmra.mxu0 %v855
    %v941 = vpop.f32.mrf.mxu0
    %v942 = vadd.f32 0.0, %v941
    %943 = vmatmul.f32.gmra.mxu0 %v858
    %v944 = vpop.f32.mrf.mxu0
    %v945 = vadd.f32 0.0, %v944
    %946 = vmatmul.f32.gmra.mxu0 %v861
    %v947 = vpop.f32.mrf.mxu0
    %v948 = vadd.f32 0.0, %v947
    %949 = vmatmul.f32.gmra.mxu0 %v864
    %v950 = vpop.f32.mrf.mxu0
    %v951 = vadd.f32 0.0, %v950
    %952 = vdwg.mxu0
    %953 = vmatpush.msra.mxu0 0.0
    %954 = vmatpush.msra.mxu0 0.0
    %955 = vmatpush.msra.mxu0 0.0
    %956 = vmatpush.msra.mxu0 0.0
    %957 = vmatpush.msra.mxu0 0.0
    %958 = vmatpush.msra.mxu0 0.0
    %959 = vmatpush.msra.mxu0 0.0
    %960 = vmatpush.msra.mxu0 0.0
    %961 = vmatpush.msra.mxu0 0.0
    %962 = vmatpush.msra.mxu0 0.0
    %963 = vmatpush.msra.mxu0 0.0
    %964 = vmatpush.msra.mxu0 0.0
    %965 = vmatpush.msra.mxu0 0.0
    %966 = vmatpush.msra.mxu0 0.0
    %967 = vmatpush.msra.mxu0 %v853
    %968 = vmatpush.msra.mxu0 %v849
    %969 = vmatmul.f32.gmra.mxu0 %v855
    %v970 = vpop.f32.mrf.mxu0
    %v971 = vadd.f32 0.0, %v970
    %972 = vmatmul.f32.gmra.mxu0 %v858
    %v973 = vpop.f32.mrf.mxu0
    %v974 = vadd.f32 0.0, %v973
    %975 = vmatmul.f32.gmra.mxu0 %v861
    %v976 = vpop.f32.mrf.mxu0
    %v977 = vadd.f32 0.0, %v976
    %978 = vmatmul.f32.gmra.mxu0 %v864
    %v979 = vpop.f32.mrf.mxu0
    %v980 = vadd.f32 0.0, %v979
    %981 = vdwg.mxu0
    %v982 = vadd.f32 %v783, %v884
    %v983 = vadd.f32 %v784, %v913
    %v984 = vadd.f32 %v785, %v942
    %v985 = vadd.f32 %v786, %v971
    %v986 = vadd.f32 %v787, %v887
    %v987 = vadd.f32 %v788, %v916
    %v988 = vadd.f32 %v789, %v945
    %v989 = vadd.f32 %v790, %v974
    %v990 = vadd.f32 %v791, %v890
    %v991 = vadd.f32 %v792, %v919
    %v992 = vadd.f32 %v793, %v948
    %v993 = vadd.f32 %v794, %v977
    %v994 = vadd.f32 %v795, %v893
    %v995 = vadd.f32 %v796, %v922
    %v996 = vadd.f32 %v797, %v951
    %v997 = vadd.f32 %v798, %v980
    %s998 = scalar_lea.vmem %s7, 96
    %v999 = vld [vmem:[%s998] sm:$0xff]
    %v1000 = vld [vmem:[%s998 + $0x8] sm:$0xff]
    %v1001 = vld [vmem:[%s998 + $0x10] sm:$0xff]
    %v1002 = vld [vmem:[%s998 + $0x18] sm:$0xff]
    %v1004 = vsel %vm406, %v999, 0
    %v1007 = vsel %vm406, %v1000, 0
    %v1010 = vsel %vm406, %v1001, 0
    %v1013 = vsel %vm406, %v1002, 0
    %1015 = vmatpush.msra.mxu0 0.0
    %1016 = vmatpush.msra.mxu0 0.0
    %1017 = vmatpush.msra.mxu0 0.0
    %1018 = vmatpush.msra.mxu0 0.0
    %1019 = vmatpush.msra.mxu0 0.0
    %1020 = vmatpush.msra.mxu0 0.0
    %1021 = vmatpush.msra.mxu0 0.0
    %1022 = vmatpush.msra.mxu0 0.0
    %1023 = vmatpush.msra.mxu0 0.0
    %1024 = vmatpush.msra.mxu0 0.0
    %1025 = vmatpush.msra.mxu0 0.0
    %1026 = vmatpush.msra.mxu0 0.0
    %1027 = vmatpush.msra.mxu0 %v62
    %1028 = vmatpush.msra.mxu0 %v61
    %1029 = vmatpush.msra.mxu0 %v60
    %1030 = vmatpush.msra.mxu0 %v59
    %1031 = vmatmul.f32.gmra.mxu0 %v1004
    %v1032 = vpop.f32.mrf.mxu0
    %v1033 = vadd.f32 0.0, %v1032
    %1034 = vmatmul.f32.gmra.mxu0 %v1007
    %v1035 = vpop.f32.mrf.mxu0
    %v1036 = vadd.f32 0.0, %v1035
    %1037 = vmatmul.f32.gmra.mxu0 %v1010
    %v1038 = vpop.f32.mrf.mxu0
    %v1039 = vadd.f32 0.0, %v1038
    %1040 = vmatmul.f32.gmra.mxu0 %v1013
    %v1041 = vpop.f32.mrf.mxu0
    %v1042 = vadd.f32 0.0, %v1041
    %1043 = vdwg.mxu0
    %s1044 = scalar_lea.vmem %s2, 192
    %v1045 = vld [vmem:[%s1044] sm:$0xff]
    %v1046 = vld [vmem:[%s1044 + $0x8] sm:$0xff]
    %v1047 = vld [vmem:[%s1044 + $0x10] sm:$0xff]
    %v1048 = vld [vmem:[%s1044 + $0x18] sm:$0xff]
    %v1049 = vld [vmem:[%s1044 + $0x20] sm:$0xff]
    %v1050 = vld [vmem:[%s1044 + $0x28] sm:$0xff]
    %v1051 = vld [vmem:[%s1044 + $0x30] sm:$0xff]
    %v1052 = vld [vmem:[%s1044 + $0x38] sm:$0xff]
    %v1054 = vsel %vm157, %v1033, 0
    %v1057 = vsel %vm157, %v1036, 0
    %v1060 = vsel %vm157, %v1039, 0
    %v1063 = vsel %vm157, %v1042, 0
    %1065 = vmatpush.msra.mxu0 0.0
    %1066 = vmatpush.msra.mxu0 0.0
    %1067 = vmatpush.msra.mxu0 0.0
    %1068 = vmatpush.msra.mxu0 0.0
    %1069 = vmatpush.msra.mxu0 0.0
    %1070 = vmatpush.msra.mxu0 0.0
    %1071 = vmatpush.msra.mxu0 0.0
    %1072 = vmatpush.msra.mxu0 0.0
    %1073 = vmatpush.msra.mxu0 0.0
    %1074 = vmatpush.msra.mxu0 0.0
    %1075 = vmatpush.msra.mxu0 0.0
    %1076 = vmatpush.msra.mxu0 0.0
    %1077 = vmatpush.msra.mxu0 0.0
    %1078 = vmatpush.msra.mxu0 0.0
    %1079 = vmatpush.msra.mxu0 %v1049
    %1080 = vmatpush.msra.mxu0 %v1045
    %1081 = vmatmul.f32.gmra.mxu0 %v1054
    %v1082 = vpop.f32.mrf.mxu0
    %v1083 = vadd.f32 0.0, %v1082
    %1084 = vmatmul.f32.gmra.mxu0 %v1057
    %v1085 = vpop.f32.mrf.mxu0
    %v1086 = vadd.f32 0.0, %v1085
    %1087 = vmatmul.f32.gmra.mxu0 %v1060
    %v1088 = vpop.f32.mrf.mxu0
    %v1089 = vadd.f32 0.0, %v1088
    %1090 = vmatmul.f32.gmra.mxu0 %v1063
    %v1091 = vpop.f32.mrf.mxu0
    %v1092 = vadd.f32 0.0, %v1091
    %1093 = vdwg.mxu0
    %1094 = vmatpush.msra.mxu0 0.0
    %1095 = vmatpush.msra.mxu0 0.0
    %1096 = vmatpush.msra.mxu0 0.0
    %1097 = vmatpush.msra.mxu0 0.0
    %1098 = vmatpush.msra.mxu0 0.0
    %1099 = vmatpush.msra.mxu0 0.0
    %1100 = vmatpush.msra.mxu0 0.0
    %1101 = vmatpush.msra.mxu0 0.0
    %1102 = vmatpush.msra.mxu0 0.0
    %1103 = vmatpush.msra.mxu0 0.0
    %1104 = vmatpush.msra.mxu0 0.0
    %1105 = vmatpush.msra.mxu0 0.0
    %1106 = vmatpush.msra.mxu0 0.0
    %1107 = vmatpush.msra.mxu0 0.0
    %1108 = vmatpush.msra.mxu0 %v1050
    %1109 = vmatpush.msra.mxu0 %v1046
    %1110 = vmatmul.f32.gmra.mxu0 %v1054
    %v1111 = vpop.f32.mrf.mxu0
    %v1112 = vadd.f32 0.0, %v1111
    %1113 = vmatmul.f32.gmra.mxu0 %v1057
    %v1114 = vpop.f32.mrf.mxu0
    %v1115 = vadd.f32 0.0, %v1114
    %1116 = vmatmul.f32.gmra.mxu0 %v1060
    %v1117 = vpop.f32.mrf.mxu0
    %v1118 = vadd.f32 0.0, %v1117
    %1119 = vmatmul.f32.gmra.mxu0 %v1063
    %v1120 = vpop.f32.mrf.mxu0
    %v1121 = vadd.f32 0.0, %v1120
    %1122 = vdwg.mxu0
    %1123 = vmatpush.msra.mxu0 0.0
    %1124 = vmatpush.msra.mxu0 0.0
    %1125 = vmatpush.msra.mxu0 0.0
    %1126 = vmatpush.msra.mxu0 0.0
    %1127 = vmatpush.msra.mxu0 0.0
    %1128 = vmatpush.msra.mxu0 0.0
    %1129 = vmatpush.msra.mxu0 0.0
    %1130 = vmatpush.msra.mxu0 0.0
    %1131 = vmatpush.msra.mxu0 0.0
    %1132 = vmatpush.msra.mxu0 0.0
    %1133 = vmatpush.msra.mxu0 0.0
    %1134 = vmatpush.msra.mxu0 0.0
    %1135 = vmatpush.msra.mxu0 0.0
    %1136 = vmatpush.msra.mxu0 0.0
    %1137 = vmatpush.msra.mxu0 %v1051
    %1138 = vmatpush.msra.mxu0 %v1047
    %1139 = vmatmul.f32.gmra.mxu0 %v1054
    %v1140 = vpop.f32.mrf.mxu0
    %v1141 = vadd.f32 0.0, %v1140
    %1142 = vmatmul.f32.gmra.mxu0 %v1057
    %v1143 = vpop.f32.mrf.mxu0
    %v1144 = vadd.f32 0.0, %v1143
    %1145 = vmatmul.f32.gmra.mxu0 %v1060
    %v1146 = vpop.f32.mrf.mxu0
    %v1147 = vadd.f32 0.0, %v1146
    %1148 = vmatmul.f32.gmra.mxu0 %v1063
    %v1149 = vpop.f32.mrf.mxu0
    %v1150 = vadd.f32 0.0, %v1149
    %1151 = vdwg.mxu0
    %1152 = vmatpush.msra.mxu0 0.0
    %1153 = vmatpush.msra.mxu0 0.0
    %1154 = vmatpush.msra.mxu0 0.0
    %1155 = vmatpush.msra.mxu0 0.0
    %1156 = vmatpush.msra.mxu0 0.0
    %1157 = vmatpush.msra.mxu0 0.0
    %1158 = vmatpush.msra.mxu0 0.0
    %1159 = vmatpush.msra.mxu0 0.0
    %1160 = vmatpush.msra.mxu0 0.0
    %1161 = vmatpush.msra.mxu0 0.0
    %1162 = vmatpush.msra.mxu0 0.0
    %1163 = vmatpush.msra.mxu0 0.0
    %1164 = vmatpush.msra.mxu0 0.0
    %1165 = vmatpush.msra.mxu0 0.0
    %1166 = vmatpush.msra.mxu0 %v1052
    %1167 = vmatpush.msra.mxu0 %v1048
    %1168 = vmatmul.f32.gmra.mxu0 %v1054
    %v1169 = vpop.f32.mrf.mxu0
    %v1170 = vadd.f32 0.0, %v1169
    %1171 = vmatmul.f32.gmra.mxu0 %v1057
    %v1172 = vpop.f32.mrf.mxu0
    %v1173 = vadd.f32 0.0, %v1172
    %1174 = vmatmul.f32.gmra.mxu0 %v1060
    %v1175 = vpop.f32.mrf.mxu0
    %v1176 = vadd.f32 0.0, %v1175
    %1177 = vmatmul.f32.gmra.mxu0 %v1063
    %v1178 = vpop.f32.mrf.mxu0
    %v1179 = vadd.f32 0.0, %v1178
    %1180 = vdwg.mxu0
    %v1181 = vadd.f32 %v982, %v1083
    %v1182 = vadd.f32 %v983, %v1112
    %v1183 = vadd.f32 %v984, %v1141
    %v1184 = vadd.f32 %v985, %v1170
    %v1185 = vadd.f32 %v986, %v1086
    %v1186 = vadd.f32 %v987, %v1115
    %v1187 = vadd.f32 %v988, %v1144
    %v1188 = vadd.f32 %v989, %v1173
    %v1189 = vadd.f32 %v990, %v1089
    %v1190 = vadd.f32 %v991, %v1118
    %v1191 = vadd.f32 %v992, %v1147
    %v1192 = vadd.f32 %v993, %v1176
    %v1193 = vadd.f32 %v994, %v1092
    %v1194 = vadd.f32 %v995, %v1121
    %v1195 = vadd.f32 %v996, %v1150
    %v1196 = vadd.f32 %v997, %v1179
    %s1197 = scalar_lea.vmem %s7, 128
    %v1198 = vld [vmem:[%s1197] sm:$0xff]
    %v1199 = vld [vmem:[%s1197 + $0x8] sm:$0xff]
    %v1200 = vld [vmem:[%s1197 + $0x10] sm:$0xff]
    %v1201 = vld [vmem:[%s1197 + $0x18] sm:$0xff]
    %v1203 = vsel %vm406, %v1198, 0
    %v1206 = vsel %vm406, %v1199, 0
    %v1209 = vsel %vm406, %v1200, 0
    %v1212 = vsel %vm406, %v1201, 0
    %1214 = vmatpush.msra.mxu0 0.0
    %1215 = vmatpush.msra.mxu0 0.0
    %1216 = vmatpush.msra.mxu0 0.0
    %1217 = vmatpush.msra.mxu0 0.0
    %1218 = vmatpush.msra.mxu0 0.0
    %1219 = vmatpush.msra.mxu0 0.0
    %1220 = vmatpush.msra.mxu0 0.0
    %1221 = vmatpush.msra.mxu0 0.0
    %1222 = vmatpush.msra.mxu0 0.0
    %1223 = vmatpush.msra.mxu0 0.0
    %1224 = vmatpush.msra.mxu0 0.0
    %1225 = vmatpush.msra.mxu0 0.0
    %1226 = vmatpush.msra.mxu0 %v62
    %1227 = vmatpush.msra.mxu0 %v61
    %1228 = vmatpush.msra.mxu0 %v60
    %1229 = vmatpush.msra.mxu0 %v59
    %1230 = vmatmul.f32.gmra.mxu0 %v1203
    %v1231 = vpop.f32.mrf.mxu0
    %v1232 = vadd.f32 0.0, %v1231
    %1233 = vmatmul.f32.gmra.mxu0 %v1206
    %v1234 = vpop.f32.mrf.mxu0
    %v1235 = vadd.f32 0.0, %v1234
    %1236 = vmatmul.f32.gmra.mxu0 %v1209
    %v1237 = vpop.f32.mrf.mxu0
    %v1238 = vadd.f32 0.0, %v1237
    %1239 = vmatmul.f32.gmra.mxu0 %v1212
    %v1240 = vpop.f32.mrf.mxu0
    %v1241 = vadd.f32 0.0, %v1240
    %1242 = vdwg.mxu0
    %s1243 = scalar_lea.vmem %s2, 256
    %v1244 = vld [vmem:[%s1243] sm:$0xff]
    %v1245 = vld [vmem:[%s1243 + $0x8] sm:$0xff]
    %v1246 = vld [vmem:[%s1243 + $0x10] sm:$0xff]
    %v1247 = vld [vmem:[%s1243 + $0x18] sm:$0xff]
    %v1248 = vld [vmem:[%s1243 + $0x20] sm:$0xff]
    %v1249 = vld [vmem:[%s1243 + $0x28] sm:$0xff]
    %v1250 = vld [vmem:[%s1243 + $0x30] sm:$0xff]
    %v1251 = vld [vmem:[%s1243 + $0x38] sm:$0xff]
    %v1253 = vsel %vm157, %v1232, 0
    %v1256 = vsel %vm157, %v1235, 0
    %v1259 = vsel %vm157, %v1238, 0
    %v1262 = vsel %vm157, %v1241, 0
    %1264 = vmatpush.msra.mxu0 0.0
    %1265 = vmatpush.msra.mxu0 0.0
    %1266 = vmatpush.msra.mxu0 0.0
    %1267 = vmatpush.msra.mxu0 0.0
    %1268 = vmatpush.msra.mxu0 0.0
    %1269 = vmatpush.msra.mxu0 0.0
    %1270 = vmatpush.msra.mxu0 0.0
    %1271 = vmatpush.msra.mxu0 0.0
    %1272 = vmatpush.msra.mxu0 0.0
    %1273 = vmatpush.msra.mxu0 0.0
    %1274 = vmatpush.msra.mxu0 0.0
    %1275 = vmatpush.msra.mxu0 0.0
    %1276 = vmatpush.msra.mxu0 0.0
    %1277 = vmatpush.msra.mxu0 0.0
    %1278 = vmatpush.msra.mxu0 %v1248
    %1279 = vmatpush.msra.mxu0 %v1244
    %1280 = vmatmul.f32.gmra.mxu0 %v1253
    %v1281 = vpop.f32.mrf.mxu0
    %v1282 = vadd.f32 0.0, %v1281
    %1283 = vmatmul.f32.gmra.mxu0 %v1256
    %v1284 = vpop.f32.mrf.mxu0
    %v1285 = vadd.f32 0.0, %v1284
    %1286 = vmatmul.f32.gmra.mxu0 %v1259
    %v1287 = vpop.f32.mrf.mxu0
    %v1288 = vadd.f32 0.0, %v1287
    %1289 = vmatmul.f32.gmra.mxu0 %v1262
    %v1290 = vpop.f32.mrf.mxu0
    %v1291 = vadd.f32 0.0, %v1290
    %1292 = vdwg.mxu0
    %1293 = vmatpush.msra.mxu0 0.0
    %1294 = vmatpush.msra.mxu0 0.0
    %1295 = vmatpush.msra.mxu0 0.0
    %1296 = vmatpush.msra.mxu0 0.0
    %1297 = vmatpush.msra.mxu0 0.0
    %1298 = vmatpush.msra.mxu0 0.0
    %1299 = vmatpush.msra.mxu0 0.0
    %1300 = vmatpush.msra.mxu0 0.0
    %1301 = vmatpush.msra.mxu0 0.0
    %1302 = vmatpush.msra.mxu0 0.0
    %1303 = vmatpush.msra.mxu0 0.0
    %1304 = vmatpush.msra.mxu0 0.0
    %1305 = vmatpush.msra.mxu0 0.0
    %1306 = vmatpush.msra.mxu0 0.0
    %1307 = vmatpush.msra.mxu0 %v1249
    %1308 = vmatpush.msra.mxu0 %v1245
    %1309 = vmatmul.f32.gmra.mxu0 %v1253
    %v1310 = vpop.f32.mrf.mxu0
    %v1311 = vadd.f32 0.0, %v1310
    %1312 = vmatmul.f32.gmra.mxu0 %v1256
    %v1313 = vpop.f32.mrf.mxu0
    %v1314 = vadd.f32 0.0, %v1313
    %1315 = vmatmul.f32.gmra.mxu0 %v1259
    %v1316 = vpop.f32.mrf.mxu0
    %v1317 = vadd.f32 0.0, %v1316
    %1318 = vmatmul.f32.gmra.mxu0 %v1262
    %v1319 = vpop.f32.mrf.mxu0
    %v1320 = vadd.f32 0.0, %v1319
    %1321 = vdwg.mxu0
    %1322 = vmatpush.msra.mxu0 0.0
    %1323 = vmatpush.msra.mxu0 0.0
    %1324 = vmatpush.msra.mxu0 0.0
    %1325 = vmatpush.msra.mxu0 0.0
    %1326 = vmatpush.msra.mxu0 0.0
    %1327 = vmatpush.msra.mxu0 0.0
    %1328 = vmatpush.msra.mxu0 0.0
    %1329 = vmatpush.msra.mxu0 0.0
    %1330 = vmatpush.msra.mxu0 0.0
    %1331 = vmatpush.msra.mxu0 0.0
    %1332 = vmatpush.msra.mxu0 0.0
    %1333 = vmatpush.msra.mxu0 0.0
    %1334 = vmatpush.msra.mxu0 0.0
    %1335 = vmatpush.msra.mxu0 0.0
    %1336 = vmatpush.msra.mxu0 %v1250
    %1337 = vmatpush.msra.mxu0 %v1246
    %1338 = vmatmul.f32.gmra.mxu0 %v1253
    %v1339 = vpop.f32.mrf.mxu0
    %v1340 = vadd.f32 0.0, %v1339
    %1341 = vmatmul.f32.gmra.mxu0 %v1256
    %v1342 = vpop.f32.mrf.mxu0
    %v1343 = vadd.f32 0.0, %v1342
    %1344 = vmatmul.f32.gmra.mxu0 %v1259
    %v1345 = vpop.f32.mrf.mxu0
    %v1346 = vadd.f32 0.0, %v1345
    %1347 = vmatmul.f32.gmra.mxu0 %v1262
    %v1348 = vpop.f32.mrf.mxu0
    %v1349 = vadd.f32 0.0, %v1348
    %1350 = vdwg.mxu0
    %1351 = vmatpush.msra.mxu0 0.0
    %1352 = vmatpush.msra.mxu0 0.0
    %1353 = vmatpush.msra.mxu0 0.0
    %1354 = vmatpush.msra.mxu0 0.0
    %1355 = vmatpush.msra.mxu0 0.0
    %1356 = vmatpush.msra.mxu0 0.0
    %1357 = vmatpush.msra.mxu0 0.0
    %1358 = vmatpush.msra.mxu0 0.0
    %1359 = vmatpush.msra.mxu0 0.0
    %1360 = vmatpush.msra.mxu0 0.0
    %1361 = vmatpush.msra.mxu0 0.0
    %1362 = vmatpush.msra.mxu0 0.0
    %1363 = vmatpush.msra.mxu0 0.0
    %1364 = vmatpush.msra.mxu0 0.0
    %1365 = vmatpush.msra.mxu0 %v1251
    %1366 = vmatpush.msra.mxu0 %v1247
    %1367 = vmatmul.f32.gmra.mxu0 %v1253
    %v1368 = vpop.f32.mrf.mxu0
    %v1369 = vadd.f32 0.0, %v1368
    %1370 = vmatmul.f32.gmra.mxu0 %v1256
    %v1371 = vpop.f32.mrf.mxu0
    %v1372 = vadd.f32 0.0, %v1371
    %1373 = vmatmul.f32.gmra.mxu0 %v1259
    %v1374 = vpop.f32.mrf.mxu0
    %v1375 = vadd.f32 0.0, %v1374
    %1376 = vmatmul.f32.gmra.mxu0 %v1262
    %v1377 = vpop.f32.mrf.mxu0
    %v1378 = vadd.f32 0.0, %v1377
    %1379 = vdwg.mxu0
    %v1380 = vadd.f32 %v1181, %v1282
    %v1381 = vadd.f32 %v1182, %v1311
    %v1382 = vadd.f32 %v1183, %v1340
    %v1383 = vadd.f32 %v1184, %v1369
    %v1384 = vadd.f32 %v1185, %v1285
    %v1385 = vadd.f32 %v1186, %v1314
    %v1386 = vadd.f32 %v1187, %v1343
    %v1387 = vadd.f32 %v1188, %v1372
    %v1388 = vadd.f32 %v1189, %v1288
    %v1389 = vadd.f32 %v1190, %v1317
    %v1390 = vadd.f32 %v1191, %v1346
    %v1391 = vadd.f32 %v1192, %v1375
    %v1392 = vadd.f32 %v1193, %v1291
    %v1393 = vadd.f32 %v1194, %v1320
    %v1394 = vadd.f32 %v1195, %v1349
    %v1395 = vadd.f32 %v1196, %v1378
    %s1396 = scalar_lea.vmem %s7, 160
    %v1397 = vld [vmem:[%s1396] sm:$0xff]
    %v1398 = vld [vmem:[%s1396 + $0x8] sm:$0xff]
    %v1399 = vld [vmem:[%s1396 + $0x10] sm:$0xff]
    %v1400 = vld [vmem:[%s1396 + $0x18] sm:$0xff]
    %v1402 = vsel %vm406, %v1397, 0
    %v1405 = vsel %vm406, %v1398, 0
    %v1408 = vsel %vm406, %v1399, 0
    %v1411 = vsel %vm406, %v1400, 0
    %1413 = vmatpush.msra.mxu0 0.0
    %1414 = vmatpush.msra.mxu0 0.0
    %1415 = vmatpush.msra.mxu0 0.0
    %1416 = vmatpush.msra.mxu0 0.0
    %1417 = vmatpush.msra.mxu0 0.0
    %1418 = vmatpush.msra.mxu0 0.0
    %1419 = vmatpush.msra.mxu0 0.0
    %1420 = vmatpush.msra.mxu0 0.0
    %1421 = vmatpush.msra.mxu0 0.0
    %1422 = vmatpush.msra.mxu0 0.0
    %1423 = vmatpush.msra.mxu0 0.0
    %1424 = vmatpush.msra.mxu0 0.0
    %1425 = vmatpush.msra.mxu0 %v62
    %1426 = vmatpush.msra.mxu0 %v61
    %1427 = vmatpush.msra.mxu0 %v60
    %1428 = vmatpush.msra.mxu0 %v59
    %1429 = vmatmul.f32.gmra.mxu0 %v1402
    %v1430 = vpop.f32.mrf.mxu0
    %v1431 = vadd.f32 0.0, %v1430
    %1432 = vmatmul.f32.gmra.mxu0 %v1405
    %v1433 = vpop.f32.mrf.mxu0
    %v1434 = vadd.f32 0.0, %v1433
    %1435 = vmatmul.f32.gmra.mxu0 %v1408
    %v1436 = vpop.f32.mrf.mxu0
    %v1437 = vadd.f32 0.0, %v1436
    %1438 = vmatmul.f32.gmra.mxu0 %v1411
    %v1439 = vpop.f32.mrf.mxu0
    %v1440 = vadd.f32 0.0, %v1439
    %1441 = vdwg.mxu0
    %s1442 = scalar_lea.vmem %s2, 320
    %v1443 = vld [vmem:[%s1442] sm:$0xff]
    %v1444 = vld [vmem:[%s1442 + $0x8] sm:$0xff]
    %v1445 = vld [vmem:[%s1442 + $0x10] sm:$0xff]
    %v1446 = vld [vmem:[%s1442 + $0x18] sm:$0xff]
    %v1447 = vld [vmem:[%s1442 + $0x20] sm:$0xff]
    %v1448 = vld [vmem:[%s1442 + $0x28] sm:$0xff]
    %v1449 = vld [vmem:[%s1442 + $0x30] sm:$0xff]
    %v1450 = vld [vmem:[%s1442 + $0x38] sm:$0xff]
    %v1452 = vsel %vm157, %v1431, 0
    %v1455 = vsel %vm157, %v1434, 0
    %v1458 = vsel %vm157, %v1437, 0
    %v1461 = vsel %vm157, %v1440, 0
    %1463 = vmatpush.msra.mxu0 0.0
    %1464 = vmatpush.msra.mxu0 0.0
    %1465 = vmatpush.msra.mxu0 0.0
    %1466 = vmatpush.msra.mxu0 0.0
    %1467 = vmatpush.msra.mxu0 0.0
    %1468 = vmatpush.msra.mxu0 0.0
    %1469 = vmatpush.msra.mxu0 0.0
    %1470 = vmatpush.msra.mxu0 0.0
    %1471 = vmatpush.msra.mxu0 0.0
    %1472 = vmatpush.msra.mxu0 0.0
    %1473 = vmatpush.msra.mxu0 0.0
    %1474 = vmatpush.msra.mxu0 0.0
    %1475 = vmatpush.msra.mxu0 0.0
    %1476 = vmatpush.msra.mxu0 0.0
    %1477 = vmatpush.msra.mxu0 %v1447
    %1478 = vmatpush.msra.mxu0 %v1443
    %1479 = vmatmul.f32.gmra.mxu0 %v1452
    %v1480 = vpop.f32.mrf.mxu0
    %v1481 = vadd.f32 0.0, %v1480
    %1482 = vmatmul.f32.gmra.mxu0 %v1455
    %v1483 = vpop.f32.mrf.mxu0
    %v1484 = vadd.f32 0.0, %v1483
    %1485 = vmatmul.f32.gmra.mxu0 %v1458
    %v1486 = vpop.f32.mrf.mxu0
    %v1487 = vadd.f32 0.0, %v1486
    %1488 = vmatmul.f32.gmra.mxu0 %v1461
    %v1489 = vpop.f32.mrf.mxu0
    %v1490 = vadd.f32 0.0, %v1489
    %1491 = vdwg.mxu0
    %1492 = vmatpush.msra.mxu0 0.0
    %1493 = vmatpush.msra.mxu0 0.0
    %1494 = vmatpush.msra.mxu0 0.0
    %1495 = vmatpush.msra.mxu0 0.0
    %1496 = vmatpush.msra.mxu0 0.0
    %1497 = vmatpush.msra.mxu0 0.0
    %1498 = vmatpush.msra.mxu0 0.0
    %1499 = vmatpush.msra.mxu0 0.0
    %1500 = vmatpush.msra.mxu0 0.0
    %1501 = vmatpush.msra.mxu0 0.0
    %1502 = vmatpush.msra.mxu0 0.0
    %1503 = vmatpush.msra.mxu0 0.0
    %1504 = vmatpush.msra.mxu0 0.0
    %1505 = vmatpush.msra.mxu0 0.0
    %1506 = vmatpush.msra.mxu0 %v1448
    %1507 = vmatpush.msra.mxu0 %v1444
    %1508 = vmatmul.f32.gmra.mxu0 %v1452
    %v1509 = vpop.f32.mrf.mxu0
    %v1510 = vadd.f32 0.0, %v1509
    %1511 = vmatmul.f32.gmra.mxu0 %v1455
    %v1512 = vpop.f32.mrf.mxu0
    %v1513 = vadd.f32 0.0, %v1512
    %1514 = vmatmul.f32.gmra.mxu0 %v1458
    %v1515 = vpop.f32.mrf.mxu0
    %v1516 = vadd.f32 0.0, %v1515
    %1517 = vmatmul.f32.gmra.mxu0 %v1461
    %v1518 = vpop.f32.mrf.mxu0
    %v1519 = vadd.f32 0.0, %v1518
    %1520 = vdwg.mxu0
    %1521 = vmatpush.msra.mxu0 0.0
    %1522 = vmatpush.msra.mxu0 0.0
    %1523 = vmatpush.msra.mxu0 0.0
    %1524 = vmatpush.msra.mxu0 0.0
    %1525 = vmatpush.msra.mxu0 0.0
    %1526 = vmatpush.msra.mxu0 0.0
    %1527 = vmatpush.msra.mxu0 0.0
    %1528 = vmatpush.msra.mxu0 0.0
    %1529 = vmatpush.msra.mxu0 0.0
    %1530 = vmatpush.msra.mxu0 0.0
    %1531 = vmatpush.msra.mxu0 0.0
    %1532 = vmatpush.msra.mxu0 0.0
    %1533 = vmatpush.msra.mxu0 0.0
    %1534 = vmatpush.msra.mxu0 0.0
    %1535 = vmatpush.msra.mxu0 %v1449
    %1536 = vmatpush.msra.mxu0 %v1445
    %1537 = vmatmul.f32.gmra.mxu0 %v1452
    %v1538 = vpop.f32.mrf.mxu0
    %v1539 = vadd.f32 0.0, %v1538
    %1540 = vmatmul.f32.gmra.mxu0 %v1455
    %v1541 = vpop.f32.mrf.mxu0
    %v1542 = vadd.f32 0.0, %v1541
    %1543 = vmatmul.f32.gmra.mxu0 %v1458
    %v1544 = vpop.f32.mrf.mxu0
    %v1545 = vadd.f32 0.0, %v1544
    %1546 = vmatmul.f32.gmra.mxu0 %v1461
    %v1547 = vpop.f32.mrf.mxu0
    %v1548 = vadd.f32 0.0, %v1547
    %1549 = vdwg.mxu0
    %1550 = vmatpush.msra.mxu0 0.0
    %1551 = vmatpush.msra.mxu0 0.0
    %1552 = vmatpush.msra.mxu0 0.0
    %1553 = vmatpush.msra.mxu0 0.0
    %1554 = vmatpush.msra.mxu0 0.0
    %1555 = vmatpush.msra.mxu0 0.0
    %1556 = vmatpush.msra.mxu0 0.0
    %1557 = vmatpush.msra.mxu0 0.0
    %1558 = vmatpush.msra.mxu0 0.0
    %1559 = vmatpush.msra.mxu0 0.0
    %1560 = vmatpush.msra.mxu0 0.0
    %1561 = vmatpush.msra.mxu0 0.0
    %1562 = vmatpush.msra.mxu0 0.0
    %1563 = vmatpush.msra.mxu0 0.0
    %1564 = vmatpush.msra.mxu0 %v1450
    %1565 = vmatpush.msra.mxu0 %v1446
    %1566 = vmatmul.f32.gmra.mxu0 %v1452
    %v1567 = vpop.f32.mrf.mxu0
    %v1568 = vadd.f32 0.0, %v1567
    %1569 = vmatmul.f32.gmra.mxu0 %v1455
    %v1570 = vpop.f32.mrf.mxu0
    %v1571 = vadd.f32 0.0, %v1570
    %1572 = vmatmul.f32.gmra.mxu0 %v1458
    %v1573 = vpop.f32.mrf.mxu0
    %v1574 = vadd.f32 0.0, %v1573
    %1575 = vmatmul.f32.gmra.mxu0 %v1461
    %v1576 = vpop.f32.mrf.mxu0
    %v1577 = vadd.f32 0.0, %v1576
    %1578 = vdwg.mxu0
    %v1579 = vadd.f32 %v1380, %v1481
    %v1580 = vadd.f32 %v1381, %v1510
    %v1581 = vadd.f32 %v1382, %v1539
    %v1582 = vadd.f32 %v1383, %v1568
    %v1583 = vadd.f32 %v1384, %v1484
    %v1584 = vadd.f32 %v1385, %v1513
    %v1585 = vadd.f32 %v1386, %v1542
    %v1586 = vadd.f32 %v1387, %v1571
    %v1587 = vadd.f32 %v1388, %v1487
    %v1588 = vadd.f32 %v1389, %v1516
    %v1589 = vadd.f32 %v1390, %v1545
    %v1590 = vadd.f32 %v1391, %v1574
    %v1591 = vadd.f32 %v1392, %v1490
    %v1592 = vadd.f32 %v1393, %v1519
    %v1593 = vadd.f32 %v1394, %v1548
    %v1594 = vadd.f32 %v1395, %v1577
    %s1595 = scalar_lea.vmem %s7, 192
    %v1596 = vld [vmem:[%s1595] sm:$0xff]
    %v1597 = vld [vmem:[%s1595 + $0x8] sm:$0xff]
    %v1598 = vld [vmem:[%s1595 + $0x10] sm:$0xff]
    %v1599 = vld [vmem:[%s1595 + $0x18] sm:$0xff]
    %v1601 = vsel %vm406, %v1596, 0
    %v1604 = vsel %vm406, %v1597, 0
    %v1607 = vsel %vm406, %v1598, 0
    %v1610 = vsel %vm406, %v1599, 0
    %1612 = vmatpush.msra.mxu0 0.0
    %1613 = vmatpush.msra.mxu0 0.0
    %1614 = vmatpush.msra.mxu0 0.0
    %1615 = vmatpush.msra.mxu0 0.0
    %1616 = vmatpush.msra.mxu0 0.0
    %1617 = vmatpush.msra.mxu0 0.0
    %1618 = vmatpush.msra.mxu0 0.0
    %1619 = vmatpush.msra.mxu0 0.0
    %1620 = vmatpush.msra.mxu0 0.0
    %1621 = vmatpush.msra.mxu0 0.0
    %1622 = vmatpush.msra.mxu0 0.0
    %1623 = vmatpush.msra.mxu0 0.0
    %1624 = vmatpush.msra.mxu0 %v62
    %1625 = vmatpush.msra.mxu0 %v61
    %1626 = vmatpush.msra.mxu0 %v60
    %1627 = vmatpush.msra.mxu0 %v59
    %1628 = vmatmul.f32.gmra.mxu0 %v1601
    %v1629 = vpop.f32.mrf.mxu0
    %v1630 = vadd.f32 0.0, %v1629
    %1631 = vmatmul.f32.gmra.mxu0 %v1604
    %v1632 = vpop.f32.mrf.mxu0
    %v1633 = vadd.f32 0.0, %v1632
    %1634 = vmatmul.f32.gmra.mxu0 %v1607
    %v1635 = vpop.f32.mrf.mxu0
    %v1636 = vadd.f32 0.0, %v1635
    %1637 = vmatmul.f32.gmra.mxu0 %v1610
    %v1638 = vpop.f32.mrf.mxu0
    %v1639 = vadd.f32 0.0, %v1638
    %1640 = vdwg.mxu0
    %s1641 = scalar_lea.vmem %s2, 384
    %v1642 = vld [vmem:[%s1641] sm:$0xff]
    %v1643 = vld [vmem:[%s1641 + $0x8] sm:$0xff]
    %v1644 = vld [vmem:[%s1641 + $0x10] sm:$0xff]
    %v1645 = vld [vmem:[%s1641 + $0x18] sm:$0xff]
    %v1646 = vld [vmem:[%s1641 + $0x20] sm:$0xff]
    %v1647 = vld [vmem:[%s1641 + $0x28] sm:$0xff]
    %v1648 = vld [vmem:[%s1641 + $0x30] sm:$0xff]
    %v1649 = vld [vmem:[%s1641 + $0x38] sm:$0xff]
    %v1651 = vsel %vm157, %v1630, 0
    %v1654 = vsel %vm157, %v1633, 0
    %v1657 = vsel %vm157, %v1636, 0
    %v1660 = vsel %vm157, %v1639, 0
    %1662 = vmatpush.msra.mxu0 0.0
    %1663 = vmatpush.msra.mxu0 0.0
    %1664 = vmatpush.msra.mxu0 0.0
    %1665 = vmatpush.msra.mxu0 0.0
    %1666 = vmatpush.msra.mxu0 0.0
    %1667 = vmatpush.msra.mxu0 0.0
    %1668 = vmatpush.msra.mxu0 0.0
    %1669 = vmatpush.msra.mxu0 0.0
    %1670 = vmatpush.msra.mxu0 0.0
    %1671 = vmatpush.msra.mxu0 0.0
    %1672 = vmatpush.msra.mxu0 0.0
    %1673 = vmatpush.msra.mxu0 0.0
    %1674 = vmatpush.msra.mxu0 0.0
    %1675 = vmatpush.msra.mxu0 0.0
    %1676 = vmatpush.msra.mxu0 %v1646
    %1677 = vmatpush.msra.mxu0 %v1642
    %1678 = vmatmul.f32.gmra.mxu0 %v1651
    %v1679 = vpop.f32.mrf.mxu0
    %v1680 = vadd.f32 0.0, %v1679
    %1681 = vmatmul.f32.gmra.mxu0 %v1654
    %v1682 = vpop.f32.mrf.mxu0
    %v1683 = vadd.f32 0.0, %v1682
    %1684 = vmatmul.f32.gmra.mxu0 %v1657
    %v1685 = vpop.f32.mrf.mxu0
    %v1686 = vadd.f32 0.0, %v1685
    %1687 = vmatmul.f32.gmra.mxu0 %v1660
    %v1688 = vpop.f32.mrf.mxu0
    %v1689 = vadd.f32 0.0, %v1688
    %1690 = vdwg.mxu0
    %1691 = vmatpush.msra.mxu0 0.0
    %1692 = vmatpush.msra.mxu0 0.0
    %1693 = vmatpush.msra.mxu0 0.0
    %1694 = vmatpush.msra.mxu0 0.0
    %1695 = vmatpush.msra.mxu0 0.0
    %1696 = vmatpush.msra.mxu0 0.0
    %1697 = vmatpush.msra.mxu0 0.0
    %1698 = vmatpush.msra.mxu0 0.0
    %1699 = vmatpush.msra.mxu0 0.0
    %1700 = vmatpush.msra.mxu0 0.0
    %1701 = vmatpush.msra.mxu0 0.0
    %1702 = vmatpush.msra.mxu0 0.0
    %1703 = vmatpush.msra.mxu0 0.0
    %1704 = vmatpush.msra.mxu0 0.0
    %1705 = vmatpush.msra.mxu0 %v1647
    %1706 = vmatpush.msra.mxu0 %v1643
    %1707 = vmatmul.f32.gmra.mxu0 %v1651
    %v1708 = vpop.f32.mrf.mxu0
    %v1709 = vadd.f32 0.0, %v1708
    %1710 = vmatmul.f32.gmra.mxu0 %v1654
    %v1711 = vpop.f32.mrf.mxu0
    %v1712 = vadd.f32 0.0, %v1711
    %1713 = vmatmul.f32.gmra.mxu0 %v1657
    %v1714 = vpop.f32.mrf.mxu0
    %v1715 = vadd.f32 0.0, %v1714
    %1716 = vmatmul.f32.gmra.mxu0 %v1660
    %v1717 = vpop.f32.mrf.mxu0
    %v1718 = vadd.f32 0.0, %v1717
    %1719 = vdwg.mxu0
    %1720 = vmatpush.msra.mxu0 0.0
    %1721 = vmatpush.msra.mxu0 0.0
    %1722 = vmatpush.msra.mxu0 0.0
    %1723 = vmatpush.msra.mxu0 0.0
    %1724 = vmatpush.msra.mxu0 0.0
    %1725 = vmatpush.msra.mxu0 0.0
    %1726 = vmatpush.msra.mxu0 0.0
    %1727 = vmatpush.msra.mxu0 0.0
    %1728 = vmatpush.msra.mxu0 0.0
    %1729 = vmatpush.msra.mxu0 0.0
    %1730 = vmatpush.msra.mxu0 0.0
    %1731 = vmatpush.msra.mxu0 0.0
    %1732 = vmatpush.msra.mxu0 0.0
    %1733 = vmatpush.msra.mxu0 0.0
    %1734 = vmatpush.msra.mxu0 %v1648
    %1735 = vmatpush.msra.mxu0 %v1644
    %1736 = vmatmul.f32.gmra.mxu0 %v1651
    %v1737 = vpop.f32.mrf.mxu0
    %v1738 = vadd.f32 0.0, %v1737
    %1739 = vmatmul.f32.gmra.mxu0 %v1654
    %v1740 = vpop.f32.mrf.mxu0
    %v1741 = vadd.f32 0.0, %v1740
    %1742 = vmatmul.f32.gmra.mxu0 %v1657
    %v1743 = vpop.f32.mrf.mxu0
    %v1744 = vadd.f32 0.0, %v1743
    %1745 = vmatmul.f32.gmra.mxu0 %v1660
    %v1746 = vpop.f32.mrf.mxu0
    %v1747 = vadd.f32 0.0, %v1746
    %1748 = vdwg.mxu0
    %1749 = vmatpush.msra.mxu0 0.0
    %1750 = vmatpush.msra.mxu0 0.0
    %1751 = vmatpush.msra.mxu0 0.0
    %1752 = vmatpush.msra.mxu0 0.0
    %1753 = vmatpush.msra.mxu0 0.0
    %1754 = vmatpush.msra.mxu0 0.0
    %1755 = vmatpush.msra.mxu0 0.0
    %1756 = vmatpush.msra.mxu0 0.0
    %1757 = vmatpush.msra.mxu0 0.0
    %1758 = vmatpush.msra.mxu0 0.0
    %1759 = vmatpush.msra.mxu0 0.0
    %1760 = vmatpush.msra.mxu0 0.0
    %1761 = vmatpush.msra.mxu0 0.0
    %1762 = vmatpush.msra.mxu0 0.0
    %1763 = vmatpush.msra.mxu0 %v1649
    %1764 = vmatpush.msra.mxu0 %v1645
    %1765 = vmatmul.f32.gmra.mxu0 %v1651
    %v1766 = vpop.f32.mrf.mxu0
    %v1767 = vadd.f32 0.0, %v1766
    %1768 = vmatmul.f32.gmra.mxu0 %v1654
    %v1769 = vpop.f32.mrf.mxu0
    %v1770 = vadd.f32 0.0, %v1769
    %1771 = vmatmul.f32.gmra.mxu0 %v1657
    %v1772 = vpop.f32.mrf.mxu0
    %v1773 = vadd.f32 0.0, %v1772
    %1774 = vmatmul.f32.gmra.mxu0 %v1660
    %v1775 = vpop.f32.mrf.mxu0
    %v1776 = vadd.f32 0.0, %v1775
    %1777 = vdwg.mxu0
    %v1778 = vadd.f32 %v1579, %v1680
    %v1779 = vadd.f32 %v1580, %v1709
    %v1780 = vadd.f32 %v1581, %v1738
    %v1781 = vadd.f32 %v1582, %v1767
    %v1782 = vadd.f32 %v1583, %v1683
    %v1783 = vadd.f32 %v1584, %v1712
    %v1784 = vadd.f32 %v1585, %v1741
    %v1785 = vadd.f32 %v1586, %v1770
    %v1786 = vadd.f32 %v1587, %v1686
    %v1787 = vadd.f32 %v1588, %v1715
    %v1788 = vadd.f32 %v1589, %v1744
    %v1789 = vadd.f32 %v1590, %v1773
    %v1790 = vadd.f32 %v1591, %v1689
    %v1791 = vadd.f32 %v1592, %v1718
    %v1792 = vadd.f32 %v1593, %v1747
    %v1793 = vadd.f32 %v1594, %v1776
    %s1794 = scalar_lea.vmem %s7, 224
    %v1795 = vld [vmem:[%s1794] sm:$0xff]
    %v1796 = vld [vmem:[%s1794 + $0x8] sm:$0xff]
    %v1797 = vld [vmem:[%s1794 + $0x10] sm:$0xff]
    %v1798 = vld [vmem:[%s1794 + $0x18] sm:$0xff]
    %v1800 = vsel %vm406, %v1795, 0
    %v1803 = vsel %vm406, %v1796, 0
    %v1806 = vsel %vm406, %v1797, 0
    %v1809 = vsel %vm406, %v1798, 0
    %1811 = vmatpush.msra.mxu0 0.0
    %1812 = vmatpush.msra.mxu0 0.0
    %1813 = vmatpush.msra.mxu0 0.0
    %1814 = vmatpush.msra.mxu0 0.0
    %1815 = vmatpush.msra.mxu0 0.0
    %1816 = vmatpush.msra.mxu0 0.0
    %1817 = vmatpush.msra.mxu0 0.0
    %1818 = vmatpush.msra.mxu0 0.0
    %1819 = vmatpush.msra.mxu0 0.0
    %1820 = vmatpush.msra.mxu0 0.0
    %1821 = vmatpush.msra.mxu0 0.0
    %1822 = vmatpush.msra.mxu0 0.0
    %1823 = vmatpush.msra.mxu0 %v62
    %1824 = vmatpush.msra.mxu0 %v61
    %1825 = vmatpush.msra.mxu0 %v60
    %1826 = vmatpush.msra.mxu0 %v59
    %1827 = vmatmul.f32.gmra.mxu0 %v1800
    %v1828 = vpop.f32.mrf.mxu0
    %v1829 = vadd.f32 0.0, %v1828
    %1830 = vmatmul.f32.gmra.mxu0 %v1803
    %v1831 = vpop.f32.mrf.mxu0
    %v1832 = vadd.f32 0.0, %v1831
    %1833 = vmatmul.f32.gmra.mxu0 %v1806
    %v1834 = vpop.f32.mrf.mxu0
    %v1835 = vadd.f32 0.0, %v1834
    %1836 = vmatmul.f32.gmra.mxu0 %v1809
    %v1837 = vpop.f32.mrf.mxu0
    %v1838 = vadd.f32 0.0, %v1837
    %1839 = vdwg.mxu0
    %s1840 = scalar_lea.vmem %s2, 448
    %v1841 = vld [vmem:[%s1840] sm:$0xff]
    %v1842 = vld [vmem:[%s1840 + $0x8] sm:$0xff]
    %v1843 = vld [vmem:[%s1840 + $0x10] sm:$0xff]
    %v1844 = vld [vmem:[%s1840 + $0x18] sm:$0xff]
    %v1845 = vld [vmem:[%s1840 + $0x20] sm:$0xff]
    %v1846 = vld [vmem:[%s1840 + $0x28] sm:$0xff]
    %v1847 = vld [vmem:[%s1840 + $0x30] sm:$0xff]
    %v1848 = vld [vmem:[%s1840 + $0x38] sm:$0xff]
    %v1850 = vsel %vm157, %v1829, 0
    %v1853 = vsel %vm157, %v1832, 0
    %v1856 = vsel %vm157, %v1835, 0
    %v1859 = vsel %vm157, %v1838, 0
    %1861 = vmatpush.msra.mxu0 0.0
    %1862 = vmatpush.msra.mxu0 0.0
    %1863 = vmatpush.msra.mxu0 0.0
    %1864 = vmatpush.msra.mxu0 0.0
    %1865 = vmatpush.msra.mxu0 0.0
    %1866 = vmatpush.msra.mxu0 0.0
    %1867 = vmatpush.msra.mxu0 0.0
    %1868 = vmatpush.msra.mxu0 0.0
    %1869 = vmatpush.msra.mxu0 0.0
    %1870 = vmatpush.msra.mxu0 0.0
    %1871 = vmatpush.msra.mxu0 0.0
    %1872 = vmatpush.msra.mxu0 0.0
    %1873 = vmatpush.msra.mxu0 0.0
    %1874 = vmatpush.msra.mxu0 0.0
    %1875 = vmatpush.msra.mxu0 %v1845
    %1876 = vmatpush.msra.mxu0 %v1841
    %1877 = vmatmul.f32.gmra.mxu0 %v1850
    %v1878 = vpop.f32.mrf.mxu0
    %v1879 = vadd.f32 0.0, %v1878
    %1880 = vmatmul.f32.gmra.mxu0 %v1853
    %v1881 = vpop.f32.mrf.mxu0
    %v1882 = vadd.f32 0.0, %v1881
    %1883 = vmatmul.f32.gmra.mxu0 %v1856
    %v1884 = vpop.f32.mrf.mxu0
    %v1885 = vadd.f32 0.0, %v1884
    %1886 = vmatmul.f32.gmra.mxu0 %v1859
    %v1887 = vpop.f32.mrf.mxu0
    %v1888 = vadd.f32 0.0, %v1887
    %1889 = vdwg.mxu0
    %1890 = vmatpush.msra.mxu0 0.0
    %1891 = vmatpush.msra.mxu0 0.0
    %1892 = vmatpush.msra.mxu0 0.0
    %1893 = vmatpush.msra.mxu0 0.0
    %1894 = vmatpush.msra.mxu0 0.0
    %1895 = vmatpush.msra.mxu0 0.0
    %1896 = vmatpush.msra.mxu0 0.0
    %1897 = vmatpush.msra.mxu0 0.0
    %1898 = vmatpush.msra.mxu0 0.0
    %1899 = vmatpush.msra.mxu0 0.0
    %1900 = vmatpush.msra.mxu0 0.0
    %1901 = vmatpush.msra.mxu0 0.0
    %1902 = vmatpush.msra.mxu0 0.0
    %1903 = vmatpush.msra.mxu0 0.0
    %1904 = vmatpush.msra.mxu0 %v1846
    %1905 = vmatpush.msra.mxu0 %v1842
    %1906 = vmatmul.f32.gmra.mxu0 %v1850
    %v1907 = vpop.f32.mrf.mxu0
    %v1908 = vadd.f32 0.0, %v1907
    %1909 = vmatmul.f32.gmra.mxu0 %v1853
    %v1910 = vpop.f32.mrf.mxu0
    %v1911 = vadd.f32 0.0, %v1910
    %1912 = vmatmul.f32.gmra.mxu0 %v1856
    %v1913 = vpop.f32.mrf.mxu0
    %v1914 = vadd.f32 0.0, %v1913
    %1915 = vmatmul.f32.gmra.mxu0 %v1859
    %v1916 = vpop.f32.mrf.mxu0
    %v1917 = vadd.f32 0.0, %v1916
    %1918 = vdwg.mxu0
    %1919 = vmatpush.msra.mxu0 0.0
    %1920 = vmatpush.msra.mxu0 0.0
    %1921 = vmatpush.msra.mxu0 0.0
    %1922 = vmatpush.msra.mxu0 0.0
    %1923 = vmatpush.msra.mxu0 0.0
    %1924 = vmatpush.msra.mxu0 0.0
    %1925 = vmatpush.msra.mxu0 0.0
    %1926 = vmatpush.msra.mxu0 0.0
    %1927 = vmatpush.msra.mxu0 0.0
    %1928 = vmatpush.msra.mxu0 0.0
    %1929 = vmatpush.msra.mxu0 0.0
    %1930 = vmatpush.msra.mxu0 0.0
    %1931 = vmatpush.msra.mxu0 0.0
    %1932 = vmatpush.msra.mxu0 0.0
    %1933 = vmatpush.msra.mxu0 %v1847
    %1934 = vmatpush.msra.mxu0 %v1843
    %1935 = vmatmul.f32.gmra.mxu0 %v1850
    %v1936 = vpop.f32.mrf.mxu0
    %v1937 = vadd.f32 0.0, %v1936
    %1938 = vmatmul.f32.gmra.mxu0 %v1853
    %v1939 = vpop.f32.mrf.mxu0
    %v1940 = vadd.f32 0.0, %v1939
    %1941 = vmatmul.f32.gmra.mxu0 %v1856
    %v1942 = vpop.f32.mrf.mxu0
    %v1943 = vadd.f32 0.0, %v1942
    %1944 = vmatmul.f32.gmra.mxu0 %v1859
    %v1945 = vpop.f32.mrf.mxu0
    %v1946 = vadd.f32 0.0, %v1945
    %1947 = vdwg.mxu0
    %1948 = vmatpush.msra.mxu0 0.0
    %1949 = vmatpush.msra.mxu0 0.0
    %1950 = vmatpush.msra.mxu0 0.0
    %1951 = vmatpush.msra.mxu0 0.0
    %1952 = vmatpush.msra.mxu0 0.0
    %1953 = vmatpush.msra.mxu0 0.0
    %1954 = vmatpush.msra.mxu0 0.0
    %1955 = vmatpush.msra.mxu0 0.0
    %1956 = vmatpush.msra.mxu0 0.0
    %1957 = vmatpush.msra.mxu0 0.0
    %1958 = vmatpush.msra.mxu0 0.0
    %1959 = vmatpush.msra.mxu0 0.0
    %1960 = vmatpush.msra.mxu0 0.0
    %1961 = vmatpush.msra.mxu0 0.0
    %1962 = vmatpush.msra.mxu0 %v1848
    %1963 = vmatpush.msra.mxu0 %v1844
    %1964 = vmatmul.f32.gmra.mxu0 %v1850
    %v1965 = vpop.f32.mrf.mxu0
    %v1966 = vadd.f32 0.0, %v1965
    %1967 = vmatmul.f32.gmra.mxu0 %v1853
    %v1968 = vpop.f32.mrf.mxu0
    %v1969 = vadd.f32 0.0, %v1968
    %1970 = vmatmul.f32.gmra.mxu0 %v1856
    %v1971 = vpop.f32.mrf.mxu0
    %v1972 = vadd.f32 0.0, %v1971
    %1973 = vmatmul.f32.gmra.mxu0 %v1859
    %v1974 = vpop.f32.mrf.mxu0
    %v1975 = vadd.f32 0.0, %v1974
    %1976 = vdwg.mxu0
    %v1977 = vadd.f32 %v1778, %v1879
    %v1978 = vadd.f32 %v1779, %v1908
    %v1979 = vadd.f32 %v1780, %v1937
    %v1980 = vadd.f32 %v1781, %v1966
    %v1981 = vadd.f32 %v1782, %v1882
    %v1982 = vadd.f32 %v1783, %v1911
    %v1983 = vadd.f32 %v1784, %v1940
    %v1984 = vadd.f32 %v1785, %v1969
    %v1985 = vadd.f32 %v1786, %v1885
    %v1986 = vadd.f32 %v1787, %v1914
    %v1987 = vadd.f32 %v1788, %v1943
    %v1988 = vadd.f32 %v1789, %v1972
    %v1989 = vadd.f32 %v1790, %v1888
    %v1990 = vadd.f32 %v1791, %v1917
    %v1991 = vadd.f32 %v1792, %v1946
    %v1992 = vadd.f32 %v1793, %v1975
    %s1993 = scalar_lea.vmem %s7, 256
    %v1994 = vld [vmem:[%s1993] sm:$0xff]
    %v1995 = vld [vmem:[%s1993 + $0x8] sm:$0xff]
    %v1996 = vld [vmem:[%s1993 + $0x10] sm:$0xff]
    %v1997 = vld [vmem:[%s1993 + $0x18] sm:$0xff]
    %v1999 = vsel %vm406, %v1994, 0
    %v2002 = vsel %vm406, %v1995, 0
    %v2005 = vsel %vm406, %v1996, 0
    %v2008 = vsel %vm406, %v1997, 0
    %2010 = vmatpush.msra.mxu0 0.0
    %2011 = vmatpush.msra.mxu0 0.0
    %2012 = vmatpush.msra.mxu0 0.0
    %2013 = vmatpush.msra.mxu0 0.0
    %2014 = vmatpush.msra.mxu0 0.0
    %2015 = vmatpush.msra.mxu0 0.0
    %2016 = vmatpush.msra.mxu0 0.0
    %2017 = vmatpush.msra.mxu0 0.0
    %2018 = vmatpush.msra.mxu0 0.0
    %2019 = vmatpush.msra.mxu0 0.0
    %2020 = vmatpush.msra.mxu0 0.0
    %2021 = vmatpush.msra.mxu0 0.0
    %2022 = vmatpush.msra.mxu0 %v62
    %2023 = vmatpush.msra.mxu0 %v61
    %2024 = vmatpush.msra.mxu0 %v60
    %2025 = vmatpush.msra.mxu0 %v59
    %2026 = vmatmul.f32.gmra.mxu0 %v1999
    %v2027 = vpop.f32.mrf.mxu0
    %v2028 = vadd.f32 0.0, %v2027
    %2029 = vmatmul.f32.gmra.mxu0 %v2002
    %v2030 = vpop.f32.mrf.mxu0
    %v2031 = vadd.f32 0.0, %v2030
    %2032 = vmatmul.f32.gmra.mxu0 %v2005
    %v2033 = vpop.f32.mrf.mxu0
    %v2034 = vadd.f32 0.0, %v2033
    %2035 = vmatmul.f32.gmra.mxu0 %v2008
    %v2036 = vpop.f32.mrf.mxu0
    %v2037 = vadd.f32 0.0, %v2036
    %2038 = vdwg.mxu0
    %s2039 = scalar_lea.vmem %s2, 512
    %v2040 = vld [vmem:[%s2039] sm:$0xff]
    %v2041 = vld [vmem:[%s2039 + $0x8] sm:$0xff]
    %v2042 = vld [vmem:[%s2039 + $0x10] sm:$0xff]
    %v2043 = vld [vmem:[%s2039 + $0x18] sm:$0xff]
    %v2044 = vld [vmem:[%s2039 + $0x20] sm:$0xff]
    %v2045 = vld [vmem:[%s2039 + $0x28] sm:$0xff]
    %v2046 = vld [vmem:[%s2039 + $0x30] sm:$0xff]
    %v2047 = vld [vmem:[%s2039 + $0x38] sm:$0xff]
    %v2049 = vsel %vm157, %v2028, 0
    %v2052 = vsel %vm157, %v2031, 0
    %v2055 = vsel %vm157, %v2034, 0
    %v2058 = vsel %vm157, %v2037, 0
    %2060 = vmatpush.msra.mxu0 0.0
    %2061 = vmatpush.msra.mxu0 0.0
    %2062 = vmatpush.msra.mxu0 0.0
    %2063 = vmatpush.msra.mxu0 0.0
    %2064 = vmatpush.msra.mxu0 0.0
    %2065 = vmatpush.msra.mxu0 0.0
    %2066 = vmatpush.msra.mxu0 0.0
    %2067 = vmatpush.msra.mxu0 0.0
    %2068 = vmatpush.msra.mxu0 0.0
    %2069 = vmatpush.msra.mxu0 0.0
    %2070 = vmatpush.msra.mxu0 0.0
    %2071 = vmatpush.msra.mxu0 0.0
    %2072 = vmatpush.msra.mxu0 0.0
    %2073 = vmatpush.msra.mxu0 0.0
    %2074 = vmatpush.msra.mxu0 %v2044
    %2075 = vmatpush.msra.mxu0 %v2040
    %2076 = vmatmul.f32.gmra.mxu0 %v2049
    %v2077 = vpop.f32.mrf.mxu0
    %v2078 = vadd.f32 0.0, %v2077
    %2079 = vmatmul.f32.gmra.mxu0 %v2052
    %v2080 = vpop.f32.mrf.mxu0
    %v2081 = vadd.f32 0.0, %v2080
    %2082 = vmatmul.f32.gmra.mxu0 %v2055
    %v2083 = vpop.f32.mrf.mxu0
    %v2084 = vadd.f32 0.0, %v2083
    %2085 = vmatmul.f32.gmra.mxu0 %v2058
    %v2086 = vpop.f32.mrf.mxu0
    %v2087 = vadd.f32 0.0, %v2086
    %2088 = vdwg.mxu0
    %2089 = vmatpush.msra.mxu0 0.0
    %2090 = vmatpush.msra.mxu0 0.0
    %2091 = vmatpush.msra.mxu0 0.0
    %2092 = vmatpush.msra.mxu0 0.0
    %2093 = vmatpush.msra.mxu0 0.0
    %2094 = vmatpush.msra.mxu0 0.0
    %2095 = vmatpush.msra.mxu0 0.0
    %2096 = vmatpush.msra.mxu0 0.0
    %2097 = vmatpush.msra.mxu0 0.0
    %2098 = vmatpush.msra.mxu0 0.0
    %2099 = vmatpush.msra.mxu0 0.0
    %2100 = vmatpush.msra.mxu0 0.0
    %2101 = vmatpush.msra.mxu0 0.0
    %2102 = vmatpush.msra.mxu0 0.0
    %2103 = vmatpush.msra.mxu0 %v2045
    %2104 = vmatpush.msra.mxu0 %v2041
    %2105 = vmatmul.f32.gmra.mxu0 %v2049
    %v2106 = vpop.f32.mrf.mxu0
    %v2107 = vadd.f32 0.0, %v2106
    %2108 = vmatmul.f32.gmra.mxu0 %v2052
    %v2109 = vpop.f32.mrf.mxu0
    %v2110 = vadd.f32 0.0, %v2109
    %2111 = vmatmul.f32.gmra.mxu0 %v2055
    %v2112 = vpop.f32.mrf.mxu0
    %v2113 = vadd.f32 0.0, %v2112
    %2114 = vmatmul.f32.gmra.mxu0 %v2058
    %v2115 = vpop.f32.mrf.mxu0
    %v2116 = vadd.f32 0.0, %v2115
    %2117 = vdwg.mxu0
    %2118 = vmatpush.msra.mxu0 0.0
    %2119 = vmatpush.msra.mxu0 0.0
    %2120 = vmatpush.msra.mxu0 0.0
    %2121 = vmatpush.msra.mxu0 0.0
    %2122 = vmatpush.msra.mxu0 0.0
    %2123 = vmatpush.msra.mxu0 0.0
    %2124 = vmatpush.msra.mxu0 0.0
    %2125 = vmatpush.msra.mxu0 0.0
    %2126 = vmatpush.msra.mxu0 0.0
    %2127 = vmatpush.msra.mxu0 0.0
    %2128 = vmatpush.msra.mxu0 0.0
    %2129 = vmatpush.msra.mxu0 0.0
    %2130 = vmatpush.msra.mxu0 0.0
    %2131 = vmatpush.msra.mxu0 0.0
    %2132 = vmatpush.msra.mxu0 %v2046
    %2133 = vmatpush.msra.mxu0 %v2042
    %2134 = vmatmul.f32.gmra.mxu0 %v2049
    %v2135 = vpop.f32.mrf.mxu0
    %v2136 = vadd.f32 0.0, %v2135
    %2137 = vmatmul.f32.gmra.mxu0 %v2052
    %v2138 = vpop.f32.mrf.mxu0
    %v2139 = vadd.f32 0.0, %v2138
    %2140 = vmatmul.f32.gmra.mxu0 %v2055
    %v2141 = vpop.f32.mrf.mxu0
    %v2142 = vadd.f32 0.0, %v2141
    %2143 = vmatmul.f32.gmra.mxu0 %v2058
    %v2144 = vpop.f32.mrf.mxu0
    %v2145 = vadd.f32 0.0, %v2144
    %2146 = vdwg.mxu0
    %2147 = vmatpush.msra.mxu0 0.0
    %2148 = vmatpush.msra.mxu0 0.0
    %2149 = vmatpush.msra.mxu0 0.0
    %2150 = vmatpush.msra.mxu0 0.0
    %2151 = vmatpush.msra.mxu0 0.0
    %2152 = vmatpush.msra.mxu0 0.0
    %2153 = vmatpush.msra.mxu0 0.0
    %2154 = vmatpush.msra.mxu0 0.0
    %2155 = vmatpush.msra.mxu0 0.0
    %2156 = vmatpush.msra.mxu0 0.0
    %2157 = vmatpush.msra.mxu0 0.0
    %2158 = vmatpush.msra.mxu0 0.0
    %2159 = vmatpush.msra.mxu0 0.0
    %2160 = vmatpush.msra.mxu0 0.0
    %2161 = vmatpush.msra.mxu0 %v2047
    %2162 = vmatpush.msra.mxu0 %v2043
    %2163 = vmatmul.f32.gmra.mxu0 %v2049
    %v2164 = vpop.f32.mrf.mxu0
    %v2165 = vadd.f32 0.0, %v2164
    %2166 = vmatmul.f32.gmra.mxu0 %v2052
    %v2167 = vpop.f32.mrf.mxu0
    %v2168 = vadd.f32 0.0, %v2167
    %2169 = vmatmul.f32.gmra.mxu0 %v2055
    %v2170 = vpop.f32.mrf.mxu0
    %v2171 = vadd.f32 0.0, %v2170
    %2172 = vmatmul.f32.gmra.mxu0 %v2058
    %v2173 = vpop.f32.mrf.mxu0
    %v2174 = vadd.f32 0.0, %v2173
    %2175 = vdwg.mxu0
    %v2176 = vadd.f32 %v1977, %v2078
    %v2177 = vadd.f32 %v1978, %v2107
    %v2178 = vadd.f32 %v1979, %v2136
    %v2179 = vadd.f32 %v1980, %v2165
    %v2180 = vadd.f32 %v1981, %v2081
    %v2181 = vadd.f32 %v1982, %v2110
    %v2182 = vadd.f32 %v1983, %v2139
    %v2183 = vadd.f32 %v1984, %v2168
    %v2184 = vadd.f32 %v1985, %v2084
    %v2185 = vadd.f32 %v1986, %v2113
    %v2186 = vadd.f32 %v1987, %v2142
    %v2187 = vadd.f32 %v1988, %v2171
    %v2188 = vadd.f32 %v1989, %v2087
    %v2189 = vadd.f32 %v1990, %v2116
    %v2190 = vadd.f32 %v1991, %v2145
    %v2191 = vadd.f32 %v1992, %v2174
    %v2192 = vld [vmem:[%s4] sm:$0xff]
    %v2193 = vld [vmem:[%s4 + $0x8] sm:$0xff]
    %v2194 = vld [vmem:[%s4 + $0x10] sm:$0xff]
    %v2195 = vld [vmem:[%s4 + $0x18] sm:$0xff]
    %v2196 = vmul.f32 %v2192, %v63
    %v2197 = vmul.f32 %v2193, %v64
    %v2198 = vmul.f32 %v2194, %v65
    %v2199 = vmul.f32 %v2195, %v66
    %v2200 = vadd.f32 %v2176, %v2196
    %v2201 = vadd.f32 %v2180, %v2197
    %v2202 = vadd.f32 %v2184, %v2198
    %v2203 = vadd.f32 %v2188, %v2199
    %v2204 = vxor.u32 %v2200, 2147483648
    %v2205 = vxor.u32 %v2201, 2147483648
    %v2206 = vxor.u32 %v2202, 2147483648
    %v2207 = vxor.u32 %v2203, 2147483648
    %v2208 = vmul.f32 %v2204, 1.442695
    %v2209 = vpow.pop %v2208
    %v2210 = vmul.f32 %v2205, 1.442695
    %v2211 = vpow.pop %v2210
    %v2212 = vmul.f32 %v2206, 1.442695
    %v2213 = vpow.pop %v2212
    %v2214 = vmul.f32 %v2207, 1.442695
    %v2215 = vpow.pop %v2214
    %v2216 = vadd.f32 %v2209, 1.0
    %v2217 = vadd.f32 %v2211, 1.0
    %v2218 = vadd.f32 %v2213, 1.0
    %v2219 = vadd.f32 %v2215, 1.0
    %v2220 = vrcp.pop %v2216
    %v2221 = vmul.f32 %v2216, %v2220
    %v2222 = vsub.f32 1.0, %v2221
    %v2223 = vmul.f32 %v2220, %v2222
    %v2224 = vadd.f32 %v2220, %v2223
    %vm2225 = vweird.f32 %v2216
    %vm2226 = vweird.f32 %v2220
    %vm2227 = vmor %vm2225, %vm2226
    %v2228 = vsel %vm2227, %v2220, %v2224
    %v2229 = vand.u32 2147483647, %v2216
    %vm2230 = vcmp.eq.f32.partialorder %v2229, 8.507059e+37
    %v2231 = vand.u32 %v2216, 2147483648
    %v2232 = vor.u32 1.1754944e-38, %v2231
    %v2233 = vsel %vm2230, %v2232, %v2228
    %v2234 = vmul.f32 1.0, %v2233
    %v2235 = vrcp.pop %v2217
    %v2236 = vmul.f32 %v2217, %v2235
    %v2237 = vsub.f32 1.0, %v2236
    %v2238 = vmul.f32 %v2235, %v2237
    %v2239 = vadd.f32 %v2235, %v2238
    %vm2240 = vweird.f32 %v2217
    %vm2241 = vweird.f32 %v2235
    %vm2242 = vmor %vm2240, %vm2241
    %v2243 = vsel %vm2242, %v2235, %v2239
    %v2244 = vand.u32 2147483647, %v2217
    %vm2245 = vcmp.eq.f32.partialorder %v2244, 8.507059e+37
    %v2246 = vand.u32 %v2217, 2147483648
    %v2247 = vor.u32 1.1754944e-38, %v2246
    %v2248 = vsel %vm2245, %v2247, %v2243
    %v2249 = vmul.f32 1.0, %v2248
    %v2250 = vrcp.pop %v2218
    %v2251 = vmul.f32 %v2218, %v2250
    %v2252 = vsub.f32 1.0, %v2251
    %v2253 = vmul.f32 %v2250, %v2252
    %v2254 = vadd.f32 %v2250, %v2253
    %vm2255 = vweird.f32 %v2218
    %vm2256 = vweird.f32 %v2250
    %vm2257 = vmor %vm2255, %vm2256
    %v2258 = vsel %vm2257, %v2250, %v2254
    %v2259 = vand.u32 2147483647, %v2218
    %vm2260 = vcmp.eq.f32.partialorder %v2259, 8.507059e+37
    %v2261 = vand.u32 %v2218, 2147483648
    %v2262 = vor.u32 1.1754944e-38, %v2261
    %v2263 = vsel %vm2260, %v2262, %v2258
    %v2264 = vmul.f32 1.0, %v2263
    %v2265 = vrcp.pop %v2219
    %v2266 = vmul.f32 %v2219, %v2265
    %v2267 = vsub.f32 1.0, %v2266
    %v2268 = vmul.f32 %v2265, %v2267
    %v2269 = vadd.f32 %v2265, %v2268
    %vm2270 = vweird.f32 %v2219
    %vm2271 = vweird.f32 %v2265
    %vm2272 = vmor %vm2270, %vm2271
    %v2273 = vsel %vm2272, %v2265, %v2269
    %v2274 = vand.u32 2147483647, %v2219
    %vm2275 = vcmp.eq.f32.partialorder %v2274, 8.507059e+37
    %v2276 = vand.u32 %v2219, 2147483648
    %v2277 = vor.u32 1.1754944e-38, %v2276
    %v2278 = vsel %vm2275, %v2277, %v2273
    %v2279 = vmul.f32 1.0, %v2278
    %v2280 = vld [vmem:[%s5] sm:$0xff]
    %v2281 = vld [vmem:[%s5 + $0x8] sm:$0xff]
    %v2282 = vld [vmem:[%s5 + $0x10] sm:$0xff]
    %v2283 = vld [vmem:[%s5 + $0x18] sm:$0xff]
    %v2284 = vmul.f32 %v2280, %v63
    %v2285 = vmul.f32 %v2281, %v64
    %v2286 = vmul.f32 %v2282, %v65
    %v2287 = vmul.f32 %v2283, %v66
    %v2288 = vadd.f32 %v2177, %v2284
    %v2289 = vadd.f32 %v2181, %v2285
    %v2290 = vadd.f32 %v2185, %v2286
    %v2291 = vadd.f32 %v2189, %v2287
    %v2292 = vxor.u32 %v2288, 2147483648
    %v2293 = vxor.u32 %v2289, 2147483648
    %v2294 = vxor.u32 %v2290, 2147483648
    %v2295 = vxor.u32 %v2291, 2147483648
    %v2296 = vmul.f32 %v2292, 1.442695
    %v2297 = vpow.pop %v2296
    %v2298 = vmul.f32 %v2293, 1.442695
    %v2299 = vpow.pop %v2298
    %v2300 = vmul.f32 %v2294, 1.442695
    %v2301 = vpow.pop %v2300
    %v2302 = vmul.f32 %v2295, 1.442695
    %v2303 = vpow.pop %v2302
    %v2304 = vadd.f32 %v2297, 1.0
    %v2305 = vadd.f32 %v2299, 1.0
    %v2306 = vadd.f32 %v2301, 1.0
    %v2307 = vadd.f32 %v2303, 1.0
    %v2308 = vrcp.pop %v2304
    %v2309 = vmul.f32 %v2304, %v2308
    %v2310 = vsub.f32 1.0, %v2309
    %v2311 = vmul.f32 %v2308, %v2310
    %v2312 = vadd.f32 %v2308, %v2311
    %vm2313 = vweird.f32 %v2304
    %vm2314 = vweird.f32 %v2308
    %vm2315 = vmor %vm2313, %vm2314
    %v2316 = vsel %vm2315, %v2308, %v2312
    %v2317 = vand.u32 2147483647, %v2304
    %vm2318 = vcmp.eq.f32.partialorder %v2317, 8.507059e+37
    %v2319 = vand.u32 %v2304, 2147483648
    %v2320 = vor.u32 1.1754944e-38, %v2319
    %v2321 = vsel %vm2318, %v2320, %v2316
    %v2322 = vmul.f32 1.0, %v2321
    %v2323 = vrcp.pop %v2305
    %v2324 = vmul.f32 %v2305, %v2323
    %v2325 = vsub.f32 1.0, %v2324
    %v2326 = vmul.f32 %v2323, %v2325
    %v2327 = vadd.f32 %v2323, %v2326
    %vm2328 = vweird.f32 %v2305
    %vm2329 = vweird.f32 %v2323
    %vm2330 = vmor %vm2328, %vm2329
    %v2331 = vsel %vm2330, %v2323, %v2327
    %v2332 = vand.u32 2147483647, %v2305
    %vm2333 = vcmp.eq.f32.partialorder %v2332, 8.507059e+37
    %v2334 = vand.u32 %v2305, 2147483648
    %v2335 = vor.u32 1.1754944e-38, %v2334
    %v2336 = vsel %vm2333, %v2335, %v2331
    %v2337 = vmul.f32 1.0, %v2336
    %v2338 = vrcp.pop %v2306
    %v2339 = vmul.f32 %v2306, %v2338
    %v2340 = vsub.f32 1.0, %v2339
    %v2341 = vmul.f32 %v2338, %v2340
    %v2342 = vadd.f32 %v2338, %v2341
    %vm2343 = vweird.f32 %v2306
    %vm2344 = vweird.f32 %v2338
    %vm2345 = vmor %vm2343, %vm2344
    %v2346 = vsel %vm2345, %v2338, %v2342
    %v2347 = vand.u32 2147483647, %v2306
    %vm2348 = vcmp.eq.f32.partialorder %v2347, 8.507059e+37
    %v2349 = vand.u32 %v2306, 2147483648
    %v2350 = vor.u32 1.1754944e-38, %v2349
    %v2351 = vsel %vm2348, %v2350, %v2346
    %v2352 = vmul.f32 1.0, %v2351
    %v2353 = vrcp.pop %v2307
    %v2354 = vmul.f32 %v2307, %v2353
    %v2355 = vsub.f32 1.0, %v2354
    %v2356 = vmul.f32 %v2353, %v2355
    %v2357 = vadd.f32 %v2353, %v2356
    %vm2358 = vweird.f32 %v2307
    %vm2359 = vweird.f32 %v2353
    %vm2360 = vmor %vm2358, %vm2359
    %v2361 = vsel %vm2360, %v2353, %v2357
    %v2362 = vand.u32 2147483647, %v2307
    %vm2363 = vcmp.eq.f32.partialorder %v2362, 8.507059e+37
    %v2364 = vand.u32 %v2307, 2147483648
    %v2365 = vor.u32 1.1754944e-38, %v2364
    %v2366 = vsel %vm2363, %v2365, %v2361
    %v2367 = vmul.f32 1.0, %v2366
    %v2368 = vtanh.pop %v2179
    %v2369 = vtanh.pop %v2183
    %v2370 = vtanh.pop %v2187
    %v2371 = vtanh.pop %v2191
    %v2372 = vmul.f32 %v2322, %v63
    %v2373 = vmul.f32 %v2337, %v64
    %v2374 = vmul.f32 %v2352, %v65
    %v2375 = vmul.f32 %v2367, %v66
    %v2376 = vmul.f32 %v2234, %v2368
    %v2377 = vmul.f32 %v2249, %v2369
    %v2378 = vmul.f32 %v2264, %v2370
    %v2379 = vmul.f32 %v2279, %v2371
    %v2380 = vadd.f32 %v2372, %v2376
    %v2381 = vadd.f32 %v2373, %v2377
    %v2382 = vadd.f32 %v2374, %v2378
    %v2383 = vadd.f32 %v2375, %v2379
    %v2384 = vld [vmem:[%s6] sm:$0xff]
    %v2385 = vld [vmem:[%s6 + $0x8] sm:$0xff]
    %v2386 = vld [vmem:[%s6 + $0x10] sm:$0xff]
    %v2387 = vld [vmem:[%s6 + $0x18] sm:$0xff]
    %v2388 = vmul.f32 %v2384, %v2380
    %v2389 = vmul.f32 %v2385, %v2381
    %v2390 = vmul.f32 %v2386, %v2382
    %v2391 = vmul.f32 %v2387, %v2383
    %v2392 = vadd.f32 %v2178, %v2388
    %v2393 = vadd.f32 %v2182, %v2389
    %v2394 = vadd.f32 %v2186, %v2390
    %v2395 = vadd.f32 %v2190, %v2391
    %v2396 = vxor.u32 %v2392, 2147483648
    %v2397 = vxor.u32 %v2393, 2147483648
    %v2398 = vxor.u32 %v2394, 2147483648
    %v2399 = vxor.u32 %v2395, 2147483648
    %v2400 = vmul.f32 %v2396, 1.442695
    %v2401 = vpow.pop %v2400
    %v2402 = vmul.f32 %v2397, 1.442695
    %v2403 = vpow.pop %v2402
    %v2404 = vmul.f32 %v2398, 1.442695
    %v2405 = vpow.pop %v2404
    %v2406 = vmul.f32 %v2399, 1.442695
    %v2407 = vpow.pop %v2406
    %v2408 = vadd.f32 %v2401, 1.0
    %v2409 = vadd.f32 %v2403, 1.0
    %v2410 = vadd.f32 %v2405, 1.0
    %v2411 = vadd.f32 %v2407, 1.0
    %v2412 = vrcp.pop %v2408
    %v2413 = vmul.f32 %v2408, %v2412
    %v2414 = vsub.f32 1.0, %v2413
    %v2415 = vmul.f32 %v2412, %v2414
    %v2416 = vadd.f32 %v2412, %v2415
    %vm2417 = vweird.f32 %v2408
    %vm2418 = vweird.f32 %v2412
    %vm2419 = vmor %vm2417, %vm2418
    %v2420 = vsel %vm2419, %v2412, %v2416
    %v2421 = vand.u32 2147483647, %v2408
    %vm2422 = vcmp.eq.f32.partialorder %v2421, 8.507059e+37
    %v2423 = vand.u32 %v2408, 2147483648
    %v2424 = vor.u32 1.1754944e-38, %v2423
    %v2425 = vsel %vm2422, %v2424, %v2420
    %v2426 = vmul.f32 1.0, %v2425
    %v2427 = vrcp.pop %v2409
    %v2428 = vmul.f32 %v2409, %v2427
    %v2429 = vsub.f32 1.0, %v2428
    %v2430 = vmul.f32 %v2427, %v2429
    %v2431 = vadd.f32 %v2427, %v2430
    %vm2432 = vweird.f32 %v2409
    %vm2433 = vweird.f32 %v2427
    %vm2434 = vmor %vm2432, %vm2433
    %v2435 = vsel %vm2434, %v2427, %v2431
    %v2436 = vand.u32 2147483647, %v2409
    %vm2437 = vcmp.eq.f32.partialorder %v2436, 8.507059e+37
    %v2438 = vand.u32 %v2409, 2147483648
    %v2439 = vor.u32 1.1754944e-38, %v2438
    %v2440 = vsel %vm2437, %v2439, %v2435
    %v2441 = vmul.f32 1.0, %v2440
    %v2442 = vrcp.pop %v2410
    %v2443 = vmul.f32 %v2410, %v2442
    %v2444 = vsub.f32 1.0, %v2443
    %v2445 = vmul.f32 %v2442, %v2444
    %v2446 = vadd.f32 %v2442, %v2445
    %vm2447 = vweird.f32 %v2410
    %vm2448 = vweird.f32 %v2442
    %vm2449 = vmor %vm2447, %vm2448
    %v2450 = vsel %vm2449, %v2442, %v2446
    %v2451 = vand.u32 2147483647, %v2410
    %vm2452 = vcmp.eq.f32.partialorder %v2451, 8.507059e+37
    %v2453 = vand.u32 %v2410, 2147483648
    %v2454 = vor.u32 1.1754944e-38, %v2453
    %v2455 = vsel %vm2452, %v2454, %v2450
    %v2456 = vmul.f32 1.0, %v2455
    %v2457 = vrcp.pop %v2411
    %v2458 = vmul.f32 %v2411, %v2457
    %v2459 = vsub.f32 1.0, %v2458
    %v2460 = vmul.f32 %v2457, %v2459
    %v2461 = vadd.f32 %v2457, %v2460
    %vm2462 = vweird.f32 %v2411
    %vm2463 = vweird.f32 %v2457
    %vm2464 = vmor %vm2462, %vm2463
    %v2465 = vsel %vm2464, %v2457, %v2461
    %v2466 = vand.u32 2147483647, %v2411
    %vm2467 = vcmp.eq.f32.partialorder %v2466, 8.507059e+37
    %v2468 = vand.u32 %v2411, 2147483648
    %v2469 = vor.u32 1.1754944e-38, %v2468
    %v2470 = vsel %vm2467, %v2469, %v2465
    %v2471 = vmul.f32 1.0, %v2470
    %v2472 = vtanh.pop %v2380
    %v2473 = vtanh.pop %v2381
    %v2474 = vtanh.pop %v2382
    %v2475 = vtanh.pop %v2383
    %v2476 = vmul.f32 %v2426, %v2472
    %v2477 = vmul.f32 %v2441, %v2473
    %v2478 = vmul.f32 %v2456, %v2474
    %v2479 = vmul.f32 %v2471, %v2475
    %2480 = vst.msk [vmem:[#allocation2] sm:$0xff] %vm157, %v2476
    %2481 = vst.msk [vmem:[#allocation2 + $0x8] sm:$0xff] %vm157, %v2477
    %2482 = vst.msk [vmem:[#allocation2 + $0x10] sm:$0xff] %vm157, %v2478
    %2483 = vst.msk [vmem:[#allocation2 + $0x18] sm:$0xff] %vm157, %v2479
    %2484 = vst.msk [vmem:[#allocation3] sm:$0xff] %vm157, %v2380
    %2485 = vst.msk [vmem:[#allocation3 + $0x8] sm:$0xff] %vm157, %v2381
    %2486 = vst.msk [vmem:[#allocation3 + $0x10] sm:$0xff] %vm157, %v2382
    %2487 = vst.msk [vmem:[#allocation3 + $0x18] sm:$0xff] %vm157, %v2383
    %2488 = vst.msk [vmem:[%s10] sm:$0xff] %vm157, %v2476
    %2489 = vst.msk [vmem:[%s10 + $0x8] sm:$0xff] %vm157, %v2477
    %2490 = vst.msk [vmem:[%s10 + $0x10] sm:$0xff] %vm157, %v2478
    %2491 = vst.msk [vmem:[%s10 + $0x18] sm:$0xff] %vm157, %v2479
    %2492 = vst.msk [vmem:[#allocation4] sm:$0xff] %vm157, %v2380
    %2493 = vst.msk [vmem:[#allocation4 + $0x8] sm:$0xff] %vm157, %v2381
    %2494 = vst.msk [vmem:[#allocation4 + $0x10] sm:$0xff] %vm157, %v2382
    %2495 = vst.msk [vmem:[#allocation4 + $0x18] sm:$0xff] %vm157, %v2383
    // Predicated region
    $region46: #{_compute.24} parent=1 // pred_check
      _
    $region47: #{_compute.24} parent=1 // pred_check_branch
      %2497 = sbr.rel (0) target = $region49
    $region48: #{_compute.24} parent=1 // pred_region
      _
    $region49: #{_compute.24} parent=1 // pred_fallthru
      _
    // Predicated region
    $region50: #{_compute.24} parent=1 // pred_check
      _
    $region51: #{_compute.24} parent=1 // pred_check_branch
      %2499 = sbr.rel (0) target = $region53
    $region52: #{_compute.24} parent=1 // pred_region
      %2501 = vsyncadd [#allocation5], 0
      %s2502 = sshll.u32 [#allocation4], 4
      %s2503 = int_to_ptr.vmem [resolvable:$true] %s2502
      %s2504 = sshll.u32 %s11, 4
      %s2505 = int_to_ptr.hbm [resolvable:$true] %s2504
      %2510 = dma.vmem_to_hbm [thread:$0]  %s2503, 512, %s2505, [#allocation5], 128, 128, 8
    $region53: #{_compute.24} parent=1 // pred_fallthru
      _
    // Predicated region
    $region54: #{_compute.24} parent=1 // pred_check
      _
    $region55: #{_compute.24} parent=1 // pred_check_branch
      %2512 = sbr.rel (0) target = $region57
    $region56: #{_compute.24} parent=1 // pred_region
      _
    $region57: #{_compute.24} parent=1 // pred_fallthru
      _
    // Predicated region
    $region58: #{_compute.24} parent=1 // pred_check
      _
    $region59: #{_compute.24} parent=1 // pred_check_branch
      %2514 = sbr.rel (0) target = $region61
    $region60: #{_compute.24} parent=1 // pred_region
      %2516 = dma.done [#allocation5], 512
    $region61: #{_compute.24} parent=1 // pred_fallthru
      _
    %2517 = vsyncpa [#allocation5], 1

// kernel: _compute.27
$region0: #{_compute.27}
  #allocation0 [shape = 'u32[]', space=smem, size = 0x4, offset = 0x4, fixed_abs, tag = 'smem constant byte address 0x4 - core index']
  #allocation1 [shape = 'u32[72,128]{1,0:T(1,128)}', space=vmem, size = 0x9000, scoped, tag = 'internal scratch']
  %s0 = inlined_call_operand.vmem [shape: f32[384,144], index: 0, kind: input, shape index: {}]
  %s1 = inlined_call_operand.vmem [shape: f32[144,128], index: 1, kind: input, shape index: {}]
  %s2 = inlined_call_operand.vmem [shape: f32[1,128], index: 2, kind: input, shape index: {}]
  %s3 = inlined_call_operand.vmem [shape: f32[384,128], index: 3, kind: output, shape index: {}]
  %s4 = sld [smem:[#allocation0]]
  $region45: #{_compute.27} parent=0
    _
  %s6 = ssub.s32 1, %s4
  %s7 = scalar_select 0, %s6, %s4
  loop: start=0, step=1, limit=5
  $region2: #{_compute.27} parent=0 // loop_pre_header
    _
  $region3: #{_compute.27} parent=0 // loop_header
    %s9 = sphi 0, %s13
    %p10 = scmp.ge.s32.totalorder %s9, 5
    %s19 = sphi 0, %s21
    %s22 = sphi 0, %s19
    %s23 = sphi 0, %s22
    %s39 = sphi 0, %s23
    %s43 = sphi 0, %s43
    %s45 = sphi 0, %s43
    %s46 = sphi 0, %s45
    %s60 = sphi 0, %s46
    %s64 = sphi 0, %s64
    %s66 = sphi 0, %s64
    %s67 = sphi 0, %s66
    %s81 = sphi 0, %s67
    %s87 = sphi 0, %s89
    %s90 = sphi 0, %s87
    %s91 = sphi 0, %s90
    %s107 = sphi 0, %s91
  $region4: #{_compute.27} parent=0 // loop_header_branch
    %12 = sbr.rel (%p10) target = $region8
  $region5: #{_compute.27} parent=0 // loop_body
    %s14 = ssub.s32 %s9, 1
    %s15 = ssub.s32 %s9, 2
    %s16 = sadd.s32 %s9, 1
    %s17 = ssub.s32 %s9, %s16
    %p18 = scmp.eq.s32.totalorder %s17, 0
    %s20 = sadd.s32 %s19, 1
    %s21 = scalar_select %p18, %s19, %s20
    %p24 = pneg %p18
    %p25 = scmp.eq.s32.totalorder %s9, 2
    %p26 = por %p24, %p25
    %p27 = scmp.ne.s32.totalorder %s19, %s22
    %p28 = scmp.eq.s32.totalorder %s9, 0
    %p29 = por %p27, %p28
    %p30 = scmp.ne.s32.totalorder %s19, %s22
    %p31 = scmp.eq.s32.totalorder %s14, 2
    %p32 = por %p30, %p31
    %p33 = scmp.ne.s32.totalorder %s22, %s23
    %p34 = scmp.eq.s32.totalorder %s14, 0
    %p35 = por %p33, %p34
    %p36 = scmp.ne.s32.totalorder %s22, %s23
    %p37 = scmp.eq.s32.totalorder %s15, 2
    %p38 = por %p36, %p37
    %p40 = scmp.ne.s32.totalorder %s23, %s39
    %p41 = scmp.eq.s32.totalorder %s15, 0
    %p42 = por %p40, %p41
    %s44 = sadd.s32 %s43, 1
    %p47 = scmp.eq.s32.totalorder %s9, 2
    %p48 = scmp.ne.s32.totalorder %s43, %s45
    %p49 = scmp.eq.s32.totalorder %s9, 0
    %p50 = por %p48, %p49
    %p51 = scmp.ne.s32.totalorder %s43, %s45
    %p52 = scmp.eq.s32.totalorder %s14, 2
    %p53 = por %p51, %p52
    %p54 = scmp.ne.s32.totalorder %s45, %s46
    %p55 = scmp.eq.s32.totalorder %s14, 0
    %p56 = por %p54, %p55
    %p57 = scmp.ne.s32.totalorder %s45, %s46
    %p58 = scmp.eq.s32.totalorder %s15, 2
    %p59 = por %p57, %p58
    %p61 = scmp.ne.s32.totalorder %s46, %s60
    %p62 = scmp.eq.s32.totalorder %s15, 0
    %p63 = por %p61, %p62
    %s65 = sadd.s32 %s64, 1
    %p68 = scmp.eq.s32.totalorder %s9, 2
    %p69 = scmp.ne.s32.totalorder %s64, %s66
    %p70 = scmp.eq.s32.totalorder %s9, 0
    %p71 = por %p69, %p70
    %p72 = scmp.ne.s32.totalorder %s64, %s66
    %p73 = scmp.eq.s32.totalorder %s14, 2
    %p74 = por %p72, %p73
    %p75 = scmp.ne.s32.totalorder %s66, %s67
    %p76 = scmp.eq.s32.totalorder %s14, 0
    %p77 = por %p75, %p76
    %p78 = scmp.ne.s32.totalorder %s66, %s67
    %p79 = scmp.eq.s32.totalorder %s15, 2
    %p80 = por %p78, %p79
    %p82 = scmp.ne.s32.totalorder %s67, %s81
    %p83 = scmp.eq.s32.totalorder %s15, 0
    %p84 = por %p82, %p83
    %s85 = ssub.s32 %s9, %s16
    %p86 = scmp.eq.s32.totalorder %s85, 0
    %s88 = sadd.s32 %s87, 1
    %s89 = scalar_select %p86, %s87, %s88
    %p92 = pneg %p86
    %p93 = scmp.eq.s32.totalorder %s9, 2
    %p94 = por %p92, %p93
    %p95 = scmp.ne.s32.totalorder %s87, %s90
    %p96 = scmp.eq.s32.totalorder %s9, 0
    %p97 = por %p95, %p96
    %p98 = scmp.ne.s32.totalorder %s87, %s90
    %p99 = scmp.eq.s32.totalorder %s14, 2
    %p100 = por %p98, %p99
    %p101 = scmp.ne.s32.totalorder %s90, %s91
    %p102 = scmp.eq.s32.totalorder %s14, 0
    %p103 = por %p101, %p102
    %p104 = scmp.ne.s32.totalorder %s90, %s91
    %p105 = scmp.eq.s32.totalorder %s15, 2
    %p106 = por %p104, %p105
    %p108 = scmp.ne.s32.totalorder %s91, %s107
    %p109 = scmp.eq.s32.totalorder %s15, 0
    %p110 = por %p108, %p109
    %p111 = scmp.le.s32.totalorder 1, %s9
    %p112 = scmp.lt.s32.totalorder %s9, 4
    %p113 = pnand %p111, %p112
    %p114 = pneg %p113
    // Predicated region
    $region9: #{_compute.27} parent=5 // pred_check
      _
    $region10: #{_compute.27} parent=5 // pred_check_branch
      %116 = sbr.rel (%p113) target = $region12
    $region11: #{_compute.27} parent=5 // pred_region
      %s117 = ssub.s32 %s9, 1
      // Predicated region
      $region13: #{_compute.27} parent=11 // pred_check
        %p118 = pneg %p56
      $region14: #{_compute.27} parent=11 // pred_check_branch
        %120 = sbr.rel (%p118) target = $region16
      $region15: #{_compute.27} parent=11 // pred_region
        _
      $region16: #{_compute.27} parent=11 // pred_fallthru
        _
      // Predicated region
      $region17: #{_compute.27} parent=11 // pred_check
        %p121 = pneg %p77
      $region18: #{_compute.27} parent=11 // pred_check_branch
        %123 = sbr.rel (%p121) target = $region20
      $region19: #{_compute.27} parent=11 // pred_region
        _
      $region20: #{_compute.27} parent=11 // pred_fallthru
        _
    $region12: #{_compute.27} parent=5 // pred_fallthru
      _
    %p124 = scmp.lt.s32.totalorder %s9, 3
    // Predicated region
    $region21: #{_compute.27} parent=5 // pred_check
      %p125 = pneg %p124
    $region22: #{_compute.27} parent=5 // pred_check_branch
      %127 = sbr.rel (%p125) target = $region24
    $region23: #{_compute.27} parent=5 // pred_region
      // Predicated region
      $region25: #{_compute.27} parent=23 // pred_check
        %p128 = pneg %p29
      $region26: #{_compute.27} parent=23 // pred_check_branch
        %130 = sbr.rel (%p128) target = $region28
      $region27: #{_compute.27} parent=23 // pred_region
        %s131 = smul.u32 16, %s9
        %p132 = scmp.lt.s32.totalorder %s131, 47
        %s133 = scalar_select %p132, %s131, 47
        %s134 = smul.addr %s133, 2
        %s135 = smul.addr %s134, 8
        %s136 = scalar_lea.vmem %s0, %s135
        %s137 = smul.u32 16, %s9
      $region28: #{_compute.27} parent=23 // pred_fallthru
        _
    $region24: #{_compute.27} parent=5 // pred_fallthru
      _
    %p138 = scmp.le.s32.totalorder 1, %s9
    %p139 = scmp.lt.s32.totalorder %s9, 4
    %p140 = pnand %p138, %p139
    %p141 = pneg %p140
    // Predicated region
    $region29: #{_compute.27} parent=5 // pred_check
      _
    $region30: #{_compute.27} parent=5 // pred_check_branch
      %143 = sbr.rel (%p140) target = $region32
    $region31: #{_compute.27} parent=5 // pred_region
      %s144 = ssub.s32 %s9, 1
      %s145 = smul.u32 16, %s14
      %p146 = scmp.lt.s32.totalorder %s145, 47
      %s147 = scalar_select %p146, %s145, 47
      %s148 = smul.addr %s147, 2
      %s149 = smul.addr %s148, 8
      %s150 = scalar_lea.vmem %s0, %s149
      %p151 = pneg %p35
      %p152 = pneg %p32
      %p153 = pneg %p56
      %p154 = pneg %p53
      %p155 = pneg %p77
      %p156 = pneg %p74
      %p157 = pneg %p103
      %p158 = pneg %p100
      %s159 = smul.u32 16, %s14
      %p160 = scmp.lt.s32.totalorder %s159, 47
      %s161 = scalar_select %p160, %s159, 47
      %s162 = smul.addr %s161, 8
      %s163 = scalar_lea.vmem %s3, %s162
      %s164 = smul.u32 16, %s14
      %p165 = scmp.lt.s32.totalorder %s164, 47
      %s166 = scalar_select %p165, %s164, 47
      %s167 = smul.addr %s166, 2
      %s168 = smul.addr %s167, 8
      %s169 = scalar_lea.vmem %s0, %s168
      %s170 = smul.u32 16, %s14
      %s171 = smul.u32 16, %s14
      %p172 = scmp.lt.s32.totalorder %s171, 47
      %s173 = scalar_select %p172, %s171, 47
      %s174 = smul.addr %s173, 8
      %s175 = scalar_lea.vmem %s3, %s174
      %s176 = smul.u32 16, %s14
      %v177 = vld [vmem:[%s169] sm:$0xff]
      %v178 = vld [vmem:[%s169 + $0x8] sm:$0xff]
      %v179 = vld [vmem:[%s169 + $0x10] sm:$0xff]
      %v180 = vld [vmem:[%s169 + $0x18] sm:$0xff]
      %v181 = vld [vmem:[%s169 + $0x20] sm:$0xff]
      %v182 = vld [vmem:[%s169 + $0x28] sm:$0xff]
      %v183 = vld [vmem:[%s169 + $0x30] sm:$0xff]
      %v184 = vld [vmem:[%s169 + $0x38] sm:$0xff]
      %v185 = vld [vmem:[%s169 + $0x40] sm:$0xff]
      %v186 = vld [vmem:[%s169 + $0x48] sm:$0xff]
      %v187 = vld [vmem:[%s169 + $0x50] sm:$0xff]
      %v188 = vld [vmem:[%s169 + $0x58] sm:$0xff]
      %v189 = vld [vmem:[%s169 + $0x60] sm:$0xff]
      %v190 = vld [vmem:[%s169 + $0x68] sm:$0xff]
      %v191 = vld [vmem:[%s169 + $0x70] sm:$0xff]
      %v192 = vld [vmem:[%s169 + $0x78] sm:$0xff]
      %v193 = vld [vmem:[%s169 + $0x80] sm:$0xff]
      %v194 = vld [vmem:[%s169 + $0x88] sm:$0xff]
      %v195 = vld [vmem:[%s169 + $0x90] sm:$0xff]
      %v196 = vld [vmem:[%s169 + $0x98] sm:$0xff]
      %v197 = vld [vmem:[%s169 + $0xa0] sm:$0xff]
      %v198 = vld [vmem:[%s169 + $0xa8] sm:$0xff]
      %v199 = vld [vmem:[%s169 + $0xb0] sm:$0xff]
      %v200 = vld [vmem:[%s169 + $0xb8] sm:$0xff]
      %v201 = vld [vmem:[%s169 + $0xc0] sm:$0xff]
      %v202 = vld [vmem:[%s169 + $0xc8] sm:$0xff]
      %v203 = vld [vmem:[%s169 + $0xd0] sm:$0xff]
      %v204 = vld [vmem:[%s169 + $0xd8] sm:$0xff]
      %v205 = vld [vmem:[%s169 + $0xe0] sm:$0xff]
      %v206 = vld [vmem:[%s169 + $0xe8] sm:$0xff]
      %v207 = vld [vmem:[%s169 + $0xf0] sm:$0xff]
      %v208 = vld [vmem:[%s169 + $0xf8] sm:$0xff]
      %v209 = vld [vmem:[%s1] sm:$0xff]
      %v210 = vld [vmem:[%s1 + $0x8] sm:$0xff]
      %v211 = vld [vmem:[%s1 + $0x10] sm:$0xff]
      %v212 = vld [vmem:[%s1 + $0x18] sm:$0xff]
      %v213 = vld [vmem:[%s1 + $0x20] sm:$0xff]
      %v214 = vld [vmem:[%s1 + $0x28] sm:$0xff]
      %v215 = vld [vmem:[%s1 + $0x30] sm:$0xff]
      %v216 = vld [vmem:[%s1 + $0x38] sm:$0xff]
      %v217 = vld [vmem:[%s1 + $0x40] sm:$0xff]
      %v218 = vld [vmem:[%s1 + $0x48] sm:$0xff]
      %v219 = vld [vmem:[%s1 + $0x50] sm:$0xff]
      %v220 = vld [vmem:[%s1 + $0x58] sm:$0xff]
      %v221 = vld [vmem:[%s1 + $0x60] sm:$0xff]
      %v222 = vld [vmem:[%s1 + $0x68] sm:$0xff]
      %v223 = vld [vmem:[%s1 + $0x70] sm:$0xff]
      %v224 = vld [vmem:[%s1 + $0x78] sm:$0xff]
      %v225 = vld [vmem:[%s1 + $0x80] sm:$0xff]
      %v226 = vld [vmem:[%s1 + $0x88] sm:$0xff]
      %v227 = vld [vmem:[%s2] sm:$0x1]
      %v229 = vperm.slane %v227, 0
      %vm231 = vcmask 130048
      %v233 = vsel %vm231, %v178, 0
      %v236 = vsel %vm231, %v180, 0
      %v239 = vsel %vm231, %v182, 0
      %v242 = vsel %vm231, %v184, 0
      %v245 = vsel %vm231, %v186, 0
      %v248 = vsel %vm231, %v188, 0
      %v251 = vsel %vm231, %v190, 0
      %v254 = vsel %vm231, %v192, 0
      %v257 = vsel %vm231, %v194, 0
      %v260 = vsel %vm231, %v196, 0
      %v263 = vsel %vm231, %v198, 0
      %v266 = vsel %vm231, %v200, 0
      %v269 = vsel %vm231, %v202, 0
      %v272 = vsel %vm231, %v204, 0
      %v275 = vsel %vm231, %v206, 0
      %v278 = vsel %vm231, %v208, 0
      %280 = vmatpush.msra.mxu0 %v224
      %281 = vmatpush.msra.mxu0 %v223
      %282 = vmatpush.msra.mxu0 %v222
      %283 = vmatpush.msra.mxu0 %v221
      %284 = vmatpush.msra.mxu0 %v220
      %285 = vmatpush.msra.mxu0 %v219
      %286 = vmatpush.msra.mxu0 %v218
      %287 = vmatpush.msra.mxu0 %v217
      %288 = vmatpush.msra.mxu0 %v216
      %289 = vmatpush.msra.mxu0 %v215
      %290 = vmatpush.msra.mxu0 %v214
      %291 = vmatpush.msra.mxu0 %v213
      %292 = vmatpush.msra.mxu0 %v212
      %293 = vmatpush.msra.mxu0 %v211
      %294 = vmatpush.msra.mxu0 %v210
      %295 = vmatpush.msra.mxu0 %v209
      %296 = vmatmul.f32.gmra.mxu0 %v177
      %v297 = vpop.f32.mrf.mxu0
      %v298 = vadd.f32 %v229, %v297
      %299 = vmatmul.f32.gmra.mxu0 %v179
      %v300 = vpop.f32.mrf.mxu0
      %v301 = vadd.f32 %v229, %v300
      %302 = vmatmul.f32.gmra.mxu0 %v181
      %v303 = vpop.f32.mrf.mxu0
      %v304 = vadd.f32 %v229, %v303
      %305 = vmatmul.f32.gmra.mxu0 %v183
      %v306 = vpop.f32.mrf.mxu0
      %v307 = vadd.f32 %v229, %v306
      %308 = vmatmul.f32.gmra.mxu0 %v185
      %v309 = vpop.f32.mrf.mxu0
      %v310 = vadd.f32 %v229, %v309
      %311 = vmatmul.f32.gmra.mxu0 %v187
      %v312 = vpop.f32.mrf.mxu0
      %v313 = vadd.f32 %v229, %v312
      %314 = vmatmul.f32.gmra.mxu0 %v189
      %v315 = vpop.f32.mrf.mxu0
      %v316 = vadd.f32 %v229, %v315
      %317 = vmatmul.f32.gmra.mxu0 %v191
      %v318 = vpop.f32.mrf.mxu0
      %v319 = vadd.f32 %v229, %v318
      %320 = vmatmul.f32.gmra.mxu0 %v193
      %v321 = vpop.f32.mrf.mxu0
      %v322 = vadd.f32 %v229, %v321
      %323 = vmatmul.f32.gmra.mxu0 %v195
      %v324 = vpop.f32.mrf.mxu0
      %v325 = vadd.f32 %v229, %v324
      %326 = vmatmul.f32.gmra.mxu0 %v197
      %v327 = vpop.f32.mrf.mxu0
      %v328 = vadd.f32 %v229, %v327
      %329 = vmatmul.f32.gmra.mxu0 %v199
      %v330 = vpop.f32.mrf.mxu0
      %v331 = vadd.f32 %v229, %v330
      %332 = vmatmul.f32.gmra.mxu0 %v201
      %v333 = vpop.f32.mrf.mxu0
      %v334 = vadd.f32 %v229, %v333
      %335 = vmatmul.f32.gmra.mxu0 %v203
      %v336 = vpop.f32.mrf.mxu0
      %v337 = vadd.f32 %v229, %v336
      %338 = vmatmul.f32.gmra.mxu0 %v205
      %v339 = vpop.f32.mrf.mxu0
      %v340 = vadd.f32 %v229, %v339
      %341 = vmatmul.f32.gmra.mxu0 %v207
      %v342 = vpop.f32.mrf.mxu0
      %v343 = vadd.f32 %v229, %v342
      %344 = vdwg.mxu0
      %345 = vmatpush.msra.mxu0 0.0
      %346 = vmatpush.msra.mxu0 0.0
      %347 = vmatpush.msra.mxu0 0.0
      %348 = vmatpush.msra.mxu0 0.0
      %349 = vmatpush.msra.mxu0 0.0
      %350 = vmatpush.msra.mxu0 0.0
      %351 = vmatpush.msra.mxu0 0.0
      %352 = vmatpush.msra.mxu0 0.0
      %353 = vmatpush.msra.mxu0 0.0
      %354 = vmatpush.msra.mxu0 0.0
      %355 = vmatpush.msra.mxu0 0.0
      %356 = vmatpush.msra.mxu0 0.0
      %357 = vmatpush.msra.mxu0 0.0
      %358 = vmatpush.msra.mxu0 0.0
      %359 = vmatpush.msra.mxu0 %v226
      %360 = vmatpush.msra.mxu0 %v225
      %361 = vmatmul.f32.gmra.mxu0 %v233
      %v362 = vpop.f32.mrf.mxu0
      %v363 = vadd.f32 %v298, %v362
      %364 = vmatmul.f32.gmra.mxu0 %v236
      %v365 = vpop.f32.mrf.mxu0
      %v366 = vadd.f32 %v301, %v365
      %367 = vmatmul.f32.gmra.mxu0 %v239
      %v368 = vpop.f32.mrf.mxu0
      %v369 = vadd.f32 %v304, %v368
      %370 = vmatmul.f32.gmra.mxu0 %v242
      %v371 = vpop.f32.mrf.mxu0
      %v372 = vadd.f32 %v307, %v371
      %373 = vmatmul.f32.gmra.mxu0 %v245
      %v374 = vpop.f32.mrf.mxu0
      %v375 = vadd.f32 %v310, %v374
      %376 = vmatmul.f32.gmra.mxu0 %v248
      %v377 = vpop.f32.mrf.mxu0
      %v378 = vadd.f32 %v313, %v377
      %379 = vmatmul.f32.gmra.mxu0 %v251
      %v380 = vpop.f32.mrf.mxu0
      %v381 = vadd.f32 %v316, %v380
      %382 = vmatmul.f32.gmra.mxu0 %v254
      %v383 = vpop.f32.mrf.mxu0
      %v384 = vadd.f32 %v319, %v383
      %385 = vmatmul.f32.gmra.mxu0 %v257
      %v386 = vpop.f32.mrf.mxu0
      %v387 = vadd.f32 %v322, %v386
      %388 = vmatmul.f32.gmra.mxu0 %v260
      %v389 = vpop.f32.mrf.mxu0
      %v390 = vadd.f32 %v325, %v389
      %391 = vmatmul.f32.gmra.mxu0 %v263
      %v392 = vpop.f32.mrf.mxu0
      %v393 = vadd.f32 %v328, %v392
      %394 = vmatmul.f32.gmra.mxu0 %v266
      %v395 = vpop.f32.mrf.mxu0
      %v396 = vadd.f32 %v331, %v395
      %397 = vmatmul.f32.gmra.mxu0 %v269
      %v398 = vpop.f32.mrf.mxu0
      %v399 = vadd.f32 %v334, %v398
      %400 = vmatmul.f32.gmra.mxu0 %v272
      %v401 = vpop.f32.mrf.mxu0
      %v402 = vadd.f32 %v337, %v401
      %403 = vmatmul.f32.gmra.mxu0 %v275
      %v404 = vpop.f32.mrf.mxu0
      %v405 = vadd.f32 %v340, %v404
      %406 = vmatmul.f32.gmra.mxu0 %v278
      %v407 = vpop.f32.mrf.mxu0
      %v408 = vadd.f32 %v343, %v407
      %409 = vdwg.mxu0
      %v410 = vxor.u32 %v363, 2147483648
      %v411 = vxor.u32 %v366, 2147483648
      %v412 = vxor.u32 %v369, 2147483648
      %v413 = vxor.u32 %v372, 2147483648
      %v414 = vxor.u32 %v375, 2147483648
      %v415 = vxor.u32 %v378, 2147483648
      %v416 = vxor.u32 %v381, 2147483648
      %v417 = vxor.u32 %v384, 2147483648
      %v418 = vxor.u32 %v387, 2147483648
      %v419 = vxor.u32 %v390, 2147483648
      %v420 = vxor.u32 %v393, 2147483648
      %v421 = vxor.u32 %v396, 2147483648
      %v422 = vxor.u32 %v399, 2147483648
      %v423 = vxor.u32 %v402, 2147483648
      %v424 = vxor.u32 %v405, 2147483648
      %v425 = vxor.u32 %v408, 2147483648
      %v426 = vmul.f32 %v410, 1.442695
      %v427 = vpow.pop %v426
      %v428 = vmul.f32 %v411, 1.442695
      %v429 = vpow.pop %v428
      %v430 = vmul.f32 %v412, 1.442695
      %v431 = vpow.pop %v430
      %v432 = vmul.f32 %v413, 1.442695
      %v433 = vpow.pop %v432
      %v434 = vmul.f32 %v414, 1.442695
      %v435 = vpow.pop %v434
      %v436 = vmul.f32 %v415, 1.442695
      %v437 = vpow.pop %v436
      %v438 = vmul.f32 %v416, 1.442695
      %v439 = vpow.pop %v438
      %v440 = vmul.f32 %v417, 1.442695
      %v441 = vpow.pop %v440
      %v442 = vmul.f32 %v418, 1.442695
      %v443 = vpow.pop %v442
      %v444 = vmul.f32 %v419, 1.442695
      %v445 = vpow.pop %v444
      %v446 = vmul.f32 %v420, 1.442695
      %v447 = vpow.pop %v446
      %v448 = vmul.f32 %v421, 1.442695
      %v449 = vpow.pop %v448
      %v450 = vmul.f32 %v422, 1.442695
      %v451 = vpow.pop %v450
      %v452 = vmul.f32 %v423, 1.442695
      %v453 = vpow.pop %v452
      %v454 = vmul.f32 %v424, 1.442695
      %v455 = vpow.pop %v454
      %v456 = vmul.f32 %v425, 1.442695
      %v457 = vpow.pop %v456
      %v458 = vadd.f32 %v427, 1.0
      %v459 = vadd.f32 %v429, 1.0
      %v460 = vadd.f32 %v431, 1.0
      %v461 = vadd.f32 %v433, 1.0
      %v462 = vadd.f32 %v435, 1.0
      %v463 = vadd.f32 %v437, 1.0
      %v464 = vadd.f32 %v439, 1.0
      %v465 = vadd.f32 %v441, 1.0
      %v466 = vadd.f32 %v443, 1.0
      %v467 = vadd.f32 %v445, 1.0
      %v468 = vadd.f32 %v447, 1.0
      %v469 = vadd.f32 %v449, 1.0
      %v470 = vadd.f32 %v451, 1.0
      %v471 = vadd.f32 %v453, 1.0
      %v472 = vadd.f32 %v455, 1.0
      %v473 = vadd.f32 %v457, 1.0
      %v474 = vrcp.pop %v458
      %v475 = vmul.f32 %v458, %v474
      %v476 = vsub.f32 1.0, %v475
      %v477 = vmul.f32 %v474, %v476
      %v478 = vadd.f32 %v474, %v477
      %vm479 = vweird.f32 %v458
      %vm480 = vweird.f32 %v474
      %vm481 = vmor %vm479, %vm480
      %v482 = vsel %vm481, %v474, %v478
      %v483 = vand.u32 2147483647, %v458
      %vm484 = vcmp.eq.f32.partialorder %v483, 8.507059e+37
      %v485 = vand.u32 %v458, 2147483648
      %v486 = vor.u32 1.1754944e-38, %v485
      %v487 = vsel %vm484, %v486, %v482
      %v488 = vmul.f32 1.0, %v487
      %v489 = vrcp.pop %v459
      %v490 = vmul.f32 %v459, %v489
      %v491 = vsub.f32 1.0, %v490
      %v492 = vmul.f32 %v489, %v491
      %v493 = vadd.f32 %v489, %v492
      %vm494 = vweird.f32 %v459
      %vm495 = vweird.f32 %v489
      %vm496 = vmor %vm494, %vm495
      %v497 = vsel %vm496, %v489, %v493
      %v498 = vand.u32 2147483647, %v459
      %vm499 = vcmp.eq.f32.partialorder %v498, 8.507059e+37
      %v500 = vand.u32 %v459, 2147483648
      %v501 = vor.u32 1.1754944e-38, %v500
      %v502 = vsel %vm499, %v501, %v497
      %v503 = vmul.f32 1.0, %v502
      %v504 = vrcp.pop %v460
      %v505 = vmul.f32 %v460, %v504
      %v506 = vsub.f32 1.0, %v505
      %v507 = vmul.f32 %v504, %v506
      %v508 = vadd.f32 %v504, %v507
      %vm509 = vweird.f32 %v460
      %vm510 = vweird.f32 %v504
      %vm511 = vmor %vm509, %vm510
      %v512 = vsel %vm511, %v504, %v508
      %v513 = vand.u32 2147483647, %v460
      %vm514 = vcmp.eq.f32.partialorder %v513, 8.507059e+37
      %v515 = vand.u32 %v460, 2147483648
      %v516 = vor.u32 1.1754944e-38, %v515
      %v517 = vsel %vm514, %v516, %v512
      %v518 = vmul.f32 1.0, %v517
      %v519 = vrcp.pop %v461
      %v520 = vmul.f32 %v461, %v519
      %v521 = vsub.f32 1.0, %v520
      %v522 = vmul.f32 %v519, %v521
      %v523 = vadd.f32 %v519, %v522
      %vm524 = vweird.f32 %v461
      %vm525 = vweird.f32 %v519
      %vm526 = vmor %vm524, %vm525
      %v527 = vsel %vm526, %v519, %v523
      %v528 = vand.u32 2147483647, %v461
      %vm529 = vcmp.eq.f32.partialorder %v528, 8.507059e+37
      %v530 = vand.u32 %v461, 2147483648
      %v531 = vor.u32 1.1754944e-38, %v530
      %v532 = vsel %vm529, %v531, %v527
      %v533 = vmul.f32 1.0, %v532
      %v534 = vrcp.pop %v462
      %v535 = vmul.f32 %v462, %v534
      %v536 = vsub.f32 1.0, %v535
      %v537 = vmul.f32 %v534, %v536
      %v538 = vadd.f32 %v534, %v537
      %vm539 = vweird.f32 %v462
      %vm540 = vweird.f32 %v534
      %vm541 = vmor %vm539, %vm540
      %v542 = vsel %vm541, %v534, %v538
      %v543 = vand.u32 2147483647, %v462
      %vm544 = vcmp.eq.f32.partialorder %v543, 8.507059e+37
      %v545 = vand.u32 %v462, 2147483648
      %v546 = vor.u32 1.1754944e-38, %v545
      %v547 = vsel %vm544, %v546, %v542
      %v548 = vmul.f32 1.0, %v547
      %v549 = vrcp.pop %v463
      %v550 = vmul.f32 %v463, %v549
      %v551 = vsub.f32 1.0, %v550
      %v552 = vmul.f32 %v549, %v551
      %v553 = vadd.f32 %v549, %v552
      %vm554 = vweird.f32 %v463
      %vm555 = vweird.f32 %v549
      %vm556 = vmor %vm554, %vm555
      %v557 = vsel %vm556, %v549, %v553
      %v558 = vand.u32 2147483647, %v463
      %vm559 = vcmp.eq.f32.partialorder %v558, 8.507059e+37
      %v560 = vand.u32 %v463, 2147483648
      %v561 = vor.u32 1.1754944e-38, %v560
      %v562 = vsel %vm559, %v561, %v557
      %v563 = vmul.f32 1.0, %v562
      %v564 = vrcp.pop %v464
      %v565 = vmul.f32 %v464, %v564
      %v566 = vsub.f32 1.0, %v565
      %v567 = vmul.f32 %v564, %v566
      %v568 = vadd.f32 %v564, %v567
      %vm569 = vweird.f32 %v464
      %vm570 = vweird.f32 %v564
      %vm571 = vmor %vm569, %vm570
      %v572 = vsel %vm571, %v564, %v568
      %v573 = vand.u32 2147483647, %v464
      %vm574 = vcmp.eq.f32.partialorder %v573, 8.507059e+37
      %v575 = vand.u32 %v464, 2147483648
      %v576 = vor.u32 1.1754944e-38, %v575
      %v577 = vsel %vm574, %v576, %v572
      %v578 = vmul.f32 1.0, %v577
      %v579 = vrcp.pop %v465
      %v580 = vmul.f32 %v465, %v579
      %v581 = vsub.f32 1.0, %v580
      %v582 = vmul.f32 %v579, %v581
      %v583 = vadd.f32 %v579, %v582
      %vm584 = vweird.f32 %v465
      %vm585 = vweird.f32 %v579
      %vm586 = vmor %vm584, %vm585
      %v587 = vsel %vm586, %v579, %v583
      %v588 = vand.u32 2147483647, %v465
      %vm589 = vcmp.eq.f32.partialorder %v588, 8.507059e+37
      %v590 = vand.u32 %v465, 2147483648
      %v591 = vor.u32 1.1754944e-38, %v590
      %v592 = vsel %vm589, %v591, %v587
      %v593 = vmul.f32 1.0, %v592
      %v594 = vrcp.pop %v466
      %v595 = vmul.f32 %v466, %v594
      %v596 = vsub.f32 1.0, %v595
      %v597 = vmul.f32 %v594, %v596
      %v598 = vadd.f32 %v594, %v597
      %vm599 = vweird.f32 %v466
      %vm600 = vweird.f32 %v594
      %vm601 = vmor %vm599, %vm600
      %v602 = vsel %vm601, %v594, %v598
      %v603 = vand.u32 2147483647, %v466
      %vm604 = vcmp.eq.f32.partialorder %v603, 8.507059e+37
      %v605 = vand.u32 %v466, 2147483648
      %v606 = vor.u32 1.1754944e-38, %v605
      %v607 = vsel %vm604, %v606, %v602
      %v608 = vmul.f32 1.0, %v607
      %v609 = vrcp.pop %v467
      %v610 = vmul.f32 %v467, %v609
      %v611 = vsub.f32 1.0, %v610
      %v612 = vmul.f32 %v609, %v611
      %v613 = vadd.f32 %v609, %v612
      %vm614 = vweird.f32 %v467
      %vm615 = vweird.f32 %v609
      %vm616 = vmor %vm614, %vm615
      %v617 = vsel %vm616, %v609, %v613
      %v618 = vand.u32 2147483647, %v467
      %vm619 = vcmp.eq.f32.partialorder %v618, 8.507059e+37
      %v620 = vand.u32 %v467, 2147483648
      %v621 = vor.u32 1.1754944e-38, %v620
      %v622 = vsel %vm619, %v621, %v617
      %v623 = vmul.f32 1.0, %v622
      %v624 = vrcp.pop %v468
      %v625 = vmul.f32 %v468, %v624
      %v626 = vsub.f32 1.0, %v625
      %v627 = vmul.f32 %v624, %v626
      %v628 = vadd.f32 %v624, %v627
      %vm629 = vweird.f32 %v468
      %vm630 = vweird.f32 %v624
      %vm631 = vmor %vm629, %vm630
      %v632 = vsel %vm631, %v624, %v628
      %v633 = vand.u32 2147483647, %v468
      %vm634 = vcmp.eq.f32.partialorder %v633, 8.507059e+37
      %v635 = vand.u32 %v468, 2147483648
      %v636 = vor.u32 1.1754944e-38, %v635
      %v637 = vsel %vm634, %v636, %v632
      %v638 = vmul.f32 1.0, %v637
      %v639 = vrcp.pop %v469
      %v640 = vmul.f32 %v469, %v639
      %v641 = vsub.f32 1.0, %v640
      %v642 = vmul.f32 %v639, %v641
      %v643 = vadd.f32 %v639, %v642
      %vm644 = vweird.f32 %v469
      %vm645 = vweird.f32 %v639
      %vm646 = vmor %vm644, %vm645
      %v647 = vsel %vm646, %v639, %v643
      %v648 = vand.u32 2147483647, %v469
      %vm649 = vcmp.eq.f32.partialorder %v648, 8.507059e+37
      %v650 = vand.u32 %v469, 2147483648
      %v651 = vor.u32 1.1754944e-38, %v650
      %v652 = vsel %vm649, %v651, %v647
      %v653 = vmul.f32 1.0, %v652
      %v654 = vrcp.pop %v470
      %v655 = vmul.f32 %v470, %v654
      %v656 = vsub.f32 1.0, %v655
      %v657 = vmul.f32 %v654, %v656
      %v658 = vadd.f32 %v654, %v657
      %vm659 = vweird.f32 %v470
      %vm660 = vweird.f32 %v654
      %vm661 = vmor %vm659, %vm660
      %v662 = vsel %vm661, %v654, %v658
      %v663 = vand.u32 2147483647, %v470
      %vm664 = vcmp.eq.f32.partialorder %v663, 8.507059e+37
      %v665 = vand.u32 %v470, 2147483648
      %v666 = vor.u32 1.1754944e-38, %v665
      %v667 = vsel %vm664, %v666, %v662
      %v668 = vmul.f32 1.0, %v667
      %v669 = vrcp.pop %v471
      %v670 = vmul.f32 %v471, %v669
      %v671 = vsub.f32 1.0, %v670
      %v672 = vmul.f32 %v669, %v671
      %v673 = vadd.f32 %v669, %v672
      %vm674 = vweird.f32 %v471
      %vm675 = vweird.f32 %v669
      %vm676 = vmor %vm674, %vm675
      %v677 = vsel %vm676, %v669, %v673
      %v678 = vand.u32 2147483647, %v471
      %vm679 = vcmp.eq.f32.partialorder %v678, 8.507059e+37
      %v680 = vand.u32 %v471, 2147483648
      %v681 = vor.u32 1.1754944e-38, %v680
      %v682 = vsel %vm679, %v681, %v677
      %v683 = vmul.f32 1.0, %v682
      %v684 = vrcp.pop %v472
      %v685 = vmul.f32 %v472, %v684
      %v686 = vsub.f32 1.0, %v685
      %v687 = vmul.f32 %v684, %v686
      %v688 = vadd.f32 %v684, %v687
      %vm689 = vweird.f32 %v472
      %vm690 = vweird.f32 %v684
      %vm691 = vmor %vm689, %vm690
      %v692 = vsel %vm691, %v684, %v688
      %v693 = vand.u32 2147483647, %v472
      %vm694 = vcmp.eq.f32.partialorder %v693, 8.507059e+37
      %v695 = vand.u32 %v472, 2147483648
      %v696 = vor.u32 1.1754944e-38, %v695
      %v697 = vsel %vm694, %v696, %v692
      %v698 = vmul.f32 1.0, %v697
      %v699 = vrcp.pop %v473
      %v700 = vmul.f32 %v473, %v699
      %v701 = vsub.f32 1.0, %v700
      %v702 = vmul.f32 %v699, %v701
      %v703 = vadd.f32 %v699, %v702
      %vm704 = vweird.f32 %v473
      %vm705 = vweird.f32 %v699
      %vm706 = vmor %vm704, %vm705
      %v707 = vsel %vm706, %v699, %v703
      %v708 = vand.u32 2147483647, %v473
      %vm709 = vcmp.eq.f32.partialorder %v708, 8.507059e+37
      %v710 = vand.u32 %v473, 2147483648
      %v711 = vor.u32 1.1754944e-38, %v710
      %v712 = vsel %vm709, %v711, %v707
      %v713 = vmul.f32 1.0, %v712
      %714 = vst [vmem:[%s175] sm:$0xff] %v488
      %715 = vst [vmem:[%s175 + $0x8] sm:$0xff] %v503
      %716 = vst [vmem:[%s175 + $0x10] sm:$0xff] %v518
      %717 = vst [vmem:[%s175 + $0x18] sm:$0xff] %v533
      %718 = vst [vmem:[%s175 + $0x20] sm:$0xff] %v548
      %719 = vst [vmem:[%s175 + $0x28] sm:$0xff] %v563
      %720 = vst [vmem:[%s175 + $0x30] sm:$0xff] %v578
      %721 = vst [vmem:[%s175 + $0x38] sm:$0xff] %v593
      %722 = vst [vmem:[%s175 + $0x40] sm:$0xff] %v608
      %723 = vst [vmem:[%s175 + $0x48] sm:$0xff] %v623
      %724 = vst [vmem:[%s175 + $0x50] sm:$0xff] %v638
      %725 = vst [vmem:[%s175 + $0x58] sm:$0xff] %v653
      %726 = vst [vmem:[%s175 + $0x60] sm:$0xff] %v668
      %727 = vst [vmem:[%s175 + $0x68] sm:$0xff] %v683
      %728 = vst [vmem:[%s175 + $0x70] sm:$0xff] %v698
      %729 = vst [vmem:[%s175 + $0x78] sm:$0xff] %v713
      %s730 = smul.u32 16, %s14
      %p731 = scmp.lt.s32.totalorder %s730, 47
      %s732 = scalar_select %p731, %s730, 47
      %s733 = smul.addr %s732, 8
      %s734 = scalar_lea.vmem %s3, %s733
      // Predicated region
      $region33: #{_compute.27} parent=31 // pred_check
        %p735 = pneg %p100
      $region34: #{_compute.27} parent=31 // pred_check_branch
        %737 = sbr.rel (%p735) target = $region36
      $region35: #{_compute.27} parent=31 // pred_region
        %s738 = smul.u32 16, %s14
      $region36: #{_compute.27} parent=31 // pred_fallthru
        _
    $region32: #{_compute.27} parent=5 // pred_fallthru
      _
    %p739 = scmp.le.s32.totalorder 2, %s9
    // Predicated region
    $region37: #{_compute.27} parent=5 // pred_check
      %p740 = pneg %p739
    $region38: #{_compute.27} parent=5 // pred_check_branch
      %742 = sbr.rel (%p740) target = $region40
    $region39: #{_compute.27} parent=5 // pred_region
      %s743 = ssub.s32 %s9, 2
      // Predicated region
      $region41: #{_compute.27} parent=39 // pred_check
        %p744 = pneg %p106
      $region42: #{_compute.27} parent=39 // pred_check_branch
        %746 = sbr.rel (%p744) target = $region44
      $region43: #{_compute.27} parent=39 // pred_region
        %s747 = smul.u32 16, %s15
        %p748 = scmp.lt.s32.totalorder %s747, 47
        %s749 = scalar_select %p748, %s747, 47
        %s750 = smul.addr %s749, 8
        %s751 = scalar_lea.vmem %s3, %s750
      $region44: #{_compute.27} parent=39 // pred_fallthru
        _
    $region40: #{_compute.27} parent=5 // pred_fallthru
      _
  $region6: #{_compute.27} parent=0 // loop_footer
    %s13 = sadd.s32 1, %s9
  $region7: #{_compute.27} parent=0 // loop_footer_branch
    %8 = sbr.rel target = $region3
  $region8: #{_compute.27} parent=0 // loop_exit
    _

</llo_original>
